<compile_context>
chip_gen: v7x
topology: tpu7x:2x2x1
jax: 0.10.0
libtpu: 0.0.40
codegen_flags: <defaults>
</compile_context>

<pallas_src>
import functools

import numpy as np
import jax
import jax.numpy as jnp
from jax import lax
from jax.experimental import pallas as pl
from jax.experimental.pallas import tpu as pltpu

EPS = 1e-5


# ----------------------------- BN folding (glue) -----------------------------
def _bn_fold(gamma, beta, mean, var):
    scale = gamma / jnp.sqrt(var + EPS)
    bias = beta - mean * scale
    return (scale.reshape(1, -1).astype(jnp.float32),
            bias.reshape(1, -1).astype(jnp.float32))


# ------------------------------- Pallas kernel --------------------------------
def _aspp_fused_kernel(xp_ref, w0_ref, wa_ref, bb_ref, wpr_ref, pb_ref, o_ref,
                       *, th, W, Cin, Cout, rates, dmax, mxu_dtype):
    """Fused ASPP: 1x1 branch + dilated 3x3 branches + projection for one
    (batch, row-tile) block.  All BN scales are pre-folded into the weights."""
    i = pl.program_id(1)
    row0 = pl.multiple_of(i * th, th)
    M = th * W

    # One dynamic-start load of the halo row slab covering every tap of every
    # branch for this row tile; all per-tap slices below are static.
    slab = xp_ref[0, pl.ds(row0, th + 2 * dmax), :, :]   # (th+2*dmax, Wp, Cin)

    def tap(d, ky, kx):
        r0 = dmax + (ky - 1) * d
        c0 = dmax + (kx - 1) * d
        return slab[r0:r0 + th, c0:c0 + W, :].reshape(M, Cin)

    x_center = tap(0, 1, 1)                              # shared center tap

    # --- branch 0: 1x1 conv (BN scale folded) + bias + ReLU -------------------
    y0 = jnp.dot(x_center, w0_ref[...], preferred_element_type=jnp.float32)
    y0 = jnp.maximum(y0 + bb_ref[0:1, :], 0.0)
    # projection contribution of branch 0 (fp32 accumulator)
    acc = jnp.dot(y0.astype(mxu_dtype), wpr_ref[0:Cout, :],
                  preferred_element_type=jnp.float32)

    # --- atrous branches: 3x3 dilated conv + bias + ReLU, then projection -----
    for r, d in enumerate(rates):
        conv = jnp.zeros((M, Cout), jnp.float32)
        for ky in range(3):
            for kx in range(3):
                patch = x_center if (ky == 1 and kx == 1) else tap(d, ky, kx)
                w_lo = (r * 9 + ky * 3 + kx) * Cin
                conv = conv + jnp.dot(patch, wa_ref[w_lo:w_lo + Cin, :],
                                      preferred_element_type=jnp.float32)
        yb = jnp.maximum(conv + bb_ref[r + 1:r + 2, :], 0.0)
        acc = acc + jnp.dot(yb.astype(mxu_dtype),
                            wpr_ref[(r + 1) * Cout:(r + 2) * Cout, :],
                            preferred_element_type=jnp.float32)

    # pooled-branch projection contribution + projection BN bias (per batch)
    acc = acc + pb_ref[0]
    o_ref[0] = jnp.maximum(acc, 0.0).reshape(th, W, Cout).astype(o_ref.dtype)


def _pick_row_tile(H, target=8):
    for t in range(min(target, H), 0, -1):
        if H % t == 0:
            return t
    return H


# ------------------------------- ASPP forward ---------------------------------
def aspp_forward(x_nchw, params, *, row_tile=8, mxu_dtype=jnp.float32):
    x = jnp.transpose(x_nchw, (0, 2, 3, 1)).astype(jnp.float32)   # NCHW -> NHWC
    N, H, W, Cin = x.shape

    w0, s0, b0 = params["branch0"]
    Cout = w0.shape[1]
    rates = tuple(d for (_, _, _, d) in params["atrous"])
    R = len(rates)
    dmax = max(rates)

    # --- fold BN scales into conv weights (bias-only epilogue in kernel) ------
    w0f = (w0 * s0).astype(mxu_dtype)                              # (Cin, Cout)
    wa_rows, bb_rows = [], [b0.reshape(1, Cout)]
    for (w, s, b, _) in params["atrous"]:
        wa_rows.append((w * s.reshape(1, 1, 1, Cout)).reshape(9 * Cin, Cout))
        bb_rows.append(b.reshape(1, Cout))
    waf = jnp.concatenate(wa_rows, axis=0).astype(mxu_dtype)       # (R*9*Cin, Cout)
    bb = jnp.concatenate(bb_rows, axis=0).astype(jnp.float32)      # (1+R, Cout)

    wpr, spr, bpr = params["project"]
    wprf = wpr * spr                                               # fold proj BN
    wprf_main = wprf[:(1 + R) * Cout, :].astype(mxu_dtype)         # ((1+R)*Cout, Cout)
    wprf_pool = wprf[(1 + R) * Cout:, :]                           # (Cout, Cout)

    # --- pooling branch in plain JAX -> per-batch projection bias -------------
    wp, sp, bp = params["pool"]
    pooled = jnp.mean(x, axis=(1, 2))                              # (N, Cin)
    y_pool = jnp.maximum(
        jnp.einsum("nc,co->no", pooled, wp * sp,
                   precision=lax.Precision.HIGHEST) + bp, 0.0)     # (N, Cout)
    pb = (jnp.einsum("nc,co->no", y_pool, wprf_pool,
                     precision=lax.Precision.HIGHEST) + bpr)       # (N, Cout)
    pb = pb.reshape(N, 1, Cout).astype(jnp.float32)

    # --- single shared pad (max dilation), reused by every atrous branch ------
    xp = jnp.pad(x, ((0, 0), (dmax, dmax), (dmax, dmax), (0, 0))).astype(mxu_dtype)
    Hp, Wp = H + 2 * dmax, W + 2 * dmax

    th = _pick_row_tile(H, row_tile)
    kern = functools.partial(_aspp_fused_kernel, th=th, W=W, Cin=Cin, Cout=Cout,
                             rates=rates, dmax=dmax, mxu_dtype=mxu_dtype)

    out = pl.pallas_call(
        kern,
        out_shape=jax.ShapeDtypeStruct((N, H, W, Cout), jnp.float32),
        grid_spec=pltpu.PrefetchScalarGridSpec(
            num_scalar_prefetch=0,
            grid=(N, H // th),
            in_specs=[
                # padded image: indexed only by batch -> resident across row tiles
                pl.BlockSpec((1, Hp, Wp, Cin), lambda n, i: (n, 0, 0, 0)),
                pl.BlockSpec((Cin, Cout), lambda n, i: (0, 0)),
                pl.BlockSpec((R * 9 * Cin, Cout), lambda n, i: (0, 0)),
                pl.BlockSpec((1 + R, Cout), lambda n, i: (0, 0)),
                pl.BlockSpec(((1 + R) * Cout, Cout), lambda n, i: (0, 0)),
                pl.BlockSpec((1, 1, Cout), lambda n, i: (n, 0, 0)),
            ],
            out_specs=pl.BlockSpec((1, th, W, Cout), lambda n, i: (n, i, 0, 0)),
        ),
        compiler_params=pltpu.CompilerParams(
            dimension_semantics=("parallel", "parallel")),
    )(xp, w0f, waf, bb, wprf_main, pb)

    return jnp.transpose(out, (0, 3, 1, 2))                        # NHWC -> NCHW


# ----------------------------- pure-JAX reference -----------------------------
def _conv_nhwc(x, w, d=1, pad=0):
    return lax.conv_general_dilated(
        x, w, window_strides=(1, 1), padding=[(pad, pad), (pad, pad)],
        rhs_dilation=(d, d), dimension_numbers=("NHWC", "HWIO", "NHWC"),
        precision=lax.Precision.HIGHEST)


def aspp_reference(x_nchw, params, rates):
    x = jnp.transpose(x_nchw, (0, 2, 3, 1))
    N, H, W, Cin = x.shape
    outs = []

    w0, s0, b0 = params["branch0"]
    y0 = _conv_nhwc(x, w0.reshape(1, 1, *w0.shape))
    outs.append(jnp.maximum(y0 * s0 + b0, 0.0))

    for (w, s, b, d) in params["atrous"]:
        y = _conv_nhwc(x, w, d=d, pad=d)
        outs.append(jnp.maximum(y * s + b, 0.0))

    wp, sp, bp = params["pool"]
    pooled = jnp.mean(x, axis=(1, 2))                              # (N, Cin)
    yp = jnp.maximum(jnp.einsum("nc,co->no", pooled, wp,
                                precision=lax.Precision.HIGHEST) * sp + bp, 0.0)
    Cout = yp.shape[-1]
    outs.append(jnp.broadcast_to(yp[:, None, None, :], (N, H, W, Cout)))

    cat = jnp.concatenate(outs, axis=-1)
    wpr, spr, bpr = params["project"]
    y = jnp.maximum(jnp.einsum("nhwk,kc->nhwc", cat, wpr,
                               precision=lax.Precision.HIGHEST) * spr + bpr, 0.0)
    return jnp.transpose(y, (0, 3, 1, 2))


# --------------------------------- params -------------------------------------
def _bn_params(key, C):
    k1, k2, k3, k4 = jax.random.split(key, 4)
    gamma = jax.random.uniform(k1, (C,), minval=0.5, maxval=1.5)
    beta = 0.1 * jax.random.normal(k2, (C,))
    mean = 0.1 * jax.random.normal(k3, (C,))
    var = jax.random.uniform(k4, (C,), minval=0.5, maxval=1.5)
    return _bn_fold(gamma, beta, mean, var)


def make_aspp_params(key, in_channels, out_channels, rates):
    keys = jax.random.split(key, 4 + 2 * len(rates))
    params = {}
    # branch 0: 1x1 conv weight stored as (Cin, Cout)
    w0 = 0.1 * jax.random.normal(keys[0], (in_channels, out_channels), jnp.float32)
    params["branch0"] = (w0, *_bn_params(keys[1], out_channels))
    # atrous branches: 3x3 conv weights in HWIO
    atrous = []
    for i, d in enumerate(rates):
        w = 0.1 * jax.random.normal(keys[2 + 2 * i],
                                    (3, 3, in_channels, out_channels), jnp.float32)
        s, b = _bn_params(keys[3 + 2 * i], out_channels)
        atrous.append((w, s, b, d))
    params["atrous"] = atrous
    # pooling branch: 1x1 conv weight (Cin, Cout)
    wp = 0.1 * jax.random.normal(keys[2 + 2 * len(rates)],
                                 (in_channels, out_channels), jnp.float32)
    params["pool"] = (wp, *_bn_params(keys[3 + 2 * len(rates)], out_channels))
    # projection: 1x1 conv over concatenated channels
    n_branch = len(rates) + 2
    kpw, kpb = jax.random.split(jax.random.fold_in(key, 777))
    wpr = 0.1 * jax.random.normal(kpw, (n_branch * out_channels, out_channels),
                                  jnp.float32)
    params["project"] = (wpr, *_bn_params(kpb, out_channels))
    return params


# ----------------------------------- main --------------------------------------
if __name__ == "__main__":
    N, Cin, H, W = 2, 8, 16, 16
    Cout = 32
    rates = (2, 4, 6)

    key = jax.random.PRNGKey(0)
    kx, kp = jax.random.split(key)
    x = jax.random.normal(kx, (N, Cin, H, W), jnp.float32)
    params = make_aspp_params(kp, Cin, Cout, rates)

    out = aspp_forward(x, params)
    out = jax.block_until_ready(out)

    ref = jax.block_until_ready(aspp_reference(x, params, rates))

    assert out.shape == (N, Cout, H, W), out.shape
    np.testing.assert_allclose(np.asarray(out), np.asarray(ref),
                               rtol=5e-3, atol=5e-3)
    print("KERNEL_OK")
</pallas_src>

<mosaic_0001>
module attributes {stable_mosaic.version = 11 : i64} {
  func.func @_aspp_fused_kernel(%arg0: i32, %arg1: i32, %arg2: memref<1x28x28x8xf32, #tpu.memory_space<vmem>>, %arg3: memref<8x32xf32, #tpu.memory_space<vmem>>, %arg4: memref<216x32xf32, #tpu.memory_space<vmem>>, %arg5: memref<4x32xf32, #tpu.memory_space<vmem>>, %arg6: memref<128x32xf32, #tpu.memory_space<vmem>>, %arg7: memref<1x1x32xf32, #tpu.memory_space<vmem>>, %arg8: memref<1x8x16x32xf32, #tpu.memory_space<vmem>>) attributes {dimension_semantics = [#tpu.dimension_semantics<parallel>, #tpu.dimension_semantics<parallel>], iteration_bounds = array<i64: 2, 2>, scalar_prefetch = 0 : i64, scratch_operands = 0 : i64, tpu.core_type = #tpu.core_type<tc>, window_params = [{transform_indices = @transform_0, window_bounds = array<i64: 1, 28, 28, 8>}, {pipeline_mode = #tpu.pipeline_mode<synchronous>, transform_indices = @transform_1, window_bounds = array<i64: 8, 32>}, {pipeline_mode = #tpu.pipeline_mode<synchronous>, transform_indices = @transform_2, window_bounds = array<i64: 216, 32>}, {pipeline_mode = #tpu.pipeline_mode<synchronous>, transform_indices = @transform_3, window_bounds = array<i64: 4, 32>}, {pipeline_mode = #tpu.pipeline_mode<synchronous>, transform_indices = @transform_4, window_bounds = array<i64: 128, 32>}, {transform_indices = @transform_5, window_bounds = array<i64: 1, 1, 32>}, {transform_indices = @transform_6, window_bounds = array<i64: 1, 8, 16, 32>}]} {
    %c8_i32 = arith.constant 8 : i32
    %0 = arith.muli %arg1, %c8_i32 : i32
    %1 = tpu.assume_multiple %0, 8 : i32
    %c0 = arith.constant 0 : index
    %2 = arith.index_cast %1 : i32 to index
    %c0_0 = arith.constant 0 : index
    %c0_1 = arith.constant 0 : index
    %3 = vector.load %arg2[%c0, %2, %c0_0, %c0_1] : memref<1x28x28x8xf32, #tpu.memory_space<vmem>>, vector<1x20x28x8xf32>
    %4 = vector.shape_cast %3 : vector<1x20x28x8xf32> to vector<20x28x8xf32>
    %5 = vector.extract_strided_slice %4 {offsets = [6, 6, 0], sizes = [8, 16, 8], strides = [1, 1, 1]} : vector<20x28x8xf32> to vector<8x16x8xf32>
    %6 = vector.shape_cast %5 : vector<8x16x8xf32> to vector<128x8xf32>
    %c0_2 = arith.constant 0 : index
    %c0_3 = arith.constant 0 : index
    %7 = vector.load %arg3[%c0_2, %c0_3] : memref<8x32xf32, #tpu.memory_space<vmem>>, vector<8x32xf32>
    %cst = arith.constant dense<0.000000e+00> : vector<128x32xf32>
    %8 = tpu.matmul %6, %7, %cst {dimension_numbers = #tpu.dot_dimension_numbers<[1], [0], [0], [1], [0, 0, 1, 1], [], []>} : vector<128x8xf32>, vector<8x32xf32>, vector<128x32xf32> -> vector<128x32xf32>
    %c0_4 = arith.constant 0 : index
    %c0_5 = arith.constant 0 : index
    %9 = vector.load %arg5[%c0_4, %c0_5] : memref<4x32xf32, #tpu.memory_space<vmem>>, vector<1x32xf32>
    %10 = vector.broadcast %9 : vector<1x32xf32> to vector<128x32xf32>
    %11 = arith.addf %8, %10 : vector<128x32xf32>
    %cst_6 = arith.constant 0.000000e+00 : f32
    %12 = vector.broadcast %cst_6 : f32 to vector<128x32xf32>
    %13 = arith.maximumf %11, %12 : vector<128x32xf32>
    %c0_7 = arith.constant 0 : index
    %c0_8 = arith.constant 0 : index
    %14 = vector.load %arg6[%c0_7, %c0_8] : memref<128x32xf32, #tpu.memory_space<vmem>>, vector<32x32xf32>
    %cst_9 = arith.constant dense<0.000000e+00> : vector<128x32xf32>
    %15 = tpu.matmul %13, %14, %cst_9 {dimension_numbers = #tpu.dot_dimension_numbers<[1], [0], [0], [1], [0, 0, 1, 1], [], []>} : vector<128x32xf32>, vector<32x32xf32>, vector<128x32xf32> -> vector<128x32xf32>
    %cst_10 = arith.constant 0.000000e+00 : f32
    %16 = vector.broadcast %cst_10 : f32 to vector<128x32xf32>
    %17 = vector.extract_strided_slice %4 {offsets = [4, 4, 0], sizes = [8, 16, 8], strides = [1, 1, 1]} : vector<20x28x8xf32> to vector<8x16x8xf32>
    %18 = vector.shape_cast %17 : vector<8x16x8xf32> to vector<128x8xf32>
    %c0_11 = arith.constant 0 : index
    %c0_12 = arith.constant 0 : index
    %19 = vector.load %arg4[%c0_11, %c0_12] : memref<216x32xf32, #tpu.memory_space<vmem>>, vector<8x32xf32>
    %cst_13 = arith.constant dense<0.000000e+00> : vector<128x32xf32>
    %20 = tpu.matmul %18, %19, %cst_13 {dimension_numbers = #tpu.dot_dimension_numbers<[1], [0], [0], [1], [0, 0, 1, 1], [], []>} : vector<128x8xf32>, vector<8x32xf32>, vector<128x32xf32> -> vector<128x32xf32>
    %21 = arith.addf %16, %20 : vector<128x32xf32>
    %22 = vector.extract_strided_slice %4 {offsets = [4, 6, 0], sizes = [8, 16, 8], strides = [1, 1, 1]} : vector<20x28x8xf32> to vector<8x16x8xf32>
    %23 = vector.shape_cast %22 : vector<8x16x8xf32> to vector<128x8xf32>
    %c8 = arith.constant 8 : index
    %c0_14 = arith.constant 0 : index
    %24 = vector.load %arg4[%c8, %c0_14] : memref<216x32xf32, #tpu.memory_space<vmem>>, vector<8x32xf32>
    %cst_15 = arith.constant dense<0.000000e+00> : vector<128x32xf32>
    %25 = tpu.matmul %23, %24, %cst_15 {dimension_numbers = #tpu.dot_dimension_numbers<[1], [0], [0], [1], [0, 0, 1, 1], [], []>} : vector<128x8xf32>, vector<8x32xf32>, vector<128x32xf32> -> vector<128x32xf32>
    %26 = arith.addf %21, %25 : vector<128x32xf32>
    %27 = vector.extract_strided_slice %4 {offsets = [4, 8, 0], sizes = [8, 16, 8], strides = [1, 1, 1]} : vector<20x28x8xf32> to vector<8x16x8xf32>
    %28 = vector.shape_cast %27 : vector<8x16x8xf32> to vector<128x8xf32>
    %c16 = arith.constant 16 : index
    %c0_16 = arith.constant 0 : index
    %29 = vector.load %arg4[%c16, %c0_16] : memref<216x32xf32, #tpu.memory_space<vmem>>, vector<8x32xf32>
    %cst_17 = arith.constant dense<0.000000e+00> : vector<128x32xf32>
    %30 = tpu.matmul %28, %29, %cst_17 {dimension_numbers = #tpu.dot_dimension_numbers<[1], [0], [0], [1], [0, 0, 1, 1], [], []>} : vector<128x8xf32>, vector<8x32xf32>, vector<128x32xf32> -> vector<128x32xf32>
    %31 = arith.addf %26, %30 : vector<128x32xf32>
    %32 = vector.extract_strided_slice %4 {offsets = [6, 4, 0], sizes = [8, 16, 8], strides = [1, 1, 1]} : vector<20x28x8xf32> to vector<8x16x8xf32>
    %33 = vector.shape_cast %32 : vector<8x16x8xf32> to vector<128x8xf32>
    %c24 = arith.constant 24 : index
    %c0_18 = arith.constant 0 : index
    %34 = vector.load %arg4[%c24, %c0_18] : memref<216x32xf32, #tpu.memory_space<vmem>>, vector<8x32xf32>
    %cst_19 = arith.constant dense<0.000000e+00> : vector<128x32xf32>
    %35 = tpu.matmul %33, %34, %cst_19 {dimension_numbers = #tpu.dot_dimension_numbers<[1], [0], [0], [1], [0, 0, 1, 1], [], []>} : vector<128x8xf32>, vector<8x32xf32>, vector<128x32xf32> -> vector<128x32xf32>
    %36 = arith.addf %31, %35 : vector<128x32xf32>
    %c32 = arith.constant 32 : index
    %c0_20 = arith.constant 0 : index
    %37 = vector.load %arg4[%c32, %c0_20] : memref<216x32xf32, #tpu.memory_space<vmem>>, vector<8x32xf32>
    %cst_21 = arith.constant dense<0.000000e+00> : vector<128x32xf32>
    %38 = tpu.matmul %6, %37, %cst_21 {dimension_numbers = #tpu.dot_dimension_numbers<[1], [0], [0], [1], [0, 0, 1, 1], [], []>} : vector<128x8xf32>, vector<8x32xf32>, vector<128x32xf32> -> vector<128x32xf32>
    %39 = arith.addf %36, %38 : vector<128x32xf32>
    %40 = vector.extract_strided_slice %4 {offsets = [6, 8, 0], sizes = [8, 16, 8], strides = [1, 1, 1]} : vector<20x28x8xf32> to vector<8x16x8xf32>
    %41 = vector.shape_cast %40 : vector<8x16x8xf32> to vector<128x8xf32>
    %c40 = arith.constant 40 : index
    %c0_22 = arith.constant 0 : index
    %42 = vector.load %arg4[%c40, %c0_22] : memref<216x32xf32, #tpu.memory_space<vmem>>, vector<8x32xf32>
    %cst_23 = arith.constant dense<0.000000e+00> : vector<128x32xf32>
    %43 = tpu.matmul %41, %42, %cst_23 {dimension_numbers = #tpu.dot_dimension_numbers<[1], [0], [0], [1], [0, 0, 1, 1], [], []>} : vector<128x8xf32>, vector<8x32xf32>, vector<128x32xf32> -> vector<128x32xf32>
    %44 = arith.addf %39, %43 : vector<128x32xf32>
    %45 = vector.extract_strided_slice %4 {offsets = [8, 4, 0], sizes = [8, 16, 8], strides = [1, 1, 1]} : vector<20x28x8xf32> to vector<8x16x8xf32>
    %46 = vector.shape_cast %45 : vector<8x16x8xf32> to vector<128x8xf32>
    %c48 = arith.constant 48 : index
    %c0_24 = arith.constant 0 : index
    %47 = vector.load %arg4[%c48, %c0_24] : memref<216x32xf32, #tpu.memory_space<vmem>>, vector<8x32xf32>
    %cst_25 = arith.constant dense<0.000000e+00> : vector<128x32xf32>
    %48 = tpu.matmul %46, %47, %cst_25 {dimension_numbers = #tpu.dot_dimension_numbers<[1], [0], [0], [1], [0, 0, 1, 1], [], []>} : vector<128x8xf32>, vector<8x32xf32>, vector<128x32xf32> -> vector<128x32xf32>
    %49 = arith.addf %44, %48 : vector<128x32xf32>
    %50 = vector.extract_strided_slice %4 {offsets = [8, 6, 0], sizes = [8, 16, 8], strides = [1, 1, 1]} : vector<20x28x8xf32> to vector<8x16x8xf32>
    %51 = vector.shape_cast %50 : vector<8x16x8xf32> to vector<128x8xf32>
    %c56 = arith.constant 56 : index
    %c0_26 = arith.constant 0 : index
    %52 = vector.load %arg4[%c56, %c0_26] : memref<216x32xf32, #tpu.memory_space<vmem>>, vector<8x32xf32>
    %cst_27 = arith.constant dense<0.000000e+00> : vector<128x32xf32>
    %53 = tpu.matmul %51, %52, %cst_27 {dimension_numbers = #tpu.dot_dimension_numbers<[1], [0], [0], [1], [0, 0, 1, 1], [], []>} : vector<128x8xf32>, vector<8x32xf32>, vector<128x32xf32> -> vector<128x32xf32>
    %54 = arith.addf %49, %53 : vector<128x32xf32>
    %55 = vector.extract_strided_slice %4 {offsets = [8, 8, 0], sizes = [8, 16, 8], strides = [1, 1, 1]} : vector<20x28x8xf32> to vector<8x16x8xf32>
    %56 = vector.shape_cast %55 : vector<8x16x8xf32> to vector<128x8xf32>
    %c64 = arith.constant 64 : index
    %c0_28 = arith.constant 0 : index
    %57 = vector.load %arg4[%c64, %c0_28] : memref<216x32xf32, #tpu.memory_space<vmem>>, vector<8x32xf32>
    %cst_29 = arith.constant dense<0.000000e+00> : vector<128x32xf32>
    %58 = tpu.matmul %56, %57, %cst_29 {dimension_numbers = #tpu.dot_dimension_numbers<[1], [0], [0], [1], [0, 0, 1, 1], [], []>} : vector<128x8xf32>, vector<8x32xf32>, vector<128x32xf32> -> vector<128x32xf32>
    %59 = arith.addf %54, %58 : vector<128x32xf32>
    %c1 = arith.constant 1 : index
    %c0_30 = arith.constant 0 : index
    %60 = vector.load %arg5[%c1, %c0_30] : memref<4x32xf32, #tpu.memory_space<vmem>>, vector<1x32xf32>
    %61 = vector.broadcast %60 : vector<1x32xf32> to vector<128x32xf32>
    %62 = arith.addf %59, %61 : vector<128x32xf32>
    %cst_31 = arith.constant 0.000000e+00 : f32
    %63 = vector.broadcast %cst_31 : f32 to vector<128x32xf32>
    %64 = arith.maximumf %62, %63 : vector<128x32xf32>
    %c32_32 = arith.constant 32 : index
    %c0_33 = arith.constant 0 : index
    %65 = vector.load %arg6[%c32_32, %c0_33] : memref<128x32xf32, #tpu.memory_space<vmem>>, vector<32x32xf32>
    %cst_34 = arith.constant dense<0.000000e+00> : vector<128x32xf32>
    %66 = tpu.matmul %64, %65, %cst_34 {dimension_numbers = #tpu.dot_dimension_numbers<[1], [0], [0], [1], [0, 0, 1, 1], [], []>} : vector<128x32xf32>, vector<32x32xf32>, vector<128x32xf32> -> vector<128x32xf32>
    %67 = arith.addf %15, %66 : vector<128x32xf32>
    %cst_35 = arith.constant 0.000000e+00 : f32
    %68 = vector.broadcast %cst_35 : f32 to vector<128x32xf32>
    %69 = vector.extract_strided_slice %4 {offsets = [2, 2, 0], sizes = [8, 16, 8], strides = [1, 1, 1]} : vector<20x28x8xf32> to vector<8x16x8xf32>
    %70 = vector.shape_cast %69 : vector<8x16x8xf32> to vector<128x8xf32>
    %c72 = arith.constant 72 : index
    %c0_36 = arith.constant 0 : index
    %71 = vector.load %arg4[%c72, %c0_36] : memref<216x32xf32, #tpu.memory_space<vmem>>, vector<8x32xf32>
    %cst_37 = arith.constant dense<0.000000e+00> : vector<128x32xf32>
    %72 = tpu.matmul %70, %71, %cst_37 {dimension_numbers = #tpu.dot_dimension_numbers<[1], [0], [0], [1], [0, 0, 1, 1], [], []>} : vector<128x8xf32>, vector<8x32xf32>, vector<128x32xf32> -> vector<128x32xf32>
    %73 = arith.addf %68, %72 : vector<128x32xf32>
    %74 = vector.extract_strided_slice %4 {offsets = [2, 6, 0], sizes = [8, 16, 8], strides = [1, 1, 1]} : vector<20x28x8xf32> to vector<8x16x8xf32>
    %75 = vector.shape_cast %74 : vector<8x16x8xf32> to vector<128x8xf32>
    %c80 = arith.constant 80 : index
    %c0_38 = arith.constant 0 : index
    %76 = vector.load %arg4[%c80, %c0_38] : memref<216x32xf32, #tpu.memory_space<vmem>>, vector<8x32xf32>
    %cst_39 = arith.constant dense<0.000000e+00> : vector<128x32xf32>
    %77 = tpu.matmul %75, %76, %cst_39 {dimension_numbers = #tpu.dot_dimension_numbers<[1], [0], [0], [1], [0, 0, 1, 1], [], []>} : vector<128x8xf32>, vector<8x32xf32>, vector<128x32xf32> -> vector<128x32xf32>
    %78 = arith.addf %73, %77 : vector<128x32xf32>
    %79 = vector.extract_strided_slice %4 {offsets = [2, 10, 0], sizes = [8, 16, 8], strides = [1, 1, 1]} : vector<20x28x8xf32> to vector<8x16x8xf32>
    %80 = vector.shape_cast %79 : vector<8x16x8xf32> to vector<128x8xf32>
    %c88 = arith.constant 88 : index
    %c0_40 = arith.constant 0 : index
    %81 = vector.load %arg4[%c88, %c0_40] : memref<216x32xf32, #tpu.memory_space<vmem>>, vector<8x32xf32>
    %cst_41 = arith.constant dense<0.000000e+00> : vector<128x32xf32>
    %82 = tpu.matmul %80, %81, %cst_41 {dimension_numbers = #tpu.dot_dimension_numbers<[1], [0], [0], [1], [0, 0, 1, 1], [], []>} : vector<128x8xf32>, vector<8x32xf32>, vector<128x32xf32> -> vector<128x32xf32>
    %83 = arith.addf %78, %82 : vector<128x32xf32>
    %84 = vector.extract_strided_slice %4 {offsets = [6, 2, 0], sizes = [8, 16, 8], strides = [1, 1, 1]} : vector<20x28x8xf32> to vector<8x16x8xf32>
    %85 = vector.shape_cast %84 : vector<8x16x8xf32> to vector<128x8xf32>
    %c96 = arith.constant 96 : index
    %c0_42 = arith.constant 0 : index
    %86 = vector.load %arg4[%c96, %c0_42] : memref<216x32xf32, #tpu.memory_space<vmem>>, vector<8x32xf32>
    %cst_43 = arith.constant dense<0.000000e+00> : vector<128x32xf32>
    %87 = tpu.matmul %85, %86, %cst_43 {dimension_numbers = #tpu.dot_dimension_numbers<[1], [0], [0], [1], [0, 0, 1, 1], [], []>} : vector<128x8xf32>, vector<8x32xf32>, vector<128x32xf32> -> vector<128x32xf32>
    %88 = arith.addf %83, %87 : vector<128x32xf32>
    %c104 = arith.constant 104 : index
    %c0_44 = arith.constant 0 : index
    %89 = vector.load %arg4[%c104, %c0_44] : memref<216x32xf32, #tpu.memory_space<vmem>>, vector<8x32xf32>
    %cst_45 = arith.constant dense<0.000000e+00> : vector<128x32xf32>
    %90 = tpu.matmul %6, %89, %cst_45 {dimension_numbers = #tpu.dot_dimension_numbers<[1], [0], [0], [1], [0, 0, 1, 1], [], []>} : vector<128x8xf32>, vector<8x32xf32>, vector<128x32xf32> -> vector<128x32xf32>
    %91 = arith.addf %88, %90 : vector<128x32xf32>
    %92 = vector.extract_strided_slice %4 {offsets = [6, 10, 0], sizes = [8, 16, 8], strides = [1, 1, 1]} : vector<20x28x8xf32> to vector<8x16x8xf32>
    %93 = vector.shape_cast %92 : vector<8x16x8xf32> to vector<128x8xf32>
    %c112 = arith.constant 112 : index
    %c0_46 = arith.constant 0 : index
    %94 = vector.load %arg4[%c112, %c0_46] : memref<216x32xf32, #tpu.memory_space<vmem>>, vector<8x32xf32>
    %cst_47 = arith.constant dense<0.000000e+00> : vector<128x32xf32>
    %95 = tpu.matmul %93, %94, %cst_47 {dimension_numbers = #tpu.dot_dimension_numbers<[1], [0], [0], [1], [0, 0, 1, 1], [], []>} : vector<128x8xf32>, vector<8x32xf32>, vector<128x32xf32> -> vector<128x32xf32>
    %96 = arith.addf %91, %95 : vector<128x32xf32>
    %97 = vector.extract_strided_slice %4 {offsets = [10, 2, 0], sizes = [8, 16, 8], strides = [1, 1, 1]} : vector<20x28x8xf32> to vector<8x16x8xf32>
    %98 = vector.shape_cast %97 : vector<8x16x8xf32> to vector<128x8xf32>
    %c120 = arith.constant 120 : index
    %c0_48 = arith.constant 0 : index
    %99 = vector.load %arg4[%c120, %c0_48] : memref<216x32xf32, #tpu.memory_space<vmem>>, vector<8x32xf32>
    %cst_49 = arith.constant dense<0.000000e+00> : vector<128x32xf32>
    %100 = tpu.matmul %98, %99, %cst_49 {dimension_numbers = #tpu.dot_dimension_numbers<[1], [0], [0], [1], [0, 0, 1, 1], [], []>} : vector<128x8xf32>, vector<8x32xf32>, vector<128x32xf32> -> vector<128x32xf32>
    %101 = arith.addf %96, %100 : vector<128x32xf32>
    %102 = vector.extract_strided_slice %4 {offsets = [10, 6, 0], sizes = [8, 16, 8], strides = [1, 1, 1]} : vector<20x28x8xf32> to vector<8x16x8xf32>
    %103 = vector.shape_cast %102 : vector<8x16x8xf32> to vector<128x8xf32>
    %c128 = arith.constant 128 : index
    %c0_50 = arith.constant 0 : index
    %104 = vector.load %arg4[%c128, %c0_50] : memref<216x32xf32, #tpu.memory_space<vmem>>, vector<8x32xf32>
    %cst_51 = arith.constant dense<0.000000e+00> : vector<128x32xf32>
    %105 = tpu.matmul %103, %104, %cst_51 {dimension_numbers = #tpu.dot_dimension_numbers<[1], [0], [0], [1], [0, 0, 1, 1], [], []>} : vector<128x8xf32>, vector<8x32xf32>, vector<128x32xf32> -> vector<128x32xf32>
    %106 = arith.addf %101, %105 : vector<128x32xf32>
    %107 = vector.extract_strided_slice %4 {offsets = [10, 10, 0], sizes = [8, 16, 8], strides = [1, 1, 1]} : vector<20x28x8xf32> to vector<8x16x8xf32>
    %108 = vector.shape_cast %107 : vector<8x16x8xf32> to vector<128x8xf32>
    %c136 = arith.constant 136 : index
    %c0_52 = arith.constant 0 : index
    %109 = vector.load %arg4[%c136, %c0_52] : memref<216x32xf32, #tpu.memory_space<vmem>>, vector<8x32xf32>
    %cst_53 = arith.constant dense<0.000000e+00> : vector<128x32xf32>
    %110 = tpu.matmul %108, %109, %cst_53 {dimension_numbers = #tpu.dot_dimension_numbers<[1], [0], [0], [1], [0, 0, 1, 1], [], []>} : vector<128x8xf32>, vector<8x32xf32>, vector<128x32xf32> -> vector<128x32xf32>
    %111 = arith.addf %106, %110 : vector<128x32xf32>
    %c2 = arith.constant 2 : index
    %c0_54 = arith.constant 0 : index
    %112 = vector.load %arg5[%c2, %c0_54] : memref<4x32xf32, #tpu.memory_space<vmem>>, vector<1x32xf32>
    %113 = vector.broadcast %112 : vector<1x32xf32> to vector<128x32xf32>
    %114 = arith.addf %111, %113 : vector<128x32xf32>
    %cst_55 = arith.constant 0.000000e+00 : f32
    %115 = vector.broadcast %cst_55 : f32 to vector<128x32xf32>
    %116 = arith.maximumf %114, %115 : vector<128x32xf32>
    %c64_56 = arith.constant 64 : index
    %c0_57 = arith.constant 0 : index
    %117 = vector.load %arg6[%c64_56, %c0_57] : memref<128x32xf32, #tpu.memory_space<vmem>>, vector<32x32xf32>
    %cst_58 = arith.constant dense<0.000000e+00> : vector<128x32xf32>
    %118 = tpu.matmul %116, %117, %cst_58 {dimension_numbers = #tpu.dot_dimension_numbers<[1], [0], [0], [1], [0, 0, 1, 1], [], []>} : vector<128x32xf32>, vector<32x32xf32>, vector<128x32xf32> -> vector<128x32xf32>
    %119 = arith.addf %67, %118 : vector<128x32xf32>
    %cst_59 = arith.constant 0.000000e+00 : f32
    %120 = vector.broadcast %cst_59 : f32 to vector<128x32xf32>
    %121 = vector.extract_strided_slice %4 {offsets = [0, 0, 0], sizes = [8, 16, 8], strides = [1, 1, 1]} : vector<20x28x8xf32> to vector<8x16x8xf32>
    %122 = vector.shape_cast %121 : vector<8x16x8xf32> to vector<128x8xf32>
    %c144 = arith.constant 144 : index
    %c0_60 = arith.constant 0 : index
    %123 = vector.load %arg4[%c144, %c0_60] : memref<216x32xf32, #tpu.memory_space<vmem>>, vector<8x32xf32>
    %cst_61 = arith.constant dense<0.000000e+00> : vector<128x32xf32>
    %124 = tpu.matmul %122, %123, %cst_61 {dimension_numbers = #tpu.dot_dimension_numbers<[1], [0], [0], [1], [0, 0, 1, 1], [], []>} : vector<128x8xf32>, vector<8x32xf32>, vector<128x32xf32> -> vector<128x32xf32>
    %125 = arith.addf %120, %124 : vector<128x32xf32>
    %126 = vector.extract_strided_slice %4 {offsets = [0, 6, 0], sizes = [8, 16, 8], strides = [1, 1, 1]} : vector<20x28x8xf32> to vector<8x16x8xf32>
    %127 = vector.shape_cast %126 : vector<8x16x8xf32> to vector<128x8xf32>
    %c152 = arith.constant 152 : index
    %c0_62 = arith.constant 0 : index
    %128 = vector.load %arg4[%c152, %c0_62] : memref<216x32xf32, #tpu.memory_space<vmem>>, vector<8x32xf32>
    %cst_63 = arith.constant dense<0.000000e+00> : vector<128x32xf32>
    %129 = tpu.matmul %127, %128, %cst_63 {dimension_numbers = #tpu.dot_dimension_numbers<[1], [0], [0], [1], [0, 0, 1, 1], [], []>} : vector<128x8xf32>, vector<8x32xf32>, vector<128x32xf32> -> vector<128x32xf32>
    %130 = arith.addf %125, %129 : vector<128x32xf32>
    %131 = vector.extract_strided_slice %4 {offsets = [0, 12, 0], sizes = [8, 16, 8], strides = [1, 1, 1]} : vector<20x28x8xf32> to vector<8x16x8xf32>
    %132 = vector.shape_cast %131 : vector<8x16x8xf32> to vector<128x8xf32>
    %c160 = arith.constant 160 : index
    %c0_64 = arith.constant 0 : index
    %133 = vector.load %arg4[%c160, %c0_64] : memref<216x32xf32, #tpu.memory_space<vmem>>, vector<8x32xf32>
    %cst_65 = arith.constant dense<0.000000e+00> : vector<128x32xf32>
    %134 = tpu.matmul %132, %133, %cst_65 {dimension_numbers = #tpu.dot_dimension_numbers<[1], [0], [0], [1], [0, 0, 1, 1], [], []>} : vector<128x8xf32>, vector<8x32xf32>, vector<128x32xf32> -> vector<128x32xf32>
    %135 = arith.addf %130, %134 : vector<128x32xf32>
    %136 = vector.extract_strided_slice %4 {offsets = [6, 0, 0], sizes = [8, 16, 8], strides = [1, 1, 1]} : vector<20x28x8xf32> to vector<8x16x8xf32>
    %137 = vector.shape_cast %136 : vector<8x16x8xf32> to vector<128x8xf32>
    %c168 = arith.constant 168 : index
    %c0_66 = arith.constant 0 : index
    %138 = vector.load %arg4[%c168, %c0_66] : memref<216x32xf32, #tpu.memory_space<vmem>>, vector<8x32xf32>
    %cst_67 = arith.constant dense<0.000000e+00> : vector<128x32xf32>
    %139 = tpu.matmul %137, %138, %cst_67 {dimension_numbers = #tpu.dot_dimension_numbers<[1], [0], [0], [1], [0, 0, 1, 1], [], []>} : vector<128x8xf32>, vector<8x32xf32>, vector<128x32xf32> -> vector<128x32xf32>
    %140 = arith.addf %135, %139 : vector<128x32xf32>
    %c176 = arith.constant 176 : index
    %c0_68 = arith.constant 0 : index
    %141 = vector.load %arg4[%c176, %c0_68] : memref<216x32xf32, #tpu.memory_space<vmem>>, vector<8x32xf32>
    %cst_69 = arith.constant dense<0.000000e+00> : vector<128x32xf32>
    %142 = tpu.matmul %6, %141, %cst_69 {dimension_numbers = #tpu.dot_dimension_numbers<[1], [0], [0], [1], [0, 0, 1, 1], [], []>} : vector<128x8xf32>, vector<8x32xf32>, vector<128x32xf32> -> vector<128x32xf32>
    %143 = arith.addf %140, %142 : vector<128x32xf32>
    %144 = vector.extract_strided_slice %4 {offsets = [6, 12, 0], sizes = [8, 16, 8], strides = [1, 1, 1]} : vector<20x28x8xf32> to vector<8x16x8xf32>
    %145 = vector.shape_cast %144 : vector<8x16x8xf32> to vector<128x8xf32>
    %c184 = arith.constant 184 : index
    %c0_70 = arith.constant 0 : index
    %146 = vector.load %arg4[%c184, %c0_70] : memref<216x32xf32, #tpu.memory_space<vmem>>, vector<8x32xf32>
    %cst_71 = arith.constant dense<0.000000e+00> : vector<128x32xf32>
    %147 = tpu.matmul %145, %146, %cst_71 {dimension_numbers = #tpu.dot_dimension_numbers<[1], [0], [0], [1], [0, 0, 1, 1], [], []>} : vector<128x8xf32>, vector<8x32xf32>, vector<128x32xf32> -> vector<128x32xf32>
    %148 = arith.addf %143, %147 : vector<128x32xf32>
    %149 = vector.extract_strided_slice %4 {offsets = [12, 0, 0], sizes = [8, 16, 8], strides = [1, 1, 1]} : vector<20x28x8xf32> to vector<8x16x8xf32>
    %150 = vector.shape_cast %149 : vector<8x16x8xf32> to vector<128x8xf32>
    %c192 = arith.constant 192 : index
    %c0_72 = arith.constant 0 : index
    %151 = vector.load %arg4[%c192, %c0_72] : memref<216x32xf32, #tpu.memory_space<vmem>>, vector<8x32xf32>
    %cst_73 = arith.constant dense<0.000000e+00> : vector<128x32xf32>
    %152 = tpu.matmul %150, %151, %cst_73 {dimension_numbers = #tpu.dot_dimension_numbers<[1], [0], [0], [1], [0, 0, 1, 1], [], []>} : vector<128x8xf32>, vector<8x32xf32>, vector<128x32xf32> -> vector<128x32xf32>
    %153 = arith.addf %148, %152 : vector<128x32xf32>
    %154 = vector.extract_strided_slice %4 {offsets = [12, 6, 0], sizes = [8, 16, 8], strides = [1, 1, 1]} : vector<20x28x8xf32> to vector<8x16x8xf32>
    %155 = vector.shape_cast %154 : vector<8x16x8xf32> to vector<128x8xf32>
    %c200 = arith.constant 200 : index
    %c0_74 = arith.constant 0 : index
    %156 = vector.load %arg4[%c200, %c0_74] : memref<216x32xf32, #tpu.memory_space<vmem>>, vector<8x32xf32>
    %cst_75 = arith.constant dense<0.000000e+00> : vector<128x32xf32>
    %157 = tpu.matmul %155, %156, %cst_75 {dimension_numbers = #tpu.dot_dimension_numbers<[1], [0], [0], [1], [0, 0, 1, 1], [], []>} : vector<128x8xf32>, vector<8x32xf32>, vector<128x32xf32> -> vector<128x32xf32>
    %158 = arith.addf %153, %157 : vector<128x32xf32>
    %159 = vector.extract_strided_slice %4 {offsets = [12, 12, 0], sizes = [8, 16, 8], strides = [1, 1, 1]} : vector<20x28x8xf32> to vector<8x16x8xf32>
    %160 = vector.shape_cast %159 : vector<8x16x8xf32> to vector<128x8xf32>
    %c208 = arith.constant 208 : index
    %c0_76 = arith.constant 0 : index
    %161 = vector.load %arg4[%c208, %c0_76] : memref<216x32xf32, #tpu.memory_space<vmem>>, vector<8x32xf32>
    %cst_77 = arith.constant dense<0.000000e+00> : vector<128x32xf32>
    %162 = tpu.matmul %160, %161, %cst_77 {dimension_numbers = #tpu.dot_dimension_numbers<[1], [0], [0], [1], [0, 0, 1, 1], [], []>} : vector<128x8xf32>, vector<8x32xf32>, vector<128x32xf32> -> vector<128x32xf32>
    %163 = arith.addf %158, %162 : vector<128x32xf32>
    %c3 = arith.constant 3 : index
    %c0_78 = arith.constant 0 : index
    %164 = vector.load %arg5[%c3, %c0_78] : memref<4x32xf32, #tpu.memory_space<vmem>>, vector<1x32xf32>
    %165 = vector.broadcast %164 : vector<1x32xf32> to vector<128x32xf32>
    %166 = arith.addf %163, %165 : vector<128x32xf32>
    %cst_79 = arith.constant 0.000000e+00 : f32
    %167 = vector.broadcast %cst_79 : f32 to vector<128x32xf32>
    %168 = arith.maximumf %166, %167 : vector<128x32xf32>
    %c96_80 = arith.constant 96 : index
    %c0_81 = arith.constant 0 : index
    %169 = vector.load %arg6[%c96_80, %c0_81] : memref<128x32xf32, #tpu.memory_space<vmem>>, vector<32x32xf32>
    %cst_82 = arith.constant dense<0.000000e+00> : vector<128x32xf32>
    %170 = tpu.matmul %168, %169, %cst_82 {dimension_numbers = #tpu.dot_dimension_numbers<[1], [0], [0], [1], [0, 0, 1, 1], [], []>} : vector<128x32xf32>, vector<32x32xf32>, vector<128x32xf32> -> vector<128x32xf32>
    %171 = arith.addf %119, %170 : vector<128x32xf32>
    %c0_83 = arith.constant 0 : index
    %c0_84 = arith.constant 0 : index
    %c0_85 = arith.constant 0 : index
    %172 = vector.load %arg7[%c0_83, %c0_84, %c0_85] : memref<1x1x32xf32, #tpu.memory_space<vmem>>, vector<1x1x32xf32>
    %173 = vector.shape_cast %172 : vector<1x1x32xf32> to vector<1x32xf32>
    %174 = vector.broadcast %173 : vector<1x32xf32> to vector<128x32xf32>
    %175 = arith.addf %171, %174 : vector<128x32xf32>
    %cst_86 = arith.constant 0.000000e+00 : f32
    %176 = vector.broadcast %cst_86 : f32 to vector<128x32xf32>
    %177 = arith.maximumf %175, %176 : vector<128x32xf32>
    %178 = vector.shape_cast %177 : vector<128x32xf32> to vector<8x16x32xf32>
    %c0_87 = arith.constant 0 : index
    %c0_88 = arith.constant 0 : index
    %c0_89 = arith.constant 0 : index
    %c0_90 = arith.constant 0 : index
    %179 = vector.load %arg8[%c0_87, %c0_88, %c0_89, %c0_90] : memref<1x8x16x32xf32, #tpu.memory_space<vmem>>, vector<1x8x16x32xf32>
    %180 = vector.shape_cast %179 : vector<1x8x16x32xf32> to vector<8x16x32xf32>
    %181 = vector.shape_cast %178 : vector<8x16x32xf32> to vector<1x8x16x32xf32>
    tpu.vector_store %arg8[%c0_87, %c0_88, %c0_89, %c0_90], %181 {strides = array<i32>} : memref<1x8x16x32xf32, #tpu.memory_space<vmem>>, vector<1x8x16x32xf32>,
    return
  }
  func.func @transform_0(%arg0: i32, %arg1: i32) -> (i32, i32, i32, i32) {
    %c0_i32 = arith.constant 0 : i32
    %c0_i32_0 = arith.constant 0 : i32
    %c0_i32_1 = arith.constant 0 : i32
    %c0_i32_2 = arith.constant 0 : i32
    return %arg0, %c0_i32, %c0_i32_0, %c0_i32_1 : i32, i32, i32, i32
  }
  func.func @transform_1(%arg0: i32, %arg1: i32) -> (i32, i32) {
    %c0_i32 = arith.constant 0 : i32
    %c0_i32_0 = arith.constant 0 : i32
    %c0_i32_1 = arith.constant 0 : i32
    return %c0_i32, %c0_i32_0 : i32, i32
  }
  func.func @transform_2(%arg0: i32, %arg1: i32) -> (i32, i32) {
    %c0_i32 = arith.constant 0 : i32
    %c0_i32_0 = arith.constant 0 : i32
    %c0_i32_1 = arith.constant 0 : i32
    return %c0_i32, %c0_i32_0 : i32, i32
  }
  func.func @transform_3(%arg0: i32, %arg1: i32) -> (i32, i32) {
    %c0_i32 = arith.constant 0 : i32
    %c0_i32_0 = arith.constant 0 : i32
    %c0_i32_1 = arith.constant 0 : i32
    return %c0_i32, %c0_i32_0 : i32, i32
  }
  func.func @transform_4(%arg0: i32, %arg1: i32) -> (i32, i32) {
    %c0_i32 = arith.constant 0 : i32
    %c0_i32_0 = arith.constant 0 : i32
    %c0_i32_1 = arith.constant 0 : i32
    return %c0_i32, %c0_i32_0 : i32, i32
  }
  func.func @transform_5(%arg0: i32, %arg1: i32) -> (i32, i32, i32) {
    %c0_i32 = arith.constant 0 : i32
    %c0_i32_0 = arith.constant 0 : i32
    %c0_i32_1 = arith.constant 0 : i32
    return %arg0, %c0_i32, %c0_i32_0 : i32, i32, i32
  }
  func.func @transform_6(%arg0: i32, %arg1: i32) -> (i32, i32, i32, i32) {
    %c0_i32 = arith.constant 0 : i32
    %c0_i32_0 = arith.constant 0 : i32
    %c0_i32_1 = arith.constant 0 : i32
    return %arg0, %arg1, %c0_i32, %c0_i32_0 : i32, i32, i32, i32
  }
}

</mosaic_0001>

<llo_original>
// kernel: tpu_custom_call.1
$region0: #{tpu_custom_call.1}
  #allocation0 [shape = 'u32[]', space=smem, size = 0x4, offset = 0x4, fixed_abs, tag = 'smem constant byte address 0x4 - core index']
  #allocation1 [shape = 'u32[144,128]{1,0:T(1,128)}', space=vmem, size = 0x12000, scoped, tag = 'internal scratch']
  %s0 = inlined_call_operand.vmem [shape: f32[2,28,28,8], index: 0, kind: input, shape index: {}]
  %s1 = inlined_call_operand.vmem [shape: f32[8,32], index: 1, kind: input, shape index: {}]
  %s2 = inlined_call_operand.vmem [shape: f32[216,32], index: 2, kind: input, shape index: {}]
  %s3 = inlined_call_operand.vmem [shape: f32[4,32], index: 3, kind: input, shape index: {}]
  %s4 = inlined_call_operand.vmem [shape: f32[128,32], index: 4, kind: input, shape index: {}]
  %s5 = inlined_call_operand.vmem [shape: f32[2,1,32], index: 5, kind: input, shape index: {}]
  %s6 = inlined_call_operand.hbm [shape: f32[2,16,16,32], index: 6, kind: output, shape index: {}]
  %s7 = sld [smem:[#allocation0]]
  $region57: #{tpu_custom_call.1} parent=0
    _
  %s9 = ssub.s32 1, %s7
  %s10 = scalar_select 0, %s9, %s7
  $region1: #{tpu_custom_call.1} parent=0
    #allocation2 [shape = 'u8[131072]{0}', space=vmem, size = 0x20000, scoped, tag = 'output window, operand 0']
    #allocation3 [shape = 's32[2]{0}', space=sflag, size = 0x8, scoped, tag = 'scoped memory for tpu_custom_call.1']
    %11 = vsyncpa [#allocation3], 0
    %s12 = scalar_lea.sflag [#allocation3], 1
    %13 = vsyncpa %s12, 0
    loop: start=0, step=1, limit=6
    $region2: #{tpu_custom_call.1} parent=1 // loop_pre_header
      _
    $region3: #{tpu_custom_call.1} parent=1 // loop_header
      %s15 = sphi 0, %s19
      %p16 = scmp.ge.s32.totalorder %s15, 6
      %s22 = sphi 0, %s34
      %s23 = sphi 0, %s30
      %s24 = sphi 0, %s22
      %s25 = sphi 0, %s23
      %s26 = sphi 0, %s24
      %s27 = sphi 0, %s25
      %s37 = sphi 0, %s39
      %s40 = sphi 0, %s37
      %s41 = sphi 0, %s40
      %s57 = sphi 0, %s41
      %s61 = sphi 0, %s61
      %s63 = sphi 0, %s61
      %s64 = sphi 0, %s63
      %s78 = sphi 0, %s64
      %s82 = sphi 0, %s82
      %s84 = sphi 0, %s82
      %s85 = sphi 0, %s84
      %s99 = sphi 0, %s85
      %s103 = sphi 0, %s103
      %s105 = sphi 0, %s103
      %s106 = sphi 0, %s105
      %s120 = sphi 0, %s106
      %s124 = sphi 0, %s124
      %s126 = sphi 0, %s124
      %s127 = sphi 0, %s126
      %s141 = sphi 0, %s127
      %s147 = sphi 0, %s149
      %s150 = sphi 0, %s147
      %s151 = sphi 0, %s150
      %s167 = sphi 0, %s151
      %s175 = sphi 0, %s177
      %s178 = sphi 0, %s175
      %s179 = sphi 0, %s178
      %s195 = sphi 0, %s179
    $region4: #{tpu_custom_call.1} parent=1 // loop_header_branch
      %18 = sbr.rel (%p16) target = $region8
    $region5: #{tpu_custom_call.1} parent=1 // loop_body
      %s20 = ssub.s32 %s15, 1
      %s21 = ssub.s32 %s15, 2
      %s28 = sadd.s32 1, %s23
      %p29 = scmp.ge.s32.totalorder %s28, 2
      %s30 = scalar_select %p29, 0, %s28
      %s31 = sadd.s32 1, %s22
      %s32 = scalar_select %p29, %s31, %s22
      %p33 = scmp.ge.s32.totalorder %s32, 2
      %s34 = scalar_select %p33, 0, %s32
      %s35 = ssub.s32 %s22, %s34
      %p36 = scmp.eq.s32.totalorder %s35, 0
      %s38 = sadd.s32 %s37, 1
      %s39 = scalar_select %p36, %s37, %s38
      %p42 = pneg %p36
      %p43 = scmp.eq.s32.totalorder %s15, 3
      %p44 = por %p42, %p43
      %p45 = scmp.ne.s32.totalorder %s37, %s40
      %p46 = scmp.eq.s32.totalorder %s15, 0
      %p47 = por %p45, %p46
      %p48 = scmp.ne.s32.totalorder %s37, %s40
      %p49 = scmp.eq.s32.totalorder %s20, 3
      %p50 = por %p48, %p49
      %p51 = scmp.ne.s32.totalorder %s40, %s41
      %p52 = scmp.eq.s32.totalorder %s20, 0
      %p53 = por %p51, %p52
      %p54 = scmp.ne.s32.totalorder %s40, %s41
      %p55 = scmp.eq.s32.totalorder %s21, 3
      %p56 = por %p54, %p55
      %p58 = scmp.ne.s32.totalorder %s41, %s57
      %p59 = scmp.eq.s32.totalorder %s21, 0
      %p60 = por %p58, %p59
      %s62 = sadd.s32 %s61, 1
      %p65 = scmp.eq.s32.totalorder %s15, 3
      %p66 = scmp.ne.s32.totalorder %s61, %s63
      %p67 = scmp.eq.s32.totalorder %s15, 0
      %p68 = por %p66, %p67
      %p69 = scmp.ne.s32.totalorder %s61, %s63
      %p70 = scmp.eq.s32.totalorder %s20, 3
      %p71 = por %p69, %p70
      %p72 = scmp.ne.s32.totalorder %s63, %s64
      %p73 = scmp.eq.s32.totalorder %s20, 0
      %p74 = por %p72, %p73
      %p75 = scmp.ne.s32.totalorder %s63, %s64
      %p76 = scmp.eq.s32.totalorder %s21, 3
      %p77 = por %p75, %p76
      %p79 = scmp.ne.s32.totalorder %s64, %s78
      %p80 = scmp.eq.s32.totalorder %s21, 0
      %p81 = por %p79, %p80
      %s83 = sadd.s32 %s82, 1
      %p86 = scmp.eq.s32.totalorder %s15, 3
      %p87 = scmp.ne.s32.totalorder %s82, %s84
      %p88 = scmp.eq.s32.totalorder %s15, 0
      %p89 = por %p87, %p88
      %p90 = scmp.ne.s32.totalorder %s82, %s84
      %p91 = scmp.eq.s32.totalorder %s20, 3
      %p92 = por %p90, %p91
      %p93 = scmp.ne.s32.totalorder %s84, %s85
      %p94 = scmp.eq.s32.totalorder %s20, 0
      %p95 = por %p93, %p94
      %p96 = scmp.ne.s32.totalorder %s84, %s85
      %p97 = scmp.eq.s32.totalorder %s21, 3
      %p98 = por %p96, %p97
      %p100 = scmp.ne.s32.totalorder %s85, %s99
      %p101 = scmp.eq.s32.totalorder %s21, 0
      %p102 = por %p100, %p101
      %s104 = sadd.s32 %s103, 1
      %p107 = scmp.eq.s32.totalorder %s15, 3
      %p108 = scmp.ne.s32.totalorder %s103, %s105
      %p109 = scmp.eq.s32.totalorder %s15, 0
      %p110 = por %p108, %p109
      %p111 = scmp.ne.s32.totalorder %s103, %s105
      %p112 = scmp.eq.s32.totalorder %s20, 3
      %p113 = por %p111, %p112
      %p114 = scmp.ne.s32.totalorder %s105, %s106
      %p115 = scmp.eq.s32.totalorder %s20, 0
      %p116 = por %p114, %p115
      %p117 = scmp.ne.s32.totalorder %s105, %s106
      %p118 = scmp.eq.s32.totalorder %s21, 3
      %p119 = por %p117, %p118
      %p121 = scmp.ne.s32.totalorder %s106, %s120
      %p122 = scmp.eq.s32.totalorder %s21, 0
      %p123 = por %p121, %p122
      %s125 = sadd.s32 %s124, 1
      %p128 = scmp.eq.s32.totalorder %s15, 3
      %p129 = scmp.ne.s32.totalorder %s124, %s126
      %p130 = scmp.eq.s32.totalorder %s15, 0
      %p131 = por %p129, %p130
      %p132 = scmp.ne.s32.totalorder %s124, %s126
      %p133 = scmp.eq.s32.totalorder %s20, 3
      %p134 = por %p132, %p133
      %p135 = scmp.ne.s32.totalorder %s126, %s127
      %p136 = scmp.eq.s32.totalorder %s20, 0
      %p137 = por %p135, %p136
      %p138 = scmp.ne.s32.totalorder %s126, %s127
      %p139 = scmp.eq.s32.totalorder %s21, 3
      %p140 = por %p138, %p139
      %p142 = scmp.ne.s32.totalorder %s127, %s141
      %p143 = scmp.eq.s32.totalorder %s21, 0
      %p144 = por %p142, %p143
      %s145 = ssub.s32 %s22, %s34
      %p146 = scmp.eq.s32.totalorder %s145, 0
      %s148 = sadd.s32 %s147, 1
      %s149 = scalar_select %p146, %s147, %s148
      %p152 = pneg %p146
      %p153 = scmp.eq.s32.totalorder %s15, 3
      %p154 = por %p152, %p153
      %p155 = scmp.ne.s32.totalorder %s147, %s150
      %p156 = scmp.eq.s32.totalorder %s15, 0
      %p157 = por %p155, %p156
      %p158 = scmp.ne.s32.totalorder %s147, %s150
      %p159 = scmp.eq.s32.totalorder %s20, 3
      %p160 = por %p158, %p159
      %p161 = scmp.ne.s32.totalorder %s150, %s151
      %p162 = scmp.eq.s32.totalorder %s20, 0
      %p163 = por %p161, %p162
      %p164 = scmp.ne.s32.totalorder %s150, %s151
      %p165 = scmp.eq.s32.totalorder %s21, 3
      %p166 = por %p164, %p165
      %p168 = scmp.ne.s32.totalorder %s151, %s167
      %p169 = scmp.eq.s32.totalorder %s21, 0
      %p170 = por %p168, %p169
      %s171 = ssub.s32 %s22, %s34
      %s172 = ssub.s32 %s23, %s30
      %s173 = sor.u32 %s171, %s172
      %p174 = scmp.eq.s32.totalorder %s173, 0
      %s176 = sadd.s32 %s175, 1
      %s177 = scalar_select %p174, %s175, %s176
      %p180 = pneg %p174
      %p181 = scmp.eq.s32.totalorder %s15, 3
      %p182 = por %p180, %p181
      %p183 = scmp.ne.s32.totalorder %s175, %s178
      %p184 = scmp.eq.s32.totalorder %s15, 0
      %p185 = por %p183, %p184
      %p186 = scmp.ne.s32.totalorder %s175, %s178
      %p187 = scmp.eq.s32.totalorder %s20, 3
      %p188 = por %p186, %p187
      %p189 = scmp.ne.s32.totalorder %s178, %s179
      %p190 = scmp.eq.s32.totalorder %s20, 0
      %p191 = por %p189, %p190
      %p192 = scmp.ne.s32.totalorder %s178, %s179
      %p193 = scmp.eq.s32.totalorder %s21, 3
      %p194 = por %p192, %p193
      %p196 = scmp.ne.s32.totalorder %s179, %s195
      %p197 = scmp.eq.s32.totalorder %s21, 0
      %p198 = por %p196, %p197
      %p199 = scmp.le.s32.totalorder 1, %s15
      %p200 = scmp.lt.s32.totalorder %s15, 5
      %p201 = pnand %p199, %p200
      %p202 = pneg %p201
      // Predicated region
      $region9: #{tpu_custom_call.1} parent=5 // pred_check
        _
      $region10: #{tpu_custom_call.1} parent=5 // pred_check_branch
        %204 = sbr.rel (%p201) target = $region12
      $region11: #{tpu_custom_call.1} parent=5 // pred_region
        %s205 = ssub.s32 %s15, 1
        // Predicated region
        $region13: #{tpu_custom_call.1} parent=11 // pred_check
          %p206 = pneg %p74
        $region14: #{tpu_custom_call.1} parent=11 // pred_check_branch
          %208 = sbr.rel (%p206) target = $region16
        $region15: #{tpu_custom_call.1} parent=11 // pred_region
          _
        $region16: #{tpu_custom_call.1} parent=11 // pred_fallthru
          _
        // Predicated region
        $region17: #{tpu_custom_call.1} parent=11 // pred_check
          %p209 = pneg %p95
        $region18: #{tpu_custom_call.1} parent=11 // pred_check_branch
          %211 = sbr.rel (%p209) target = $region20
        $region19: #{tpu_custom_call.1} parent=11 // pred_region
          _
        $region20: #{tpu_custom_call.1} parent=11 // pred_fallthru
          _
        // Predicated region
        $region21: #{tpu_custom_call.1} parent=11 // pred_check
          %p212 = pneg %p116
        $region22: #{tpu_custom_call.1} parent=11 // pred_check_branch
          %214 = sbr.rel (%p212) target = $region24
        $region23: #{tpu_custom_call.1} parent=11 // pred_region
          _
        $region24: #{tpu_custom_call.1} parent=11 // pred_fallthru
          _
        // Predicated region
        $region25: #{tpu_custom_call.1} parent=11 // pred_check
          %p215 = pneg %p137
        $region26: #{tpu_custom_call.1} parent=11 // pred_check_branch
          %217 = sbr.rel (%p215) target = $region28
        $region27: #{tpu_custom_call.1} parent=11 // pred_region
          _
        $region28: #{tpu_custom_call.1} parent=11 // pred_fallthru
          _
      $region12: #{tpu_custom_call.1} parent=5 // pred_fallthru
        _
      %p218 = scmp.lt.s32.totalorder %s15, 4
      // Predicated region
      $region29: #{tpu_custom_call.1} parent=5 // pred_check
        %p219 = pneg %p218
      $region30: #{tpu_custom_call.1} parent=5 // pred_check_branch
        %221 = sbr.rel (%p219) target = $region32
      $region31: #{tpu_custom_call.1} parent=5 // pred_region
        // Predicated region
        $region33: #{tpu_custom_call.1} parent=31 // pred_check
          %p222 = pneg %p47
        $region34: #{tpu_custom_call.1} parent=31 // pred_check_branch
          %224 = sbr.rel (%p222) target = $region36
        $region35: #{tpu_custom_call.1} parent=31 // pred_region
          %p225 = scmp.lt.s32.totalorder %s22, 1
          %s226 = scalar_select %p225, %s22, 1
          %s227 = smul.addr %s226, 112
          %s228 = smul.addr %s227, 8
          %s229 = scalar_lea.vmem %s0, %s228
        $region36: #{tpu_custom_call.1} parent=31 // pred_fallthru
          _
        // Predicated region
        $region37: #{tpu_custom_call.1} parent=31 // pred_check
          %p230 = pneg %p157
        $region38: #{tpu_custom_call.1} parent=31 // pred_check_branch
          %232 = sbr.rel (%p230) target = $region40
        $region39: #{tpu_custom_call.1} parent=31 // pred_region
          %p233 = scmp.lt.s32.totalorder %s22, 1
          %s234 = scalar_select %p233, %s22, 1
          %s235 = scalar_lea.vmem %s5, %s234
        $region40: #{tpu_custom_call.1} parent=31 // pred_fallthru
          _
      $region32: #{tpu_custom_call.1} parent=5 // pred_fallthru
        _
      %p236 = scmp.le.s32.totalorder 1, %s15
      %p237 = scmp.lt.s32.totalorder %s15, 5
      %p238 = pnand %p236, %p237
      %p239 = pneg %p238
      // Predicated region
      $region41: #{tpu_custom_call.1} parent=5 // pred_check
        _
      $region42: #{tpu_custom_call.1} parent=5 // pred_check_branch
        %241 = sbr.rel (%p238) target = $region44
      $region43: #{tpu_custom_call.1} parent=5 // pred_region
        %s242 = ssub.s32 %s15, 1
        %p243 = scmp.lt.s32.totalorder %s24, 1
        %s244 = scalar_select %p243, %s24, 1
        %s245 = smul.addr %s244, 112
        %s246 = smul.addr %s245, 8
        %s247 = scalar_lea.vmem %s0, %s246
        %p248 = pneg %p53
        %p249 = pneg %p50
        %p250 = pneg %p74
        %p251 = pneg %p71
        %p252 = pneg %p95
        %p253 = pneg %p92
        %p254 = pneg %p116
        %p255 = pneg %p113
        %p256 = pneg %p137
        %p257 = pneg %p134
        %p258 = scmp.lt.s32.totalorder %s24, 1
        %s259 = scalar_select %p258, %s24, 1
        %s260 = scalar_lea.vmem %s5, %s259
        %p261 = pneg %p163
        %p262 = pneg %p160
        %p263 = pneg %p191
        %p264 = pneg %p188
        %s265 = sand.u32 %s178, 1
        %s266 = scalar_lea.sflag [#allocation3], %s265
        %s267 = sand.u32 %s178, 1
        %s268 = smul.addr %s267, 128
        %s269 = scalar_lea.vmem [#allocation2], %s268
        %p270 = scmp.lt.s32.totalorder %s24, 1
        %s271 = scalar_select %p270, %s24, 1
        %s272 = smul.addr %s271, 112
        %s273 = smul.addr %s272, 8
        %s274 = scalar_lea.vmem %s0, %s273
        %p275 = scmp.lt.s32.totalorder %s24, 1
        %s276 = scalar_select %p275, %s24, 1
        %s277 = scalar_lea.vmem %s5, %s276
        %s278 = smul.u32 8, %s25
        %s279 = smul.u32 %s25, 8
        %s280 = smul.u32 %s279, 32
        %s281 = scalar_lea.vmem %s274, %s280
        %v282 = vld [vmem:[%s281] sm:$0xff]
        %v283 = vld [vmem:[%s281 + $0x8] sm:$0xff]
        %v284 = vld [vmem:[%s281 + $0x10] sm:$0xff]
        %v285 = vld [vmem:[%s281 + $0x18] sm:$0xf]
        %v286 = vld [vmem:[%s281 + $0x20] sm:$0xff]
        %v287 = vld [vmem:[%s281 + $0x28] sm:$0xff]
        %v288 = vld [vmem:[%s281 + $0x30] sm:$0xff]
        %v289 = vld [vmem:[%s281 + $0x38] sm:$0xf]
        %v290 = vld [vmem:[%s281 + $0x40] sm:$0xff]
        %v291 = vld [vmem:[%s281 + $0x48] sm:$0xff]
        %v292 = vld [vmem:[%s281 + $0x50] sm:$0xff]
        %v293 = vld [vmem:[%s281 + $0x58] sm:$0xf]
        %v294 = vld [vmem:[%s281 + $0x60] sm:$0xff]
        %v295 = vld [vmem:[%s281 + $0x68] sm:$0xff]
        %v296 = vld [vmem:[%s281 + $0x70] sm:$0xff]
        %v297 = vld [vmem:[%s281 + $0x78] sm:$0xf]
        %v298 = vld [vmem:[%s281 + $0x80] sm:$0xff]
        %v299 = vld [vmem:[%s281 + $0x88] sm:$0xff]
        %v300 = vld [vmem:[%s281 + $0x90] sm:$0xff]
        %v301 = vld [vmem:[%s281 + $0x98] sm:$0xf]
        %v302 = vld [vmem:[%s281 + $0xa0] sm:$0xff]
        %v303 = vld [vmem:[%s281 + $0xa8] sm:$0xff]
        %v304 = vld [vmem:[%s281 + $0xb0] sm:$0xff]
        %v305 = vld [vmem:[%s281 + $0xb8] sm:$0xf]
        %v306 = vld [vmem:[%s281 + $0xc0] sm:$0xff]
        %v307 = vld [vmem:[%s281 + $0xc8] sm:$0xff]
        %v308 = vld [vmem:[%s281 + $0xd0] sm:$0xff]
        %v309 = vld [vmem:[%s281 + $0xd8] sm:$0xf]
        %v310 = vld [vmem:[%s281 + $0xe0] sm:$0xff]
        %v311 = vld [vmem:[%s281 + $0xe8] sm:$0xff]
        %v312 = vld [vmem:[%s281 + $0xf0] sm:$0xff]
        %v313 = vld [vmem:[%s281 + $0xf8] sm:$0xf]
        %v314 = vld [vmem:[%s281 + $0x100] sm:$0xff]
        %v315 = vld [vmem:[%s281 + $0x108] sm:$0xff]
        %v316 = vld [vmem:[%s281 + $0x110] sm:$0xff]
        %v317 = vld [vmem:[%s281 + $0x118] sm:$0xf]
        %v318 = vld [vmem:[%s281 + $0x120] sm:$0xff]
        %v319 = vld [vmem:[%s281 + $0x128] sm:$0xff]
        %v320 = vld [vmem:[%s281 + $0x130] sm:$0xff]
        %v321 = vld [vmem:[%s281 + $0x138] sm:$0xf]
        %v322 = vld [vmem:[%s281 + $0x140] sm:$0xff]
        %v323 = vld [vmem:[%s281 + $0x148] sm:$0xff]
        %v324 = vld [vmem:[%s281 + $0x150] sm:$0xff]
        %v325 = vld [vmem:[%s281 + $0x158] sm:$0xf]
        %v326 = vld [vmem:[%s281 + $0x160] sm:$0xff]
        %v327 = vld [vmem:[%s281 + $0x168] sm:$0xff]
        %v328 = vld [vmem:[%s281 + $0x170] sm:$0xff]
        %v329 = vld [vmem:[%s281 + $0x178] sm:$0xf]
        %v330 = vld [vmem:[%s281 + $0x180] sm:$0xff]
        %v331 = vld [vmem:[%s281 + $0x188] sm:$0xff]
        %v332 = vld [vmem:[%s281 + $0x190] sm:$0xff]
        %v333 = vld [vmem:[%s281 + $0x198] sm:$0xf]
        %v334 = vld [vmem:[%s281 + $0x1a0] sm:$0xff]
        %v335 = vld [vmem:[%s281 + $0x1a8] sm:$0xff]
        %v336 = vld [vmem:[%s281 + $0x1b0] sm:$0xff]
        %v337 = vld [vmem:[%s281 + $0x1b8] sm:$0xf]
        %v338 = vld [vmem:[%s281 + $0x1c0] sm:$0xff]
        %v339 = vld [vmem:[%s281 + $0x1c8] sm:$0xff]
        %v340 = vld [vmem:[%s281 + $0x1d0] sm:$0xff]
        %v341 = vld [vmem:[%s281 + $0x1d8] sm:$0xf]
        %v342 = vld [vmem:[%s281 + $0x1e0] sm:$0xff]
        %v343 = vld [vmem:[%s281 + $0x1e8] sm:$0xff]
        %v344 = vld [vmem:[%s281 + $0x1f0] sm:$0xff]
        %v345 = vld [vmem:[%s281 + $0x1f8] sm:$0xf]
        %v346 = vld [vmem:[%s281 + $0x200] sm:$0xff]
        %v347 = vld [vmem:[%s281 + $0x208] sm:$0xff]
        %v348 = vld [vmem:[%s281 + $0x210] sm:$0xff]
        %v349 = vld [vmem:[%s281 + $0x218] sm:$0xf]
        %v350 = vld [vmem:[%s281 + $0x220] sm:$0xff]
        %v351 = vld [vmem:[%s281 + $0x228] sm:$0xff]
        %v352 = vld [vmem:[%s281 + $0x230] sm:$0xff]
        %v353 = vld [vmem:[%s281 + $0x238] sm:$0xf]
        %v354 = vld [vmem:[%s281 + $0x240] sm:$0xff]
        %v355 = vld [vmem:[%s281 + $0x248] sm:$0xff]
        %v356 = vld [vmem:[%s281 + $0x250] sm:$0xff]
        %v357 = vld [vmem:[%s281 + $0x258] sm:$0xf]
        %v358 = vld [vmem:[%s281 + $0x260] sm:$0xff]
        %v359 = vld [vmem:[%s281 + $0x268] sm:$0xff]
        %v360 = vld [vmem:[%s281 + $0x270] sm:$0xff]
        %v361 = vld [vmem:[%s281 + $0x278] sm:$0xf]
        %vm386 = vcmask 1041408
        %v387 = vrot.slane %v306, 6
        %v388 = vrot.slane %v307, 6
        %v389 = vsel %vm386, %v387, %v388
        %v390 = vrot.slane %v308, 6
        %v391 = vsel %vm386, %v388, %v390
        %v392 = vrot.slane %v310, 6
        %v393 = vrot.slane %v311, 6
        %v394 = vsel %vm386, %v392, %v393
        %v395 = vrot.slane %v312, 6
        %v396 = vsel %vm386, %v393, %v395
        %v397 = vrot.slane %v314, 6
        %v398 = vrot.slane %v315, 6
        %v399 = vsel %vm386, %v397, %v398
        %v400 = vrot.slane %v316, 6
        %v401 = vsel %vm386, %v398, %v400
        %v402 = vrot.slane %v318, 6
        %v403 = vrot.slane %v319, 6
        %v404 = vsel %vm386, %v402, %v403
        %v405 = vrot.slane %v320, 6
        %v406 = vsel %vm386, %v403, %v405
        %v407 = vrot.slane %v322, 6
        %v408 = vrot.slane %v323, 6
        %v409 = vsel %vm386, %v407, %v408
        %v410 = vrot.slane %v324, 6
        %v411 = vsel %vm386, %v408, %v410
        %v412 = vrot.slane %v326, 6
        %v413 = vrot.slane %v327, 6
        %v414 = vsel %vm386, %v412, %v413
        %v415 = vrot.slane %v328, 6
        %v416 = vsel %vm386, %v413, %v415
        %v417 = vrot.slane %v330, 6
        %v418 = vrot.slane %v331, 6
        %v419 = vsel %vm386, %v417, %v418
        %v420 = vrot.slane %v332, 6
        %v421 = vsel %vm386, %v418, %v420
        %v422 = vrot.slane %v334, 6
        %v423 = vrot.slane %v335, 6
        %v424 = vsel %vm386, %v422, %v423
        %v425 = vrot.slane %v336, 6
        %v426 = vsel %vm386, %v423, %v425
        %v427 = vld [vmem:[%s1] sm:$0xff]
        %v428 = vld [vmem:[%s3] sm:$0x1]
        %v429 = vlaneseq
        %v430 = vshrl.u32 %v429, 7
        %v431 = vsub.s32 0, %v430
        %v432 = vrot.slane %v428, %v431
        %vm433 = vcmask 64512
        %v434 = vsel %vm433, %v389, 0
        %v436 = vsel %vm433, %v391, 0
        %v438 = vsel %vm433, %v394, 0
        %v440 = vsel %vm433, %v396, 0
        %v442 = vsel %vm433, %v399, 0
        %v444 = vsel %vm433, %v401, 0
        %v446 = vsel %vm433, %v404, 0
        %v448 = vsel %vm433, %v406, 0
        %v450 = vsel %vm433, %v409, 0
        %v452 = vsel %vm433, %v411, 0
        %v454 = vsel %vm433, %v414, 0
        %v456 = vsel %vm433, %v416, 0
        %v458 = vsel %vm433, %v419, 0
        %v460 = vsel %vm433, %v421, 0
        %v462 = vsel %vm433, %v424, 0
        %v464 = vsel %vm433, %v426, 0
        %466 = vmatprep.subr.mxu0 0.0
        %467 = vmatpush1.msra.mxu0 %v427
        %468 = vmatprep.subr.mxu0 0.0
        %469 = vmatpush1.msra.mxu0 0.0
        %470 = vmatprep.subr.mxu0 0.0
        %471 = vmatpush1.msra.mxu0 0.0
        %472 = vmatprep.subr.mxu0 0.0
        %473 = vmatpush1.msra.mxu0 0.0
        %474 = vmatprep.subr.mxu0 0.0
        %475 = vmatpush1.msra.mxu0 0.0
        %476 = vmatprep.subr.mxu0 0.0
        %477 = vmatpush1.msra.mxu0 0.0
        %478 = vmatprep.subr.mxu0 0.0
        %479 = vmatpush1.msra.mxu0 0.0
        %480 = vmatprep.subr.mxu0 0.0
        %481 = vmatpush1.msra.mxu0 0.0
        %482 = vmatprep.subr.mxu0 0.0
        %483 = vmatpush1.msra.mxu0 0.0
        %484 = vmatprep.subr.mxu0 0.0
        %485 = vmatpush1.msra.mxu0 0.0
        %486 = vmatprep.subr.mxu0 0.0
        %487 = vmatpush1.msra.mxu0 0.0
        %488 = vmatprep.subr.mxu0 0.0
        %489 = vmatpush1.msra.mxu0 0.0
        %490 = vmatprep.subr.mxu0 0.0
        %491 = vmatpush1.msra.mxu0 0.0
        %492 = vmatprep.subr.mxu0 0.0
        %493 = vmatpush1.msra.mxu0 0.0
        %494 = vmatprep.subr.mxu0 0.0
        %495 = vmatpush1.msra.mxu0 0.0
        %496 = vmatprep.subr.mxu0 0.0
        %497 = vmatpush1.msra.mxu0 0.0
        %498 = vmatprep.subr.mxu0 0.0
        %499 = vmatpush1.msra.mxu0 0.0
        %500 = vmatprep.subr.mxu0 0.0
        %501 = vmatpush1.msra.mxu0 0.0
        %502 = vmatprep.subr.mxu0 0.0
        %503 = vmatpush1.msra.mxu0 0.0
        %504 = vmatprep.subr.mxu0 0.0
        %505 = vmatpush1.msra.mxu0 0.0
        %506 = vmatprep.subr.mxu0 0.0
        %507 = vmatpush1.msra.mxu0 0.0
        %508 = vmatprep.subr.mxu0 0.0
        %509 = vmatpush1.msra.mxu0 0.0
        %510 = vmatprep.subr.mxu0 0.0
        %511 = vmatpush1.msra.mxu0 0.0
        %512 = vmatprep.subr.mxu0 0.0
        %513 = vmatpush1.msra.mxu0 0.0
        %514 = vmatprep.subr.mxu0 0.0
        %515 = vmatpush1.msra.mxu0 0.0
        %516 = vmatprep.subr.mxu0 0.0
        %517 = vmatpush1.msra.mxu0 0.0
        %518 = vmatprep.subr.mxu0 0.0
        %519 = vmatpush1.msra.mxu0 0.0
        %520 = vmatprep.subr.mxu0 0.0
        %521 = vmatpush1.msra.mxu0 0.0
        %522 = vmatprep.subr.mxu0 0.0
        %523 = vmatpush1.msra.mxu0 0.0
        %524 = vmatprep.subr.mxu0 0.0
        %525 = vmatpush1.msra.mxu0 0.0
        %526 = vmatprep.subr.mxu0 0.0
        %527 = vmatpush1.msra.mxu0 0.0
        %528 = vmatprep.subr.mxu0 0.0
        %529 = vmatpush1.msra.mxu0 0.0
        %530 = vmatprep.mubr.f32.mxu0 0.0
        %531 = vmatmul.mubr.f32.gmra.mrb[0].mxu0 %v434
        %v532 = vpop.f32.mrb[0].mxu0
        %v533 = vadd.f32 %v432, %v532
        %v534 = vpop.f32.mrb[0].mxu0
        %535 = vmatprep.mubr.f32.mxu0 0.0
        %536 = vmatmul.mubr.f32.gmra.mrb[0].mxu0 %v436
        %v537 = vpop.f32.mrb[0].mxu0
        %v538 = vadd.f32 %v432, %v537
        %v539 = vpop.f32.mrb[0].mxu0
        %540 = vmatprep.mubr.f32.mxu0 0.0
        %541 = vmatmul.mubr.f32.gmra.mrb[0].mxu0 %v438
        %v542 = vpop.f32.mrb[0].mxu0
        %v543 = vadd.f32 %v432, %v542
        %v544 = vpop.f32.mrb[0].mxu0
        %545 = vmatprep.mubr.f32.mxu0 0.0
        %546 = vmatmul.mubr.f32.gmra.mrb[0].mxu0 %v440
        %v547 = vpop.f32.mrb[0].mxu0
        %v548 = vadd.f32 %v432, %v547
        %v549 = vpop.f32.mrb[0].mxu0
        %550 = vmatprep.mubr.f32.mxu0 0.0
        %551 = vmatmul.mubr.f32.gmra.mrb[0].mxu0 %v442
        %v552 = vpop.f32.mrb[0].mxu0
        %v553 = vadd.f32 %v432, %v552
        %v554 = vpop.f32.mrb[0].mxu0
        %555 = vmatprep.mubr.f32.mxu0 0.0
        %556 = vmatmul.mubr.f32.gmra.mrb[0].mxu0 %v444
        %v557 = vpop.f32.mrb[0].mxu0
        %v558 = vadd.f32 %v432, %v557
        %v559 = vpop.f32.mrb[0].mxu0
        %560 = vmatprep.mubr.f32.mxu0 0.0
        %561 = vmatmul.mubr.f32.gmra.mrb[0].mxu0 %v446
        %v562 = vpop.f32.mrb[0].mxu0
        %v563 = vadd.f32 %v432, %v562
        %v564 = vpop.f32.mrb[0].mxu0
        %565 = vmatprep.mubr.f32.mxu0 0.0
        %566 = vmatmul.mubr.f32.gmra.mrb[0].mxu0 %v448
        %v567 = vpop.f32.mrb[0].mxu0
        %v568 = vadd.f32 %v432, %v567
        %v569 = vpop.f32.mrb[0].mxu0
        %570 = vmatprep.mubr.f32.mxu0 0.0
        %571 = vmatmul.mubr.f32.gmra.mrb[0].mxu0 %v450
        %v572 = vpop.f32.mrb[0].mxu0
        %v573 = vadd.f32 %v432, %v572
        %v574 = vpop.f32.mrb[0].mxu0
        %575 = vmatprep.mubr.f32.mxu0 0.0
        %576 = vmatmul.mubr.f32.gmra.mrb[0].mxu0 %v452
        %v577 = vpop.f32.mrb[0].mxu0
        %v578 = vadd.f32 %v432, %v577
        %v579 = vpop.f32.mrb[0].mxu0
        %580 = vmatprep.mubr.f32.mxu0 0.0
        %581 = vmatmul.mubr.f32.gmra.mrb[0].mxu0 %v454
        %v582 = vpop.f32.mrb[0].mxu0
        %v583 = vadd.f32 %v432, %v582
        %v584 = vpop.f32.mrb[0].mxu0
        %585 = vmatprep.mubr.f32.mxu0 0.0
        %586 = vmatmul.mubr.f32.gmra.mrb[0].mxu0 %v456
        %v587 = vpop.f32.mrb[0].mxu0
        %v588 = vadd.f32 %v432, %v587
        %v589 = vpop.f32.mrb[0].mxu0
        %590 = vmatprep.mubr.f32.mxu0 0.0
        %591 = vmatmul.mubr.f32.gmra.mrb[0].mxu0 %v458
        %v592 = vpop.f32.mrb[0].mxu0
        %v593 = vadd.f32 %v432, %v592
        %v594 = vpop.f32.mrb[0].mxu0
        %595 = vmatprep.mubr.f32.mxu0 0.0
        %596 = vmatmul.mubr.f32.gmra.mrb[0].mxu0 %v460
        %v597 = vpop.f32.mrb[0].mxu0
        %v598 = vadd.f32 %v432, %v597
        %v599 = vpop.f32.mrb[0].mxu0
        %600 = vmatprep.mubr.f32.mxu0 0.0
        %601 = vmatmul.mubr.f32.gmra.mrb[0].mxu0 %v462
        %v602 = vpop.f32.mrb[0].mxu0
        %v603 = vadd.f32 %v432, %v602
        %v604 = vpop.f32.mrb[0].mxu0
        %605 = vmatprep.mubr.f32.mxu0 0.0
        %606 = vmatmul.mubr.f32.gmra.mrb[0].mxu0 %v464
        %v607 = vpop.f32.mrb[0].mxu0
        %v608 = vadd.f32 %v432, %v607
        %v609 = vpop.f32.mrb[0].mxu0
        %610 = vdwg.mxu0
        %v611 = vmax.f32 %v533, 0.0
        %v612 = vmax.f32 %v538, 0.0
        %v613 = vmax.f32 %v543, 0.0
        %v614 = vmax.f32 %v548, 0.0
        %v615 = vmax.f32 %v553, 0.0
        %v616 = vmax.f32 %v558, 0.0
        %v617 = vmax.f32 %v563, 0.0
        %v618 = vmax.f32 %v568, 0.0
        %v619 = vmax.f32 %v573, 0.0
        %v620 = vmax.f32 %v578, 0.0
        %v621 = vmax.f32 %v583, 0.0
        %v622 = vmax.f32 %v588, 0.0
        %v623 = vmax.f32 %v593, 0.0
        %v624 = vmax.f32 %v598, 0.0
        %v625 = vmax.f32 %v603, 0.0
        %v626 = vmax.f32 %v608, 0.0
        %v627 = vld [vmem:[%s4] sm:$0xff]
        %v628 = vld [vmem:[%s4 + $0x8] sm:$0xff]
        %v629 = vld [vmem:[%s4 + $0x10] sm:$0xff]
        %v630 = vld [vmem:[%s4 + $0x18] sm:$0xff]
        %vm637 = vcmask 1043456
        %v638 = vrot.slane %v298, 4
        %v639 = vrot.slane %v299, 4
        %v640 = vsel %vm637, %v638, %v639
        %v641 = vrot.slane %v300, 4
        %v642 = vsel %vm637, %v639, %v641
        %v643 = vrot.slane %v302, 4
        %v644 = vrot.slane %v303, 4
        %v645 = vsel %vm637, %v643, %v644
        %v646 = vrot.slane %v304, 4
        %v647 = vsel %vm637, %v644, %v646
        %v648 = vrot.slane %v306, 4
        %v649 = vrot.slane %v307, 4
        %v650 = vsel %vm637, %v648, %v649
        %v651 = vrot.slane %v308, 4
        %v652 = vsel %vm637, %v649, %v651
        %v653 = vrot.slane %v310, 4
        %v654 = vrot.slane %v311, 4
        %v655 = vsel %vm637, %v653, %v654
        %v656 = vrot.slane %v312, 4
        %v657 = vsel %vm637, %v654, %v656
        %v658 = vrot.slane %v314, 4
        %v659 = vrot.slane %v315, 4
        %v660 = vsel %vm637, %v658, %v659
        %v661 = vrot.slane %v316, 4
        %v662 = vsel %vm637, %v659, %v661
        %v663 = vrot.slane %v318, 4
        %v664 = vrot.slane %v319, 4
        %v665 = vsel %vm637, %v663, %v664
        %v666 = vrot.slane %v320, 4
        %v667 = vsel %vm637, %v664, %v666
        %v668 = vrot.slane %v322, 4
        %v669 = vrot.slane %v323, 4
        %v670 = vsel %vm637, %v668, %v669
        %v671 = vrot.slane %v324, 4
        %v672 = vsel %vm637, %v669, %v671
        %v673 = vrot.slane %v326, 4
        %v674 = vrot.slane %v327, 4
        %v675 = vsel %vm637, %v673, %v674
        %v676 = vrot.slane %v328, 4
        %v677 = vsel %vm637, %v674, %v676
        %v678 = vld [vmem:[%s2] sm:$0xff]
        %v679 = vrot.slane %v298, 6
        %v680 = vrot.slane %v299, 6
        %v681 = vsel %vm386, %v679, %v680
        %v682 = vrot.slane %v300, 6
        %v683 = vsel %vm386, %v680, %v682
        %v684 = vrot.slane %v302, 6
        %v685 = vrot.slane %v303, 6
        %v686 = vsel %vm386, %v684, %v685
        %v687 = vrot.slane %v304, 6
        %v688 = vsel %vm386, %v685, %v687
        %v689 = vld [vmem:[%s2 + $0x8] sm:$0xff]
        %v690 = vsel %vm433, %v681, 0
        %v692 = vsel %vm433, %v683, 0
        %v694 = vsel %vm433, %v686, 0
        %v696 = vsel %vm433, %v688, 0
        %698 = vmatprep.subr.mxu0 0.0
        %699 = vmatpush1.msra.mxu0 %v689
        %700 = vmatprep.subr.mxu0 0.0
        %701 = vmatpush1.msra.mxu0 0.0
        %702 = vmatprep.subr.mxu0 0.0
        %703 = vmatpush1.msra.mxu0 0.0
        %704 = vmatprep.subr.mxu0 0.0
        %705 = vmatpush1.msra.mxu0 0.0
        %706 = vmatprep.subr.mxu0 0.0
        %707 = vmatpush1.msra.mxu0 0.0
        %708 = vmatprep.subr.mxu0 0.0
        %709 = vmatpush1.msra.mxu0 0.0
        %710 = vmatprep.subr.mxu0 0.0
        %711 = vmatpush1.msra.mxu0 0.0
        %712 = vmatprep.subr.mxu0 0.0
        %713 = vmatpush1.msra.mxu0 0.0
        %714 = vmatprep.subr.mxu0 0.0
        %715 = vmatpush1.msra.mxu0 0.0
        %716 = vmatprep.subr.mxu0 0.0
        %717 = vmatpush1.msra.mxu0 0.0
        %718 = vmatprep.subr.mxu0 0.0
        %719 = vmatpush1.msra.mxu0 0.0
        %720 = vmatprep.subr.mxu0 0.0
        %721 = vmatpush1.msra.mxu0 0.0
        %722 = vmatprep.subr.mxu0 0.0
        %723 = vmatpush1.msra.mxu0 0.0
        %724 = vmatprep.subr.mxu0 0.0
        %725 = vmatpush1.msra.mxu0 0.0
        %726 = vmatprep.subr.mxu0 0.0
        %727 = vmatpush1.msra.mxu0 0.0
        %728 = vmatprep.subr.mxu0 0.0
        %729 = vmatpush1.msra.mxu0 0.0
        %730 = vmatprep.subr.mxu0 0.0
        %731 = vmatpush1.msra.mxu0 0.0
        %732 = vmatprep.subr.mxu0 0.0
        %733 = vmatpush1.msra.mxu0 0.0
        %734 = vmatprep.subr.mxu0 0.0
        %735 = vmatpush1.msra.mxu0 0.0
        %736 = vmatprep.subr.mxu0 0.0
        %737 = vmatpush1.msra.mxu0 0.0
        %738 = vmatprep.subr.mxu0 0.0
        %739 = vmatpush1.msra.mxu0 0.0
        %740 = vmatprep.subr.mxu0 0.0
        %741 = vmatpush1.msra.mxu0 0.0
        %742 = vmatprep.subr.mxu0 0.0
        %743 = vmatpush1.msra.mxu0 0.0
        %744 = vmatprep.subr.mxu0 0.0
        %745 = vmatpush1.msra.mxu0 0.0
        %746 = vmatprep.subr.mxu0 0.0
        %747 = vmatpush1.msra.mxu0 0.0
        %748 = vmatprep.subr.mxu0 0.0
        %749 = vmatpush1.msra.mxu0 0.0
        %750 = vmatprep.subr.mxu0 0.0
        %751 = vmatpush1.msra.mxu0 0.0
        %752 = vmatprep.subr.mxu0 0.0
        %753 = vmatpush1.msra.mxu0 0.0
        %754 = vmatprep.subr.mxu0 0.0
        %755 = vmatpush1.msra.mxu0 0.0
        %756 = vmatprep.subr.mxu0 0.0
        %757 = vmatpush1.msra.mxu0 0.0
        %758 = vmatprep.subr.mxu0 0.0
        %759 = vmatpush1.msra.mxu0 0.0
        %760 = vmatprep.subr.mxu0 0.0
        %761 = vmatpush1.msra.mxu0 0.0
        %762 = vmatprep.mubr.f32.mxu0 0.0
        %763 = vmatmul.mubr.f32.gmra.mrb[0].mxu0 %v690
        %v764 = vpop.f32.mrb[0].mxu0
        %v765 = vadd.f32 0.0, %v764
        %v766 = vpop.f32.mrb[0].mxu0
        %767 = vmatprep.mubr.f32.mxu0 0.0
        %768 = vmatmul.mubr.f32.gmra.mrb[0].mxu0 %v692
        %v769 = vpop.f32.mrb[0].mxu0
        %v770 = vadd.f32 0.0, %v769
        %v771 = vpop.f32.mrb[0].mxu0
        %772 = vmatprep.mubr.f32.mxu0 0.0
        %773 = vmatmul.mubr.f32.gmra.mrb[0].mxu0 %v694
        %v774 = vpop.f32.mrb[0].mxu0
        %v775 = vadd.f32 0.0, %v774
        %v776 = vpop.f32.mrb[0].mxu0
        %777 = vmatprep.mubr.f32.mxu0 0.0
        %778 = vmatmul.mubr.f32.gmra.mrb[0].mxu0 %v696
        %v779 = vpop.f32.mrb[0].mxu0
        %v780 = vadd.f32 0.0, %v779
        %v781 = vpop.f32.mrb[0].mxu0
        %782 = vmatprep.mubr.f32.mxu0 0.0
        %783 = vmatmul.mubr.f32.gmra.mrb[0].mxu0 %v434
        %v784 = vpop.f32.mrb[0].mxu0
        %v785 = vadd.f32 0.0, %v784
        %v786 = vpop.f32.mrb[0].mxu0
        %787 = vmatprep.mubr.f32.mxu0 0.0
        %788 = vmatmul.mubr.f32.gmra.mrb[0].mxu0 %v436
        %v789 = vpop.f32.mrb[0].mxu0
        %v790 = vadd.f32 0.0, %v789
        %v791 = vpop.f32.mrb[0].mxu0
        %792 = vmatprep.mubr.f32.mxu0 0.0
        %793 = vmatmul.mubr.f32.gmra.mrb[0].mxu0 %v438
        %v794 = vpop.f32.mrb[0].mxu0
        %v795 = vadd.f32 0.0, %v794
        %v796 = vpop.f32.mrb[0].mxu0
        %797 = vmatprep.mubr.f32.mxu0 0.0
        %798 = vmatmul.mubr.f32.gmra.mrb[0].mxu0 %v440
        %v799 = vpop.f32.mrb[0].mxu0
        %v800 = vadd.f32 0.0, %v799
        %v801 = vpop.f32.mrb[0].mxu0
        %802 = vmatprep.mubr.f32.mxu0 0.0
        %803 = vmatmul.mubr.f32.gmra.mrb[0].mxu0 %v442
        %v804 = vpop.f32.mrb[0].mxu0
        %v805 = vadd.f32 0.0, %v804
        %v806 = vpop.f32.mrb[0].mxu0
        %807 = vmatprep.mubr.f32.mxu0 0.0
        %808 = vmatmul.mubr.f32.gmra.mrb[0].mxu0 %v444
        %v809 = vpop.f32.mrb[0].mxu0
        %v810 = vadd.f32 0.0, %v809
        %v811 = vpop.f32.mrb[0].mxu0
        %812 = vmatprep.mubr.f32.mxu0 0.0
        %813 = vmatmul.mubr.f32.gmra.mrb[0].mxu0 %v446
        %v814 = vpop.f32.mrb[0].mxu0
        %v815 = vadd.f32 0.0, %v814
        %v816 = vpop.f32.mrb[0].mxu0
        %817 = vmatprep.mubr.f32.mxu0 0.0
        %818 = vmatmul.mubr.f32.gmra.mrb[0].mxu0 %v448
        %v819 = vpop.f32.mrb[0].mxu0
        %v820 = vadd.f32 0.0, %v819
        %v821 = vpop.f32.mrb[0].mxu0
        %822 = vmatprep.mubr.f32.mxu0 0.0
        %823 = vmatmul.mubr.f32.gmra.mrb[0].mxu0 %v450
        %v824 = vpop.f32.mrb[0].mxu0
        %v825 = vadd.f32 0.0, %v824
        %v826 = vpop.f32.mrb[0].mxu0
        %827 = vmatprep.mubr.f32.mxu0 0.0
        %828 = vmatmul.mubr.f32.gmra.mrb[0].mxu0 %v452
        %v829 = vpop.f32.mrb[0].mxu0
        %v830 = vadd.f32 0.0, %v829
        %v831 = vpop.f32.mrb[0].mxu0
        %832 = vmatprep.mubr.f32.mxu0 0.0
        %833 = vmatmul.mubr.f32.gmra.mrb[0].mxu0 %v454
        %v834 = vpop.f32.mrb[0].mxu0
        %v835 = vadd.f32 0.0, %v834
        %v836 = vpop.f32.mrb[0].mxu0
        %837 = vmatprep.mubr.f32.mxu0 0.0
        %838 = vmatmul.mubr.f32.gmra.mrb[0].mxu0 %v456
        %v839 = vpop.f32.mrb[0].mxu0
        %v840 = vadd.f32 0.0, %v839
        %v841 = vpop.f32.mrb[0].mxu0
        %842 = vdwg.mxu0
        %v843 = vsel %vm433, %v640, 0
        %v845 = vsel %vm433, %v642, 0
        %v847 = vsel %vm433, %v645, 0
        %v849 = vsel %vm433, %v647, 0
        %v851 = vsel %vm433, %v650, 0
        %v853 = vsel %vm433, %v652, 0
        %v855 = vsel %vm433, %v655, 0
        %v857 = vsel %vm433, %v657, 0
        %v859 = vsel %vm433, %v660, 0
        %v861 = vsel %vm433, %v662, 0
        %v863 = vsel %vm433, %v665, 0
        %v865 = vsel %vm433, %v667, 0
        %v867 = vsel %vm433, %v670, 0
        %v869 = vsel %vm433, %v672, 0
        %v871 = vsel %vm433, %v675, 0
        %v873 = vsel %vm433, %v677, 0
        %875 = vmatprep.subr.mxu0 0.0
        %876 = vmatpush1.msra.mxu0 %v678
        %877 = vmatprep.subr.mxu0 0.0
        %878 = vmatpush1.msra.mxu0 0.0
        %879 = vmatprep.subr.mxu0 0.0
        %880 = vmatpush1.msra.mxu0 0.0
        %881 = vmatprep.subr.mxu0 0.0
        %882 = vmatpush1.msra.mxu0 0.0
        %883 = vmatprep.subr.mxu0 0.0
        %884 = vmatpush1.msra.mxu0 0.0
        %885 = vmatprep.subr.mxu0 0.0
        %886 = vmatpush1.msra.mxu0 0.0
        %887 = vmatprep.subr.mxu0 0.0
        %888 = vmatpush1.msra.mxu0 0.0
        %889 = vmatprep.subr.mxu0 0.0
        %890 = vmatpush1.msra.mxu0 0.0
        %891 = vmatprep.subr.mxu0 0.0
        %892 = vmatpush1.msra.mxu0 0.0
        %893 = vmatprep.subr.mxu0 0.0
        %894 = vmatpush1.msra.mxu0 0.0
        %895 = vmatprep.subr.mxu0 0.0
        %896 = vmatpush1.msra.mxu0 0.0
        %897 = vmatprep.subr.mxu0 0.0
        %898 = vmatpush1.msra.mxu0 0.0
        %899 = vmatprep.subr.mxu0 0.0
        %900 = vmatpush1.msra.mxu0 0.0
        %901 = vmatprep.subr.mxu0 0.0
        %902 = vmatpush1.msra.mxu0 0.0
        %903 = vmatprep.subr.mxu0 0.0
        %904 = vmatpush1.msra.mxu0 0.0
        %905 = vmatprep.subr.mxu0 0.0
        %906 = vmatpush1.msra.mxu0 0.0
        %907 = vmatprep.subr.mxu0 0.0
        %908 = vmatpush1.msra.mxu0 0.0
        %909 = vmatprep.subr.mxu0 0.0
        %910 = vmatpush1.msra.mxu0 0.0
        %911 = vmatprep.subr.mxu0 0.0
        %912 = vmatpush1.msra.mxu0 0.0
        %913 = vmatprep.subr.mxu0 0.0
        %914 = vmatpush1.msra.mxu0 0.0
        %915 = vmatprep.subr.mxu0 0.0
        %916 = vmatpush1.msra.mxu0 0.0
        %917 = vmatprep.subr.mxu0 0.0
        %918 = vmatpush1.msra.mxu0 0.0
        %919 = vmatprep.subr.mxu0 0.0
        %920 = vmatpush1.msra.mxu0 0.0
        %921 = vmatprep.subr.mxu0 0.0
        %922 = vmatpush1.msra.mxu0 0.0
        %923 = vmatprep.subr.mxu0 0.0
        %924 = vmatpush1.msra.mxu0 0.0
        %925 = vmatprep.subr.mxu0 0.0
        %926 = vmatpush1.msra.mxu0 0.0
        %927 = vmatprep.subr.mxu0 0.0
        %928 = vmatpush1.msra.mxu0 0.0
        %929 = vmatprep.subr.mxu0 0.0
        %930 = vmatpush1.msra.mxu0 0.0
        %931 = vmatprep.subr.mxu0 0.0
        %932 = vmatpush1.msra.mxu0 0.0
        %933 = vmatprep.subr.mxu0 0.0
        %934 = vmatpush1.msra.mxu0 0.0
        %935 = vmatprep.subr.mxu0 0.0
        %936 = vmatpush1.msra.mxu0 0.0
        %937 = vmatprep.subr.mxu0 0.0
        %938 = vmatpush1.msra.mxu0 0.0
        %939 = vmatprep.mubr.f32.mxu0 0.0
        %940 = vmatmul.mubr.f32.gmra.mrb[0].mxu0 %v843
        %v941 = vpop.f32.mrb[0].mxu0
        %v942 = vadd.f32 %v765, %v941
        %v943 = vpop.f32.mrb[0].mxu0
        %944 = vmatprep.mubr.f32.mxu0 0.0
        %945 = vmatmul.mubr.f32.gmra.mrb[0].mxu0 %v845
        %v946 = vpop.f32.mrb[0].mxu0
        %v947 = vadd.f32 %v770, %v946
        %v948 = vpop.f32.mrb[0].mxu0
        %949 = vmatprep.mubr.f32.mxu0 0.0
        %950 = vmatmul.mubr.f32.gmra.mrb[0].mxu0 %v847
        %v951 = vpop.f32.mrb[0].mxu0
        %v952 = vadd.f32 %v775, %v951
        %v953 = vpop.f32.mrb[0].mxu0
        %954 = vmatprep.mubr.f32.mxu0 0.0
        %955 = vmatmul.mubr.f32.gmra.mrb[0].mxu0 %v849
        %v956 = vpop.f32.mrb[0].mxu0
        %v957 = vadd.f32 %v780, %v956
        %v958 = vpop.f32.mrb[0].mxu0
        %959 = vmatprep.mubr.f32.mxu0 0.0
        %960 = vmatmul.mubr.f32.gmra.mrb[0].mxu0 %v851
        %v961 = vpop.f32.mrb[0].mxu0
        %v962 = vadd.f32 %v785, %v961
        %v963 = vpop.f32.mrb[0].mxu0
        %964 = vmatprep.mubr.f32.mxu0 0.0
        %965 = vmatmul.mubr.f32.gmra.mrb[0].mxu0 %v853
        %v966 = vpop.f32.mrb[0].mxu0
        %v967 = vadd.f32 %v790, %v966
        %v968 = vpop.f32.mrb[0].mxu0
        %969 = vmatprep.mubr.f32.mxu0 0.0
        %970 = vmatmul.mubr.f32.gmra.mrb[0].mxu0 %v855
        %v971 = vpop.f32.mrb[0].mxu0
        %v972 = vadd.f32 %v795, %v971
        %v973 = vpop.f32.mrb[0].mxu0
        %974 = vmatprep.mubr.f32.mxu0 0.0
        %975 = vmatmul.mubr.f32.gmra.mrb[0].mxu0 %v857
        %v976 = vpop.f32.mrb[0].mxu0
        %v977 = vadd.f32 %v800, %v976
        %v978 = vpop.f32.mrb[0].mxu0
        %979 = vmatprep.mubr.f32.mxu0 0.0
        %980 = vmatmul.mubr.f32.gmra.mrb[0].mxu0 %v859
        %v981 = vpop.f32.mrb[0].mxu0
        %v982 = vadd.f32 %v805, %v981
        %v983 = vpop.f32.mrb[0].mxu0
        %984 = vmatprep.mubr.f32.mxu0 0.0
        %985 = vmatmul.mubr.f32.gmra.mrb[0].mxu0 %v861
        %v986 = vpop.f32.mrb[0].mxu0
        %v987 = vadd.f32 %v810, %v986
        %v988 = vpop.f32.mrb[0].mxu0
        %989 = vmatprep.mubr.f32.mxu0 0.0
        %990 = vmatmul.mubr.f32.gmra.mrb[0].mxu0 %v863
        %v991 = vpop.f32.mrb[0].mxu0
        %v992 = vadd.f32 %v815, %v991
        %v993 = vpop.f32.mrb[0].mxu0
        %994 = vmatprep.mubr.f32.mxu0 0.0
        %995 = vmatmul.mubr.f32.gmra.mrb[0].mxu0 %v865
        %v996 = vpop.f32.mrb[0].mxu0
        %v997 = vadd.f32 %v820, %v996
        %v998 = vpop.f32.mrb[0].mxu0
        %999 = vmatprep.mubr.f32.mxu0 0.0
        %1000 = vmatmul.mubr.f32.gmra.mrb[0].mxu0 %v867
        %v1001 = vpop.f32.mrb[0].mxu0
        %v1002 = vadd.f32 %v825, %v1001
        %v1003 = vpop.f32.mrb[0].mxu0
        %1004 = vmatprep.mubr.f32.mxu0 0.0
        %1005 = vmatmul.mubr.f32.gmra.mrb[0].mxu0 %v869
        %v1006 = vpop.f32.mrb[0].mxu0
        %v1007 = vadd.f32 %v830, %v1006
        %v1008 = vpop.f32.mrb[0].mxu0
        %1009 = vmatprep.mubr.f32.mxu0 0.0
        %1010 = vmatmul.mubr.f32.gmra.mrb[0].mxu0 %v871
        %v1011 = vpop.f32.mrb[0].mxu0
        %v1012 = vadd.f32 %v835, %v1011
        %v1013 = vpop.f32.mrb[0].mxu0
        %1014 = vmatprep.mubr.f32.mxu0 0.0
        %1015 = vmatmul.mubr.f32.gmra.mrb[0].mxu0 %v873
        %v1016 = vpop.f32.mrb[0].mxu0
        %v1017 = vadd.f32 %v840, %v1016
        %v1018 = vpop.f32.mrb[0].mxu0
        %1019 = vdwg.mxu0
        %v1020 = vld [vmem:[%s2 + $0x10] sm:$0xff]
        %v1021 = vsel %vm433, %v299, 0
        %v1023 = vsel %vm433, %v300, 0
        %v1025 = vsel %vm433, %v303, 0
        %v1027 = vsel %vm433, %v304, 0
        %v1029 = vsel %vm433, %v307, 0
        %v1031 = vsel %vm433, %v308, 0
        %v1033 = vsel %vm433, %v311, 0
        %v1035 = vsel %vm433, %v312, 0
        %v1037 = vsel %vm433, %v315, 0
        %v1039 = vsel %vm433, %v316, 0
        %v1041 = vsel %vm433, %v319, 0
        %v1043 = vsel %vm433, %v320, 0
        %v1045 = vsel %vm433, %v323, 0
        %v1047 = vsel %vm433, %v324, 0
        %v1049 = vsel %vm433, %v327, 0
        %v1051 = vsel %vm433, %v328, 0
        %1053 = vmatprep.subr.mxu0 0.0
        %1054 = vmatpush1.msra.mxu0 %v1020
        %1055 = vmatprep.subr.mxu0 0.0
        %1056 = vmatpush1.msra.mxu0 0.0
        %1057 = vmatprep.subr.mxu0 0.0
        %1058 = vmatpush1.msra.mxu0 0.0
        %1059 = vmatprep.subr.mxu0 0.0
        %1060 = vmatpush1.msra.mxu0 0.0
        %1061 = vmatprep.subr.mxu0 0.0
        %1062 = vmatpush1.msra.mxu0 0.0
        %1063 = vmatprep.subr.mxu0 0.0
        %1064 = vmatpush1.msra.mxu0 0.0
        %1065 = vmatprep.subr.mxu0 0.0
        %1066 = vmatpush1.msra.mxu0 0.0
        %1067 = vmatprep.subr.mxu0 0.0
        %1068 = vmatpush1.msra.mxu0 0.0
        %1069 = vmatprep.subr.mxu0 0.0
        %1070 = vmatpush1.msra.mxu0 0.0
        %1071 = vmatprep.subr.mxu0 0.0
        %1072 = vmatpush1.msra.mxu0 0.0
        %1073 = vmatprep.subr.mxu0 0.0
        %1074 = vmatpush1.msra.mxu0 0.0
        %1075 = vmatprep.subr.mxu0 0.0
        %1076 = vmatpush1.msra.mxu0 0.0
        %1077 = vmatprep.subr.mxu0 0.0
        %1078 = vmatpush1.msra.mxu0 0.0
        %1079 = vmatprep.subr.mxu0 0.0
        %1080 = vmatpush1.msra.mxu0 0.0
        %1081 = vmatprep.subr.mxu0 0.0
        %1082 = vmatpush1.msra.mxu0 0.0
        %1083 = vmatprep.subr.mxu0 0.0
        %1084 = vmatpush1.msra.mxu0 0.0
        %1085 = vmatprep.subr.mxu0 0.0
        %1086 = vmatpush1.msra.mxu0 0.0
        %1087 = vmatprep.subr.mxu0 0.0
        %1088 = vmatpush1.msra.mxu0 0.0
        %1089 = vmatprep.subr.mxu0 0.0
        %1090 = vmatpush1.msra.mxu0 0.0
        %1091 = vmatprep.subr.mxu0 0.0
        %1092 = vmatpush1.msra.mxu0 0.0
        %1093 = vmatprep.subr.mxu0 0.0
        %1094 = vmatpush1.msra.mxu0 0.0
        %1095 = vmatprep.subr.mxu0 0.0
        %1096 = vmatpush1.msra.mxu0 0.0
        %1097 = vmatprep.subr.mxu0 0.0
        %1098 = vmatpush1.msra.mxu0 0.0
        %1099 = vmatprep.subr.mxu0 0.0
        %1100 = vmatpush1.msra.mxu0 0.0
        %1101 = vmatprep.subr.mxu0 0.0
        %1102 = vmatpush1.msra.mxu0 0.0
        %1103 = vmatprep.subr.mxu0 0.0
        %1104 = vmatpush1.msra.mxu0 0.0
        %1105 = vmatprep.subr.mxu0 0.0
        %1106 = vmatpush1.msra.mxu0 0.0
        %1107 = vmatprep.subr.mxu0 0.0
        %1108 = vmatpush1.msra.mxu0 0.0
        %1109 = vmatprep.subr.mxu0 0.0
        %1110 = vmatpush1.msra.mxu0 0.0
        %1111 = vmatprep.subr.mxu0 0.0
        %1112 = vmatpush1.msra.mxu0 0.0
        %1113 = vmatprep.subr.mxu0 0.0
        %1114 = vmatpush1.msra.mxu0 0.0
        %1115 = vmatprep.subr.mxu0 0.0
        %1116 = vmatpush1.msra.mxu0 0.0
        %1117 = vmatprep.mubr.f32.mxu0 0.0
        %1118 = vmatmul.mubr.f32.gmra.mrb[0].mxu0 %v1021
        %v1119 = vpop.f32.mrb[0].mxu0
        %v1120 = vadd.f32 0.0, %v1119
        %v1121 = vpop.f32.mrb[0].mxu0
        %1122 = vmatprep.mubr.f32.mxu0 0.0
        %1123 = vmatmul.mubr.f32.gmra.mrb[0].mxu0 %v1023
        %v1124 = vpop.f32.mrb[0].mxu0
        %v1125 = vadd.f32 0.0, %v1124
        %v1126 = vpop.f32.mrb[0].mxu0
        %1127 = vmatprep.mubr.f32.mxu0 0.0
        %1128 = vmatmul.mubr.f32.gmra.mrb[0].mxu0 %v1025
        %v1129 = vpop.f32.mrb[0].mxu0
        %v1130 = vadd.f32 0.0, %v1129
        %v1131 = vpop.f32.mrb[0].mxu0
        %1132 = vmatprep.mubr.f32.mxu0 0.0
        %1133 = vmatmul.mubr.f32.gmra.mrb[0].mxu0 %v1027
        %v1134 = vpop.f32.mrb[0].mxu0
        %v1135 = vadd.f32 0.0, %v1134
        %v1136 = vpop.f32.mrb[0].mxu0
        %1137 = vmatprep.mubr.f32.mxu0 0.0
        %1138 = vmatmul.mubr.f32.gmra.mrb[0].mxu0 %v1029
        %v1139 = vpop.f32.mrb[0].mxu0
        %v1140 = vadd.f32 0.0, %v1139
        %v1141 = vpop.f32.mrb[0].mxu0
        %1142 = vmatprep.mubr.f32.mxu0 0.0
        %1143 = vmatmul.mubr.f32.gmra.mrb[0].mxu0 %v1031
        %v1144 = vpop.f32.mrb[0].mxu0
        %v1145 = vadd.f32 0.0, %v1144
        %v1146 = vpop.f32.mrb[0].mxu0
        %1147 = vmatprep.mubr.f32.mxu0 0.0
        %1148 = vmatmul.mubr.f32.gmra.mrb[0].mxu0 %v1033
        %v1149 = vpop.f32.mrb[0].mxu0
        %v1150 = vadd.f32 0.0, %v1149
        %v1151 = vpop.f32.mrb[0].mxu0
        %1152 = vmatprep.mubr.f32.mxu0 0.0
        %1153 = vmatmul.mubr.f32.gmra.mrb[0].mxu0 %v1035
        %v1154 = vpop.f32.mrb[0].mxu0
        %v1155 = vadd.f32 0.0, %v1154
        %v1156 = vpop.f32.mrb[0].mxu0
        %1157 = vmatprep.mubr.f32.mxu0 0.0
        %1158 = vmatmul.mubr.f32.gmra.mrb[0].mxu0 %v1037
        %v1159 = vpop.f32.mrb[0].mxu0
        %v1160 = vadd.f32 0.0, %v1159
        %v1161 = vpop.f32.mrb[0].mxu0
        %1162 = vmatprep.mubr.f32.mxu0 0.0
        %1163 = vmatmul.mubr.f32.gmra.mrb[0].mxu0 %v1039
        %v1164 = vpop.f32.mrb[0].mxu0
        %v1165 = vadd.f32 0.0, %v1164
        %v1166 = vpop.f32.mrb[0].mxu0
        %1167 = vmatprep.mubr.f32.mxu0 0.0
        %1168 = vmatmul.mubr.f32.gmra.mrb[0].mxu0 %v1041
        %v1169 = vpop.f32.mrb[0].mxu0
        %v1170 = vadd.f32 0.0, %v1169
        %v1171 = vpop.f32.mrb[0].mxu0
        %1172 = vmatprep.mubr.f32.mxu0 0.0
        %1173 = vmatmul.mubr.f32.gmra.mrb[0].mxu0 %v1043
        %v1174 = vpop.f32.mrb[0].mxu0
        %v1175 = vadd.f32 0.0, %v1174
        %v1176 = vpop.f32.mrb[0].mxu0
        %1177 = vmatprep.mubr.f32.mxu0 0.0
        %1178 = vmatmul.mubr.f32.gmra.mrb[0].mxu0 %v1045
        %v1179 = vpop.f32.mrb[0].mxu0
        %v1180 = vadd.f32 0.0, %v1179
        %v1181 = vpop.f32.mrb[0].mxu0
        %1182 = vmatprep.mubr.f32.mxu0 0.0
        %1183 = vmatmul.mubr.f32.gmra.mrb[0].mxu0 %v1047
        %v1184 = vpop.f32.mrb[0].mxu0
        %v1185 = vadd.f32 0.0, %v1184
        %v1186 = vpop.f32.mrb[0].mxu0
        %1187 = vmatprep.mubr.f32.mxu0 0.0
        %1188 = vmatmul.mubr.f32.gmra.mrb[0].mxu0 %v1049
        %v1189 = vpop.f32.mrb[0].mxu0
        %v1190 = vadd.f32 0.0, %v1189
        %v1191 = vpop.f32.mrb[0].mxu0
        %1192 = vmatprep.mubr.f32.mxu0 0.0
        %1193 = vmatmul.mubr.f32.gmra.mrb[0].mxu0 %v1051
        %v1194 = vpop.f32.mrb[0].mxu0
        %v1195 = vadd.f32 0.0, %v1194
        %v1196 = vpop.f32.mrb[0].mxu0
        %1197 = vdwg.mxu0
        %v1198 = vadd.f32 %v942, %v1120
        %v1199 = vadd.f32 %v947, %v1125
        %v1200 = vadd.f32 %v952, %v1130
        %v1201 = vadd.f32 %v957, %v1135
        %v1202 = vadd.f32 %v962, %v1140
        %v1203 = vadd.f32 %v967, %v1145
        %v1204 = vadd.f32 %v972, %v1150
        %v1205 = vadd.f32 %v977, %v1155
        %v1206 = vadd.f32 %v982, %v1160
        %v1207 = vadd.f32 %v987, %v1165
        %v1208 = vadd.f32 %v992, %v1170
        %v1209 = vadd.f32 %v997, %v1175
        %v1210 = vadd.f32 %v1002, %v1180
        %v1211 = vadd.f32 %v1007, %v1185
        %v1212 = vadd.f32 %v1012, %v1190
        %v1213 = vadd.f32 %v1017, %v1195
        %v1214 = vrot.slane %v330, 4
        %v1215 = vrot.slane %v331, 4
        %v1216 = vsel %vm637, %v1214, %v1215
        %v1217 = vrot.slane %v332, 4
        %v1218 = vsel %vm637, %v1215, %v1217
        %v1219 = vrot.slane %v334, 4
        %v1220 = vrot.slane %v335, 4
        %v1221 = vsel %vm637, %v1219, %v1220
        %v1222 = vrot.slane %v336, 4
        %v1223 = vsel %vm637, %v1220, %v1222
        %v1224 = vld [vmem:[%s2 + $0x18] sm:$0xff]
        %v1225 = vsel %vm433, %v1216, 0
        %v1227 = vsel %vm433, %v1218, 0
        %v1229 = vsel %vm433, %v1221, 0
        %v1231 = vsel %vm433, %v1223, 0
        %1233 = vmatprep.subr.mxu0 0.0
        %1234 = vmatpush1.msra.mxu0 %v1224
        %1235 = vmatprep.subr.mxu0 0.0
        %1236 = vmatpush1.msra.mxu0 0.0
        %1237 = vmatprep.subr.mxu0 0.0
        %1238 = vmatpush1.msra.mxu0 0.0
        %1239 = vmatprep.subr.mxu0 0.0
        %1240 = vmatpush1.msra.mxu0 0.0
        %1241 = vmatprep.subr.mxu0 0.0
        %1242 = vmatpush1.msra.mxu0 0.0
        %1243 = vmatprep.subr.mxu0 0.0
        %1244 = vmatpush1.msra.mxu0 0.0
        %1245 = vmatprep.subr.mxu0 0.0
        %1246 = vmatpush1.msra.mxu0 0.0
        %1247 = vmatprep.subr.mxu0 0.0
        %1248 = vmatpush1.msra.mxu0 0.0
        %1249 = vmatprep.subr.mxu0 0.0
        %1250 = vmatpush1.msra.mxu0 0.0
        %1251 = vmatprep.subr.mxu0 0.0
        %1252 = vmatpush1.msra.mxu0 0.0
        %1253 = vmatprep.subr.mxu0 0.0
        %1254 = vmatpush1.msra.mxu0 0.0
        %1255 = vmatprep.subr.mxu0 0.0
        %1256 = vmatpush1.msra.mxu0 0.0
        %1257 = vmatprep.subr.mxu0 0.0
        %1258 = vmatpush1.msra.mxu0 0.0
        %1259 = vmatprep.subr.mxu0 0.0
        %1260 = vmatpush1.msra.mxu0 0.0
        %1261 = vmatprep.subr.mxu0 0.0
        %1262 = vmatpush1.msra.mxu0 0.0
        %1263 = vmatprep.subr.mxu0 0.0
        %1264 = vmatpush1.msra.mxu0 0.0
        %1265 = vmatprep.subr.mxu0 0.0
        %1266 = vmatpush1.msra.mxu0 0.0
        %1267 = vmatprep.subr.mxu0 0.0
        %1268 = vmatpush1.msra.mxu0 0.0
        %1269 = vmatprep.subr.mxu0 0.0
        %1270 = vmatpush1.msra.mxu0 0.0
        %1271 = vmatprep.subr.mxu0 0.0
        %1272 = vmatpush1.msra.mxu0 0.0
        %1273 = vmatprep.subr.mxu0 0.0
        %1274 = vmatpush1.msra.mxu0 0.0
        %1275 = vmatprep.subr.mxu0 0.0
        %1276 = vmatpush1.msra.mxu0 0.0
        %1277 = vmatprep.subr.mxu0 0.0
        %1278 = vmatpush1.msra.mxu0 0.0
        %1279 = vmatprep.subr.mxu0 0.0
        %1280 = vmatpush1.msra.mxu0 0.0
        %1281 = vmatprep.subr.mxu0 0.0
        %1282 = vmatpush1.msra.mxu0 0.0
        %1283 = vmatprep.subr.mxu0 0.0
        %1284 = vmatpush1.msra.mxu0 0.0
        %1285 = vmatprep.subr.mxu0 0.0
        %1286 = vmatpush1.msra.mxu0 0.0
        %1287 = vmatprep.subr.mxu0 0.0
        %1288 = vmatpush1.msra.mxu0 0.0
        %1289 = vmatprep.subr.mxu0 0.0
        %1290 = vmatpush1.msra.mxu0 0.0
        %1291 = vmatprep.subr.mxu0 0.0
        %1292 = vmatpush1.msra.mxu0 0.0
        %1293 = vmatprep.subr.mxu0 0.0
        %1294 = vmatpush1.msra.mxu0 0.0
        %1295 = vmatprep.subr.mxu0 0.0
        %1296 = vmatpush1.msra.mxu0 0.0
        %1297 = vmatprep.mubr.f32.mxu0 0.0
        %1298 = vmatmul.mubr.f32.gmra.mrb[0].mxu0 %v851
        %v1299 = vpop.f32.mrb[0].mxu0
        %v1300 = vadd.f32 0.0, %v1299
        %v1301 = vpop.f32.mrb[0].mxu0
        %1302 = vmatprep.mubr.f32.mxu0 0.0
        %1303 = vmatmul.mubr.f32.gmra.mrb[0].mxu0 %v853
        %v1304 = vpop.f32.mrb[0].mxu0
        %v1305 = vadd.f32 0.0, %v1304
        %v1306 = vpop.f32.mrb[0].mxu0
        %1307 = vmatprep.mubr.f32.mxu0 0.0
        %1308 = vmatmul.mubr.f32.gmra.mrb[0].mxu0 %v855
        %v1309 = vpop.f32.mrb[0].mxu0
        %v1310 = vadd.f32 0.0, %v1309
        %v1311 = vpop.f32.mrb[0].mxu0
        %1312 = vmatprep.mubr.f32.mxu0 0.0
        %1313 = vmatmul.mubr.f32.gmra.mrb[0].mxu0 %v857
        %v1314 = vpop.f32.mrb[0].mxu0
        %v1315 = vadd.f32 0.0, %v1314
        %v1316 = vpop.f32.mrb[0].mxu0
        %1317 = vmatprep.mubr.f32.mxu0 0.0
        %1318 = vmatmul.mubr.f32.gmra.mrb[0].mxu0 %v859
        %v1319 = vpop.f32.mrb[0].mxu0
        %v1320 = vadd.f32 0.0, %v1319
        %v1321 = vpop.f32.mrb[0].mxu0
        %1322 = vmatprep.mubr.f32.mxu0 0.0
        %1323 = vmatmul.mubr.f32.gmra.mrb[0].mxu0 %v861
        %v1324 = vpop.f32.mrb[0].mxu0
        %v1325 = vadd.f32 0.0, %v1324
        %v1326 = vpop.f32.mrb[0].mxu0
        %1327 = vmatprep.mubr.f32.mxu0 0.0
        %1328 = vmatmul.mubr.f32.gmra.mrb[0].mxu0 %v863
        %v1329 = vpop.f32.mrb[0].mxu0
        %v1330 = vadd.f32 0.0, %v1329
        %v1331 = vpop.f32.mrb[0].mxu0
        %1332 = vmatprep.mubr.f32.mxu0 0.0
        %1333 = vmatmul.mubr.f32.gmra.mrb[0].mxu0 %v865
        %v1334 = vpop.f32.mrb[0].mxu0
        %v1335 = vadd.f32 0.0, %v1334
        %v1336 = vpop.f32.mrb[0].mxu0
        %1337 = vmatprep.mubr.f32.mxu0 0.0
        %1338 = vmatmul.mubr.f32.gmra.mrb[0].mxu0 %v867
        %v1339 = vpop.f32.mrb[0].mxu0
        %v1340 = vadd.f32 0.0, %v1339
        %v1341 = vpop.f32.mrb[0].mxu0
        %1342 = vmatprep.mubr.f32.mxu0 0.0
        %1343 = vmatmul.mubr.f32.gmra.mrb[0].mxu0 %v869
        %v1344 = vpop.f32.mrb[0].mxu0
        %v1345 = vadd.f32 0.0, %v1344
        %v1346 = vpop.f32.mrb[0].mxu0
        %1347 = vmatprep.mubr.f32.mxu0 0.0
        %1348 = vmatmul.mubr.f32.gmra.mrb[0].mxu0 %v871
        %v1349 = vpop.f32.mrb[0].mxu0
        %v1350 = vadd.f32 0.0, %v1349
        %v1351 = vpop.f32.mrb[0].mxu0
        %1352 = vmatprep.mubr.f32.mxu0 0.0
        %1353 = vmatmul.mubr.f32.gmra.mrb[0].mxu0 %v873
        %v1354 = vpop.f32.mrb[0].mxu0
        %v1355 = vadd.f32 0.0, %v1354
        %v1356 = vpop.f32.mrb[0].mxu0
        %1357 = vmatprep.mubr.f32.mxu0 0.0
        %1358 = vmatmul.mubr.f32.gmra.mrb[0].mxu0 %v1225
        %v1359 = vpop.f32.mrb[0].mxu0
        %v1360 = vadd.f32 0.0, %v1359
        %v1361 = vpop.f32.mrb[0].mxu0
        %1362 = vmatprep.mubr.f32.mxu0 0.0
        %1363 = vmatmul.mubr.f32.gmra.mrb[0].mxu0 %v1227
        %v1364 = vpop.f32.mrb[0].mxu0
        %v1365 = vadd.f32 0.0, %v1364
        %v1366 = vpop.f32.mrb[0].mxu0
        %1367 = vmatprep.mubr.f32.mxu0 0.0
        %1368 = vmatmul.mubr.f32.gmra.mrb[0].mxu0 %v1229
        %v1369 = vpop.f32.mrb[0].mxu0
        %v1370 = vadd.f32 0.0, %v1369
        %v1371 = vpop.f32.mrb[0].mxu0
        %1372 = vmatprep.mubr.f32.mxu0 0.0
        %1373 = vmatmul.mubr.f32.gmra.mrb[0].mxu0 %v1231
        %v1374 = vpop.f32.mrb[0].mxu0
        %v1375 = vadd.f32 0.0, %v1374
        %v1376 = vpop.f32.mrb[0].mxu0
        %1377 = vdwg.mxu0
        %v1378 = vadd.f32 %v1198, %v1300
        %v1379 = vadd.f32 %v1199, %v1305
        %v1380 = vadd.f32 %v1200, %v1310
        %v1381 = vadd.f32 %v1201, %v1315
        %v1382 = vadd.f32 %v1202, %v1320
        %v1383 = vadd.f32 %v1203, %v1325
        %v1384 = vadd.f32 %v1204, %v1330
        %v1385 = vadd.f32 %v1205, %v1335
        %v1386 = vadd.f32 %v1206, %v1340
        %v1387 = vadd.f32 %v1207, %v1345
        %v1388 = vadd.f32 %v1208, %v1350
        %v1389 = vadd.f32 %v1209, %v1355
        %v1390 = vadd.f32 %v1210, %v1360
        %v1391 = vadd.f32 %v1211, %v1365
        %v1392 = vadd.f32 %v1212, %v1370
        %v1393 = vadd.f32 %v1213, %v1375
        %v1394 = vld [vmem:[%s2 + $0x20] sm:$0xff]
        %1395 = vmatprep.subr.mxu0 0.0
        %1396 = vmatpush1.msra.mxu0 %v1394
        %1397 = vmatprep.subr.mxu0 0.0
        %1398 = vmatpush1.msra.mxu0 0.0
        %1399 = vmatprep.subr.mxu0 0.0
        %1400 = vmatpush1.msra.mxu0 0.0
        %1401 = vmatprep.subr.mxu0 0.0
        %1402 = vmatpush1.msra.mxu0 0.0
        %1403 = vmatprep.subr.mxu0 0.0
        %1404 = vmatpush1.msra.mxu0 0.0
        %1405 = vmatprep.subr.mxu0 0.0
        %1406 = vmatpush1.msra.mxu0 0.0
        %1407 = vmatprep.subr.mxu0 0.0
        %1408 = vmatpush1.msra.mxu0 0.0
        %1409 = vmatprep.subr.mxu0 0.0
        %1410 = vmatpush1.msra.mxu0 0.0
        %1411 = vmatprep.subr.mxu0 0.0
        %1412 = vmatpush1.msra.mxu0 0.0
        %1413 = vmatprep.subr.mxu0 0.0
        %1414 = vmatpush1.msra.mxu0 0.0
        %1415 = vmatprep.subr.mxu0 0.0
        %1416 = vmatpush1.msra.mxu0 0.0
        %1417 = vmatprep.subr.mxu0 0.0
        %1418 = vmatpush1.msra.mxu0 0.0
        %1419 = vmatprep.subr.mxu0 0.0
        %1420 = vmatpush1.msra.mxu0 0.0
        %1421 = vmatprep.subr.mxu0 0.0
        %1422 = vmatpush1.msra.mxu0 0.0
        %1423 = vmatprep.subr.mxu0 0.0
        %1424 = vmatpush1.msra.mxu0 0.0
        %1425 = vmatprep.subr.mxu0 0.0
        %1426 = vmatpush1.msra.mxu0 0.0
        %1427 = vmatprep.subr.mxu0 0.0
        %1428 = vmatpush1.msra.mxu0 0.0
        %1429 = vmatprep.subr.mxu0 0.0
        %1430 = vmatpush1.msra.mxu0 0.0
        %1431 = vmatprep.subr.mxu0 0.0
        %1432 = vmatpush1.msra.mxu0 0.0
        %1433 = vmatprep.subr.mxu0 0.0
        %1434 = vmatpush1.msra.mxu0 0.0
        %1435 = vmatprep.subr.mxu0 0.0
        %1436 = vmatpush1.msra.mxu0 0.0
        %1437 = vmatprep.subr.mxu0 0.0
        %1438 = vmatpush1.msra.mxu0 0.0
        %1439 = vmatprep.subr.mxu0 0.0
        %1440 = vmatpush1.msra.mxu0 0.0
        %1441 = vmatprep.subr.mxu0 0.0
        %1442 = vmatpush1.msra.mxu0 0.0
        %1443 = vmatprep.subr.mxu0 0.0
        %1444 = vmatpush1.msra.mxu0 0.0
        %1445 = vmatprep.subr.mxu0 0.0
        %1446 = vmatpush1.msra.mxu0 0.0
        %1447 = vmatprep.subr.mxu0 0.0
        %1448 = vmatpush1.msra.mxu0 0.0
        %1449 = vmatprep.subr.mxu0 0.0
        %1450 = vmatpush1.msra.mxu0 0.0
        %1451 = vmatprep.subr.mxu0 0.0
        %1452 = vmatpush1.msra.mxu0 0.0
        %1453 = vmatprep.subr.mxu0 0.0
        %1454 = vmatpush1.msra.mxu0 0.0
        %1455 = vmatprep.subr.mxu0 0.0
        %1456 = vmatpush1.msra.mxu0 0.0
        %1457 = vmatprep.subr.mxu0 0.0
        %1458 = vmatpush1.msra.mxu0 0.0
        %1459 = vmatprep.mubr.f32.mxu0 0.0
        %1460 = vmatmul.mubr.f32.gmra.mrb[0].mxu0 %v434
        %v1461 = vpop.f32.mrb[0].mxu0
        %v1462 = vadd.f32 0.0, %v1461
        %v1463 = vpop.f32.mrb[0].mxu0
        %1464 = vmatprep.mubr.f32.mxu0 0.0
        %1465 = vmatmul.mubr.f32.gmra.mrb[0].mxu0 %v436
        %v1466 = vpop.f32.mrb[0].mxu0
        %v1467 = vadd.f32 0.0, %v1466
        %v1468 = vpop.f32.mrb[0].mxu0
        %1469 = vmatprep.mubr.f32.mxu0 0.0
        %1470 = vmatmul.mubr.f32.gmra.mrb[0].mxu0 %v438
        %v1471 = vpop.f32.mrb[0].mxu0
        %v1472 = vadd.f32 0.0, %v1471
        %v1473 = vpop.f32.mrb[0].mxu0
        %1474 = vmatprep.mubr.f32.mxu0 0.0
        %1475 = vmatmul.mubr.f32.gmra.mrb[0].mxu0 %v440
        %v1476 = vpop.f32.mrb[0].mxu0
        %v1477 = vadd.f32 0.0, %v1476
        %v1478 = vpop.f32.mrb[0].mxu0
        %1479 = vmatprep.mubr.f32.mxu0 0.0
        %1480 = vmatmul.mubr.f32.gmra.mrb[0].mxu0 %v442
        %v1481 = vpop.f32.mrb[0].mxu0
        %v1482 = vadd.f32 0.0, %v1481
        %v1483 = vpop.f32.mrb[0].mxu0
        %1484 = vmatprep.mubr.f32.mxu0 0.0
        %1485 = vmatmul.mubr.f32.gmra.mrb[0].mxu0 %v444
        %v1486 = vpop.f32.mrb[0].mxu0
        %v1487 = vadd.f32 0.0, %v1486
        %v1488 = vpop.f32.mrb[0].mxu0
        %1489 = vmatprep.mubr.f32.mxu0 0.0
        %1490 = vmatmul.mubr.f32.gmra.mrb[0].mxu0 %v446
        %v1491 = vpop.f32.mrb[0].mxu0
        %v1492 = vadd.f32 0.0, %v1491
        %v1493 = vpop.f32.mrb[0].mxu0
        %1494 = vmatprep.mubr.f32.mxu0 0.0
        %1495 = vmatmul.mubr.f32.gmra.mrb[0].mxu0 %v448
        %v1496 = vpop.f32.mrb[0].mxu0
        %v1497 = vadd.f32 0.0, %v1496
        %v1498 = vpop.f32.mrb[0].mxu0
        %1499 = vmatprep.mubr.f32.mxu0 0.0
        %1500 = vmatmul.mubr.f32.gmra.mrb[0].mxu0 %v450
        %v1501 = vpop.f32.mrb[0].mxu0
        %v1502 = vadd.f32 0.0, %v1501
        %v1503 = vpop.f32.mrb[0].mxu0
        %1504 = vmatprep.mubr.f32.mxu0 0.0
        %1505 = vmatmul.mubr.f32.gmra.mrb[0].mxu0 %v452
        %v1506 = vpop.f32.mrb[0].mxu0
        %v1507 = vadd.f32 0.0, %v1506
        %v1508 = vpop.f32.mrb[0].mxu0
        %1509 = vmatprep.mubr.f32.mxu0 0.0
        %1510 = vmatmul.mubr.f32.gmra.mrb[0].mxu0 %v454
        %v1511 = vpop.f32.mrb[0].mxu0
        %v1512 = vadd.f32 0.0, %v1511
        %v1513 = vpop.f32.mrb[0].mxu0
        %1514 = vmatprep.mubr.f32.mxu0 0.0
        %1515 = vmatmul.mubr.f32.gmra.mrb[0].mxu0 %v456
        %v1516 = vpop.f32.mrb[0].mxu0
        %v1517 = vadd.f32 0.0, %v1516
        %v1518 = vpop.f32.mrb[0].mxu0
        %1519 = vmatprep.mubr.f32.mxu0 0.0
        %1520 = vmatmul.mubr.f32.gmra.mrb[0].mxu0 %v458
        %v1521 = vpop.f32.mrb[0].mxu0
        %v1522 = vadd.f32 0.0, %v1521
        %v1523 = vpop.f32.mrb[0].mxu0
        %1524 = vmatprep.mubr.f32.mxu0 0.0
        %1525 = vmatmul.mubr.f32.gmra.mrb[0].mxu0 %v460
        %v1526 = vpop.f32.mrb[0].mxu0
        %v1527 = vadd.f32 0.0, %v1526
        %v1528 = vpop.f32.mrb[0].mxu0
        %1529 = vmatprep.mubr.f32.mxu0 0.0
        %1530 = vmatmul.mubr.f32.gmra.mrb[0].mxu0 %v462
        %v1531 = vpop.f32.mrb[0].mxu0
        %v1532 = vadd.f32 0.0, %v1531
        %v1533 = vpop.f32.mrb[0].mxu0
        %1534 = vmatprep.mubr.f32.mxu0 0.0
        %1535 = vmatmul.mubr.f32.gmra.mrb[0].mxu0 %v464
        %v1536 = vpop.f32.mrb[0].mxu0
        %v1537 = vadd.f32 0.0, %v1536
        %v1538 = vpop.f32.mrb[0].mxu0
        %1539 = vdwg.mxu0
        %v1540 = vadd.f32 %v1378, %v1462
        %v1541 = vadd.f32 %v1379, %v1467
        %v1542 = vadd.f32 %v1380, %v1472
        %v1543 = vadd.f32 %v1381, %v1477
        %v1544 = vadd.f32 %v1382, %v1482
        %v1545 = vadd.f32 %v1383, %v1487
        %v1546 = vadd.f32 %v1384, %v1492
        %v1547 = vadd.f32 %v1385, %v1497
        %v1548 = vadd.f32 %v1386, %v1502
        %v1549 = vadd.f32 %v1387, %v1507
        %v1550 = vadd.f32 %v1388, %v1512
        %v1551 = vadd.f32 %v1389, %v1517
        %v1552 = vadd.f32 %v1390, %v1522
        %v1553 = vadd.f32 %v1391, %v1527
        %v1554 = vadd.f32 %v1392, %v1532
        %v1555 = vadd.f32 %v1393, %v1537
        %v1556 = vld [vmem:[%s2 + $0x28] sm:$0xff]
        %v1557 = vsel %vm433, %v331, 0
        %v1559 = vsel %vm433, %v332, 0
        %v1561 = vsel %vm433, %v335, 0
        %v1563 = vsel %vm433, %v336, 0
        %1565 = vmatprep.subr.mxu0 0.0
        %1566 = vmatpush1.msra.mxu0 %v1556
        %1567 = vmatprep.subr.mxu0 0.0
        %1568 = vmatpush1.msra.mxu0 0.0
        %1569 = vmatprep.subr.mxu0 0.0
        %1570 = vmatpush1.msra.mxu0 0.0
        %1571 = vmatprep.subr.mxu0 0.0
        %1572 = vmatpush1.msra.mxu0 0.0
        %1573 = vmatprep.subr.mxu0 0.0
        %1574 = vmatpush1.msra.mxu0 0.0
        %1575 = vmatprep.subr.mxu0 0.0
        %1576 = vmatpush1.msra.mxu0 0.0
        %1577 = vmatprep.subr.mxu0 0.0
        %1578 = vmatpush1.msra.mxu0 0.0
        %1579 = vmatprep.subr.mxu0 0.0
        %1580 = vmatpush1.msra.mxu0 0.0
        %1581 = vmatprep.subr.mxu0 0.0
        %1582 = vmatpush1.msra.mxu0 0.0
        %1583 = vmatprep.subr.mxu0 0.0
        %1584 = vmatpush1.msra.mxu0 0.0
        %1585 = vmatprep.subr.mxu0 0.0
        %1586 = vmatpush1.msra.mxu0 0.0
        %1587 = vmatprep.subr.mxu0 0.0
        %1588 = vmatpush1.msra.mxu0 0.0
        %1589 = vmatprep.subr.mxu0 0.0
        %1590 = vmatpush1.msra.mxu0 0.0
        %1591 = vmatprep.subr.mxu0 0.0
        %1592 = vmatpush1.msra.mxu0 0.0
        %1593 = vmatprep.subr.mxu0 0.0
        %1594 = vmatpush1.msra.mxu0 0.0
        %1595 = vmatprep.subr.mxu0 0.0
        %1596 = vmatpush1.msra.mxu0 0.0
        %1597 = vmatprep.subr.mxu0 0.0
        %1598 = vmatpush1.msra.mxu0 0.0
        %1599 = vmatprep.subr.mxu0 0.0
        %1600 = vmatpush1.msra.mxu0 0.0
        %1601 = vmatprep.subr.mxu0 0.0
        %1602 = vmatpush1.msra.mxu0 0.0
        %1603 = vmatprep.subr.mxu0 0.0
        %1604 = vmatpush1.msra.mxu0 0.0
        %1605 = vmatprep.subr.mxu0 0.0
        %1606 = vmatpush1.msra.mxu0 0.0
        %1607 = vmatprep.subr.mxu0 0.0
        %1608 = vmatpush1.msra.mxu0 0.0
        %1609 = vmatprep.subr.mxu0 0.0
        %1610 = vmatpush1.msra.mxu0 0.0
        %1611 = vmatprep.subr.mxu0 0.0
        %1612 = vmatpush1.msra.mxu0 0.0
        %1613 = vmatprep.subr.mxu0 0.0
        %1614 = vmatpush1.msra.mxu0 0.0
        %1615 = vmatprep.subr.mxu0 0.0
        %1616 = vmatpush1.msra.mxu0 0.0
        %1617 = vmatprep.subr.mxu0 0.0
        %1618 = vmatpush1.msra.mxu0 0.0
        %1619 = vmatprep.subr.mxu0 0.0
        %1620 = vmatpush1.msra.mxu0 0.0
        %1621 = vmatprep.subr.mxu0 0.0
        %1622 = vmatpush1.msra.mxu0 0.0
        %1623 = vmatprep.subr.mxu0 0.0
        %1624 = vmatpush1.msra.mxu0 0.0
        %1625 = vmatprep.subr.mxu0 0.0
        %1626 = vmatpush1.msra.mxu0 0.0
        %1627 = vmatprep.subr.mxu0 0.0
        %1628 = vmatpush1.msra.mxu0 0.0
        %1629 = vmatprep.mubr.f32.mxu0 0.0
        %1630 = vmatmul.mubr.f32.gmra.mrb[0].mxu0 %v1029
        %v1631 = vpop.f32.mrb[0].mxu0
        %v1632 = vadd.f32 0.0, %v1631
        %v1633 = vpop.f32.mrb[0].mxu0
        %1634 = vmatprep.mubr.f32.mxu0 0.0
        %1635 = vmatmul.mubr.f32.gmra.mrb[0].mxu0 %v1031
        %v1636 = vpop.f32.mrb[0].mxu0
        %v1637 = vadd.f32 0.0, %v1636
        %v1638 = vpop.f32.mrb[0].mxu0
        %1639 = vmatprep.mubr.f32.mxu0 0.0
        %1640 = vmatmul.mubr.f32.gmra.mrb[0].mxu0 %v1033
        %v1641 = vpop.f32.mrb[0].mxu0
        %v1642 = vadd.f32 0.0, %v1641
        %v1643 = vpop.f32.mrb[0].mxu0
        %1644 = vmatprep.mubr.f32.mxu0 0.0
        %1645 = vmatmul.mubr.f32.gmra.mrb[0].mxu0 %v1035
        %v1646 = vpop.f32.mrb[0].mxu0
        %v1647 = vadd.f32 0.0, %v1646
        %v1648 = vpop.f32.mrb[0].mxu0
        %1649 = vmatprep.mubr.f32.mxu0 0.0
        %1650 = vmatmul.mubr.f32.gmra.mrb[0].mxu0 %v1037
        %v1651 = vpop.f32.mrb[0].mxu0
        %v1652 = vadd.f32 0.0, %v1651
        %v1653 = vpop.f32.mrb[0].mxu0
        %1654 = vmatprep.mubr.f32.mxu0 0.0
        %1655 = vmatmul.mubr.f32.gmra.mrb[0].mxu0 %v1039
        %v1656 = vpop.f32.mrb[0].mxu0
        %v1657 = vadd.f32 0.0, %v1656
        %v1658 = vpop.f32.mrb[0].mxu0
        %1659 = vmatprep.mubr.f32.mxu0 0.0
        %1660 = vmatmul.mubr.f32.gmra.mrb[0].mxu0 %v1041
        %v1661 = vpop.f32.mrb[0].mxu0
        %v1662 = vadd.f32 0.0, %v1661
        %v1663 = vpop.f32.mrb[0].mxu0
        %1664 = vmatprep.mubr.f32.mxu0 0.0
        %1665 = vmatmul.mubr.f32.gmra.mrb[0].mxu0 %v1043
        %v1666 = vpop.f32.mrb[0].mxu0
        %v1667 = vadd.f32 0.0, %v1666
        %v1668 = vpop.f32.mrb[0].mxu0
        %1669 = vmatprep.mubr.f32.mxu0 0.0
        %1670 = vmatmul.mubr.f32.gmra.mrb[0].mxu0 %v1045
        %v1671 = vpop.f32.mrb[0].mxu0
        %v1672 = vadd.f32 0.0, %v1671
        %v1673 = vpop.f32.mrb[0].mxu0
        %1674 = vmatprep.mubr.f32.mxu0 0.0
        %1675 = vmatmul.mubr.f32.gmra.mrb[0].mxu0 %v1047
        %v1676 = vpop.f32.mrb[0].mxu0
        %v1677 = vadd.f32 0.0, %v1676
        %v1678 = vpop.f32.mrb[0].mxu0
        %1679 = vmatprep.mubr.f32.mxu0 0.0
        %1680 = vmatmul.mubr.f32.gmra.mrb[0].mxu0 %v1049
        %v1681 = vpop.f32.mrb[0].mxu0
        %v1682 = vadd.f32 0.0, %v1681
        %v1683 = vpop.f32.mrb[0].mxu0
        %1684 = vmatprep.mubr.f32.mxu0 0.0
        %1685 = vmatmul.mubr.f32.gmra.mrb[0].mxu0 %v1051
        %v1686 = vpop.f32.mrb[0].mxu0
        %v1687 = vadd.f32 0.0, %v1686
        %v1688 = vpop.f32.mrb[0].mxu0
        %1689 = vmatprep.mubr.f32.mxu0 0.0
        %1690 = vmatmul.mubr.f32.gmra.mrb[0].mxu0 %v1557
        %v1691 = vpop.f32.mrb[0].mxu0
        %v1692 = vadd.f32 0.0, %v1691
        %v1693 = vpop.f32.mrb[0].mxu0
        %1694 = vmatprep.mubr.f32.mxu0 0.0
        %1695 = vmatmul.mubr.f32.gmra.mrb[0].mxu0 %v1559
        %v1696 = vpop.f32.mrb[0].mxu0
        %v1697 = vadd.f32 0.0, %v1696
        %v1698 = vpop.f32.mrb[0].mxu0
        %1699 = vmatprep.mubr.f32.mxu0 0.0
        %1700 = vmatmul.mubr.f32.gmra.mrb[0].mxu0 %v1561
        %v1701 = vpop.f32.mrb[0].mxu0
        %v1702 = vadd.f32 0.0, %v1701
        %v1703 = vpop.f32.mrb[0].mxu0
        %1704 = vmatprep.mubr.f32.mxu0 0.0
        %1705 = vmatmul.mubr.f32.gmra.mrb[0].mxu0 %v1563
        %v1706 = vpop.f32.mrb[0].mxu0
        %v1707 = vadd.f32 0.0, %v1706
        %v1708 = vpop.f32.mrb[0].mxu0
        %1709 = vdwg.mxu0
        %v1710 = vadd.f32 %v1540, %v1632
        %v1711 = vadd.f32 %v1541, %v1637
        %v1712 = vadd.f32 %v1542, %v1642
        %v1713 = vadd.f32 %v1543, %v1647
        %v1714 = vadd.f32 %v1544, %v1652
        %v1715 = vadd.f32 %v1545, %v1657
        %v1716 = vadd.f32 %v1546, %v1662
        %v1717 = vadd.f32 %v1547, %v1667
        %v1718 = vadd.f32 %v1548, %v1672
        %v1719 = vadd.f32 %v1549, %v1677
        %v1720 = vadd.f32 %v1550, %v1682
        %v1721 = vadd.f32 %v1551, %v1687
        %v1722 = vadd.f32 %v1552, %v1692
        %v1723 = vadd.f32 %v1553, %v1697
        %v1724 = vadd.f32 %v1554, %v1702
        %v1725 = vadd.f32 %v1555, %v1707
        %v1732 = vrot.slane %v338, 4
        %v1733 = vrot.slane %v339, 4
        %v1734 = vsel %vm637, %v1732, %v1733
        %v1735 = vrot.slane %v340, 4
        %v1736 = vsel %vm637, %v1733, %v1735
        %v1737 = vrot.slane %v342, 4
        %v1738 = vrot.slane %v343, 4
        %v1739 = vsel %vm637, %v1737, %v1738
        %v1740 = vrot.slane %v344, 4
        %v1741 = vsel %vm637, %v1738, %v1740
        %v1742 = vld [vmem:[%s2 + $0x30] sm:$0xff]
        %v1743 = vsel %vm433, %v1734, 0
        %v1745 = vsel %vm433, %v1736, 0
        %v1747 = vsel %vm433, %v1739, 0
        %v1749 = vsel %vm433, %v1741, 0
        %1751 = vmatprep.subr.mxu0 0.0
        %1752 = vmatpush1.msra.mxu0 %v1742
        %1753 = vmatprep.subr.mxu0 0.0
        %1754 = vmatpush1.msra.mxu0 0.0
        %1755 = vmatprep.subr.mxu0 0.0
        %1756 = vmatpush1.msra.mxu0 0.0
        %1757 = vmatprep.subr.mxu0 0.0
        %1758 = vmatpush1.msra.mxu0 0.0
        %1759 = vmatprep.subr.mxu0 0.0
        %1760 = vmatpush1.msra.mxu0 0.0
        %1761 = vmatprep.subr.mxu0 0.0
        %1762 = vmatpush1.msra.mxu0 0.0
        %1763 = vmatprep.subr.mxu0 0.0
        %1764 = vmatpush1.msra.mxu0 0.0
        %1765 = vmatprep.subr.mxu0 0.0
        %1766 = vmatpush1.msra.mxu0 0.0
        %1767 = vmatprep.subr.mxu0 0.0
        %1768 = vmatpush1.msra.mxu0 0.0
        %1769 = vmatprep.subr.mxu0 0.0
        %1770 = vmatpush1.msra.mxu0 0.0
        %1771 = vmatprep.subr.mxu0 0.0
        %1772 = vmatpush1.msra.mxu0 0.0
        %1773 = vmatprep.subr.mxu0 0.0
        %1774 = vmatpush1.msra.mxu0 0.0
        %1775 = vmatprep.subr.mxu0 0.0
        %1776 = vmatpush1.msra.mxu0 0.0
        %1777 = vmatprep.subr.mxu0 0.0
        %1778 = vmatpush1.msra.mxu0 0.0
        %1779 = vmatprep.subr.mxu0 0.0
        %1780 = vmatpush1.msra.mxu0 0.0
        %1781 = vmatprep.subr.mxu0 0.0
        %1782 = vmatpush1.msra.mxu0 0.0
        %1783 = vmatprep.subr.mxu0 0.0
        %1784 = vmatpush1.msra.mxu0 0.0
        %1785 = vmatprep.subr.mxu0 0.0
        %1786 = vmatpush1.msra.mxu0 0.0
        %1787 = vmatprep.subr.mxu0 0.0
        %1788 = vmatpush1.msra.mxu0 0.0
        %1789 = vmatprep.subr.mxu0 0.0
        %1790 = vmatpush1.msra.mxu0 0.0
        %1791 = vmatprep.subr.mxu0 0.0
        %1792 = vmatpush1.msra.mxu0 0.0
        %1793 = vmatprep.subr.mxu0 0.0
        %1794 = vmatpush1.msra.mxu0 0.0
        %1795 = vmatprep.subr.mxu0 0.0
        %1796 = vmatpush1.msra.mxu0 0.0
        %1797 = vmatprep.subr.mxu0 0.0
        %1798 = vmatpush1.msra.mxu0 0.0
        %1799 = vmatprep.subr.mxu0 0.0
        %1800 = vmatpush1.msra.mxu0 0.0
        %1801 = vmatprep.subr.mxu0 0.0
        %1802 = vmatpush1.msra.mxu0 0.0
        %1803 = vmatprep.subr.mxu0 0.0
        %1804 = vmatpush1.msra.mxu0 0.0
        %1805 = vmatprep.subr.mxu0 0.0
        %1806 = vmatpush1.msra.mxu0 0.0
        %1807 = vmatprep.subr.mxu0 0.0
        %1808 = vmatpush1.msra.mxu0 0.0
        %1809 = vmatprep.subr.mxu0 0.0
        %1810 = vmatpush1.msra.mxu0 0.0
        %1811 = vmatprep.subr.mxu0 0.0
        %1812 = vmatpush1.msra.mxu0 0.0
        %1813 = vmatprep.subr.mxu0 0.0
        %1814 = vmatpush1.msra.mxu0 0.0
        %1815 = vmatprep.mubr.f32.mxu0 0.0
        %1816 = vmatmul.mubr.f32.gmra.mrb[0].mxu0 %v859
        %v1817 = vpop.f32.mrb[0].mxu0
        %v1818 = vadd.f32 0.0, %v1817
        %v1819 = vpop.f32.mrb[0].mxu0
        %1820 = vmatprep.mubr.f32.mxu0 0.0
        %1821 = vmatmul.mubr.f32.gmra.mrb[0].mxu0 %v861
        %v1822 = vpop.f32.mrb[0].mxu0
        %v1823 = vadd.f32 0.0, %v1822
        %v1824 = vpop.f32.mrb[0].mxu0
        %1825 = vmatprep.mubr.f32.mxu0 0.0
        %1826 = vmatmul.mubr.f32.gmra.mrb[0].mxu0 %v863
        %v1827 = vpop.f32.mrb[0].mxu0
        %v1828 = vadd.f32 0.0, %v1827
        %v1829 = vpop.f32.mrb[0].mxu0
        %1830 = vmatprep.mubr.f32.mxu0 0.0
        %1831 = vmatmul.mubr.f32.gmra.mrb[0].mxu0 %v865
        %v1832 = vpop.f32.mrb[0].mxu0
        %v1833 = vadd.f32 0.0, %v1832
        %v1834 = vpop.f32.mrb[0].mxu0
        %1835 = vmatprep.mubr.f32.mxu0 0.0
        %1836 = vmatmul.mubr.f32.gmra.mrb[0].mxu0 %v867
        %v1837 = vpop.f32.mrb[0].mxu0
        %v1838 = vadd.f32 0.0, %v1837
        %v1839 = vpop.f32.mrb[0].mxu0
        %1840 = vmatprep.mubr.f32.mxu0 0.0
        %1841 = vmatmul.mubr.f32.gmra.mrb[0].mxu0 %v869
        %v1842 = vpop.f32.mrb[0].mxu0
        %v1843 = vadd.f32 0.0, %v1842
        %v1844 = vpop.f32.mrb[0].mxu0
        %1845 = vmatprep.mubr.f32.mxu0 0.0
        %1846 = vmatmul.mubr.f32.gmra.mrb[0].mxu0 %v871
        %v1847 = vpop.f32.mrb[0].mxu0
        %v1848 = vadd.f32 0.0, %v1847
        %v1849 = vpop.f32.mrb[0].mxu0
        %1850 = vmatprep.mubr.f32.mxu0 0.0
        %1851 = vmatmul.mubr.f32.gmra.mrb[0].mxu0 %v873
        %v1852 = vpop.f32.mrb[0].mxu0
        %v1853 = vadd.f32 0.0, %v1852
        %v1854 = vpop.f32.mrb[0].mxu0
        %1855 = vmatprep.mubr.f32.mxu0 0.0
        %1856 = vmatmul.mubr.f32.gmra.mrb[0].mxu0 %v1225
        %v1857 = vpop.f32.mrb[0].mxu0
        %v1858 = vadd.f32 0.0, %v1857
        %v1859 = vpop.f32.mrb[0].mxu0
        %1860 = vmatprep.mubr.f32.mxu0 0.0
        %1861 = vmatmul.mubr.f32.gmra.mrb[0].mxu0 %v1227
        %v1862 = vpop.f32.mrb[0].mxu0
        %v1863 = vadd.f32 0.0, %v1862
        %v1864 = vpop.f32.mrb[0].mxu0
        %1865 = vmatprep.mubr.f32.mxu0 0.0
        %1866 = vmatmul.mubr.f32.gmra.mrb[0].mxu0 %v1229
        %v1867 = vpop.f32.mrb[0].mxu0
        %v1868 = vadd.f32 0.0, %v1867
        %v1869 = vpop.f32.mrb[0].mxu0
        %1870 = vmatprep.mubr.f32.mxu0 0.0
        %1871 = vmatmul.mubr.f32.gmra.mrb[0].mxu0 %v1231
        %v1872 = vpop.f32.mrb[0].mxu0
        %v1873 = vadd.f32 0.0, %v1872
        %v1874 = vpop.f32.mrb[0].mxu0
        %1875 = vmatprep.mubr.f32.mxu0 0.0
        %1876 = vmatmul.mubr.f32.gmra.mrb[0].mxu0 %v1743
        %v1877 = vpop.f32.mrb[0].mxu0
        %v1878 = vadd.f32 0.0, %v1877
        %v1879 = vpop.f32.mrb[0].mxu0
        %1880 = vmatprep.mubr.f32.mxu0 0.0
        %1881 = vmatmul.mubr.f32.gmra.mrb[0].mxu0 %v1745
        %v1882 = vpop.f32.mrb[0].mxu0
        %v1883 = vadd.f32 0.0, %v1882
        %v1884 = vpop.f32.mrb[0].mxu0
        %1885 = vmatprep.mubr.f32.mxu0 0.0
        %1886 = vmatmul.mubr.f32.gmra.mrb[0].mxu0 %v1747
        %v1887 = vpop.f32.mrb[0].mxu0
        %v1888 = vadd.f32 0.0, %v1887
        %v1889 = vpop.f32.mrb[0].mxu0
        %1890 = vmatprep.mubr.f32.mxu0 0.0
        %1891 = vmatmul.mubr.f32.gmra.mrb[0].mxu0 %v1749
        %v1892 = vpop.f32.mrb[0].mxu0
        %v1893 = vadd.f32 0.0, %v1892
        %v1894 = vpop.f32.mrb[0].mxu0
        %1895 = vdwg.mxu0
        %v1896 = vadd.f32 %v1710, %v1818
        %v1897 = vadd.f32 %v1711, %v1823
        %v1898 = vadd.f32 %v1712, %v1828
        %v1899 = vadd.f32 %v1713, %v1833
        %v1900 = vadd.f32 %v1714, %v1838
        %v1901 = vadd.f32 %v1715, %v1843
        %v1902 = vadd.f32 %v1716, %v1848
        %v1903 = vadd.f32 %v1717, %v1853
        %v1904 = vadd.f32 %v1718, %v1858
        %v1905 = vadd.f32 %v1719, %v1863
        %v1906 = vadd.f32 %v1720, %v1868
        %v1907 = vadd.f32 %v1721, %v1873
        %v1908 = vadd.f32 %v1722, %v1878
        %v1909 = vadd.f32 %v1723, %v1883
        %v1910 = vadd.f32 %v1724, %v1888
        %v1911 = vadd.f32 %v1725, %v1893
        %v1912 = vrot.slane %v338, 6
        %v1913 = vrot.slane %v339, 6
        %v1914 = vsel %vm386, %v1912, %v1913
        %v1915 = vrot.slane %v340, 6
        %v1916 = vsel %vm386, %v1913, %v1915
        %v1917 = vrot.slane %v342, 6
        %v1918 = vrot.slane %v343, 6
        %v1919 = vsel %vm386, %v1917, %v1918
        %v1920 = vrot.slane %v344, 6
        %v1921 = vsel %vm386, %v1918, %v1920
        %v1922 = vld [vmem:[%s2 + $0x38] sm:$0xff]
        %v1923 = vsel %vm433, %v1914, 0
        %v1925 = vsel %vm433, %v1916, 0
        %v1927 = vsel %vm433, %v1919, 0
        %v1929 = vsel %vm433, %v1921, 0
        %1931 = vmatprep.subr.mxu0 0.0
        %1932 = vmatpush1.msra.mxu0 %v1922
        %1933 = vmatprep.subr.mxu0 0.0
        %1934 = vmatpush1.msra.mxu0 0.0
        %1935 = vmatprep.subr.mxu0 0.0
        %1936 = vmatpush1.msra.mxu0 0.0
        %1937 = vmatprep.subr.mxu0 0.0
        %1938 = vmatpush1.msra.mxu0 0.0
        %1939 = vmatprep.subr.mxu0 0.0
        %1940 = vmatpush1.msra.mxu0 0.0
        %1941 = vmatprep.subr.mxu0 0.0
        %1942 = vmatpush1.msra.mxu0 0.0
        %1943 = vmatprep.subr.mxu0 0.0
        %1944 = vmatpush1.msra.mxu0 0.0
        %1945 = vmatprep.subr.mxu0 0.0
        %1946 = vmatpush1.msra.mxu0 0.0
        %1947 = vmatprep.subr.mxu0 0.0
        %1948 = vmatpush1.msra.mxu0 0.0
        %1949 = vmatprep.subr.mxu0 0.0
        %1950 = vmatpush1.msra.mxu0 0.0
        %1951 = vmatprep.subr.mxu0 0.0
        %1952 = vmatpush1.msra.mxu0 0.0
        %1953 = vmatprep.subr.mxu0 0.0
        %1954 = vmatpush1.msra.mxu0 0.0
        %1955 = vmatprep.subr.mxu0 0.0
        %1956 = vmatpush1.msra.mxu0 0.0
        %1957 = vmatprep.subr.mxu0 0.0
        %1958 = vmatpush1.msra.mxu0 0.0
        %1959 = vmatprep.subr.mxu0 0.0
        %1960 = vmatpush1.msra.mxu0 0.0
        %1961 = vmatprep.subr.mxu0 0.0
        %1962 = vmatpush1.msra.mxu0 0.0
        %1963 = vmatprep.subr.mxu0 0.0
        %1964 = vmatpush1.msra.mxu0 0.0
        %1965 = vmatprep.subr.mxu0 0.0
        %1966 = vmatpush1.msra.mxu0 0.0
        %1967 = vmatprep.subr.mxu0 0.0
        %1968 = vmatpush1.msra.mxu0 0.0
        %1969 = vmatprep.subr.mxu0 0.0
        %1970 = vmatpush1.msra.mxu0 0.0
        %1971 = vmatprep.subr.mxu0 0.0
        %1972 = vmatpush1.msra.mxu0 0.0
        %1973 = vmatprep.subr.mxu0 0.0
        %1974 = vmatpush1.msra.mxu0 0.0
        %1975 = vmatprep.subr.mxu0 0.0
        %1976 = vmatpush1.msra.mxu0 0.0
        %1977 = vmatprep.subr.mxu0 0.0
        %1978 = vmatpush1.msra.mxu0 0.0
        %1979 = vmatprep.subr.mxu0 0.0
        %1980 = vmatpush1.msra.mxu0 0.0
        %1981 = vmatprep.subr.mxu0 0.0
        %1982 = vmatpush1.msra.mxu0 0.0
        %1983 = vmatprep.subr.mxu0 0.0
        %1984 = vmatpush1.msra.mxu0 0.0
        %1985 = vmatprep.subr.mxu0 0.0
        %1986 = vmatpush1.msra.mxu0 0.0
        %1987 = vmatprep.subr.mxu0 0.0
        %1988 = vmatpush1.msra.mxu0 0.0
        %1989 = vmatprep.subr.mxu0 0.0
        %1990 = vmatpush1.msra.mxu0 0.0
        %1991 = vmatprep.subr.mxu0 0.0
        %1992 = vmatpush1.msra.mxu0 0.0
        %1993 = vmatprep.subr.mxu0 0.0
        %1994 = vmatpush1.msra.mxu0 0.0
        %1995 = vmatprep.mubr.f32.mxu0 0.0
        %1996 = vmatmul.mubr.f32.gmra.mrb[0].mxu0 %v442
        %v1997 = vpop.f32.mrb[0].mxu0
        %v1998 = vadd.f32 0.0, %v1997
        %v1999 = vpop.f32.mrb[0].mxu0
        %2000 = vmatprep.mubr.f32.mxu0 0.0
        %2001 = vmatmul.mubr.f32.gmra.mrb[0].mxu0 %v444
        %v2002 = vpop.f32.mrb[0].mxu0
        %v2003 = vadd.f32 0.0, %v2002
        %v2004 = vpop.f32.mrb[0].mxu0
        %2005 = vmatprep.mubr.f32.mxu0 0.0
        %2006 = vmatmul.mubr.f32.gmra.mrb[0].mxu0 %v446
        %v2007 = vpop.f32.mrb[0].mxu0
        %v2008 = vadd.f32 0.0, %v2007
        %v2009 = vpop.f32.mrb[0].mxu0
        %2010 = vmatprep.mubr.f32.mxu0 0.0
        %2011 = vmatmul.mubr.f32.gmra.mrb[0].mxu0 %v448
        %v2012 = vpop.f32.mrb[0].mxu0
        %v2013 = vadd.f32 0.0, %v2012
        %v2014 = vpop.f32.mrb[0].mxu0
        %2015 = vmatprep.mubr.f32.mxu0 0.0
        %2016 = vmatmul.mubr.f32.gmra.mrb[0].mxu0 %v450
        %v2017 = vpop.f32.mrb[0].mxu0
        %v2018 = vadd.f32 0.0, %v2017
        %v2019 = vpop.f32.mrb[0].mxu0
        %2020 = vmatprep.mubr.f32.mxu0 0.0
        %2021 = vmatmul.mubr.f32.gmra.mrb[0].mxu0 %v452
        %v2022 = vpop.f32.mrb[0].mxu0
        %v2023 = vadd.f32 0.0, %v2022
        %v2024 = vpop.f32.mrb[0].mxu0
        %2025 = vmatprep.mubr.f32.mxu0 0.0
        %2026 = vmatmul.mubr.f32.gmra.mrb[0].mxu0 %v454
        %v2027 = vpop.f32.mrb[0].mxu0
        %v2028 = vadd.f32 0.0, %v2027
        %v2029 = vpop.f32.mrb[0].mxu0
        %2030 = vmatprep.mubr.f32.mxu0 0.0
        %2031 = vmatmul.mubr.f32.gmra.mrb[0].mxu0 %v456
        %v2032 = vpop.f32.mrb[0].mxu0
        %v2033 = vadd.f32 0.0, %v2032
        %v2034 = vpop.f32.mrb[0].mxu0
        %2035 = vmatprep.mubr.f32.mxu0 0.0
        %2036 = vmatmul.mubr.f32.gmra.mrb[0].mxu0 %v458
        %v2037 = vpop.f32.mrb[0].mxu0
        %v2038 = vadd.f32 0.0, %v2037
        %v2039 = vpop.f32.mrb[0].mxu0
        %2040 = vmatprep.mubr.f32.mxu0 0.0
        %2041 = vmatmul.mubr.f32.gmra.mrb[0].mxu0 %v460
        %v2042 = vpop.f32.mrb[0].mxu0
        %v2043 = vadd.f32 0.0, %v2042
        %v2044 = vpop.f32.mrb[0].mxu0
        %2045 = vmatprep.mubr.f32.mxu0 0.0
        %2046 = vmatmul.mubr.f32.gmra.mrb[0].mxu0 %v462
        %v2047 = vpop.f32.mrb[0].mxu0
        %v2048 = vadd.f32 0.0, %v2047
        %v2049 = vpop.f32.mrb[0].mxu0
        %2050 = vmatprep.mubr.f32.mxu0 0.0
        %2051 = vmatmul.mubr.f32.gmra.mrb[0].mxu0 %v464
        %v2052 = vpop.f32.mrb[0].mxu0
        %v2053 = vadd.f32 0.0, %v2052
        %v2054 = vpop.f32.mrb[0].mxu0
        %2055 = vmatprep.mubr.f32.mxu0 0.0
        %2056 = vmatmul.mubr.f32.gmra.mrb[0].mxu0 %v1923
        %v2057 = vpop.f32.mrb[0].mxu0
        %v2058 = vadd.f32 0.0, %v2057
        %v2059 = vpop.f32.mrb[0].mxu0
        %2060 = vmatprep.mubr.f32.mxu0 0.0
        %2061 = vmatmul.mubr.f32.gmra.mrb[0].mxu0 %v1925
        %v2062 = vpop.f32.mrb[0].mxu0
        %v2063 = vadd.f32 0.0, %v2062
        %v2064 = vpop.f32.mrb[0].mxu0
        %2065 = vmatprep.mubr.f32.mxu0 0.0
        %2066 = vmatmul.mubr.f32.gmra.mrb[0].mxu0 %v1927
        %v2067 = vpop.f32.mrb[0].mxu0
        %v2068 = vadd.f32 0.0, %v2067
        %v2069 = vpop.f32.mrb[0].mxu0
        %2070 = vmatprep.mubr.f32.mxu0 0.0
        %2071 = vmatmul.mubr.f32.gmra.mrb[0].mxu0 %v1929
        %v2072 = vpop.f32.mrb[0].mxu0
        %v2073 = vadd.f32 0.0, %v2072
        %v2074 = vpop.f32.mrb[0].mxu0
        %2075 = vdwg.mxu0
        %v2076 = vadd.f32 %v1896, %v1998
        %v2077 = vadd.f32 %v1897, %v2003
        %v2078 = vadd.f32 %v1898, %v2008
        %v2079 = vadd.f32 %v1899, %v2013
        %v2080 = vadd.f32 %v1900, %v2018
        %v2081 = vadd.f32 %v1901, %v2023
        %v2082 = vadd.f32 %v1902, %v2028
        %v2083 = vadd.f32 %v1903, %v2033
        %v2084 = vadd.f32 %v1904, %v2038
        %v2085 = vadd.f32 %v1905, %v2043
        %v2086 = vadd.f32 %v1906, %v2048
        %v2087 = vadd.f32 %v1907, %v2053
        %v2088 = vadd.f32 %v1908, %v2058
        %v2089 = vadd.f32 %v1909, %v2063
        %v2090 = vadd.f32 %v1910, %v2068
        %v2091 = vadd.f32 %v1911, %v2073
        %v2092 = vld [vmem:[%s2 + $0x40] sm:$0xff]
        %v2093 = vsel %vm433, %v339, 0
        %v2095 = vsel %vm433, %v340, 0
        %v2097 = vsel %vm433, %v343, 0
        %v2099 = vsel %vm433, %v344, 0
        %2101 = vmatprep.subr.mxu0 0.0
        %2102 = vmatpush1.msra.mxu0 %v2092
        %2103 = vmatprep.subr.mxu0 0.0
        %2104 = vmatpush1.msra.mxu0 0.0
        %2105 = vmatprep.subr.mxu0 0.0
        %2106 = vmatpush1.msra.mxu0 0.0
        %2107 = vmatprep.subr.mxu0 0.0
        %2108 = vmatpush1.msra.mxu0 0.0
        %2109 = vmatprep.subr.mxu0 0.0
        %2110 = vmatpush1.msra.mxu0 0.0
        %2111 = vmatprep.subr.mxu0 0.0
        %2112 = vmatpush1.msra.mxu0 0.0
        %2113 = vmatprep.subr.mxu0 0.0
        %2114 = vmatpush1.msra.mxu0 0.0
        %2115 = vmatprep.subr.mxu0 0.0
        %2116 = vmatpush1.msra.mxu0 0.0
        %2117 = vmatprep.subr.mxu0 0.0
        %2118 = vmatpush1.msra.mxu0 0.0
        %2119 = vmatprep.subr.mxu0 0.0
        %2120 = vmatpush1.msra.mxu0 0.0
        %2121 = vmatprep.subr.mxu0 0.0
        %2122 = vmatpush1.msra.mxu0 0.0
        %2123 = vmatprep.subr.mxu0 0.0
        %2124 = vmatpush1.msra.mxu0 0.0
        %2125 = vmatprep.subr.mxu0 0.0
        %2126 = vmatpush1.msra.mxu0 0.0
        %2127 = vmatprep.subr.mxu0 0.0
        %2128 = vmatpush1.msra.mxu0 0.0
        %2129 = vmatprep.subr.mxu0 0.0
        %2130 = vmatpush1.msra.mxu0 0.0
        %2131 = vmatprep.subr.mxu0 0.0
        %2132 = vmatpush1.msra.mxu0 0.0
        %2133 = vmatprep.subr.mxu0 0.0
        %2134 = vmatpush1.msra.mxu0 0.0
        %2135 = vmatprep.subr.mxu0 0.0
        %2136 = vmatpush1.msra.mxu0 0.0
        %2137 = vmatprep.subr.mxu0 0.0
        %2138 = vmatpush1.msra.mxu0 0.0
        %2139 = vmatprep.subr.mxu0 0.0
        %2140 = vmatpush1.msra.mxu0 0.0
        %2141 = vmatprep.subr.mxu0 0.0
        %2142 = vmatpush1.msra.mxu0 0.0
        %2143 = vmatprep.subr.mxu0 0.0
        %2144 = vmatpush1.msra.mxu0 0.0
        %2145 = vmatprep.subr.mxu0 0.0
        %2146 = vmatpush1.msra.mxu0 0.0
        %2147 = vmatprep.subr.mxu0 0.0
        %2148 = vmatpush1.msra.mxu0 0.0
        %2149 = vmatprep.subr.mxu0 0.0
        %2150 = vmatpush1.msra.mxu0 0.0
        %2151 = vmatprep.subr.mxu0 0.0
        %2152 = vmatpush1.msra.mxu0 0.0
        %2153 = vmatprep.subr.mxu0 0.0
        %2154 = vmatpush1.msra.mxu0 0.0
        %2155 = vmatprep.subr.mxu0 0.0
        %2156 = vmatpush1.msra.mxu0 0.0
        %2157 = vmatprep.subr.mxu0 0.0
        %2158 = vmatpush1.msra.mxu0 0.0
        %2159 = vmatprep.subr.mxu0 0.0
        %2160 = vmatpush1.msra.mxu0 0.0
        %2161 = vmatprep.subr.mxu0 0.0
        %2162 = vmatpush1.msra.mxu0 0.0
        %2163 = vmatprep.subr.mxu0 0.0
        %2164 = vmatpush1.msra.mxu0 0.0
        %2165 = vmatprep.mubr.f32.mxu0 0.0
        %2166 = vmatmul.mubr.f32.gmra.mrb[0].mxu0 %v1037
        %v2167 = vpop.f32.mrb[0].mxu0
        %v2168 = vadd.f32 0.0, %v2167
        %v2169 = vpop.f32.mrb[0].mxu0
        %2170 = vmatprep.mubr.f32.mxu0 0.0
        %2171 = vmatmul.mubr.f32.gmra.mrb[0].mxu0 %v1039
        %v2172 = vpop.f32.mrb[0].mxu0
        %v2173 = vadd.f32 0.0, %v2172
        %v2174 = vpop.f32.mrb[0].mxu0
        %2175 = vmatprep.mubr.f32.mxu0 0.0
        %2176 = vmatmul.mubr.f32.gmra.mrb[0].mxu0 %v1041
        %v2177 = vpop.f32.mrb[0].mxu0
        %v2178 = vadd.f32 0.0, %v2177
        %v2179 = vpop.f32.mrb[0].mxu0
        %2180 = vmatprep.mubr.f32.mxu0 0.0
        %2181 = vmatmul.mubr.f32.gmra.mrb[0].mxu0 %v1043
        %v2182 = vpop.f32.mrb[0].mxu0
        %v2183 = vadd.f32 0.0, %v2182
        %v2184 = vpop.f32.mrb[0].mxu0
        %2185 = vmatprep.mubr.f32.mxu0 0.0
        %2186 = vmatmul.mubr.f32.gmra.mrb[0].mxu0 %v1045
        %v2187 = vpop.f32.mrb[0].mxu0
        %v2188 = vadd.f32 0.0, %v2187
        %v2189 = vpop.f32.mrb[0].mxu0
        %2190 = vmatprep.mubr.f32.mxu0 0.0
        %2191 = vmatmul.mubr.f32.gmra.mrb[0].mxu0 %v1047
        %v2192 = vpop.f32.mrb[0].mxu0
        %v2193 = vadd.f32 0.0, %v2192
        %v2194 = vpop.f32.mrb[0].mxu0
        %2195 = vmatprep.mubr.f32.mxu0 0.0
        %2196 = vmatmul.mubr.f32.gmra.mrb[0].mxu0 %v1049
        %v2197 = vpop.f32.mrb[0].mxu0
        %v2198 = vadd.f32 0.0, %v2197
        %v2199 = vpop.f32.mrb[0].mxu0
        %2200 = vmatprep.mubr.f32.mxu0 0.0
        %2201 = vmatmul.mubr.f32.gmra.mrb[0].mxu0 %v1051
        %v2202 = vpop.f32.mrb[0].mxu0
        %v2203 = vadd.f32 0.0, %v2202
        %v2204 = vpop.f32.mrb[0].mxu0
        %2205 = vmatprep.mubr.f32.mxu0 0.0
        %2206 = vmatmul.mubr.f32.gmra.mrb[0].mxu0 %v1557
        %v2207 = vpop.f32.mrb[0].mxu0
        %v2208 = vadd.f32 0.0, %v2207
        %v2209 = vpop.f32.mrb[0].mxu0
        %2210 = vmatprep.mubr.f32.mxu0 0.0
        %2211 = vmatmul.mubr.f32.gmra.mrb[0].mxu0 %v1559
        %v2212 = vpop.f32.mrb[0].mxu0
        %v2213 = vadd.f32 0.0, %v2212
        %v2214 = vpop.f32.mrb[0].mxu0
        %2215 = vmatprep.mubr.f32.mxu0 0.0
        %2216 = vmatmul.mubr.f32.gmra.mrb[0].mxu0 %v1561
        %v2217 = vpop.f32.mrb[0].mxu0
        %v2218 = vadd.f32 0.0, %v2217
        %v2219 = vpop.f32.mrb[0].mxu0
        %2220 = vmatprep.mubr.f32.mxu0 0.0
        %2221 = vmatmul.mubr.f32.gmra.mrb[0].mxu0 %v1563
        %v2222 = vpop.f32.mrb[0].mxu0
        %v2223 = vadd.f32 0.0, %v2222
        %v2224 = vpop.f32.mrb[0].mxu0
        %2225 = vmatprep.mubr.f32.mxu0 0.0
        %2226 = vmatmul.mubr.f32.gmra.mrb[0].mxu0 %v2093
        %v2227 = vpop.f32.mrb[0].mxu0
        %v2228 = vadd.f32 0.0, %v2227
        %v2229 = vpop.f32.mrb[0].mxu0
        %2230 = vmatprep.mubr.f32.mxu0 0.0
        %2231 = vmatmul.mubr.f32.gmra.mrb[0].mxu0 %v2095
        %v2232 = vpop.f32.mrb[0].mxu0
        %v2233 = vadd.f32 0.0, %v2232
        %v2234 = vpop.f32.mrb[0].mxu0
        %2235 = vmatprep.mubr.f32.mxu0 0.0
        %2236 = vmatmul.mubr.f32.gmra.mrb[0].mxu0 %v2097
        %v2237 = vpop.f32.mrb[0].mxu0
        %v2238 = vadd.f32 0.0, %v2237
        %v2239 = vpop.f32.mrb[0].mxu0
        %2240 = vmatprep.mubr.f32.mxu0 0.0
        %2241 = vmatmul.mubr.f32.gmra.mrb[0].mxu0 %v2099
        %v2242 = vpop.f32.mrb[0].mxu0
        %v2243 = vadd.f32 0.0, %v2242
        %v2244 = vpop.f32.mrb[0].mxu0
        %2245 = vdwg.mxu0
        %v2246 = vadd.f32 %v2076, %v2168
        %v2247 = vadd.f32 %v2077, %v2173
        %v2248 = vadd.f32 %v2078, %v2178
        %v2249 = vadd.f32 %v2079, %v2183
        %v2250 = vadd.f32 %v2080, %v2188
        %v2251 = vadd.f32 %v2081, %v2193
        %v2252 = vadd.f32 %v2082, %v2198
        %v2253 = vadd.f32 %v2083, %v2203
        %v2254 = vadd.f32 %v2084, %v2208
        %v2255 = vadd.f32 %v2085, %v2213
        %v2256 = vadd.f32 %v2086, %v2218
        %v2257 = vadd.f32 %v2087, %v2223
        %v2258 = vadd.f32 %v2088, %v2228
        %v2259 = vadd.f32 %v2089, %v2233
        %v2260 = vadd.f32 %v2090, %v2238
        %v2261 = vadd.f32 %v2091, %v2243
        %v2262 = vld [vmem:[%s3 + $0x1] sm:$0x1]
        %v2263 = vlaneseq
        %v2264 = vshrl.u32 %v2263, 7
        %v2265 = vsub.s32 0, %v2264
        %v2266 = vrot.slane %v2262, %v2265
        %v2267 = vadd.f32 %v2246, %v2266
        %v2268 = vadd.f32 %v2247, %v2266
        %v2269 = vadd.f32 %v2248, %v2266
        %v2270 = vadd.f32 %v2249, %v2266
        %v2271 = vadd.f32 %v2250, %v2266
        %v2272 = vadd.f32 %v2251, %v2266
        %v2273 = vadd.f32 %v2252, %v2266
        %v2274 = vadd.f32 %v2253, %v2266
        %v2275 = vadd.f32 %v2254, %v2266
        %v2276 = vadd.f32 %v2255, %v2266
        %v2277 = vadd.f32 %v2256, %v2266
        %v2278 = vadd.f32 %v2257, %v2266
        %v2279 = vadd.f32 %v2258, %v2266
        %v2280 = vadd.f32 %v2259, %v2266
        %v2281 = vadd.f32 %v2260, %v2266
        %v2282 = vadd.f32 %v2261, %v2266
        %v2283 = vmax.f32 %v2267, 0.0
        %v2284 = vmax.f32 %v2268, 0.0
        %v2285 = vmax.f32 %v2269, 0.0
        %v2286 = vmax.f32 %v2270, 0.0
        %v2287 = vmax.f32 %v2271, 0.0
        %v2288 = vmax.f32 %v2272, 0.0
        %v2289 = vmax.f32 %v2273, 0.0
        %v2290 = vmax.f32 %v2274, 0.0
        %v2291 = vmax.f32 %v2275, 0.0
        %v2292 = vmax.f32 %v2276, 0.0
        %v2293 = vmax.f32 %v2277, 0.0
        %v2294 = vmax.f32 %v2278, 0.0
        %v2295 = vmax.f32 %v2279, 0.0
        %v2296 = vmax.f32 %v2280, 0.0
        %v2297 = vmax.f32 %v2281, 0.0
        %v2298 = vmax.f32 %v2282, 0.0
        %v2299 = vld [vmem:[%s4 + $0x20] sm:$0xff]
        %v2300 = vld [vmem:[%s4 + $0x28] sm:$0xff]
        %v2301 = vld [vmem:[%s4 + $0x30] sm:$0xff]
        %v2302 = vld [vmem:[%s4 + $0x38] sm:$0xff]
        %vm2303 = vcmask 261120
        %v2305 = vsel %vm2303, %v2283, 0
        %v2308 = vsel %vm2303, %v2284, 0
        %v2311 = vsel %vm2303, %v2285, 0
        %v2314 = vsel %vm2303, %v2286, 0
        %v2317 = vsel %vm2303, %v2287, 0
        %v2320 = vsel %vm2303, %v2288, 0
        %v2323 = vsel %vm2303, %v2289, 0
        %v2326 = vsel %vm2303, %v2290, 0
        %v2329 = vsel %vm2303, %v2291, 0
        %v2332 = vsel %vm2303, %v2292, 0
        %v2335 = vsel %vm2303, %v2293, 0
        %v2338 = vsel %vm2303, %v2294, 0
        %v2341 = vsel %vm2303, %v2295, 0
        %v2344 = vsel %vm2303, %v2296, 0
        %v2347 = vsel %vm2303, %v2297, 0
        %v2350 = vsel %vm2303, %v2298, 0
        %2352 = vmatprep.subr.mxu0 0.0
        %2353 = vmatpush1.msra.mxu0 %v2299
        %2354 = vmatprep.subr.mxu0 0.0
        %2355 = vmatpush1.msra.mxu0 %v2300
        %2356 = vmatprep.subr.mxu0 0.0
        %2357 = vmatpush1.msra.mxu0 %v2301
        %2358 = vmatprep.subr.mxu0 0.0
        %2359 = vmatpush1.msra.mxu0 %v2302
        %2360 = vmatprep.subr.mxu0 0.0
        %2361 = vmatpush1.msra.mxu0 0.0
        %2362 = vmatprep.subr.mxu0 0.0
        %2363 = vmatpush1.msra.mxu0 0.0
        %2364 = vmatprep.subr.mxu0 0.0
        %2365 = vmatpush1.msra.mxu0 0.0
        %2366 = vmatprep.subr.mxu0 0.0
        %2367 = vmatpush1.msra.mxu0 0.0
        %2368 = vmatprep.subr.mxu0 0.0
        %2369 = vmatpush1.msra.mxu0 0.0
        %2370 = vmatprep.subr.mxu0 0.0
        %2371 = vmatpush1.msra.mxu0 0.0
        %2372 = vmatprep.subr.mxu0 0.0
        %2373 = vmatpush1.msra.mxu0 0.0
        %2374 = vmatprep.subr.mxu0 0.0
        %2375 = vmatpush1.msra.mxu0 0.0
        %2376 = vmatprep.subr.mxu0 0.0
        %2377 = vmatpush1.msra.mxu0 0.0
        %2378 = vmatprep.subr.mxu0 0.0
        %2379 = vmatpush1.msra.mxu0 0.0
        %2380 = vmatprep.subr.mxu0 0.0
        %2381 = vmatpush1.msra.mxu0 0.0
        %2382 = vmatprep.subr.mxu0 0.0
        %2383 = vmatpush1.msra.mxu0 0.0
        %2384 = vmatprep.subr.mxu0 0.0
        %2385 = vmatpush1.msra.mxu0 0.0
        %2386 = vmatprep.subr.mxu0 0.0
        %2387 = vmatpush1.msra.mxu0 0.0
        %2388 = vmatprep.subr.mxu0 0.0
        %2389 = vmatpush1.msra.mxu0 0.0
        %2390 = vmatprep.subr.mxu0 0.0
        %2391 = vmatpush1.msra.mxu0 0.0
        %2392 = vmatprep.subr.mxu0 0.0
        %2393 = vmatpush1.msra.mxu0 0.0
        %2394 = vmatprep.subr.mxu0 0.0
        %2395 = vmatpush1.msra.mxu0 0.0
        %2396 = vmatprep.subr.mxu0 0.0
        %2397 = vmatpush1.msra.mxu0 0.0
        %2398 = vmatprep.subr.mxu0 0.0
        %2399 = vmatpush1.msra.mxu0 0.0
        %2400 = vmatprep.subr.mxu0 0.0
        %2401 = vmatpush1.msra.mxu0 0.0
        %2402 = vmatprep.subr.mxu0 0.0
        %2403 = vmatpush1.msra.mxu0 0.0
        %2404 = vmatprep.subr.mxu0 0.0
        %2405 = vmatpush1.msra.mxu0 0.0
        %2406 = vmatprep.subr.mxu0 0.0
        %2407 = vmatpush1.msra.mxu0 0.0
        %2408 = vmatprep.subr.mxu0 0.0
        %2409 = vmatpush1.msra.mxu0 0.0
        %2410 = vmatprep.subr.mxu0 0.0
        %2411 = vmatpush1.msra.mxu0 0.0
        %2412 = vmatprep.subr.mxu0 0.0
        %2413 = vmatpush1.msra.mxu0 0.0
        %2414 = vmatprep.subr.mxu0 0.0
        %2415 = vmatpush1.msra.mxu0 0.0
        %2416 = vmatprep.mubr.f32.mxu0 0.0
        %2417 = vmatmul.mubr.f32.gmra.mrb[0].mxu0 %v2305
        %v2418 = vpop.f32.mrb[0].mxu0
        %v2419 = vadd.f32 0.0, %v2418
        %v2420 = vpop.f32.mrb[0].mxu0
        %2421 = vmatprep.mubr.f32.mxu0 0.0
        %2422 = vmatmul.mubr.f32.gmra.mrb[0].mxu0 %v2308
        %v2423 = vpop.f32.mrb[0].mxu0
        %v2424 = vadd.f32 0.0, %v2423
        %v2425 = vpop.f32.mrb[0].mxu0
        %2426 = vmatprep.mubr.f32.mxu0 0.0
        %2427 = vmatmul.mubr.f32.gmra.mrb[0].mxu0 %v2311
        %v2428 = vpop.f32.mrb[0].mxu0
        %v2429 = vadd.f32 0.0, %v2428
        %v2430 = vpop.f32.mrb[0].mxu0
        %2431 = vmatprep.mubr.f32.mxu0 0.0
        %2432 = vmatmul.mubr.f32.gmra.mrb[0].mxu0 %v2314
        %v2433 = vpop.f32.mrb[0].mxu0
        %v2434 = vadd.f32 0.0, %v2433
        %v2435 = vpop.f32.mrb[0].mxu0
        %2436 = vmatprep.mubr.f32.mxu0 0.0
        %2437 = vmatmul.mubr.f32.gmra.mrb[0].mxu0 %v2317
        %v2438 = vpop.f32.mrb[0].mxu0
        %v2439 = vadd.f32 0.0, %v2438
        %v2440 = vpop.f32.mrb[0].mxu0
        %2441 = vmatprep.mubr.f32.mxu0 0.0
        %2442 = vmatmul.mubr.f32.gmra.mrb[0].mxu0 %v2320
        %v2443 = vpop.f32.mrb[0].mxu0
        %v2444 = vadd.f32 0.0, %v2443
        %v2445 = vpop.f32.mrb[0].mxu0
        %2446 = vmatprep.mubr.f32.mxu0 0.0
        %2447 = vmatmul.mubr.f32.gmra.mrb[0].mxu0 %v2323
        %v2448 = vpop.f32.mrb[0].mxu0
        %v2449 = vadd.f32 0.0, %v2448
        %v2450 = vpop.f32.mrb[0].mxu0
        %2451 = vmatprep.mubr.f32.mxu0 0.0
        %2452 = vmatmul.mubr.f32.gmra.mrb[0].mxu0 %v2326
        %v2453 = vpop.f32.mrb[0].mxu0
        %v2454 = vadd.f32 0.0, %v2453
        %v2455 = vpop.f32.mrb[0].mxu0
        %2456 = vmatprep.mubr.f32.mxu0 0.0
        %2457 = vmatmul.mubr.f32.gmra.mrb[0].mxu0 %v2329
        %v2458 = vpop.f32.mrb[0].mxu0
        %v2459 = vadd.f32 0.0, %v2458
        %v2460 = vpop.f32.mrb[0].mxu0
        %2461 = vmatprep.mubr.f32.mxu0 0.0
        %2462 = vmatmul.mubr.f32.gmra.mrb[0].mxu0 %v2332
        %v2463 = vpop.f32.mrb[0].mxu0
        %v2464 = vadd.f32 0.0, %v2463
        %v2465 = vpop.f32.mrb[0].mxu0
        %2466 = vmatprep.mubr.f32.mxu0 0.0
        %2467 = vmatmul.mubr.f32.gmra.mrb[0].mxu0 %v2335
        %v2468 = vpop.f32.mrb[0].mxu0
        %v2469 = vadd.f32 0.0, %v2468
        %v2470 = vpop.f32.mrb[0].mxu0
        %2471 = vmatprep.mubr.f32.mxu0 0.0
        %2472 = vmatmul.mubr.f32.gmra.mrb[0].mxu0 %v2338
        %v2473 = vpop.f32.mrb[0].mxu0
        %v2474 = vadd.f32 0.0, %v2473
        %v2475 = vpop.f32.mrb[0].mxu0
        %2476 = vmatprep.mubr.f32.mxu0 0.0
        %2477 = vmatmul.mubr.f32.gmra.mrb[0].mxu0 %v2341
        %v2478 = vpop.f32.mrb[0].mxu0
        %v2479 = vadd.f32 0.0, %v2478
        %v2480 = vpop.f32.mrb[0].mxu0
        %2481 = vmatprep.mubr.f32.mxu0 0.0
        %2482 = vmatmul.mubr.f32.gmra.mrb[0].mxu0 %v2344
        %v2483 = vpop.f32.mrb[0].mxu0
        %v2484 = vadd.f32 0.0, %v2483
        %v2485 = vpop.f32.mrb[0].mxu0
        %2486 = vmatprep.mubr.f32.mxu0 0.0
        %2487 = vmatmul.mubr.f32.gmra.mrb[0].mxu0 %v2347
        %v2488 = vpop.f32.mrb[0].mxu0
        %v2489 = vadd.f32 0.0, %v2488
        %v2490 = vpop.f32.mrb[0].mxu0
        %2491 = vmatprep.mubr.f32.mxu0 0.0
        %2492 = vmatmul.mubr.f32.gmra.mrb[0].mxu0 %v2350
        %v2493 = vpop.f32.mrb[0].mxu0
        %v2494 = vadd.f32 0.0, %v2493
        %v2495 = vpop.f32.mrb[0].mxu0
        %2496 = vdwg.mxu0
        %v2498 = vsel %vm2303, %v611, 0
        %v2501 = vsel %vm2303, %v612, 0
        %v2504 = vsel %vm2303, %v613, 0
        %v2507 = vsel %vm2303, %v614, 0
        %v2510 = vsel %vm2303, %v615, 0
        %v2513 = vsel %vm2303, %v616, 0
        %v2516 = vsel %vm2303, %v617, 0
        %v2519 = vsel %vm2303, %v618, 0
        %v2522 = vsel %vm2303, %v619, 0
        %v2525 = vsel %vm2303, %v620, 0
        %v2528 = vsel %vm2303, %v621, 0
        %v2531 = vsel %vm2303, %v622, 0
        %v2534 = vsel %vm2303, %v623, 0
        %v2537 = vsel %vm2303, %v624, 0
        %v2540 = vsel %vm2303, %v625, 0
        %v2543 = vsel %vm2303, %v626, 0
        %2545 = vmatprep.subr.mxu0 0.0
        %2546 = vmatpush1.msra.mxu0 %v627
        %2547 = vmatprep.subr.mxu0 0.0
        %2548 = vmatpush1.msra.mxu0 %v628
        %2549 = vmatprep.subr.mxu0 0.0
        %2550 = vmatpush1.msra.mxu0 %v629
        %2551 = vmatprep.subr.mxu0 0.0
        %2552 = vmatpush1.msra.mxu0 %v630
        %2553 = vmatprep.subr.mxu0 0.0
        %2554 = vmatpush1.msra.mxu0 0.0
        %2555 = vmatprep.subr.mxu0 0.0
        %2556 = vmatpush1.msra.mxu0 0.0
        %2557 = vmatprep.subr.mxu0 0.0
        %2558 = vmatpush1.msra.mxu0 0.0
        %2559 = vmatprep.subr.mxu0 0.0
        %2560 = vmatpush1.msra.mxu0 0.0
        %2561 = vmatprep.subr.mxu0 0.0
        %2562 = vmatpush1.msra.mxu0 0.0
        %2563 = vmatprep.subr.mxu0 0.0
        %2564 = vmatpush1.msra.mxu0 0.0
        %2565 = vmatprep.subr.mxu0 0.0
        %2566 = vmatpush1.msra.mxu0 0.0
        %2567 = vmatprep.subr.mxu0 0.0
        %2568 = vmatpush1.msra.mxu0 0.0
        %2569 = vmatprep.subr.mxu0 0.0
        %2570 = vmatpush1.msra.mxu0 0.0
        %2571 = vmatprep.subr.mxu0 0.0
        %2572 = vmatpush1.msra.mxu0 0.0
        %2573 = vmatprep.subr.mxu0 0.0
        %2574 = vmatpush1.msra.mxu0 0.0
        %2575 = vmatprep.subr.mxu0 0.0
        %2576 = vmatpush1.msra.mxu0 0.0
        %2577 = vmatprep.subr.mxu0 0.0
        %2578 = vmatpush1.msra.mxu0 0.0
        %2579 = vmatprep.subr.mxu0 0.0
        %2580 = vmatpush1.msra.mxu0 0.0
        %2581 = vmatprep.subr.mxu0 0.0
        %2582 = vmatpush1.msra.mxu0 0.0
        %2583 = vmatprep.subr.mxu0 0.0
        %2584 = vmatpush1.msra.mxu0 0.0
        %2585 = vmatprep.subr.mxu0 0.0
        %2586 = vmatpush1.msra.mxu0 0.0
        %2587 = vmatprep.subr.mxu0 0.0
        %2588 = vmatpush1.msra.mxu0 0.0
        %2589 = vmatprep.subr.mxu0 0.0
        %2590 = vmatpush1.msra.mxu0 0.0
        %2591 = vmatprep.subr.mxu0 0.0
        %2592 = vmatpush1.msra.mxu0 0.0
        %2593 = vmatprep.subr.mxu0 0.0
        %2594 = vmatpush1.msra.mxu0 0.0
        %2595 = vmatprep.subr.mxu0 0.0
        %2596 = vmatpush1.msra.mxu0 0.0
        %2597 = vmatprep.subr.mxu0 0.0
        %2598 = vmatpush1.msra.mxu0 0.0
        %2599 = vmatprep.subr.mxu0 0.0
        %2600 = vmatpush1.msra.mxu0 0.0
        %2601 = vmatprep.subr.mxu0 0.0
        %2602 = vmatpush1.msra.mxu0 0.0
        %2603 = vmatprep.subr.mxu0 0.0
        %2604 = vmatpush1.msra.mxu0 0.0
        %2605 = vmatprep.subr.mxu0 0.0
        %2606 = vmatpush1.msra.mxu0 0.0
        %2607 = vmatprep.subr.mxu0 0.0
        %2608 = vmatpush1.msra.mxu0 0.0
        %2609 = vmatprep.mubr.f32.mxu0 0.0
        %2610 = vmatmul.mubr.f32.gmra.mrb[0].mxu0 %v2498
        %v2611 = vpop.f32.mrb[0].mxu0
        %v2612 = vadd.f32 %v2419, %v2611
        %v2613 = vpop.f32.mrb[0].mxu0
        %2614 = vmatprep.mubr.f32.mxu0 0.0
        %2615 = vmatmul.mubr.f32.gmra.mrb[0].mxu0 %v2501
        %v2616 = vpop.f32.mrb[0].mxu0
        %v2617 = vadd.f32 %v2424, %v2616
        %v2618 = vpop.f32.mrb[0].mxu0
        %2619 = vmatprep.mubr.f32.mxu0 0.0
        %2620 = vmatmul.mubr.f32.gmra.mrb[0].mxu0 %v2504
        %v2621 = vpop.f32.mrb[0].mxu0
        %v2622 = vadd.f32 %v2429, %v2621
        %v2623 = vpop.f32.mrb[0].mxu0
        %2624 = vmatprep.mubr.f32.mxu0 0.0
        %2625 = vmatmul.mubr.f32.gmra.mrb[0].mxu0 %v2507
        %v2626 = vpop.f32.mrb[0].mxu0
        %v2627 = vadd.f32 %v2434, %v2626
        %v2628 = vpop.f32.mrb[0].mxu0
        %2629 = vmatprep.mubr.f32.mxu0 0.0
        %2630 = vmatmul.mubr.f32.gmra.mrb[0].mxu0 %v2510
        %v2631 = vpop.f32.mrb[0].mxu0
        %v2632 = vadd.f32 %v2439, %v2631
        %v2633 = vpop.f32.mrb[0].mxu0
        %2634 = vmatprep.mubr.f32.mxu0 0.0
        %2635 = vmatmul.mubr.f32.gmra.mrb[0].mxu0 %v2513
        %v2636 = vpop.f32.mrb[0].mxu0
        %v2637 = vadd.f32 %v2444, %v2636
        %v2638 = vpop.f32.mrb[0].mxu0
        %2639 = vmatprep.mubr.f32.mxu0 0.0
        %2640 = vmatmul.mubr.f32.gmra.mrb[0].mxu0 %v2516
        %v2641 = vpop.f32.mrb[0].mxu0
        %v2642 = vadd.f32 %v2449, %v2641
        %v2643 = vpop.f32.mrb[0].mxu0
        %2644 = vmatprep.mubr.f32.mxu0 0.0
        %2645 = vmatmul.mubr.f32.gmra.mrb[0].mxu0 %v2519
        %v2646 = vpop.f32.mrb[0].mxu0
        %v2647 = vadd.f32 %v2454, %v2646
        %v2648 = vpop.f32.mrb[0].mxu0
        %2649 = vmatprep.mubr.f32.mxu0 0.0
        %2650 = vmatmul.mubr.f32.gmra.mrb[0].mxu0 %v2522
        %v2651 = vpop.f32.mrb[0].mxu0
        %v2652 = vadd.f32 %v2459, %v2651
        %v2653 = vpop.f32.mrb[0].mxu0
        %2654 = vmatprep.mubr.f32.mxu0 0.0
        %2655 = vmatmul.mubr.f32.gmra.mrb[0].mxu0 %v2525
        %v2656 = vpop.f32.mrb[0].mxu0
        %v2657 = vadd.f32 %v2464, %v2656
        %v2658 = vpop.f32.mrb[0].mxu0
        %2659 = vmatprep.mubr.f32.mxu0 0.0
        %2660 = vmatmul.mubr.f32.gmra.mrb[0].mxu0 %v2528
        %v2661 = vpop.f32.mrb[0].mxu0
        %v2662 = vadd.f32 %v2469, %v2661
        %v2663 = vpop.f32.mrb[0].mxu0
        %2664 = vmatprep.mubr.f32.mxu0 0.0
        %2665 = vmatmul.mubr.f32.gmra.mrb[0].mxu0 %v2531
        %v2666 = vpop.f32.mrb[0].mxu0
        %v2667 = vadd.f32 %v2474, %v2666
        %v2668 = vpop.f32.mrb[0].mxu0
        %2669 = vmatprep.mubr.f32.mxu0 0.0
        %2670 = vmatmul.mubr.f32.gmra.mrb[0].mxu0 %v2534
        %v2671 = vpop.f32.mrb[0].mxu0
        %v2672 = vadd.f32 %v2479, %v2671
        %v2673 = vpop.f32.mrb[0].mxu0
        %2674 = vmatprep.mubr.f32.mxu0 0.0
        %2675 = vmatmul.mubr.f32.gmra.mrb[0].mxu0 %v2537
        %v2676 = vpop.f32.mrb[0].mxu0
        %v2677 = vadd.f32 %v2484, %v2676
        %v2678 = vpop.f32.mrb[0].mxu0
        %2679 = vmatprep.mubr.f32.mxu0 0.0
        %2680 = vmatmul.mubr.f32.gmra.mrb[0].mxu0 %v2540
        %v2681 = vpop.f32.mrb[0].mxu0
        %v2682 = vadd.f32 %v2489, %v2681
        %v2683 = vpop.f32.mrb[0].mxu0
        %2684 = vmatprep.mubr.f32.mxu0 0.0
        %2685 = vmatmul.mubr.f32.gmra.mrb[0].mxu0 %v2543
        %v2686 = vpop.f32.mrb[0].mxu0
        %v2687 = vadd.f32 %v2494, %v2686
        %v2688 = vpop.f32.mrb[0].mxu0
        %2689 = vdwg.mxu0
        %vm2696 = vcmask 1045504
        %v2697 = vrot.slane %v290, 2
        %v2698 = vrot.slane %v291, 2
        %v2699 = vsel %vm2696, %v2697, %v2698
        %v2700 = vrot.slane %v292, 2
        %v2701 = vsel %vm2696, %v2698, %v2700
        %v2702 = vrot.slane %v294, 2
        %v2703 = vrot.slane %v295, 2
        %v2704 = vsel %vm2696, %v2702, %v2703
        %v2705 = vrot.slane %v296, 2
        %v2706 = vsel %vm2696, %v2703, %v2705
        %v2707 = vrot.slane %v298, 2
        %v2708 = vrot.slane %v299, 2
        %v2709 = vsel %vm2696, %v2707, %v2708
        %v2710 = vrot.slane %v300, 2
        %v2711 = vsel %vm2696, %v2708, %v2710
        %v2712 = vrot.slane %v302, 2
        %v2713 = vrot.slane %v303, 2
        %v2714 = vsel %vm2696, %v2712, %v2713
        %v2715 = vrot.slane %v304, 2
        %v2716 = vsel %vm2696, %v2713, %v2715
        %v2717 = vrot.slane %v306, 2
        %v2718 = vrot.slane %v307, 2
        %v2719 = vsel %vm2696, %v2717, %v2718
        %v2720 = vrot.slane %v308, 2
        %v2721 = vsel %vm2696, %v2718, %v2720
        %v2722 = vrot.slane %v310, 2
        %v2723 = vrot.slane %v311, 2
        %v2724 = vsel %vm2696, %v2722, %v2723
        %v2725 = vrot.slane %v312, 2
        %v2726 = vsel %vm2696, %v2723, %v2725
        %v2727 = vrot.slane %v314, 2
        %v2728 = vrot.slane %v315, 2
        %v2729 = vsel %vm2696, %v2727, %v2728
        %v2730 = vrot.slane %v316, 2
        %v2731 = vsel %vm2696, %v2728, %v2730
        %v2732 = vrot.slane %v318, 2
        %v2733 = vrot.slane %v319, 2
        %v2734 = vsel %vm2696, %v2732, %v2733
        %v2735 = vrot.slane %v320, 2
        %v2736 = vsel %vm2696, %v2733, %v2735
        %v2737 = vld [vmem:[%s2 + $0x48] sm:$0xff]
        %v2738 = vrot.slane %v290, 6
        %v2739 = vrot.slane %v291, 6
        %v2740 = vsel %vm386, %v2738, %v2739
        %v2741 = vrot.slane %v292, 6
        %v2742 = vsel %vm386, %v2739, %v2741
        %v2743 = vrot.slane %v294, 6
        %v2744 = vrot.slane %v295, 6
        %v2745 = vsel %vm386, %v2743, %v2744
        %v2746 = vrot.slane %v296, 6
        %v2747 = vsel %vm386, %v2744, %v2746
        %v2748 = vld [vmem:[%s2 + $0x50] sm:$0xff]
        %v2749 = vsel %vm433, %v2740, 0
        %v2751 = vsel %vm433, %v2742, 0
        %v2753 = vsel %vm433, %v2745, 0
        %v2755 = vsel %vm433, %v2747, 0
        %2757 = vmatprep.subr.mxu0 0.0
        %2758 = vmatpush1.msra.mxu0 %v2748
        %2759 = vmatprep.subr.mxu0 0.0
        %2760 = vmatpush1.msra.mxu0 0.0
        %2761 = vmatprep.subr.mxu0 0.0
        %2762 = vmatpush1.msra.mxu0 0.0
        %2763 = vmatprep.subr.mxu0 0.0
        %2764 = vmatpush1.msra.mxu0 0.0
        %2765 = vmatprep.subr.mxu0 0.0
        %2766 = vmatpush1.msra.mxu0 0.0
        %2767 = vmatprep.subr.mxu0 0.0
        %2768 = vmatpush1.msra.mxu0 0.0
        %2769 = vmatprep.subr.mxu0 0.0
        %2770 = vmatpush1.msra.mxu0 0.0
        %2771 = vmatprep.subr.mxu0 0.0
        %2772 = vmatpush1.msra.mxu0 0.0
        %2773 = vmatprep.subr.mxu0 0.0
        %2774 = vmatpush1.msra.mxu0 0.0
        %2775 = vmatprep.subr.mxu0 0.0
        %2776 = vmatpush1.msra.mxu0 0.0
        %2777 = vmatprep.subr.mxu0 0.0
        %2778 = vmatpush1.msra.mxu0 0.0
        %2779 = vmatprep.subr.mxu0 0.0
        %2780 = vmatpush1.msra.mxu0 0.0
        %2781 = vmatprep.subr.mxu0 0.0
        %2782 = vmatpush1.msra.mxu0 0.0
        %2783 = vmatprep.subr.mxu0 0.0
        %2784 = vmatpush1.msra.mxu0 0.0
        %2785 = vmatprep.subr.mxu0 0.0
        %2786 = vmatpush1.msra.mxu0 0.0
        %2787 = vmatprep.subr.mxu0 0.0
        %2788 = vmatpush1.msra.mxu0 0.0
        %2789 = vmatprep.subr.mxu0 0.0
        %2790 = vmatpush1.msra.mxu0 0.0
        %2791 = vmatprep.subr.mxu0 0.0
        %2792 = vmatpush1.msra.mxu0 0.0
        %2793 = vmatprep.subr.mxu0 0.0
        %2794 = vmatpush1.msra.mxu0 0.0
        %2795 = vmatprep.subr.mxu0 0.0
        %2796 = vmatpush1.msra.mxu0 0.0
        %2797 = vmatprep.subr.mxu0 0.0
        %2798 = vmatpush1.msra.mxu0 0.0
        %2799 = vmatprep.subr.mxu0 0.0
        %2800 = vmatpush1.msra.mxu0 0.0
        %2801 = vmatprep.subr.mxu0 0.0
        %2802 = vmatpush1.msra.mxu0 0.0
        %2803 = vmatprep.subr.mxu0 0.0
        %2804 = vmatpush1.msra.mxu0 0.0
        %2805 = vmatprep.subr.mxu0 0.0
        %2806 = vmatpush1.msra.mxu0 0.0
        %2807 = vmatprep.subr.mxu0 0.0
        %2808 = vmatpush1.msra.mxu0 0.0
        %2809 = vmatprep.subr.mxu0 0.0
        %2810 = vmatpush1.msra.mxu0 0.0
        %2811 = vmatprep.subr.mxu0 0.0
        %2812 = vmatpush1.msra.mxu0 0.0
        %2813 = vmatprep.subr.mxu0 0.0
        %2814 = vmatpush1.msra.mxu0 0.0
        %2815 = vmatprep.subr.mxu0 0.0
        %2816 = vmatpush1.msra.mxu0 0.0
        %2817 = vmatprep.subr.mxu0 0.0
        %2818 = vmatpush1.msra.mxu0 0.0
        %2819 = vmatprep.subr.mxu0 0.0
        %2820 = vmatpush1.msra.mxu0 0.0
        %2821 = vmatprep.mubr.f32.mxu0 0.0
        %2822 = vmatmul.mubr.f32.gmra.mrb[0].mxu0 %v2749
        %v2823 = vpop.f32.mrb[0].mxu0
        %v2824 = vadd.f32 0.0, %v2823
        %v2825 = vpop.f32.mrb[0].mxu0
        %2826 = vmatprep.mubr.f32.mxu0 0.0
        %2827 = vmatmul.mubr.f32.gmra.mrb[0].mxu0 %v2751
        %v2828 = vpop.f32.mrb[0].mxu0
        %v2829 = vadd.f32 0.0, %v2828
        %v2830 = vpop.f32.mrb[0].mxu0
        %2831 = vmatprep.mubr.f32.mxu0 0.0
        %2832 = vmatmul.mubr.f32.gmra.mrb[0].mxu0 %v2753
        %v2833 = vpop.f32.mrb[0].mxu0
        %v2834 = vadd.f32 0.0, %v2833
        %v2835 = vpop.f32.mrb[0].mxu0
        %2836 = vmatprep.mubr.f32.mxu0 0.0
        %2837 = vmatmul.mubr.f32.gmra.mrb[0].mxu0 %v2755
        %v2838 = vpop.f32.mrb[0].mxu0
        %v2839 = vadd.f32 0.0, %v2838
        %v2840 = vpop.f32.mrb[0].mxu0
        %2841 = vmatprep.mubr.f32.mxu0 0.0
        %2842 = vmatmul.mubr.f32.gmra.mrb[0].mxu0 %v690
        %v2843 = vpop.f32.mrb[0].mxu0
        %v2844 = vadd.f32 0.0, %v2843
        %v2845 = vpop.f32.mrb[0].mxu0
        %2846 = vmatprep.mubr.f32.mxu0 0.0
        %2847 = vmatmul.mubr.f32.gmra.mrb[0].mxu0 %v692
        %v2848 = vpop.f32.mrb[0].mxu0
        %v2849 = vadd.f32 0.0, %v2848
        %v2850 = vpop.f32.mrb[0].mxu0
        %2851 = vmatprep.mubr.f32.mxu0 0.0
        %2852 = vmatmul.mubr.f32.gmra.mrb[0].mxu0 %v694
        %v2853 = vpop.f32.mrb[0].mxu0
        %v2854 = vadd.f32 0.0, %v2853
        %v2855 = vpop.f32.mrb[0].mxu0
        %2856 = vmatprep.mubr.f32.mxu0 0.0
        %2857 = vmatmul.mubr.f32.gmra.mrb[0].mxu0 %v696
        %v2858 = vpop.f32.mrb[0].mxu0
        %v2859 = vadd.f32 0.0, %v2858
        %v2860 = vpop.f32.mrb[0].mxu0
        %2861 = vmatprep.mubr.f32.mxu0 0.0
        %2862 = vmatmul.mubr.f32.gmra.mrb[0].mxu0 %v434
        %v2863 = vpop.f32.mrb[0].mxu0
        %v2864 = vadd.f32 0.0, %v2863
        %v2865 = vpop.f32.mrb[0].mxu0
        %2866 = vmatprep.mubr.f32.mxu0 0.0
        %2867 = vmatmul.mubr.f32.gmra.mrb[0].mxu0 %v436
        %v2868 = vpop.f32.mrb[0].mxu0
        %v2869 = vadd.f32 0.0, %v2868
        %v2870 = vpop.f32.mrb[0].mxu0
        %2871 = vmatprep.mubr.f32.mxu0 0.0
        %2872 = vmatmul.mubr.f32.gmra.mrb[0].mxu0 %v438
        %v2873 = vpop.f32.mrb[0].mxu0
        %v2874 = vadd.f32 0.0, %v2873
        %v2875 = vpop.f32.mrb[0].mxu0
        %2876 = vmatprep.mubr.f32.mxu0 0.0
        %2877 = vmatmul.mubr.f32.gmra.mrb[0].mxu0 %v440
        %v2878 = vpop.f32.mrb[0].mxu0
        %v2879 = vadd.f32 0.0, %v2878
        %v2880 = vpop.f32.mrb[0].mxu0
        %2881 = vmatprep.mubr.f32.mxu0 0.0
        %2882 = vmatmul.mubr.f32.gmra.mrb[0].mxu0 %v442
        %v2883 = vpop.f32.mrb[0].mxu0
        %v2884 = vadd.f32 0.0, %v2883
        %v2885 = vpop.f32.mrb[0].mxu0
        %2886 = vmatprep.mubr.f32.mxu0 0.0
        %2887 = vmatmul.mubr.f32.gmra.mrb[0].mxu0 %v444
        %v2888 = vpop.f32.mrb[0].mxu0
        %v2889 = vadd.f32 0.0, %v2888
        %v2890 = vpop.f32.mrb[0].mxu0
        %2891 = vmatprep.mubr.f32.mxu0 0.0
        %2892 = vmatmul.mubr.f32.gmra.mrb[0].mxu0 %v446
        %v2893 = vpop.f32.mrb[0].mxu0
        %v2894 = vadd.f32 0.0, %v2893
        %v2895 = vpop.f32.mrb[0].mxu0
        %2896 = vmatprep.mubr.f32.mxu0 0.0
        %2897 = vmatmul.mubr.f32.gmra.mrb[0].mxu0 %v448
        %v2898 = vpop.f32.mrb[0].mxu0
        %v2899 = vadd.f32 0.0, %v2898
        %v2900 = vpop.f32.mrb[0].mxu0
        %2901 = vdwg.mxu0
        %v2902 = vsel %vm433, %v2699, 0
        %v2904 = vsel %vm433, %v2701, 0
        %v2906 = vsel %vm433, %v2704, 0
        %v2908 = vsel %vm433, %v2706, 0
        %v2910 = vsel %vm433, %v2709, 0
        %v2912 = vsel %vm433, %v2711, 0
        %v2914 = vsel %vm433, %v2714, 0
        %v2916 = vsel %vm433, %v2716, 0
        %v2918 = vsel %vm433, %v2719, 0
        %v2920 = vsel %vm433, %v2721, 0
        %v2922 = vsel %vm433, %v2724, 0
        %v2924 = vsel %vm433, %v2726, 0
        %v2926 = vsel %vm433, %v2729, 0
        %v2928 = vsel %vm433, %v2731, 0
        %v2930 = vsel %vm433, %v2734, 0
        %v2932 = vsel %vm433, %v2736, 0
        %2934 = vmatprep.subr.mxu0 0.0
        %2935 = vmatpush1.msra.mxu0 %v2737
        %2936 = vmatprep.subr.mxu0 0.0
        %2937 = vmatpush1.msra.mxu0 0.0
        %2938 = vmatprep.subr.mxu0 0.0
        %2939 = vmatpush1.msra.mxu0 0.0
        %2940 = vmatprep.subr.mxu0 0.0
        %2941 = vmatpush1.msra.mxu0 0.0
        %2942 = vmatprep.subr.mxu0 0.0
        %2943 = vmatpush1.msra.mxu0 0.0
        %2944 = vmatprep.subr.mxu0 0.0
        %2945 = vmatpush1.msra.mxu0 0.0
        %2946 = vmatprep.subr.mxu0 0.0
        %2947 = vmatpush1.msra.mxu0 0.0
        %2948 = vmatprep.subr.mxu0 0.0
        %2949 = vmatpush1.msra.mxu0 0.0
        %2950 = vmatprep.subr.mxu0 0.0
        %2951 = vmatpush1.msra.mxu0 0.0
        %2952 = vmatprep.subr.mxu0 0.0
        %2953 = vmatpush1.msra.mxu0 0.0
        %2954 = vmatprep.subr.mxu0 0.0
        %2955 = vmatpush1.msra.mxu0 0.0
        %2956 = vmatprep.subr.mxu0 0.0
        %2957 = vmatpush1.msra.mxu0 0.0
        %2958 = vmatprep.subr.mxu0 0.0
        %2959 = vmatpush1.msra.mxu0 0.0
        %2960 = vmatprep.subr.mxu0 0.0
        %2961 = vmatpush1.msra.mxu0 0.0
        %2962 = vmatprep.subr.mxu0 0.0
        %2963 = vmatpush1.msra.mxu0 0.0
        %2964 = vmatprep.subr.mxu0 0.0
        %2965 = vmatpush1.msra.mxu0 0.0
        %2966 = vmatprep.subr.mxu0 0.0
        %2967 = vmatpush1.msra.mxu0 0.0
        %2968 = vmatprep.subr.mxu0 0.0
        %2969 = vmatpush1.msra.mxu0 0.0
        %2970 = vmatprep.subr.mxu0 0.0
        %2971 = vmatpush1.msra.mxu0 0.0
        %2972 = vmatprep.subr.mxu0 0.0
        %2973 = vmatpush1.msra.mxu0 0.0
        %2974 = vmatprep.subr.mxu0 0.0
        %2975 = vmatpush1.msra.mxu0 0.0
        %2976 = vmatprep.subr.mxu0 0.0
        %2977 = vmatpush1.msra.mxu0 0.0
        %2978 = vmatprep.subr.mxu0 0.0
        %2979 = vmatpush1.msra.mxu0 0.0
        %2980 = vmatprep.subr.mxu0 0.0
        %2981 = vmatpush1.msra.mxu0 0.0
        %2982 = vmatprep.subr.mxu0 0.0
        %2983 = vmatpush1.msra.mxu0 0.0
        %2984 = vmatprep.subr.mxu0 0.0
        %2985 = vmatpush1.msra.mxu0 0.0
        %2986 = vmatprep.subr.mxu0 0.0
        %2987 = vmatpush1.msra.mxu0 0.0
        %2988 = vmatprep.subr.mxu0 0.0
        %2989 = vmatpush1.msra.mxu0 0.0
        %2990 = vmatprep.subr.mxu0 0.0
        %2991 = vmatpush1.msra.mxu0 0.0
        %2992 = vmatprep.subr.mxu0 0.0
        %2993 = vmatpush1.msra.mxu0 0.0
        %2994 = vmatprep.subr.mxu0 0.0
        %2995 = vmatpush1.msra.mxu0 0.0
        %2996 = vmatprep.subr.mxu0 0.0
        %2997 = vmatpush1.msra.mxu0 0.0
        %2998 = vmatprep.mubr.f32.mxu0 0.0
        %2999 = vmatmul.mubr.f32.gmra.mrb[0].mxu0 %v2902
        %v3000 = vpop.f32.mrb[0].mxu0
        %v3001 = vadd.f32 %v2824, %v3000
        %v3002 = vpop.f32.mrb[0].mxu0
        %3003 = vmatprep.mubr.f32.mxu0 0.0
        %3004 = vmatmul.mubr.f32.gmra.mrb[0].mxu0 %v2904
        %v3005 = vpop.f32.mrb[0].mxu0
        %v3006 = vadd.f32 %v2829, %v3005
        %v3007 = vpop.f32.mrb[0].mxu0
        %3008 = vmatprep.mubr.f32.mxu0 0.0
        %3009 = vmatmul.mubr.f32.gmra.mrb[0].mxu0 %v2906
        %v3010 = vpop.f32.mrb[0].mxu0
        %v3011 = vadd.f32 %v2834, %v3010
        %v3012 = vpop.f32.mrb[0].mxu0
        %3013 = vmatprep.mubr.f32.mxu0 0.0
        %3014 = vmatmul.mubr.f32.gmra.mrb[0].mxu0 %v2908
        %v3015 = vpop.f32.mrb[0].mxu0
        %v3016 = vadd.f32 %v2839, %v3015
        %v3017 = vpop.f32.mrb[0].mxu0
        %3018 = vmatprep.mubr.f32.mxu0 0.0
        %3019 = vmatmul.mubr.f32.gmra.mrb[0].mxu0 %v2910
        %v3020 = vpop.f32.mrb[0].mxu0
        %v3021 = vadd.f32 %v2844, %v3020
        %v3022 = vpop.f32.mrb[0].mxu0
        %3023 = vmatprep.mubr.f32.mxu0 0.0
        %3024 = vmatmul.mubr.f32.gmra.mrb[0].mxu0 %v2912
        %v3025 = vpop.f32.mrb[0].mxu0
        %v3026 = vadd.f32 %v2849, %v3025
        %v3027 = vpop.f32.mrb[0].mxu0
        %3028 = vmatprep.mubr.f32.mxu0 0.0
        %3029 = vmatmul.mubr.f32.gmra.mrb[0].mxu0 %v2914
        %v3030 = vpop.f32.mrb[0].mxu0
        %v3031 = vadd.f32 %v2854, %v3030
        %v3032 = vpop.f32.mrb[0].mxu0
        %3033 = vmatprep.mubr.f32.mxu0 0.0
        %3034 = vmatmul.mubr.f32.gmra.mrb[0].mxu0 %v2916
        %v3035 = vpop.f32.mrb[0].mxu0
        %v3036 = vadd.f32 %v2859, %v3035
        %v3037 = vpop.f32.mrb[0].mxu0
        %3038 = vmatprep.mubr.f32.mxu0 0.0
        %3039 = vmatmul.mubr.f32.gmra.mrb[0].mxu0 %v2918
        %v3040 = vpop.f32.mrb[0].mxu0
        %v3041 = vadd.f32 %v2864, %v3040
        %v3042 = vpop.f32.mrb[0].mxu0
        %3043 = vmatprep.mubr.f32.mxu0 0.0
        %3044 = vmatmul.mubr.f32.gmra.mrb[0].mxu0 %v2920
        %v3045 = vpop.f32.mrb[0].mxu0
        %v3046 = vadd.f32 %v2869, %v3045
        %v3047 = vpop.f32.mrb[0].mxu0
        %3048 = vmatprep.mubr.f32.mxu0 0.0
        %3049 = vmatmul.mubr.f32.gmra.mrb[0].mxu0 %v2922
        %v3050 = vpop.f32.mrb[0].mxu0
        %v3051 = vadd.f32 %v2874, %v3050
        %v3052 = vpop.f32.mrb[0].mxu0
        %3053 = vmatprep.mubr.f32.mxu0 0.0
        %3054 = vmatmul.mubr.f32.gmra.mrb[0].mxu0 %v2924
        %v3055 = vpop.f32.mrb[0].mxu0
        %v3056 = vadd.f32 %v2879, %v3055
        %v3057 = vpop.f32.mrb[0].mxu0
        %3058 = vmatprep.mubr.f32.mxu0 0.0
        %3059 = vmatmul.mubr.f32.gmra.mrb[0].mxu0 %v2926
        %v3060 = vpop.f32.mrb[0].mxu0
        %v3061 = vadd.f32 %v2884, %v3060
        %v3062 = vpop.f32.mrb[0].mxu0
        %3063 = vmatprep.mubr.f32.mxu0 0.0
        %3064 = vmatmul.mubr.f32.gmra.mrb[0].mxu0 %v2928
        %v3065 = vpop.f32.mrb[0].mxu0
        %v3066 = vadd.f32 %v2889, %v3065
        %v3067 = vpop.f32.mrb[0].mxu0
        %3068 = vmatprep.mubr.f32.mxu0 0.0
        %3069 = vmatmul.mubr.f32.gmra.mrb[0].mxu0 %v2930
        %v3070 = vpop.f32.mrb[0].mxu0
        %v3071 = vadd.f32 %v2894, %v3070
        %v3072 = vpop.f32.mrb[0].mxu0
        %3073 = vmatprep.mubr.f32.mxu0 0.0
        %3074 = vmatmul.mubr.f32.gmra.mrb[0].mxu0 %v2932
        %v3075 = vpop.f32.mrb[0].mxu0
        %v3076 = vadd.f32 %v2899, %v3075
        %v3077 = vpop.f32.mrb[0].mxu0
        %3078 = vdwg.mxu0
        %v3087 = vrot.slane %v293, 2
        %v3088 = vsel %vm2696, %v2700, %v3087
        %v3089 = vrot.slane %v297, 2
        %v3090 = vsel %vm2696, %v2705, %v3089
        %v3091 = vrot.slane %v301, 2
        %v3092 = vsel %vm2696, %v2710, %v3091
        %v3093 = vrot.slane %v305, 2
        %v3094 = vsel %vm2696, %v2715, %v3093
        %v3095 = vrot.slane %v309, 2
        %v3096 = vsel %vm2696, %v2720, %v3095
        %v3097 = vrot.slane %v313, 2
        %v3098 = vsel %vm2696, %v2725, %v3097
        %v3099 = vrot.slane %v317, 2
        %v3100 = vsel %vm2696, %v2730, %v3099
        %v3101 = vrot.slane %v321, 2
        %v3102 = vsel %vm2696, %v2735, %v3101
        %v3103 = vld [vmem:[%s2 + $0x58] sm:$0xff]
        %v3104 = vsel %vm433, %v3088, 0
        %v3106 = vsel %vm433, %v3090, 0
        %v3108 = vsel %vm433, %v3092, 0
        %v3110 = vsel %vm433, %v3094, 0
        %v3112 = vsel %vm433, %v3096, 0
        %v3114 = vsel %vm433, %v3098, 0
        %v3116 = vsel %vm433, %v3100, 0
        %v3118 = vsel %vm433, %v3102, 0
        %3120 = vmatprep.subr.mxu0 0.0
        %3121 = vmatpush1.msra.mxu0 %v3103
        %3122 = vmatprep.subr.mxu0 0.0
        %3123 = vmatpush1.msra.mxu0 0.0
        %3124 = vmatprep.subr.mxu0 0.0
        %3125 = vmatpush1.msra.mxu0 0.0
        %3126 = vmatprep.subr.mxu0 0.0
        %3127 = vmatpush1.msra.mxu0 0.0
        %3128 = vmatprep.subr.mxu0 0.0
        %3129 = vmatpush1.msra.mxu0 0.0
        %3130 = vmatprep.subr.mxu0 0.0
        %3131 = vmatpush1.msra.mxu0 0.0
        %3132 = vmatprep.subr.mxu0 0.0
        %3133 = vmatpush1.msra.mxu0 0.0
        %3134 = vmatprep.subr.mxu0 0.0
        %3135 = vmatpush1.msra.mxu0 0.0
        %3136 = vmatprep.subr.mxu0 0.0
        %3137 = vmatpush1.msra.mxu0 0.0
        %3138 = vmatprep.subr.mxu0 0.0
        %3139 = vmatpush1.msra.mxu0 0.0
        %3140 = vmatprep.subr.mxu0 0.0
        %3141 = vmatpush1.msra.mxu0 0.0
        %3142 = vmatprep.subr.mxu0 0.0
        %3143 = vmatpush1.msra.mxu0 0.0
        %3144 = vmatprep.subr.mxu0 0.0
        %3145 = vmatpush1.msra.mxu0 0.0
        %3146 = vmatprep.subr.mxu0 0.0
        %3147 = vmatpush1.msra.mxu0 0.0
        %3148 = vmatprep.subr.mxu0 0.0
        %3149 = vmatpush1.msra.mxu0 0.0
        %3150 = vmatprep.subr.mxu0 0.0
        %3151 = vmatpush1.msra.mxu0 0.0
        %3152 = vmatprep.subr.mxu0 0.0
        %3153 = vmatpush1.msra.mxu0 0.0
        %3154 = vmatprep.subr.mxu0 0.0
        %3155 = vmatpush1.msra.mxu0 0.0
        %3156 = vmatprep.subr.mxu0 0.0
        %3157 = vmatpush1.msra.mxu0 0.0
        %3158 = vmatprep.subr.mxu0 0.0
        %3159 = vmatpush1.msra.mxu0 0.0
        %3160 = vmatprep.subr.mxu0 0.0
        %3161 = vmatpush1.msra.mxu0 0.0
        %3162 = vmatprep.subr.mxu0 0.0
        %3163 = vmatpush1.msra.mxu0 0.0
        %3164 = vmatprep.subr.mxu0 0.0
        %3165 = vmatpush1.msra.mxu0 0.0
        %3166 = vmatprep.subr.mxu0 0.0
        %3167 = vmatpush1.msra.mxu0 0.0
        %3168 = vmatprep.subr.mxu0 0.0
        %3169 = vmatpush1.msra.mxu0 0.0
        %3170 = vmatprep.subr.mxu0 0.0
        %3171 = vmatpush1.msra.mxu0 0.0
        %3172 = vmatprep.subr.mxu0 0.0
        %3173 = vmatpush1.msra.mxu0 0.0
        %3174 = vmatprep.subr.mxu0 0.0
        %3175 = vmatpush1.msra.mxu0 0.0
        %3176 = vmatprep.subr.mxu0 0.0
        %3177 = vmatpush1.msra.mxu0 0.0
        %3178 = vmatprep.subr.mxu0 0.0
        %3179 = vmatpush1.msra.mxu0 0.0
        %3180 = vmatprep.subr.mxu0 0.0
        %3181 = vmatpush1.msra.mxu0 0.0
        %3182 = vmatprep.subr.mxu0 0.0
        %3183 = vmatpush1.msra.mxu0 0.0
        %3184 = vmatprep.mubr.f32.mxu0 0.0
        %3185 = vmatmul.mubr.f32.gmra.mrb[0].mxu0 %v2904
        %v3186 = vpop.f32.mrb[0].mxu0
        %v3187 = vadd.f32 0.0, %v3186
        %v3188 = vpop.f32.mrb[0].mxu0
        %3189 = vmatprep.mubr.f32.mxu0 0.0
        %3190 = vmatmul.mubr.f32.gmra.mrb[0].mxu0 %v3104
        %v3191 = vpop.f32.mrb[0].mxu0
        %v3192 = vadd.f32 0.0, %v3191
        %v3193 = vpop.f32.mrb[0].mxu0
        %3194 = vmatprep.mubr.f32.mxu0 0.0
        %3195 = vmatmul.mubr.f32.gmra.mrb[0].mxu0 %v2908
        %v3196 = vpop.f32.mrb[0].mxu0
        %v3197 = vadd.f32 0.0, %v3196
        %v3198 = vpop.f32.mrb[0].mxu0
        %3199 = vmatprep.mubr.f32.mxu0 0.0
        %3200 = vmatmul.mubr.f32.gmra.mrb[0].mxu0 %v3106
        %v3201 = vpop.f32.mrb[0].mxu0
        %v3202 = vadd.f32 0.0, %v3201
        %v3203 = vpop.f32.mrb[0].mxu0
        %3204 = vmatprep.mubr.f32.mxu0 0.0
        %3205 = vmatmul.mubr.f32.gmra.mrb[0].mxu0 %v2912
        %v3206 = vpop.f32.mrb[0].mxu0
        %v3207 = vadd.f32 0.0, %v3206
        %v3208 = vpop.f32.mrb[0].mxu0
        %3209 = vmatprep.mubr.f32.mxu0 0.0
        %3210 = vmatmul.mubr.f32.gmra.mrb[0].mxu0 %v3108
        %v3211 = vpop.f32.mrb[0].mxu0
        %v3212 = vadd.f32 0.0, %v3211
        %v3213 = vpop.f32.mrb[0].mxu0
        %3214 = vmatprep.mubr.f32.mxu0 0.0
        %3215 = vmatmul.mubr.f32.gmra.mrb[0].mxu0 %v2916
        %v3216 = vpop.f32.mrb[0].mxu0
        %v3217 = vadd.f32 0.0, %v3216
        %v3218 = vpop.f32.mrb[0].mxu0
        %3219 = vmatprep.mubr.f32.mxu0 0.0
        %3220 = vmatmul.mubr.f32.gmra.mrb[0].mxu0 %v3110
        %v3221 = vpop.f32.mrb[0].mxu0
        %v3222 = vadd.f32 0.0, %v3221
        %v3223 = vpop.f32.mrb[0].mxu0
        %3224 = vmatprep.mubr.f32.mxu0 0.0
        %3225 = vmatmul.mubr.f32.gmra.mrb[0].mxu0 %v2920
        %v3226 = vpop.f32.mrb[0].mxu0
        %v3227 = vadd.f32 0.0, %v3226
        %v3228 = vpop.f32.mrb[0].mxu0
        %3229 = vmatprep.mubr.f32.mxu0 0.0
        %3230 = vmatmul.mubr.f32.gmra.mrb[0].mxu0 %v3112
        %v3231 = vpop.f32.mrb[0].mxu0
        %v3232 = vadd.f32 0.0, %v3231
        %v3233 = vpop.f32.mrb[0].mxu0
        %3234 = vmatprep.mubr.f32.mxu0 0.0
        %3235 = vmatmul.mubr.f32.gmra.mrb[0].mxu0 %v2924
        %v3236 = vpop.f32.mrb[0].mxu0
        %v3237 = vadd.f32 0.0, %v3236
        %v3238 = vpop.f32.mrb[0].mxu0
        %3239 = vmatprep.mubr.f32.mxu0 0.0
        %3240 = vmatmul.mubr.f32.gmra.mrb[0].mxu0 %v3114
        %v3241 = vpop.f32.mrb[0].mxu0
        %v3242 = vadd.f32 0.0, %v3241
        %v3243 = vpop.f32.mrb[0].mxu0
        %3244 = vmatprep.mubr.f32.mxu0 0.0
        %3245 = vmatmul.mubr.f32.gmra.mrb[0].mxu0 %v2928
        %v3246 = vpop.f32.mrb[0].mxu0
        %v3247 = vadd.f32 0.0, %v3246
        %v3248 = vpop.f32.mrb[0].mxu0
        %3249 = vmatprep.mubr.f32.mxu0 0.0
        %3250 = vmatmul.mubr.f32.gmra.mrb[0].mxu0 %v3116
        %v3251 = vpop.f32.mrb[0].mxu0
        %v3252 = vadd.f32 0.0, %v3251
        %v3253 = vpop.f32.mrb[0].mxu0
        %3254 = vmatprep.mubr.f32.mxu0 0.0
        %3255 = vmatmul.mubr.f32.gmra.mrb[0].mxu0 %v2932
        %v3256 = vpop.f32.mrb[0].mxu0
        %v3257 = vadd.f32 0.0, %v3256
        %v3258 = vpop.f32.mrb[0].mxu0
        %3259 = vmatprep.mubr.f32.mxu0 0.0
        %3260 = vmatmul.mubr.f32.gmra.mrb[0].mxu0 %v3118
        %v3261 = vpop.f32.mrb[0].mxu0
        %v3262 = vadd.f32 0.0, %v3261
        %v3263 = vpop.f32.mrb[0].mxu0
        %3264 = vdwg.mxu0
        %v3265 = vadd.f32 %v3001, %v3187
        %v3266 = vadd.f32 %v3006, %v3192
        %v3267 = vadd.f32 %v3011, %v3197
        %v3268 = vadd.f32 %v3016, %v3202
        %v3269 = vadd.f32 %v3021, %v3207
        %v3270 = vadd.f32 %v3026, %v3212
        %v3271 = vadd.f32 %v3031, %v3217
        %v3272 = vadd.f32 %v3036, %v3222
        %v3273 = vadd.f32 %v3041, %v3227
        %v3274 = vadd.f32 %v3046, %v3232
        %v3275 = vadd.f32 %v3051, %v3237
        %v3276 = vadd.f32 %v3056, %v3242
        %v3277 = vadd.f32 %v3061, %v3247
        %v3278 = vadd.f32 %v3066, %v3252
        %v3279 = vadd.f32 %v3071, %v3257
        %v3280 = vadd.f32 %v3076, %v3262
        %v3281 = vrot.slane %v322, 2
        %v3282 = vrot.slane %v323, 2
        %v3283 = vsel %vm2696, %v3281, %v3282
        %v3284 = vrot.slane %v324, 2
        %v3285 = vsel %vm2696, %v3282, %v3284
        %v3286 = vrot.slane %v326, 2
        %v3287 = vrot.slane %v327, 2
        %v3288 = vsel %vm2696, %v3286, %v3287
        %v3289 = vrot.slane %v328, 2
        %v3290 = vsel %vm2696, %v3287, %v3289
        %v3291 = vrot.slane %v330, 2
        %v3292 = vrot.slane %v331, 2
        %v3293 = vsel %vm2696, %v3291, %v3292
        %v3294 = vrot.slane %v332, 2
        %v3295 = vsel %vm2696, %v3292, %v3294
        %v3296 = vrot.slane %v334, 2
        %v3297 = vrot.slane %v335, 2
        %v3298 = vsel %vm2696, %v3296, %v3297
        %v3299 = vrot.slane %v336, 2
        %v3300 = vsel %vm2696, %v3297, %v3299
        %v3301 = vld [vmem:[%s2 + $0x60] sm:$0xff]
        %v3302 = vsel %vm433, %v3283, 0
        %v3304 = vsel %vm433, %v3285, 0
        %v3306 = vsel %vm433, %v3288, 0
        %v3308 = vsel %vm433, %v3290, 0
        %v3310 = vsel %vm433, %v3293, 0
        %v3312 = vsel %vm433, %v3295, 0
        %v3314 = vsel %vm433, %v3298, 0
        %v3316 = vsel %vm433, %v3300, 0
        %3318 = vmatprep.subr.mxu0 0.0
        %3319 = vmatpush1.msra.mxu0 %v3301
        %3320 = vmatprep.subr.mxu0 0.0
        %3321 = vmatpush1.msra.mxu0 0.0
        %3322 = vmatprep.subr.mxu0 0.0
        %3323 = vmatpush1.msra.mxu0 0.0
        %3324 = vmatprep.subr.mxu0 0.0
        %3325 = vmatpush1.msra.mxu0 0.0
        %3326 = vmatprep.subr.mxu0 0.0
        %3327 = vmatpush1.msra.mxu0 0.0
        %3328 = vmatprep.subr.mxu0 0.0
        %3329 = vmatpush1.msra.mxu0 0.0
        %3330 = vmatprep.subr.mxu0 0.0
        %3331 = vmatpush1.msra.mxu0 0.0
        %3332 = vmatprep.subr.mxu0 0.0
        %3333 = vmatpush1.msra.mxu0 0.0
        %3334 = vmatprep.subr.mxu0 0.0
        %3335 = vmatpush1.msra.mxu0 0.0
        %3336 = vmatprep.subr.mxu0 0.0
        %3337 = vmatpush1.msra.mxu0 0.0
        %3338 = vmatprep.subr.mxu0 0.0
        %3339 = vmatpush1.msra.mxu0 0.0
        %3340 = vmatprep.subr.mxu0 0.0
        %3341 = vmatpush1.msra.mxu0 0.0
        %3342 = vmatprep.subr.mxu0 0.0
        %3343 = vmatpush1.msra.mxu0 0.0
        %3344 = vmatprep.subr.mxu0 0.0
        %3345 = vmatpush1.msra.mxu0 0.0
        %3346 = vmatprep.subr.mxu0 0.0
        %3347 = vmatpush1.msra.mxu0 0.0
        %3348 = vmatprep.subr.mxu0 0.0
        %3349 = vmatpush1.msra.mxu0 0.0
        %3350 = vmatprep.subr.mxu0 0.0
        %3351 = vmatpush1.msra.mxu0 0.0
        %3352 = vmatprep.subr.mxu0 0.0
        %3353 = vmatpush1.msra.mxu0 0.0
        %3354 = vmatprep.subr.mxu0 0.0
        %3355 = vmatpush1.msra.mxu0 0.0
        %3356 = vmatprep.subr.mxu0 0.0
        %3357 = vmatpush1.msra.mxu0 0.0
        %3358 = vmatprep.subr.mxu0 0.0
        %3359 = vmatpush1.msra.mxu0 0.0
        %3360 = vmatprep.subr.mxu0 0.0
        %3361 = vmatpush1.msra.mxu0 0.0
        %3362 = vmatprep.subr.mxu0 0.0
        %3363 = vmatpush1.msra.mxu0 0.0
        %3364 = vmatprep.subr.mxu0 0.0
        %3365 = vmatpush1.msra.mxu0 0.0
        %3366 = vmatprep.subr.mxu0 0.0
        %3367 = vmatpush1.msra.mxu0 0.0
        %3368 = vmatprep.subr.mxu0 0.0
        %3369 = vmatpush1.msra.mxu0 0.0
        %3370 = vmatprep.subr.mxu0 0.0
        %3371 = vmatpush1.msra.mxu0 0.0
        %3372 = vmatprep.subr.mxu0 0.0
        %3373 = vmatpush1.msra.mxu0 0.0
        %3374 = vmatprep.subr.mxu0 0.0
        %3375 = vmatpush1.msra.mxu0 0.0
        %3376 = vmatprep.subr.mxu0 0.0
        %3377 = vmatpush1.msra.mxu0 0.0
        %3378 = vmatprep.subr.mxu0 0.0
        %3379 = vmatpush1.msra.mxu0 0.0
        %3380 = vmatprep.subr.mxu0 0.0
        %3381 = vmatpush1.msra.mxu0 0.0
        %3382 = vmatprep.mubr.f32.mxu0 0.0
        %3383 = vmatmul.mubr.f32.gmra.mrb[0].mxu0 %v2918
        %v3384 = vpop.f32.mrb[0].mxu0
        %v3385 = vadd.f32 0.0, %v3384
        %v3386 = vpop.f32.mrb[0].mxu0
        %3387 = vmatprep.mubr.f32.mxu0 0.0
        %3388 = vmatmul.mubr.f32.gmra.mrb[0].mxu0 %v2920
        %v3389 = vpop.f32.mrb[0].mxu0
        %v3390 = vadd.f32 0.0, %v3389
        %v3391 = vpop.f32.mrb[0].mxu0
        %3392 = vmatprep.mubr.f32.mxu0 0.0
        %3393 = vmatmul.mubr.f32.gmra.mrb[0].mxu0 %v2922
        %v3394 = vpop.f32.mrb[0].mxu0
        %v3395 = vadd.f32 0.0, %v3394
        %v3396 = vpop.f32.mrb[0].mxu0
        %3397 = vmatprep.mubr.f32.mxu0 0.0
        %3398 = vmatmul.mubr.f32.gmra.mrb[0].mxu0 %v2924
        %v3399 = vpop.f32.mrb[0].mxu0
        %v3400 = vadd.f32 0.0, %v3399
        %v3401 = vpop.f32.mrb[0].mxu0
        %3402 = vmatprep.mubr.f32.mxu0 0.0
        %3403 = vmatmul.mubr.f32.gmra.mrb[0].mxu0 %v2926
        %v3404 = vpop.f32.mrb[0].mxu0
        %v3405 = vadd.f32 0.0, %v3404
        %v3406 = vpop.f32.mrb[0].mxu0
        %3407 = vmatprep.mubr.f32.mxu0 0.0
        %3408 = vmatmul.mubr.f32.gmra.mrb[0].mxu0 %v2928
        %v3409 = vpop.f32.mrb[0].mxu0
        %v3410 = vadd.f32 0.0, %v3409
        %v3411 = vpop.f32.mrb[0].mxu0
        %3412 = vmatprep.mubr.f32.mxu0 0.0
        %3413 = vmatmul.mubr.f32.gmra.mrb[0].mxu0 %v2930
        %v3414 = vpop.f32.mrb[0].mxu0
        %v3415 = vadd.f32 0.0, %v3414
        %v3416 = vpop.f32.mrb[0].mxu0
        %3417 = vmatprep.mubr.f32.mxu0 0.0
        %3418 = vmatmul.mubr.f32.gmra.mrb[0].mxu0 %v2932
        %v3419 = vpop.f32.mrb[0].mxu0
        %v3420 = vadd.f32 0.0, %v3419
        %v3421 = vpop.f32.mrb[0].mxu0
        %3422 = vmatprep.mubr.f32.mxu0 0.0
        %3423 = vmatmul.mubr.f32.gmra.mrb[0].mxu0 %v3302
        %v3424 = vpop.f32.mrb[0].mxu0
        %v3425 = vadd.f32 0.0, %v3424
        %v3426 = vpop.f32.mrb[0].mxu0
        %3427 = vmatprep.mubr.f32.mxu0 0.0
        %3428 = vmatmul.mubr.f32.gmra.mrb[0].mxu0 %v3304
        %v3429 = vpop.f32.mrb[0].mxu0
        %v3430 = vadd.f32 0.0, %v3429
        %v3431 = vpop.f32.mrb[0].mxu0
        %3432 = vmatprep.mubr.f32.mxu0 0.0
        %3433 = vmatmul.mubr.f32.gmra.mrb[0].mxu0 %v3306
        %v3434 = vpop.f32.mrb[0].mxu0
        %v3435 = vadd.f32 0.0, %v3434
        %v3436 = vpop.f32.mrb[0].mxu0
        %3437 = vmatprep.mubr.f32.mxu0 0.0
        %3438 = vmatmul.mubr.f32.gmra.mrb[0].mxu0 %v3308
        %v3439 = vpop.f32.mrb[0].mxu0
        %v3440 = vadd.f32 0.0, %v3439
        %v3441 = vpop.f32.mrb[0].mxu0
        %3442 = vmatprep.mubr.f32.mxu0 0.0
        %3443 = vmatmul.mubr.f32.gmra.mrb[0].mxu0 %v3310
        %v3444 = vpop.f32.mrb[0].mxu0
        %v3445 = vadd.f32 0.0, %v3444
        %v3446 = vpop.f32.mrb[0].mxu0
        %3447 = vmatprep.mubr.f32.mxu0 0.0
        %3448 = vmatmul.mubr.f32.gmra.mrb[0].mxu0 %v3312
        %v3449 = vpop.f32.mrb[0].mxu0
        %v3450 = vadd.f32 0.0, %v3449
        %v3451 = vpop.f32.mrb[0].mxu0
        %3452 = vmatprep.mubr.f32.mxu0 0.0
        %3453 = vmatmul.mubr.f32.gmra.mrb[0].mxu0 %v3314
        %v3454 = vpop.f32.mrb[0].mxu0
        %v3455 = vadd.f32 0.0, %v3454
        %v3456 = vpop.f32.mrb[0].mxu0
        %3457 = vmatprep.mubr.f32.mxu0 0.0
        %3458 = vmatmul.mubr.f32.gmra.mrb[0].mxu0 %v3316
        %v3459 = vpop.f32.mrb[0].mxu0
        %v3460 = vadd.f32 0.0, %v3459
        %v3461 = vpop.f32.mrb[0].mxu0
        %3462 = vdwg.mxu0
        %v3463 = vadd.f32 %v3265, %v3385
        %v3464 = vadd.f32 %v3266, %v3390
        %v3465 = vadd.f32 %v3267, %v3395
        %v3466 = vadd.f32 %v3268, %v3400
        %v3467 = vadd.f32 %v3269, %v3405
        %v3468 = vadd.f32 %v3270, %v3410
        %v3469 = vadd.f32 %v3271, %v3415
        %v3470 = vadd.f32 %v3272, %v3420
        %v3471 = vadd.f32 %v3273, %v3425
        %v3472 = vadd.f32 %v3274, %v3430
        %v3473 = vadd.f32 %v3275, %v3435
        %v3474 = vadd.f32 %v3276, %v3440
        %v3475 = vadd.f32 %v3277, %v3445
        %v3476 = vadd.f32 %v3278, %v3450
        %v3477 = vadd.f32 %v3279, %v3455
        %v3478 = vadd.f32 %v3280, %v3460
        %v3479 = vld [vmem:[%s2 + $0x68] sm:$0xff]
        %3480 = vmatprep.subr.mxu0 0.0
        %3481 = vmatpush1.msra.mxu0 %v3479
        %3482 = vmatprep.subr.mxu0 0.0
        %3483 = vmatpush1.msra.mxu0 0.0
        %3484 = vmatprep.subr.mxu0 0.0
        %3485 = vmatpush1.msra.mxu0 0.0
        %3486 = vmatprep.subr.mxu0 0.0
        %3487 = vmatpush1.msra.mxu0 0.0
        %3488 = vmatprep.subr.mxu0 0.0
        %3489 = vmatpush1.msra.mxu0 0.0
        %3490 = vmatprep.subr.mxu0 0.0
        %3491 = vmatpush1.msra.mxu0 0.0
        %3492 = vmatprep.subr.mxu0 0.0
        %3493 = vmatpush1.msra.mxu0 0.0
        %3494 = vmatprep.subr.mxu0 0.0
        %3495 = vmatpush1.msra.mxu0 0.0
        %3496 = vmatprep.subr.mxu0 0.0
        %3497 = vmatpush1.msra.mxu0 0.0
        %3498 = vmatprep.subr.mxu0 0.0
        %3499 = vmatpush1.msra.mxu0 0.0
        %3500 = vmatprep.subr.mxu0 0.0
        %3501 = vmatpush1.msra.mxu0 0.0
        %3502 = vmatprep.subr.mxu0 0.0
        %3503 = vmatpush1.msra.mxu0 0.0
        %3504 = vmatprep.subr.mxu0 0.0
        %3505 = vmatpush1.msra.mxu0 0.0
        %3506 = vmatprep.subr.mxu0 0.0
        %3507 = vmatpush1.msra.mxu0 0.0
        %3508 = vmatprep.subr.mxu0 0.0
        %3509 = vmatpush1.msra.mxu0 0.0
        %3510 = vmatprep.subr.mxu0 0.0
        %3511 = vmatpush1.msra.mxu0 0.0
        %3512 = vmatprep.subr.mxu0 0.0
        %3513 = vmatpush1.msra.mxu0 0.0
        %3514 = vmatprep.subr.mxu0 0.0
        %3515 = vmatpush1.msra.mxu0 0.0
        %3516 = vmatprep.subr.mxu0 0.0
        %3517 = vmatpush1.msra.mxu0 0.0
        %3518 = vmatprep.subr.mxu0 0.0
        %3519 = vmatpush1.msra.mxu0 0.0
        %3520 = vmatprep.subr.mxu0 0.0
        %3521 = vmatpush1.msra.mxu0 0.0
        %3522 = vmatprep.subr.mxu0 0.0
        %3523 = vmatpush1.msra.mxu0 0.0
        %3524 = vmatprep.subr.mxu0 0.0
        %3525 = vmatpush1.msra.mxu0 0.0
        %3526 = vmatprep.subr.mxu0 0.0
        %3527 = vmatpush1.msra.mxu0 0.0
        %3528 = vmatprep.subr.mxu0 0.0
        %3529 = vmatpush1.msra.mxu0 0.0
        %3530 = vmatprep.subr.mxu0 0.0
        %3531 = vmatpush1.msra.mxu0 0.0
        %3532 = vmatprep.subr.mxu0 0.0
        %3533 = vmatpush1.msra.mxu0 0.0
        %3534 = vmatprep.subr.mxu0 0.0
        %3535 = vmatpush1.msra.mxu0 0.0
        %3536 = vmatprep.subr.mxu0 0.0
        %3537 = vmatpush1.msra.mxu0 0.0
        %3538 = vmatprep.subr.mxu0 0.0
        %3539 = vmatpush1.msra.mxu0 0.0
        %3540 = vmatprep.subr.mxu0 0.0
        %3541 = vmatpush1.msra.mxu0 0.0
        %3542 = vmatprep.subr.mxu0 0.0
        %3543 = vmatpush1.msra.mxu0 0.0
        %3544 = vmatprep.mubr.f32.mxu0 0.0
        %3545 = vmatmul.mubr.f32.gmra.mrb[0].mxu0 %v434
        %v3546 = vpop.f32.mrb[0].mxu0
        %v3547 = vadd.f32 0.0, %v3546
        %v3548 = vpop.f32.mrb[0].mxu0
        %3549 = vmatprep.mubr.f32.mxu0 0.0
        %3550 = vmatmul.mubr.f32.gmra.mrb[0].mxu0 %v436
        %v3551 = vpop.f32.mrb[0].mxu0
        %v3552 = vadd.f32 0.0, %v3551
        %v3553 = vpop.f32.mrb[0].mxu0
        %3554 = vmatprep.mubr.f32.mxu0 0.0
        %3555 = vmatmul.mubr.f32.gmra.mrb[0].mxu0 %v438
        %v3556 = vpop.f32.mrb[0].mxu0
        %v3557 = vadd.f32 0.0, %v3556
        %v3558 = vpop.f32.mrb[0].mxu0
        %3559 = vmatprep.mubr.f32.mxu0 0.0
        %3560 = vmatmul.mubr.f32.gmra.mrb[0].mxu0 %v440
        %v3561 = vpop.f32.mrb[0].mxu0
        %v3562 = vadd.f32 0.0, %v3561
        %v3563 = vpop.f32.mrb[0].mxu0
        %3564 = vmatprep.mubr.f32.mxu0 0.0
        %3565 = vmatmul.mubr.f32.gmra.mrb[0].mxu0 %v442
        %v3566 = vpop.f32.mrb[0].mxu0
        %v3567 = vadd.f32 0.0, %v3566
        %v3568 = vpop.f32.mrb[0].mxu0
        %3569 = vmatprep.mubr.f32.mxu0 0.0
        %3570 = vmatmul.mubr.f32.gmra.mrb[0].mxu0 %v444
        %v3571 = vpop.f32.mrb[0].mxu0
        %v3572 = vadd.f32 0.0, %v3571
        %v3573 = vpop.f32.mrb[0].mxu0
        %3574 = vmatprep.mubr.f32.mxu0 0.0
        %3575 = vmatmul.mubr.f32.gmra.mrb[0].mxu0 %v446
        %v3576 = vpop.f32.mrb[0].mxu0
        %v3577 = vadd.f32 0.0, %v3576
        %v3578 = vpop.f32.mrb[0].mxu0
        %3579 = vmatprep.mubr.f32.mxu0 0.0
        %3580 = vmatmul.mubr.f32.gmra.mrb[0].mxu0 %v448
        %v3581 = vpop.f32.mrb[0].mxu0
        %v3582 = vadd.f32 0.0, %v3581
        %v3583 = vpop.f32.mrb[0].mxu0
        %3584 = vmatprep.mubr.f32.mxu0 0.0
        %3585 = vmatmul.mubr.f32.gmra.mrb[0].mxu0 %v450
        %v3586 = vpop.f32.mrb[0].mxu0
        %v3587 = vadd.f32 0.0, %v3586
        %v3588 = vpop.f32.mrb[0].mxu0
        %3589 = vmatprep.mubr.f32.mxu0 0.0
        %3590 = vmatmul.mubr.f32.gmra.mrb[0].mxu0 %v452
        %v3591 = vpop.f32.mrb[0].mxu0
        %v3592 = vadd.f32 0.0, %v3591
        %v3593 = vpop.f32.mrb[0].mxu0
        %3594 = vmatprep.mubr.f32.mxu0 0.0
        %3595 = vmatmul.mubr.f32.gmra.mrb[0].mxu0 %v454
        %v3596 = vpop.f32.mrb[0].mxu0
        %v3597 = vadd.f32 0.0, %v3596
        %v3598 = vpop.f32.mrb[0].mxu0
        %3599 = vmatprep.mubr.f32.mxu0 0.0
        %3600 = vmatmul.mubr.f32.gmra.mrb[0].mxu0 %v456
        %v3601 = vpop.f32.mrb[0].mxu0
        %v3602 = vadd.f32 0.0, %v3601
        %v3603 = vpop.f32.mrb[0].mxu0
        %3604 = vmatprep.mubr.f32.mxu0 0.0
        %3605 = vmatmul.mubr.f32.gmra.mrb[0].mxu0 %v458
        %v3606 = vpop.f32.mrb[0].mxu0
        %v3607 = vadd.f32 0.0, %v3606
        %v3608 = vpop.f32.mrb[0].mxu0
        %3609 = vmatprep.mubr.f32.mxu0 0.0
        %3610 = vmatmul.mubr.f32.gmra.mrb[0].mxu0 %v460
        %v3611 = vpop.f32.mrb[0].mxu0
        %v3612 = vadd.f32 0.0, %v3611
        %v3613 = vpop.f32.mrb[0].mxu0
        %3614 = vmatprep.mubr.f32.mxu0 0.0
        %3615 = vmatmul.mubr.f32.gmra.mrb[0].mxu0 %v462
        %v3616 = vpop.f32.mrb[0].mxu0
        %v3617 = vadd.f32 0.0, %v3616
        %v3618 = vpop.f32.mrb[0].mxu0
        %3619 = vmatprep.mubr.f32.mxu0 0.0
        %3620 = vmatmul.mubr.f32.gmra.mrb[0].mxu0 %v464
        %v3621 = vpop.f32.mrb[0].mxu0
        %v3622 = vadd.f32 0.0, %v3621
        %v3623 = vpop.f32.mrb[0].mxu0
        %3624 = vdwg.mxu0
        %v3625 = vadd.f32 %v3463, %v3547
        %v3626 = vadd.f32 %v3464, %v3552
        %v3627 = vadd.f32 %v3465, %v3557
        %v3628 = vadd.f32 %v3466, %v3562
        %v3629 = vadd.f32 %v3467, %v3567
        %v3630 = vadd.f32 %v3468, %v3572
        %v3631 = vadd.f32 %v3469, %v3577
        %v3632 = vadd.f32 %v3470, %v3582
        %v3633 = vadd.f32 %v3471, %v3587
        %v3634 = vadd.f32 %v3472, %v3592
        %v3635 = vadd.f32 %v3473, %v3597
        %v3636 = vadd.f32 %v3474, %v3602
        %v3637 = vadd.f32 %v3475, %v3607
        %v3638 = vadd.f32 %v3476, %v3612
        %v3639 = vadd.f32 %v3477, %v3617
        %v3640 = vadd.f32 %v3478, %v3622
        %v3645 = vrot.slane %v325, 2
        %v3646 = vsel %vm2696, %v3284, %v3645
        %v3647 = vrot.slane %v329, 2
        %v3648 = vsel %vm2696, %v3289, %v3647
        %v3649 = vrot.slane %v333, 2
        %v3650 = vsel %vm2696, %v3294, %v3649
        %v3651 = vrot.slane %v337, 2
        %v3652 = vsel %vm2696, %v3299, %v3651
        %v3653 = vld [vmem:[%s2 + $0x70] sm:$0xff]
        %v3654 = vsel %vm433, %v3646, 0
        %v3656 = vsel %vm433, %v3648, 0
        %v3658 = vsel %vm433, %v3650, 0
        %v3660 = vsel %vm433, %v3652, 0
        %3662 = vmatprep.subr.mxu0 0.0
        %3663 = vmatpush1.msra.mxu0 %v3653
        %3664 = vmatprep.subr.mxu0 0.0
        %3665 = vmatpush1.msra.mxu0 0.0
        %3666 = vmatprep.subr.mxu0 0.0
        %3667 = vmatpush1.msra.mxu0 0.0
        %3668 = vmatprep.subr.mxu0 0.0
        %3669 = vmatpush1.msra.mxu0 0.0
        %3670 = vmatprep.subr.mxu0 0.0
        %3671 = vmatpush1.msra.mxu0 0.0
        %3672 = vmatprep.subr.mxu0 0.0
        %3673 = vmatpush1.msra.mxu0 0.0
        %3674 = vmatprep.subr.mxu0 0.0
        %3675 = vmatpush1.msra.mxu0 0.0
        %3676 = vmatprep.subr.mxu0 0.0
        %3677 = vmatpush1.msra.mxu0 0.0
        %3678 = vmatprep.subr.mxu0 0.0
        %3679 = vmatpush1.msra.mxu0 0.0
        %3680 = vmatprep.subr.mxu0 0.0
        %3681 = vmatpush1.msra.mxu0 0.0
        %3682 = vmatprep.subr.mxu0 0.0
        %3683 = vmatpush1.msra.mxu0 0.0
        %3684 = vmatprep.subr.mxu0 0.0
        %3685 = vmatpush1.msra.mxu0 0.0
        %3686 = vmatprep.subr.mxu0 0.0
        %3687 = vmatpush1.msra.mxu0 0.0
        %3688 = vmatprep.subr.mxu0 0.0
        %3689 = vmatpush1.msra.mxu0 0.0
        %3690 = vmatprep.subr.mxu0 0.0
        %3691 = vmatpush1.msra.mxu0 0.0
        %3692 = vmatprep.subr.mxu0 0.0
        %3693 = vmatpush1.msra.mxu0 0.0
        %3694 = vmatprep.subr.mxu0 0.0
        %3695 = vmatpush1.msra.mxu0 0.0
        %3696 = vmatprep.subr.mxu0 0.0
        %3697 = vmatpush1.msra.mxu0 0.0
        %3698 = vmatprep.subr.mxu0 0.0
        %3699 = vmatpush1.msra.mxu0 0.0
        %3700 = vmatprep.subr.mxu0 0.0
        %3701 = vmatpush1.msra.mxu0 0.0
        %3702 = vmatprep.subr.mxu0 0.0
        %3703 = vmatpush1.msra.mxu0 0.0
        %3704 = vmatprep.subr.mxu0 0.0
        %3705 = vmatpush1.msra.mxu0 0.0
        %3706 = vmatprep.subr.mxu0 0.0
        %3707 = vmatpush1.msra.mxu0 0.0
        %3708 = vmatprep.subr.mxu0 0.0
        %3709 = vmatpush1.msra.mxu0 0.0
        %3710 = vmatprep.subr.mxu0 0.0
        %3711 = vmatpush1.msra.mxu0 0.0
        %3712 = vmatprep.subr.mxu0 0.0
        %3713 = vmatpush1.msra.mxu0 0.0
        %3714 = vmatprep.subr.mxu0 0.0
        %3715 = vmatpush1.msra.mxu0 0.0
        %3716 = vmatprep.subr.mxu0 0.0
        %3717 = vmatpush1.msra.mxu0 0.0
        %3718 = vmatprep.subr.mxu0 0.0
        %3719 = vmatpush1.msra.mxu0 0.0
        %3720 = vmatprep.subr.mxu0 0.0
        %3721 = vmatpush1.msra.mxu0 0.0
        %3722 = vmatprep.subr.mxu0 0.0
        %3723 = vmatpush1.msra.mxu0 0.0
        %3724 = vmatprep.subr.mxu0 0.0
        %3725 = vmatpush1.msra.mxu0 0.0
        %3726 = vmatprep.mubr.f32.mxu0 0.0
        %3727 = vmatmul.mubr.f32.gmra.mrb[0].mxu0 %v2920
        %v3728 = vpop.f32.mrb[0].mxu0
        %v3729 = vadd.f32 0.0, %v3728
        %v3730 = vpop.f32.mrb[0].mxu0
        %3731 = vmatprep.mubr.f32.mxu0 0.0
        %3732 = vmatmul.mubr.f32.gmra.mrb[0].mxu0 %v3112
        %v3733 = vpop.f32.mrb[0].mxu0
        %v3734 = vadd.f32 0.0, %v3733
        %v3735 = vpop.f32.mrb[0].mxu0
        %3736 = vmatprep.mubr.f32.mxu0 0.0
        %3737 = vmatmul.mubr.f32.gmra.mrb[0].mxu0 %v2924
        %v3738 = vpop.f32.mrb[0].mxu0
        %v3739 = vadd.f32 0.0, %v3738
        %v3740 = vpop.f32.mrb[0].mxu0
        %3741 = vmatprep.mubr.f32.mxu0 0.0
        %3742 = vmatmul.mubr.f32.gmra.mrb[0].mxu0 %v3114
        %v3743 = vpop.f32.mrb[0].mxu0
        %v3744 = vadd.f32 0.0, %v3743
        %v3745 = vpop.f32.mrb[0].mxu0
        %3746 = vmatprep.mubr.f32.mxu0 0.0
        %3747 = vmatmul.mubr.f32.gmra.mrb[0].mxu0 %v2928
        %v3748 = vpop.f32.mrb[0].mxu0
        %v3749 = vadd.f32 0.0, %v3748
        %v3750 = vpop.f32.mrb[0].mxu0
        %3751 = vmatprep.mubr.f32.mxu0 0.0
        %3752 = vmatmul.mubr.f32.gmra.mrb[0].mxu0 %v3116
        %v3753 = vpop.f32.mrb[0].mxu0
        %v3754 = vadd.f32 0.0, %v3753
        %v3755 = vpop.f32.mrb[0].mxu0
        %3756 = vmatprep.mubr.f32.mxu0 0.0
        %3757 = vmatmul.mubr.f32.gmra.mrb[0].mxu0 %v2932
        %v3758 = vpop.f32.mrb[0].mxu0
        %v3759 = vadd.f32 0.0, %v3758
        %v3760 = vpop.f32.mrb[0].mxu0
        %3761 = vmatprep.mubr.f32.mxu0 0.0
        %3762 = vmatmul.mubr.f32.gmra.mrb[0].mxu0 %v3118
        %v3763 = vpop.f32.mrb[0].mxu0
        %v3764 = vadd.f32 0.0, %v3763
        %v3765 = vpop.f32.mrb[0].mxu0
        %3766 = vmatprep.mubr.f32.mxu0 0.0
        %3767 = vmatmul.mubr.f32.gmra.mrb[0].mxu0 %v3304
        %v3768 = vpop.f32.mrb[0].mxu0
        %v3769 = vadd.f32 0.0, %v3768
        %v3770 = vpop.f32.mrb[0].mxu0
        %3771 = vmatprep.mubr.f32.mxu0 0.0
        %3772 = vmatmul.mubr.f32.gmra.mrb[0].mxu0 %v3654
        %v3773 = vpop.f32.mrb[0].mxu0
        %v3774 = vadd.f32 0.0, %v3773
        %v3775 = vpop.f32.mrb[0].mxu0
        %3776 = vmatprep.mubr.f32.mxu0 0.0
        %3777 = vmatmul.mubr.f32.gmra.mrb[0].mxu0 %v3308
        %v3778 = vpop.f32.mrb[0].mxu0
        %v3779 = vadd.f32 0.0, %v3778
        %v3780 = vpop.f32.mrb[0].mxu0
        %3781 = vmatprep.mubr.f32.mxu0 0.0
        %3782 = vmatmul.mubr.f32.gmra.mrb[0].mxu0 %v3656
        %v3783 = vpop.f32.mrb[0].mxu0
        %v3784 = vadd.f32 0.0, %v3783
        %v3785 = vpop.f32.mrb[0].mxu0
        %3786 = vmatprep.mubr.f32.mxu0 0.0
        %3787 = vmatmul.mubr.f32.gmra.mrb[0].mxu0 %v3312
        %v3788 = vpop.f32.mrb[0].mxu0
        %v3789 = vadd.f32 0.0, %v3788
        %v3790 = vpop.f32.mrb[0].mxu0
        %3791 = vmatprep.mubr.f32.mxu0 0.0
        %3792 = vmatmul.mubr.f32.gmra.mrb[0].mxu0 %v3658
        %v3793 = vpop.f32.mrb[0].mxu0
        %v3794 = vadd.f32 0.0, %v3793
        %v3795 = vpop.f32.mrb[0].mxu0
        %3796 = vmatprep.mubr.f32.mxu0 0.0
        %3797 = vmatmul.mubr.f32.gmra.mrb[0].mxu0 %v3316
        %v3798 = vpop.f32.mrb[0].mxu0
        %v3799 = vadd.f32 0.0, %v3798
        %v3800 = vpop.f32.mrb[0].mxu0
        %3801 = vmatprep.mubr.f32.mxu0 0.0
        %3802 = vmatmul.mubr.f32.gmra.mrb[0].mxu0 %v3660
        %v3803 = vpop.f32.mrb[0].mxu0
        %v3804 = vadd.f32 0.0, %v3803
        %v3805 = vpop.f32.mrb[0].mxu0
        %3806 = vdwg.mxu0
        %v3807 = vadd.f32 %v3625, %v3729
        %v3808 = vadd.f32 %v3626, %v3734
        %v3809 = vadd.f32 %v3627, %v3739
        %v3810 = vadd.f32 %v3628, %v3744
        %v3811 = vadd.f32 %v3629, %v3749
        %v3812 = vadd.f32 %v3630, %v3754
        %v3813 = vadd.f32 %v3631, %v3759
        %v3814 = vadd.f32 %v3632, %v3764
        %v3815 = vadd.f32 %v3633, %v3769
        %v3816 = vadd.f32 %v3634, %v3774
        %v3817 = vadd.f32 %v3635, %v3779
        %v3818 = vadd.f32 %v3636, %v3784
        %v3819 = vadd.f32 %v3637, %v3789
        %v3820 = vadd.f32 %v3638, %v3794
        %v3821 = vadd.f32 %v3639, %v3799
        %v3822 = vadd.f32 %v3640, %v3804
        %v3829 = vrot.slane %v338, 2
        %v3830 = vrot.slane %v339, 2
        %v3831 = vsel %vm2696, %v3829, %v3830
        %v3832 = vrot.slane %v340, 2
        %v3833 = vsel %vm2696, %v3830, %v3832
        %v3834 = vrot.slane %v342, 2
        %v3835 = vrot.slane %v343, 2
        %v3836 = vsel %vm2696, %v3834, %v3835
        %v3837 = vrot.slane %v344, 2
        %v3838 = vsel %vm2696, %v3835, %v3837
        %v3839 = vrot.slane %v346, 2
        %v3840 = vrot.slane %v347, 2
        %v3841 = vsel %vm2696, %v3839, %v3840
        %v3842 = vrot.slane %v348, 2
        %v3843 = vsel %vm2696, %v3840, %v3842
        %v3844 = vrot.slane %v350, 2
        %v3845 = vrot.slane %v351, 2
        %v3846 = vsel %vm2696, %v3844, %v3845
        %v3847 = vrot.slane %v352, 2
        %v3848 = vsel %vm2696, %v3845, %v3847
        %v3849 = vld [vmem:[%s2 + $0x78] sm:$0xff]
        %v3850 = vsel %vm433, %v3831, 0
        %v3852 = vsel %vm433, %v3833, 0
        %v3854 = vsel %vm433, %v3836, 0
        %v3856 = vsel %vm433, %v3838, 0
        %v3858 = vsel %vm433, %v3841, 0
        %v3860 = vsel %vm433, %v3843, 0
        %v3862 = vsel %vm433, %v3846, 0
        %v3864 = vsel %vm433, %v3848, 0
        %3866 = vmatprep.subr.mxu0 0.0
        %3867 = vmatpush1.msra.mxu0 %v3849
        %3868 = vmatprep.subr.mxu0 0.0
        %3869 = vmatpush1.msra.mxu0 0.0
        %3870 = vmatprep.subr.mxu0 0.0
        %3871 = vmatpush1.msra.mxu0 0.0
        %3872 = vmatprep.subr.mxu0 0.0
        %3873 = vmatpush1.msra.mxu0 0.0
        %3874 = vmatprep.subr.mxu0 0.0
        %3875 = vmatpush1.msra.mxu0 0.0
        %3876 = vmatprep.subr.mxu0 0.0
        %3877 = vmatpush1.msra.mxu0 0.0
        %3878 = vmatprep.subr.mxu0 0.0
        %3879 = vmatpush1.msra.mxu0 0.0
        %3880 = vmatprep.subr.mxu0 0.0
        %3881 = vmatpush1.msra.mxu0 0.0
        %3882 = vmatprep.subr.mxu0 0.0
        %3883 = vmatpush1.msra.mxu0 0.0
        %3884 = vmatprep.subr.mxu0 0.0
        %3885 = vmatpush1.msra.mxu0 0.0
        %3886 = vmatprep.subr.mxu0 0.0
        %3887 = vmatpush1.msra.mxu0 0.0
        %3888 = vmatprep.subr.mxu0 0.0
        %3889 = vmatpush1.msra.mxu0 0.0
        %3890 = vmatprep.subr.mxu0 0.0
        %3891 = vmatpush1.msra.mxu0 0.0
        %3892 = vmatprep.subr.mxu0 0.0
        %3893 = vmatpush1.msra.mxu0 0.0
        %3894 = vmatprep.subr.mxu0 0.0
        %3895 = vmatpush1.msra.mxu0 0.0
        %3896 = vmatprep.subr.mxu0 0.0
        %3897 = vmatpush1.msra.mxu0 0.0
        %3898 = vmatprep.subr.mxu0 0.0
        %3899 = vmatpush1.msra.mxu0 0.0
        %3900 = vmatprep.subr.mxu0 0.0
        %3901 = vmatpush1.msra.mxu0 0.0
        %3902 = vmatprep.subr.mxu0 0.0
        %3903 = vmatpush1.msra.mxu0 0.0
        %3904 = vmatprep.subr.mxu0 0.0
        %3905 = vmatpush1.msra.mxu0 0.0
        %3906 = vmatprep.subr.mxu0 0.0
        %3907 = vmatpush1.msra.mxu0 0.0
        %3908 = vmatprep.subr.mxu0 0.0
        %3909 = vmatpush1.msra.mxu0 0.0
        %3910 = vmatprep.subr.mxu0 0.0
        %3911 = vmatpush1.msra.mxu0 0.0
        %3912 = vmatprep.subr.mxu0 0.0
        %3913 = vmatpush1.msra.mxu0 0.0
        %3914 = vmatprep.subr.mxu0 0.0
        %3915 = vmatpush1.msra.mxu0 0.0
        %3916 = vmatprep.subr.mxu0 0.0
        %3917 = vmatpush1.msra.mxu0 0.0
        %3918 = vmatprep.subr.mxu0 0.0
        %3919 = vmatpush1.msra.mxu0 0.0
        %3920 = vmatprep.subr.mxu0 0.0
        %3921 = vmatpush1.msra.mxu0 0.0
        %3922 = vmatprep.subr.mxu0 0.0
        %3923 = vmatpush1.msra.mxu0 0.0
        %3924 = vmatprep.subr.mxu0 0.0
        %3925 = vmatpush1.msra.mxu0 0.0
        %3926 = vmatprep.subr.mxu0 0.0
        %3927 = vmatpush1.msra.mxu0 0.0
        %3928 = vmatprep.subr.mxu0 0.0
        %3929 = vmatpush1.msra.mxu0 0.0
        %3930 = vmatprep.mubr.f32.mxu0 0.0
        %3931 = vmatmul.mubr.f32.gmra.mrb[0].mxu0 %v3302
        %v3932 = vpop.f32.mrb[0].mxu0
        %v3933 = vadd.f32 0.0, %v3932
        %v3934 = vpop.f32.mrb[0].mxu0
        %3935 = vmatprep.mubr.f32.mxu0 0.0
        %3936 = vmatmul.mubr.f32.gmra.mrb[0].mxu0 %v3304
        %v3937 = vpop.f32.mrb[0].mxu0
        %v3938 = vadd.f32 0.0, %v3937
        %v3939 = vpop.f32.mrb[0].mxu0
        %3940 = vmatprep.mubr.f32.mxu0 0.0
        %3941 = vmatmul.mubr.f32.gmra.mrb[0].mxu0 %v3306
        %v3942 = vpop.f32.mrb[0].mxu0
        %v3943 = vadd.f32 0.0, %v3942
        %v3944 = vpop.f32.mrb[0].mxu0
        %3945 = vmatprep.mubr.f32.mxu0 0.0
        %3946 = vmatmul.mubr.f32.gmra.mrb[0].mxu0 %v3308
        %v3947 = vpop.f32.mrb[0].mxu0
        %v3948 = vadd.f32 0.0, %v3947
        %v3949 = vpop.f32.mrb[0].mxu0
        %3950 = vmatprep.mubr.f32.mxu0 0.0
        %3951 = vmatmul.mubr.f32.gmra.mrb[0].mxu0 %v3310
        %v3952 = vpop.f32.mrb[0].mxu0
        %v3953 = vadd.f32 0.0, %v3952
        %v3954 = vpop.f32.mrb[0].mxu0
        %3955 = vmatprep.mubr.f32.mxu0 0.0
        %3956 = vmatmul.mubr.f32.gmra.mrb[0].mxu0 %v3312
        %v3957 = vpop.f32.mrb[0].mxu0
        %v3958 = vadd.f32 0.0, %v3957
        %v3959 = vpop.f32.mrb[0].mxu0
        %3960 = vmatprep.mubr.f32.mxu0 0.0
        %3961 = vmatmul.mubr.f32.gmra.mrb[0].mxu0 %v3314
        %v3962 = vpop.f32.mrb[0].mxu0
        %v3963 = vadd.f32 0.0, %v3962
        %v3964 = vpop.f32.mrb[0].mxu0
        %3965 = vmatprep.mubr.f32.mxu0 0.0
        %3966 = vmatmul.mubr.f32.gmra.mrb[0].mxu0 %v3316
        %v3967 = vpop.f32.mrb[0].mxu0
        %v3968 = vadd.f32 0.0, %v3967
        %v3969 = vpop.f32.mrb[0].mxu0
        %3970 = vmatprep.mubr.f32.mxu0 0.0
        %3971 = vmatmul.mubr.f32.gmra.mrb[0].mxu0 %v3850
        %v3972 = vpop.f32.mrb[0].mxu0
        %v3973 = vadd.f32 0.0, %v3972
        %v3974 = vpop.f32.mrb[0].mxu0
        %3975 = vmatprep.mubr.f32.mxu0 0.0
        %3976 = vmatmul.mubr.f32.gmra.mrb[0].mxu0 %v3852
        %v3977 = vpop.f32.mrb[0].mxu0
        %v3978 = vadd.f32 0.0, %v3977
        %v3979 = vpop.f32.mrb[0].mxu0
        %3980 = vmatprep.mubr.f32.mxu0 0.0
        %3981 = vmatmul.mubr.f32.gmra.mrb[0].mxu0 %v3854
        %v3982 = vpop.f32.mrb[0].mxu0
        %v3983 = vadd.f32 0.0, %v3982
        %v3984 = vpop.f32.mrb[0].mxu0
        %3985 = vmatprep.mubr.f32.mxu0 0.0
        %3986 = vmatmul.mubr.f32.gmra.mrb[0].mxu0 %v3856
        %v3987 = vpop.f32.mrb[0].mxu0
        %v3988 = vadd.f32 0.0, %v3987
        %v3989 = vpop.f32.mrb[0].mxu0
        %3990 = vmatprep.mubr.f32.mxu0 0.0
        %3991 = vmatmul.mubr.f32.gmra.mrb[0].mxu0 %v3858
        %v3992 = vpop.f32.mrb[0].mxu0
        %v3993 = vadd.f32 0.0, %v3992
        %v3994 = vpop.f32.mrb[0].mxu0
        %3995 = vmatprep.mubr.f32.mxu0 0.0
        %3996 = vmatmul.mubr.f32.gmra.mrb[0].mxu0 %v3860
        %v3997 = vpop.f32.mrb[0].mxu0
        %v3998 = vadd.f32 0.0, %v3997
        %v3999 = vpop.f32.mrb[0].mxu0
        %4000 = vmatprep.mubr.f32.mxu0 0.0
        %4001 = vmatmul.mubr.f32.gmra.mrb[0].mxu0 %v3862
        %v4002 = vpop.f32.mrb[0].mxu0
        %v4003 = vadd.f32 0.0, %v4002
        %v4004 = vpop.f32.mrb[0].mxu0
        %4005 = vmatprep.mubr.f32.mxu0 0.0
        %4006 = vmatmul.mubr.f32.gmra.mrb[0].mxu0 %v3864
        %v4007 = vpop.f32.mrb[0].mxu0
        %v4008 = vadd.f32 0.0, %v4007
        %v4009 = vpop.f32.mrb[0].mxu0
        %4010 = vdwg.mxu0
        %v4011 = vadd.f32 %v3807, %v3933
        %v4012 = vadd.f32 %v3808, %v3938
        %v4013 = vadd.f32 %v3809, %v3943
        %v4014 = vadd.f32 %v3810, %v3948
        %v4015 = vadd.f32 %v3811, %v3953
        %v4016 = vadd.f32 %v3812, %v3958
        %v4017 = vadd.f32 %v3813, %v3963
        %v4018 = vadd.f32 %v3814, %v3968
        %v4019 = vadd.f32 %v3815, %v3973
        %v4020 = vadd.f32 %v3816, %v3978
        %v4021 = vadd.f32 %v3817, %v3983
        %v4022 = vadd.f32 %v3818, %v3988
        %v4023 = vadd.f32 %v3819, %v3993
        %v4024 = vadd.f32 %v3820, %v3998
        %v4025 = vadd.f32 %v3821, %v4003
        %v4026 = vadd.f32 %v3822, %v4008
        %v4027 = vrot.slane %v346, 6
        %v4028 = vrot.slane %v347, 6
        %v4029 = vsel %vm386, %v4027, %v4028
        %v4030 = vrot.slane %v348, 6
        %v4031 = vsel %vm386, %v4028, %v4030
        %v4032 = vrot.slane %v350, 6
        %v4033 = vrot.slane %v351, 6
        %v4034 = vsel %vm386, %v4032, %v4033
        %v4035 = vrot.slane %v352, 6
        %v4036 = vsel %vm386, %v4033, %v4035
        %v4037 = vld [vmem:[%s2 + $0x80] sm:$0xff]
        %v4038 = vsel %vm433, %v4029, 0
        %v4040 = vsel %vm433, %v4031, 0
        %v4042 = vsel %vm433, %v4034, 0
        %v4044 = vsel %vm433, %v4036, 0
        %4046 = vmatprep.subr.mxu0 0.0
        %4047 = vmatpush1.msra.mxu0 %v4037
        %4048 = vmatprep.subr.mxu0 0.0
        %4049 = vmatpush1.msra.mxu0 0.0
        %4050 = vmatprep.subr.mxu0 0.0
        %4051 = vmatpush1.msra.mxu0 0.0
        %4052 = vmatprep.subr.mxu0 0.0
        %4053 = vmatpush1.msra.mxu0 0.0
        %4054 = vmatprep.subr.mxu0 0.0
        %4055 = vmatpush1.msra.mxu0 0.0
        %4056 = vmatprep.subr.mxu0 0.0
        %4057 = vmatpush1.msra.mxu0 0.0
        %4058 = vmatprep.subr.mxu0 0.0
        %4059 = vmatpush1.msra.mxu0 0.0
        %4060 = vmatprep.subr.mxu0 0.0
        %4061 = vmatpush1.msra.mxu0 0.0
        %4062 = vmatprep.subr.mxu0 0.0
        %4063 = vmatpush1.msra.mxu0 0.0
        %4064 = vmatprep.subr.mxu0 0.0
        %4065 = vmatpush1.msra.mxu0 0.0
        %4066 = vmatprep.subr.mxu0 0.0
        %4067 = vmatpush1.msra.mxu0 0.0
        %4068 = vmatprep.subr.mxu0 0.0
        %4069 = vmatpush1.msra.mxu0 0.0
        %4070 = vmatprep.subr.mxu0 0.0
        %4071 = vmatpush1.msra.mxu0 0.0
        %4072 = vmatprep.subr.mxu0 0.0
        %4073 = vmatpush1.msra.mxu0 0.0
        %4074 = vmatprep.subr.mxu0 0.0
        %4075 = vmatpush1.msra.mxu0 0.0
        %4076 = vmatprep.subr.mxu0 0.0
        %4077 = vmatpush1.msra.mxu0 0.0
        %4078 = vmatprep.subr.mxu0 0.0
        %4079 = vmatpush1.msra.mxu0 0.0
        %4080 = vmatprep.subr.mxu0 0.0
        %4081 = vmatpush1.msra.mxu0 0.0
        %4082 = vmatprep.subr.mxu0 0.0
        %4083 = vmatpush1.msra.mxu0 0.0
        %4084 = vmatprep.subr.mxu0 0.0
        %4085 = vmatpush1.msra.mxu0 0.0
        %4086 = vmatprep.subr.mxu0 0.0
        %4087 = vmatpush1.msra.mxu0 0.0
        %4088 = vmatprep.subr.mxu0 0.0
        %4089 = vmatpush1.msra.mxu0 0.0
        %4090 = vmatprep.subr.mxu0 0.0
        %4091 = vmatpush1.msra.mxu0 0.0
        %4092 = vmatprep.subr.mxu0 0.0
        %4093 = vmatpush1.msra.mxu0 0.0
        %4094 = vmatprep.subr.mxu0 0.0
        %4095 = vmatpush1.msra.mxu0 0.0
        %4096 = vmatprep.subr.mxu0 0.0
        %4097 = vmatpush1.msra.mxu0 0.0
        %4098 = vmatprep.subr.mxu0 0.0
        %4099 = vmatpush1.msra.mxu0 0.0
        %4100 = vmatprep.subr.mxu0 0.0
        %4101 = vmatpush1.msra.mxu0 0.0
        %4102 = vmatprep.subr.mxu0 0.0
        %4103 = vmatpush1.msra.mxu0 0.0
        %4104 = vmatprep.subr.mxu0 0.0
        %4105 = vmatpush1.msra.mxu0 0.0
        %4106 = vmatprep.subr.mxu0 0.0
        %4107 = vmatpush1.msra.mxu0 0.0
        %4108 = vmatprep.subr.mxu0 0.0
        %4109 = vmatpush1.msra.mxu0 0.0
        %4110 = vmatprep.mubr.f32.mxu0 0.0
        %4111 = vmatmul.mubr.f32.gmra.mrb[0].mxu0 %v450
        %v4112 = vpop.f32.mrb[0].mxu0
        %v4113 = vadd.f32 0.0, %v4112
        %v4114 = vpop.f32.mrb[0].mxu0
        %4115 = vmatprep.mubr.f32.mxu0 0.0
        %4116 = vmatmul.mubr.f32.gmra.mrb[0].mxu0 %v452
        %v4117 = vpop.f32.mrb[0].mxu0
        %v4118 = vadd.f32 0.0, %v4117
        %v4119 = vpop.f32.mrb[0].mxu0
        %4120 = vmatprep.mubr.f32.mxu0 0.0
        %4121 = vmatmul.mubr.f32.gmra.mrb[0].mxu0 %v454
        %v4122 = vpop.f32.mrb[0].mxu0
        %v4123 = vadd.f32 0.0, %v4122
        %v4124 = vpop.f32.mrb[0].mxu0
        %4125 = vmatprep.mubr.f32.mxu0 0.0
        %4126 = vmatmul.mubr.f32.gmra.mrb[0].mxu0 %v456
        %v4127 = vpop.f32.mrb[0].mxu0
        %v4128 = vadd.f32 0.0, %v4127
        %v4129 = vpop.f32.mrb[0].mxu0
        %4130 = vmatprep.mubr.f32.mxu0 0.0
        %4131 = vmatmul.mubr.f32.gmra.mrb[0].mxu0 %v458
        %v4132 = vpop.f32.mrb[0].mxu0
        %v4133 = vadd.f32 0.0, %v4132
        %v4134 = vpop.f32.mrb[0].mxu0
        %4135 = vmatprep.mubr.f32.mxu0 0.0
        %4136 = vmatmul.mubr.f32.gmra.mrb[0].mxu0 %v460
        %v4137 = vpop.f32.mrb[0].mxu0
        %v4138 = vadd.f32 0.0, %v4137
        %v4139 = vpop.f32.mrb[0].mxu0
        %4140 = vmatprep.mubr.f32.mxu0 0.0
        %4141 = vmatmul.mubr.f32.gmra.mrb[0].mxu0 %v462
        %v4142 = vpop.f32.mrb[0].mxu0
        %v4143 = vadd.f32 0.0, %v4142
        %v4144 = vpop.f32.mrb[0].mxu0
        %4145 = vmatprep.mubr.f32.mxu0 0.0
        %4146 = vmatmul.mubr.f32.gmra.mrb[0].mxu0 %v464
        %v4147 = vpop.f32.mrb[0].mxu0
        %v4148 = vadd.f32 0.0, %v4147
        %v4149 = vpop.f32.mrb[0].mxu0
        %4150 = vmatprep.mubr.f32.mxu0 0.0
        %4151 = vmatmul.mubr.f32.gmra.mrb[0].mxu0 %v1923
        %v4152 = vpop.f32.mrb[0].mxu0
        %v4153 = vadd.f32 0.0, %v4152
        %v4154 = vpop.f32.mrb[0].mxu0
        %4155 = vmatprep.mubr.f32.mxu0 0.0
        %4156 = vmatmul.mubr.f32.gmra.mrb[0].mxu0 %v1925
        %v4157 = vpop.f32.mrb[0].mxu0
        %v4158 = vadd.f32 0.0, %v4157
        %v4159 = vpop.f32.mrb[0].mxu0
        %4160 = vmatprep.mubr.f32.mxu0 0.0
        %4161 = vmatmul.mubr.f32.gmra.mrb[0].mxu0 %v1927
        %v4162 = vpop.f32.mrb[0].mxu0
        %v4163 = vadd.f32 0.0, %v4162
        %v4164 = vpop.f32.mrb[0].mxu0
        %4165 = vmatprep.mubr.f32.mxu0 0.0
        %4166 = vmatmul.mubr.f32.gmra.mrb[0].mxu0 %v1929
        %v4167 = vpop.f32.mrb[0].mxu0
        %v4168 = vadd.f32 0.0, %v4167
        %v4169 = vpop.f32.mrb[0].mxu0
        %4170 = vmatprep.mubr.f32.mxu0 0.0
        %4171 = vmatmul.mubr.f32.gmra.mrb[0].mxu0 %v4038
        %v4172 = vpop.f32.mrb[0].mxu0
        %v4173 = vadd.f32 0.0, %v4172
        %v4174 = vpop.f32.mrb[0].mxu0
        %4175 = vmatprep.mubr.f32.mxu0 0.0
        %4176 = vmatmul.mubr.f32.gmra.mrb[0].mxu0 %v4040
        %v4177 = vpop.f32.mrb[0].mxu0
        %v4178 = vadd.f32 0.0, %v4177
        %v4179 = vpop.f32.mrb[0].mxu0
        %4180 = vmatprep.mubr.f32.mxu0 0.0
        %4181 = vmatmul.mubr.f32.gmra.mrb[0].mxu0 %v4042
        %v4182 = vpop.f32.mrb[0].mxu0
        %v4183 = vadd.f32 0.0, %v4182
        %v4184 = vpop.f32.mrb[0].mxu0
        %4185 = vmatprep.mubr.f32.mxu0 0.0
        %4186 = vmatmul.mubr.f32.gmra.mrb[0].mxu0 %v4044
        %v4187 = vpop.f32.mrb[0].mxu0
        %v4188 = vadd.f32 0.0, %v4187
        %v4189 = vpop.f32.mrb[0].mxu0
        %4190 = vdwg.mxu0
        %v4191 = vadd.f32 %v4011, %v4113
        %v4192 = vadd.f32 %v4012, %v4118
        %v4193 = vadd.f32 %v4013, %v4123
        %v4194 = vadd.f32 %v4014, %v4128
        %v4195 = vadd.f32 %v4015, %v4133
        %v4196 = vadd.f32 %v4016, %v4138
        %v4197 = vadd.f32 %v4017, %v4143
        %v4198 = vadd.f32 %v4018, %v4148
        %v4199 = vadd.f32 %v4019, %v4153
        %v4200 = vadd.f32 %v4020, %v4158
        %v4201 = vadd.f32 %v4021, %v4163
        %v4202 = vadd.f32 %v4022, %v4168
        %v4203 = vadd.f32 %v4023, %v4173
        %v4204 = vadd.f32 %v4024, %v4178
        %v4205 = vadd.f32 %v4025, %v4183
        %v4206 = vadd.f32 %v4026, %v4188
        %v4211 = vrot.slane %v341, 2
        %v4212 = vsel %vm2696, %v3832, %v4211
        %v4213 = vrot.slane %v345, 2
        %v4214 = vsel %vm2696, %v3837, %v4213
        %v4215 = vrot.slane %v349, 2
        %v4216 = vsel %vm2696, %v3842, %v4215
        %v4217 = vrot.slane %v353, 2
        %v4218 = vsel %vm2696, %v3847, %v4217
        %v4219 = vld [vmem:[%s2 + $0x88] sm:$0xff]
        %v4220 = vsel %vm433, %v4212, 0
        %v4222 = vsel %vm433, %v4214, 0
        %v4224 = vsel %vm433, %v4216, 0
        %v4226 = vsel %vm433, %v4218, 0
        %4228 = vmatprep.subr.mxu0 0.0
        %4229 = vmatpush1.msra.mxu0 %v4219
        %4230 = vmatprep.subr.mxu0 0.0
        %4231 = vmatpush1.msra.mxu0 0.0
        %4232 = vmatprep.subr.mxu0 0.0
        %4233 = vmatpush1.msra.mxu0 0.0
        %4234 = vmatprep.subr.mxu0 0.0
        %4235 = vmatpush1.msra.mxu0 0.0
        %4236 = vmatprep.subr.mxu0 0.0
        %4237 = vmatpush1.msra.mxu0 0.0
        %4238 = vmatprep.subr.mxu0 0.0
        %4239 = vmatpush1.msra.mxu0 0.0
        %4240 = vmatprep.subr.mxu0 0.0
        %4241 = vmatpush1.msra.mxu0 0.0
        %4242 = vmatprep.subr.mxu0 0.0
        %4243 = vmatpush1.msra.mxu0 0.0
        %4244 = vmatprep.subr.mxu0 0.0
        %4245 = vmatpush1.msra.mxu0 0.0
        %4246 = vmatprep.subr.mxu0 0.0
        %4247 = vmatpush1.msra.mxu0 0.0
        %4248 = vmatprep.subr.mxu0 0.0
        %4249 = vmatpush1.msra.mxu0 0.0
        %4250 = vmatprep.subr.mxu0 0.0
        %4251 = vmatpush1.msra.mxu0 0.0
        %4252 = vmatprep.subr.mxu0 0.0
        %4253 = vmatpush1.msra.mxu0 0.0
        %4254 = vmatprep.subr.mxu0 0.0
        %4255 = vmatpush1.msra.mxu0 0.0
        %4256 = vmatprep.subr.mxu0 0.0
        %4257 = vmatpush1.msra.mxu0 0.0
        %4258 = vmatprep.subr.mxu0 0.0
        %4259 = vmatpush1.msra.mxu0 0.0
        %4260 = vmatprep.subr.mxu0 0.0
        %4261 = vmatpush1.msra.mxu0 0.0
        %4262 = vmatprep.subr.mxu0 0.0
        %4263 = vmatpush1.msra.mxu0 0.0
        %4264 = vmatprep.subr.mxu0 0.0
        %4265 = vmatpush1.msra.mxu0 0.0
        %4266 = vmatprep.subr.mxu0 0.0
        %4267 = vmatpush1.msra.mxu0 0.0
        %4268 = vmatprep.subr.mxu0 0.0
        %4269 = vmatpush1.msra.mxu0 0.0
        %4270 = vmatprep.subr.mxu0 0.0
        %4271 = vmatpush1.msra.mxu0 0.0
        %4272 = vmatprep.subr.mxu0 0.0
        %4273 = vmatpush1.msra.mxu0 0.0
        %4274 = vmatprep.subr.mxu0 0.0
        %4275 = vmatpush1.msra.mxu0 0.0
        %4276 = vmatprep.subr.mxu0 0.0
        %4277 = vmatpush1.msra.mxu0 0.0
        %4278 = vmatprep.subr.mxu0 0.0
        %4279 = vmatpush1.msra.mxu0 0.0
        %4280 = vmatprep.subr.mxu0 0.0
        %4281 = vmatpush1.msra.mxu0 0.0
        %4282 = vmatprep.subr.mxu0 0.0
        %4283 = vmatpush1.msra.mxu0 0.0
        %4284 = vmatprep.subr.mxu0 0.0
        %4285 = vmatpush1.msra.mxu0 0.0
        %4286 = vmatprep.subr.mxu0 0.0
        %4287 = vmatpush1.msra.mxu0 0.0
        %4288 = vmatprep.subr.mxu0 0.0
        %4289 = vmatpush1.msra.mxu0 0.0
        %4290 = vmatprep.subr.mxu0 0.0
        %4291 = vmatpush1.msra.mxu0 0.0
        %4292 = vmatprep.mubr.f32.mxu0 0.0
        %4293 = vmatmul.mubr.f32.gmra.mrb[0].mxu0 %v3304
        %v4294 = vpop.f32.mrb[0].mxu0
        %v4295 = vadd.f32 0.0, %v4294
        %v4296 = vpop.f32.mrb[0].mxu0
        %4297 = vmatprep.mubr.f32.mxu0 0.0
        %4298 = vmatmul.mubr.f32.gmra.mrb[0].mxu0 %v3654
        %v4299 = vpop.f32.mrb[0].mxu0
        %v4300 = vadd.f32 0.0, %v4299
        %v4301 = vpop.f32.mrb[0].mxu0
        %4302 = vmatprep.mubr.f32.mxu0 0.0
        %4303 = vmatmul.mubr.f32.gmra.mrb[0].mxu0 %v3308
        %v4304 = vpop.f32.mrb[0].mxu0
        %v4305 = vadd.f32 0.0, %v4304
        %v4306 = vpop.f32.mrb[0].mxu0
        %4307 = vmatprep.mubr.f32.mxu0 0.0
        %4308 = vmatmul.mubr.f32.gmra.mrb[0].mxu0 %v3656
        %v4309 = vpop.f32.mrb[0].mxu0
        %v4310 = vadd.f32 0.0, %v4309
        %v4311 = vpop.f32.mrb[0].mxu0
        %4312 = vmatprep.mubr.f32.mxu0 0.0
        %4313 = vmatmul.mubr.f32.gmra.mrb[0].mxu0 %v3312
        %v4314 = vpop.f32.mrb[0].mxu0
        %v4315 = vadd.f32 0.0, %v4314
        %v4316 = vpop.f32.mrb[0].mxu0
        %4317 = vmatprep.mubr.f32.mxu0 0.0
        %4318 = vmatmul.mubr.f32.gmra.mrb[0].mxu0 %v3658
        %v4319 = vpop.f32.mrb[0].mxu0
        %v4320 = vadd.f32 0.0, %v4319
        %v4321 = vpop.f32.mrb[0].mxu0
        %4322 = vmatprep.mubr.f32.mxu0 0.0
        %4323 = vmatmul.mubr.f32.gmra.mrb[0].mxu0 %v3316
        %v4324 = vpop.f32.mrb[0].mxu0
        %v4325 = vadd.f32 0.0, %v4324
        %v4326 = vpop.f32.mrb[0].mxu0
        %4327 = vmatprep.mubr.f32.mxu0 0.0
        %4328 = vmatmul.mubr.f32.gmra.mrb[0].mxu0 %v3660
        %v4329 = vpop.f32.mrb[0].mxu0
        %v4330 = vadd.f32 0.0, %v4329
        %v4331 = vpop.f32.mrb[0].mxu0
        %4332 = vmatprep.mubr.f32.mxu0 0.0
        %4333 = vmatmul.mubr.f32.gmra.mrb[0].mxu0 %v3852
        %v4334 = vpop.f32.mrb[0].mxu0
        %v4335 = vadd.f32 0.0, %v4334
        %v4336 = vpop.f32.mrb[0].mxu0
        %4337 = vmatprep.mubr.f32.mxu0 0.0
        %4338 = vmatmul.mubr.f32.gmra.mrb[0].mxu0 %v4220
        %v4339 = vpop.f32.mrb[0].mxu0
        %v4340 = vadd.f32 0.0, %v4339
        %v4341 = vpop.f32.mrb[0].mxu0
        %4342 = vmatprep.mubr.f32.mxu0 0.0
        %4343 = vmatmul.mubr.f32.gmra.mrb[0].mxu0 %v3856
        %v4344 = vpop.f32.mrb[0].mxu0
        %v4345 = vadd.f32 0.0, %v4344
        %v4346 = vpop.f32.mrb[0].mxu0
        %4347 = vmatprep.mubr.f32.mxu0 0.0
        %4348 = vmatmul.mubr.f32.gmra.mrb[0].mxu0 %v4222
        %v4349 = vpop.f32.mrb[0].mxu0
        %v4350 = vadd.f32 0.0, %v4349
        %v4351 = vpop.f32.mrb[0].mxu0
        %4352 = vmatprep.mubr.f32.mxu0 0.0
        %4353 = vmatmul.mubr.f32.gmra.mrb[0].mxu0 %v3860
        %v4354 = vpop.f32.mrb[0].mxu0
        %v4355 = vadd.f32 0.0, %v4354
        %v4356 = vpop.f32.mrb[0].mxu0
        %4357 = vmatprep.mubr.f32.mxu0 0.0
        %4358 = vmatmul.mubr.f32.gmra.mrb[0].mxu0 %v4224
        %v4359 = vpop.f32.mrb[0].mxu0
        %v4360 = vadd.f32 0.0, %v4359
        %v4361 = vpop.f32.mrb[0].mxu0
        %4362 = vmatprep.mubr.f32.mxu0 0.0
        %4363 = vmatmul.mubr.f32.gmra.mrb[0].mxu0 %v3864
        %v4364 = vpop.f32.mrb[0].mxu0
        %v4365 = vadd.f32 0.0, %v4364
        %v4366 = vpop.f32.mrb[0].mxu0
        %4367 = vmatprep.mubr.f32.mxu0 0.0
        %4368 = vmatmul.mubr.f32.gmra.mrb[0].mxu0 %v4226
        %v4369 = vpop.f32.mrb[0].mxu0
        %v4370 = vadd.f32 0.0, %v4369
        %v4371 = vpop.f32.mrb[0].mxu0
        %4372 = vdwg.mxu0
        %v4373 = vadd.f32 %v4191, %v4295
        %v4374 = vadd.f32 %v4192, %v4300
        %v4375 = vadd.f32 %v4193, %v4305
        %v4376 = vadd.f32 %v4194, %v4310
        %v4377 = vadd.f32 %v4195, %v4315
        %v4378 = vadd.f32 %v4196, %v4320
        %v4379 = vadd.f32 %v4197, %v4325
        %v4380 = vadd.f32 %v4198, %v4330
        %v4381 = vadd.f32 %v4199, %v4335
        %v4382 = vadd.f32 %v4200, %v4340
        %v4383 = vadd.f32 %v4201, %v4345
        %v4384 = vadd.f32 %v4202, %v4350
        %v4385 = vadd.f32 %v4203, %v4355
        %v4386 = vadd.f32 %v4204, %v4360
        %v4387 = vadd.f32 %v4205, %v4365
        %v4388 = vadd.f32 %v4206, %v4370
        %v4389 = vld [vmem:[%s3 + $0x2] sm:$0x1]
        %v4390 = vlaneseq
        %v4391 = vshrl.u32 %v4390, 7
        %v4392 = vsub.s32 0, %v4391
        %v4393 = vrot.slane %v4389, %v4392
        %v4394 = vadd.f32 %v4373, %v4393
        %v4395 = vadd.f32 %v4374, %v4393
        %v4396 = vadd.f32 %v4375, %v4393
        %v4397 = vadd.f32 %v4376, %v4393
        %v4398 = vadd.f32 %v4377, %v4393
        %v4399 = vadd.f32 %v4378, %v4393
        %v4400 = vadd.f32 %v4379, %v4393
        %v4401 = vadd.f32 %v4380, %v4393
        %v4402 = vadd.f32 %v4381, %v4393
        %v4403 = vadd.f32 %v4382, %v4393
        %v4404 = vadd.f32 %v4383, %v4393
        %v4405 = vadd.f32 %v4384, %v4393
        %v4406 = vadd.f32 %v4385, %v4393
        %v4407 = vadd.f32 %v4386, %v4393
        %v4408 = vadd.f32 %v4387, %v4393
        %v4409 = vadd.f32 %v4388, %v4393
        %v4410 = vmax.f32 %v4394, 0.0
        %v4411 = vmax.f32 %v4395, 0.0
        %v4412 = vmax.f32 %v4396, 0.0
        %v4413 = vmax.f32 %v4397, 0.0
        %v4414 = vmax.f32 %v4398, 0.0
        %v4415 = vmax.f32 %v4399, 0.0
        %v4416 = vmax.f32 %v4400, 0.0
        %v4417 = vmax.f32 %v4401, 0.0
        %v4418 = vmax.f32 %v4402, 0.0
        %v4419 = vmax.f32 %v4403, 0.0
        %v4420 = vmax.f32 %v4404, 0.0
        %v4421 = vmax.f32 %v4405, 0.0
        %v4422 = vmax.f32 %v4406, 0.0
        %v4423 = vmax.f32 %v4407, 0.0
        %v4424 = vmax.f32 %v4408, 0.0
        %v4425 = vmax.f32 %v4409, 0.0
        %v4426 = vld [vmem:[%s4 + $0x40] sm:$0xff]
        %v4427 = vld [vmem:[%s4 + $0x48] sm:$0xff]
        %v4428 = vld [vmem:[%s4 + $0x50] sm:$0xff]
        %v4429 = vld [vmem:[%s4 + $0x58] sm:$0xff]
        %v4431 = vsel %vm2303, %v4410, 0
        %v4434 = vsel %vm2303, %v4411, 0
        %v4437 = vsel %vm2303, %v4412, 0
        %v4440 = vsel %vm2303, %v4413, 0
        %v4443 = vsel %vm2303, %v4414, 0
        %v4446 = vsel %vm2303, %v4415, 0
        %v4449 = vsel %vm2303, %v4416, 0
        %v4452 = vsel %vm2303, %v4417, 0
        %v4455 = vsel %vm2303, %v4418, 0
        %v4458 = vsel %vm2303, %v4419, 0
        %v4461 = vsel %vm2303, %v4420, 0
        %v4464 = vsel %vm2303, %v4421, 0
        %v4467 = vsel %vm2303, %v4422, 0
        %v4470 = vsel %vm2303, %v4423, 0
        %v4473 = vsel %vm2303, %v4424, 0
        %v4476 = vsel %vm2303, %v4425, 0
        %4478 = vmatprep.subr.mxu0 0.0
        %4479 = vmatpush1.msra.mxu0 %v4426
        %4480 = vmatprep.subr.mxu0 0.0
        %4481 = vmatpush1.msra.mxu0 %v4427
        %4482 = vmatprep.subr.mxu0 0.0
        %4483 = vmatpush1.msra.mxu0 %v4428
        %4484 = vmatprep.subr.mxu0 0.0
        %4485 = vmatpush1.msra.mxu0 %v4429
        %4486 = vmatprep.subr.mxu0 0.0
        %4487 = vmatpush1.msra.mxu0 0.0
        %4488 = vmatprep.subr.mxu0 0.0
        %4489 = vmatpush1.msra.mxu0 0.0
        %4490 = vmatprep.subr.mxu0 0.0
        %4491 = vmatpush1.msra.mxu0 0.0
        %4492 = vmatprep.subr.mxu0 0.0
        %4493 = vmatpush1.msra.mxu0 0.0
        %4494 = vmatprep.subr.mxu0 0.0
        %4495 = vmatpush1.msra.mxu0 0.0
        %4496 = vmatprep.subr.mxu0 0.0
        %4497 = vmatpush1.msra.mxu0 0.0
        %4498 = vmatprep.subr.mxu0 0.0
        %4499 = vmatpush1.msra.mxu0 0.0
        %4500 = vmatprep.subr.mxu0 0.0
        %4501 = vmatpush1.msra.mxu0 0.0
        %4502 = vmatprep.subr.mxu0 0.0
        %4503 = vmatpush1.msra.mxu0 0.0
        %4504 = vmatprep.subr.mxu0 0.0
        %4505 = vmatpush1.msra.mxu0 0.0
        %4506 = vmatprep.subr.mxu0 0.0
        %4507 = vmatpush1.msra.mxu0 0.0
        %4508 = vmatprep.subr.mxu0 0.0
        %4509 = vmatpush1.msra.mxu0 0.0
        %4510 = vmatprep.subr.mxu0 0.0
        %4511 = vmatpush1.msra.mxu0 0.0
        %4512 = vmatprep.subr.mxu0 0.0
        %4513 = vmatpush1.msra.mxu0 0.0
        %4514 = vmatprep.subr.mxu0 0.0
        %4515 = vmatpush1.msra.mxu0 0.0
        %4516 = vmatprep.subr.mxu0 0.0
        %4517 = vmatpush1.msra.mxu0 0.0
        %4518 = vmatprep.subr.mxu0 0.0
        %4519 = vmatpush1.msra.mxu0 0.0
        %4520 = vmatprep.subr.mxu0 0.0
        %4521 = vmatpush1.msra.mxu0 0.0
        %4522 = vmatprep.subr.mxu0 0.0
        %4523 = vmatpush1.msra.mxu0 0.0
        %4524 = vmatprep.subr.mxu0 0.0
        %4525 = vmatpush1.msra.mxu0 0.0
        %4526 = vmatprep.subr.mxu0 0.0
        %4527 = vmatpush1.msra.mxu0 0.0
        %4528 = vmatprep.subr.mxu0 0.0
        %4529 = vmatpush1.msra.mxu0 0.0
        %4530 = vmatprep.subr.mxu0 0.0
        %4531 = vmatpush1.msra.mxu0 0.0
        %4532 = vmatprep.subr.mxu0 0.0
        %4533 = vmatpush1.msra.mxu0 0.0
        %4534 = vmatprep.subr.mxu0 0.0
        %4535 = vmatpush1.msra.mxu0 0.0
        %4536 = vmatprep.subr.mxu0 0.0
        %4537 = vmatpush1.msra.mxu0 0.0
        %4538 = vmatprep.subr.mxu0 0.0
        %4539 = vmatpush1.msra.mxu0 0.0
        %4540 = vmatprep.subr.mxu0 0.0
        %4541 = vmatpush1.msra.mxu0 0.0
        %4542 = vmatprep.mubr.f32.mxu0 0.0
        %4543 = vmatmul.mubr.f32.gmra.mrb[0].mxu0 %v4431
        %v4544 = vpop.f32.mrb[0].mxu0
        %v4545 = vadd.f32 0.0, %v4544
        %v4546 = vpop.f32.mrb[0].mxu0
        %4547 = vmatprep.mubr.f32.mxu0 0.0
        %4548 = vmatmul.mubr.f32.gmra.mrb[0].mxu0 %v4434
        %v4549 = vpop.f32.mrb[0].mxu0
        %v4550 = vadd.f32 0.0, %v4549
        %v4551 = vpop.f32.mrb[0].mxu0
        %4552 = vmatprep.mubr.f32.mxu0 0.0
        %4553 = vmatmul.mubr.f32.gmra.mrb[0].mxu0 %v4437
        %v4554 = vpop.f32.mrb[0].mxu0
        %v4555 = vadd.f32 0.0, %v4554
        %v4556 = vpop.f32.mrb[0].mxu0
        %4557 = vmatprep.mubr.f32.mxu0 0.0
        %4558 = vmatmul.mubr.f32.gmra.mrb[0].mxu0 %v4440
        %v4559 = vpop.f32.mrb[0].mxu0
        %v4560 = vadd.f32 0.0, %v4559
        %v4561 = vpop.f32.mrb[0].mxu0
        %4562 = vmatprep.mubr.f32.mxu0 0.0
        %4563 = vmatmul.mubr.f32.gmra.mrb[0].mxu0 %v4443
        %v4564 = vpop.f32.mrb[0].mxu0
        %v4565 = vadd.f32 0.0, %v4564
        %v4566 = vpop.f32.mrb[0].mxu0
        %4567 = vmatprep.mubr.f32.mxu0 0.0
        %4568 = vmatmul.mubr.f32.gmra.mrb[0].mxu0 %v4446
        %v4569 = vpop.f32.mrb[0].mxu0
        %v4570 = vadd.f32 0.0, %v4569
        %v4571 = vpop.f32.mrb[0].mxu0
        %4572 = vmatprep.mubr.f32.mxu0 0.0
        %4573 = vmatmul.mubr.f32.gmra.mrb[0].mxu0 %v4449
        %v4574 = vpop.f32.mrb[0].mxu0
        %v4575 = vadd.f32 0.0, %v4574
        %v4576 = vpop.f32.mrb[0].mxu0
        %4577 = vmatprep.mubr.f32.mxu0 0.0
        %4578 = vmatmul.mubr.f32.gmra.mrb[0].mxu0 %v4452
        %v4579 = vpop.f32.mrb[0].mxu0
        %v4580 = vadd.f32 0.0, %v4579
        %v4581 = vpop.f32.mrb[0].mxu0
        %4582 = vmatprep.mubr.f32.mxu0 0.0
        %4583 = vmatmul.mubr.f32.gmra.mrb[0].mxu0 %v4455
        %v4584 = vpop.f32.mrb[0].mxu0
        %v4585 = vadd.f32 0.0, %v4584
        %v4586 = vpop.f32.mrb[0].mxu0
        %4587 = vmatprep.mubr.f32.mxu0 0.0
        %4588 = vmatmul.mubr.f32.gmra.mrb[0].mxu0 %v4458
        %v4589 = vpop.f32.mrb[0].mxu0
        %v4590 = vadd.f32 0.0, %v4589
        %v4591 = vpop.f32.mrb[0].mxu0
        %4592 = vmatprep.mubr.f32.mxu0 0.0
        %4593 = vmatmul.mubr.f32.gmra.mrb[0].mxu0 %v4461
        %v4594 = vpop.f32.mrb[0].mxu0
        %v4595 = vadd.f32 0.0, %v4594
        %v4596 = vpop.f32.mrb[0].mxu0
        %4597 = vmatprep.mubr.f32.mxu0 0.0
        %4598 = vmatmul.mubr.f32.gmra.mrb[0].mxu0 %v4464
        %v4599 = vpop.f32.mrb[0].mxu0
        %v4600 = vadd.f32 0.0, %v4599
        %v4601 = vpop.f32.mrb[0].mxu0
        %4602 = vmatprep.mubr.f32.mxu0 0.0
        %4603 = vmatmul.mubr.f32.gmra.mrb[0].mxu0 %v4467
        %v4604 = vpop.f32.mrb[0].mxu0
        %v4605 = vadd.f32 0.0, %v4604
        %v4606 = vpop.f32.mrb[0].mxu0
        %4607 = vmatprep.mubr.f32.mxu0 0.0
        %4608 = vmatmul.mubr.f32.gmra.mrb[0].mxu0 %v4470
        %v4609 = vpop.f32.mrb[0].mxu0
        %v4610 = vadd.f32 0.0, %v4609
        %v4611 = vpop.f32.mrb[0].mxu0
        %4612 = vmatprep.mubr.f32.mxu0 0.0
        %4613 = vmatmul.mubr.f32.gmra.mrb[0].mxu0 %v4473
        %v4614 = vpop.f32.mrb[0].mxu0
        %v4615 = vadd.f32 0.0, %v4614
        %v4616 = vpop.f32.mrb[0].mxu0
        %4617 = vmatprep.mubr.f32.mxu0 0.0
        %4618 = vmatmul.mubr.f32.gmra.mrb[0].mxu0 %v4476
        %v4619 = vpop.f32.mrb[0].mxu0
        %v4620 = vadd.f32 0.0, %v4619
        %v4621 = vpop.f32.mrb[0].mxu0
        %4622 = vdwg.mxu0
        %v4623 = vadd.f32 %v2612, %v4545
        %v4624 = vadd.f32 %v2617, %v4550
        %v4625 = vadd.f32 %v2622, %v4555
        %v4626 = vadd.f32 %v2627, %v4560
        %v4627 = vadd.f32 %v2632, %v4565
        %v4628 = vadd.f32 %v2637, %v4570
        %v4629 = vadd.f32 %v2642, %v4575
        %v4630 = vadd.f32 %v2647, %v4580
        %v4631 = vadd.f32 %v2652, %v4585
        %v4632 = vadd.f32 %v2657, %v4590
        %v4633 = vadd.f32 %v2662, %v4595
        %v4634 = vadd.f32 %v2667, %v4600
        %v4635 = vadd.f32 %v2672, %v4605
        %v4636 = vadd.f32 %v2677, %v4610
        %v4637 = vadd.f32 %v2682, %v4615
        %v4638 = vadd.f32 %v2687, %v4620
        %v4639 = vld [vmem:[%s2 + $0x90] sm:$0xff]
        %v4646 = vrot.slane %v282, 6
        %v4647 = vrot.slane %v283, 6
        %v4648 = vsel %vm386, %v4646, %v4647
        %v4649 = vrot.slane %v284, 6
        %v4650 = vsel %vm386, %v4647, %v4649
        %v4651 = vrot.slane %v286, 6
        %v4652 = vrot.slane %v287, 6
        %v4653 = vsel %vm386, %v4651, %v4652
        %v4654 = vrot.slane %v288, 6
        %v4655 = vsel %vm386, %v4652, %v4654
        %v4656 = vld [vmem:[%s2 + $0x98] sm:$0xff]
        %v4657 = vsel %vm433, %v4648, 0
        %v4659 = vsel %vm433, %v4650, 0
        %v4661 = vsel %vm433, %v4653, 0
        %v4663 = vsel %vm433, %v4655, 0
        %4665 = vmatprep.subr.mxu0 0.0
        %4666 = vmatpush1.msra.mxu0 %v4656
        %4667 = vmatprep.subr.mxu0 0.0
        %4668 = vmatpush1.msra.mxu0 0.0
        %4669 = vmatprep.subr.mxu0 0.0
        %4670 = vmatpush1.msra.mxu0 0.0
        %4671 = vmatprep.subr.mxu0 0.0
        %4672 = vmatpush1.msra.mxu0 0.0
        %4673 = vmatprep.subr.mxu0 0.0
        %4674 = vmatpush1.msra.mxu0 0.0
        %4675 = vmatprep.subr.mxu0 0.0
        %4676 = vmatpush1.msra.mxu0 0.0
        %4677 = vmatprep.subr.mxu0 0.0
        %4678 = vmatpush1.msra.mxu0 0.0
        %4679 = vmatprep.subr.mxu0 0.0
        %4680 = vmatpush1.msra.mxu0 0.0
        %4681 = vmatprep.subr.mxu0 0.0
        %4682 = vmatpush1.msra.mxu0 0.0
        %4683 = vmatprep.subr.mxu0 0.0
        %4684 = vmatpush1.msra.mxu0 0.0
        %4685 = vmatprep.subr.mxu0 0.0
        %4686 = vmatpush1.msra.mxu0 0.0
        %4687 = vmatprep.subr.mxu0 0.0
        %4688 = vmatpush1.msra.mxu0 0.0
        %4689 = vmatprep.subr.mxu0 0.0
        %4690 = vmatpush1.msra.mxu0 0.0
        %4691 = vmatprep.subr.mxu0 0.0
        %4692 = vmatpush1.msra.mxu0 0.0
        %4693 = vmatprep.subr.mxu0 0.0
        %4694 = vmatpush1.msra.mxu0 0.0
        %4695 = vmatprep.subr.mxu0 0.0
        %4696 = vmatpush1.msra.mxu0 0.0
        %4697 = vmatprep.subr.mxu0 0.0
        %4698 = vmatpush1.msra.mxu0 0.0
        %4699 = vmatprep.subr.mxu0 0.0
        %4700 = vmatpush1.msra.mxu0 0.0
        %4701 = vmatprep.subr.mxu0 0.0
        %4702 = vmatpush1.msra.mxu0 0.0
        %4703 = vmatprep.subr.mxu0 0.0
        %4704 = vmatpush1.msra.mxu0 0.0
        %4705 = vmatprep.subr.mxu0 0.0
        %4706 = vmatpush1.msra.mxu0 0.0
        %4707 = vmatprep.subr.mxu0 0.0
        %4708 = vmatpush1.msra.mxu0 0.0
        %4709 = vmatprep.subr.mxu0 0.0
        %4710 = vmatpush1.msra.mxu0 0.0
        %4711 = vmatprep.subr.mxu0 0.0
        %4712 = vmatpush1.msra.mxu0 0.0
        %4713 = vmatprep.subr.mxu0 0.0
        %4714 = vmatpush1.msra.mxu0 0.0
        %4715 = vmatprep.subr.mxu0 0.0
        %4716 = vmatpush1.msra.mxu0 0.0
        %4717 = vmatprep.subr.mxu0 0.0
        %4718 = vmatpush1.msra.mxu0 0.0
        %4719 = vmatprep.subr.mxu0 0.0
        %4720 = vmatpush1.msra.mxu0 0.0
        %4721 = vmatprep.subr.mxu0 0.0
        %4722 = vmatpush1.msra.mxu0 0.0
        %4723 = vmatprep.subr.mxu0 0.0
        %4724 = vmatpush1.msra.mxu0 0.0
        %4725 = vmatprep.subr.mxu0 0.0
        %4726 = vmatpush1.msra.mxu0 0.0
        %4727 = vmatprep.subr.mxu0 0.0
        %4728 = vmatpush1.msra.mxu0 0.0
        %4729 = vmatprep.mubr.f32.mxu0 0.0
        %4730 = vmatmul.mubr.f32.gmra.mrb[0].mxu0 %v4657
        %v4731 = vpop.f32.mrb[0].mxu0
        %v4732 = vadd.f32 0.0, %v4731
        %v4733 = vpop.f32.mrb[0].mxu0
        %4734 = vmatprep.mubr.f32.mxu0 0.0
        %4735 = vmatmul.mubr.f32.gmra.mrb[0].mxu0 %v4659
        %v4736 = vpop.f32.mrb[0].mxu0
        %v4737 = vadd.f32 0.0, %v4736
        %v4738 = vpop.f32.mrb[0].mxu0
        %4739 = vmatprep.mubr.f32.mxu0 0.0
        %4740 = vmatmul.mubr.f32.gmra.mrb[0].mxu0 %v4661
        %v4741 = vpop.f32.mrb[0].mxu0
        %v4742 = vadd.f32 0.0, %v4741
        %v4743 = vpop.f32.mrb[0].mxu0
        %4744 = vmatprep.mubr.f32.mxu0 0.0
        %4745 = vmatmul.mubr.f32.gmra.mrb[0].mxu0 %v4663
        %v4746 = vpop.f32.mrb[0].mxu0
        %v4747 = vadd.f32 0.0, %v4746
        %v4748 = vpop.f32.mrb[0].mxu0
        %4749 = vmatprep.mubr.f32.mxu0 0.0
        %4750 = vmatmul.mubr.f32.gmra.mrb[0].mxu0 %v2749
        %v4751 = vpop.f32.mrb[0].mxu0
        %v4752 = vadd.f32 0.0, %v4751
        %v4753 = vpop.f32.mrb[0].mxu0
        %4754 = vmatprep.mubr.f32.mxu0 0.0
        %4755 = vmatmul.mubr.f32.gmra.mrb[0].mxu0 %v2751
        %v4756 = vpop.f32.mrb[0].mxu0
        %v4757 = vadd.f32 0.0, %v4756
        %v4758 = vpop.f32.mrb[0].mxu0
        %4759 = vmatprep.mubr.f32.mxu0 0.0
        %4760 = vmatmul.mubr.f32.gmra.mrb[0].mxu0 %v2753
        %v4761 = vpop.f32.mrb[0].mxu0
        %v4762 = vadd.f32 0.0, %v4761
        %v4763 = vpop.f32.mrb[0].mxu0
        %4764 = vmatprep.mubr.f32.mxu0 0.0
        %4765 = vmatmul.mubr.f32.gmra.mrb[0].mxu0 %v2755
        %v4766 = vpop.f32.mrb[0].mxu0
        %v4767 = vadd.f32 0.0, %v4766
        %v4768 = vpop.f32.mrb[0].mxu0
        %4769 = vmatprep.mubr.f32.mxu0 0.0
        %4770 = vmatmul.mubr.f32.gmra.mrb[0].mxu0 %v690
        %v4771 = vpop.f32.mrb[0].mxu0
        %v4772 = vadd.f32 0.0, %v4771
        %v4773 = vpop.f32.mrb[0].mxu0
        %4774 = vmatprep.mubr.f32.mxu0 0.0
        %4775 = vmatmul.mubr.f32.gmra.mrb[0].mxu0 %v692
        %v4776 = vpop.f32.mrb[0].mxu0
        %v4777 = vadd.f32 0.0, %v4776
        %v4778 = vpop.f32.mrb[0].mxu0
        %4779 = vmatprep.mubr.f32.mxu0 0.0
        %4780 = vmatmul.mubr.f32.gmra.mrb[0].mxu0 %v694
        %v4781 = vpop.f32.mrb[0].mxu0
        %v4782 = vadd.f32 0.0, %v4781
        %v4783 = vpop.f32.mrb[0].mxu0
        %4784 = vmatprep.mubr.f32.mxu0 0.0
        %4785 = vmatmul.mubr.f32.gmra.mrb[0].mxu0 %v696
        %v4786 = vpop.f32.mrb[0].mxu0
        %v4787 = vadd.f32 0.0, %v4786
        %v4788 = vpop.f32.mrb[0].mxu0
        %4789 = vmatprep.mubr.f32.mxu0 0.0
        %4790 = vmatmul.mubr.f32.gmra.mrb[0].mxu0 %v434
        %v4791 = vpop.f32.mrb[0].mxu0
        %v4792 = vadd.f32 0.0, %v4791
        %v4793 = vpop.f32.mrb[0].mxu0
        %4794 = vmatprep.mubr.f32.mxu0 0.0
        %4795 = vmatmul.mubr.f32.gmra.mrb[0].mxu0 %v436
        %v4796 = vpop.f32.mrb[0].mxu0
        %v4797 = vadd.f32 0.0, %v4796
        %v4798 = vpop.f32.mrb[0].mxu0
        %4799 = vmatprep.mubr.f32.mxu0 0.0
        %4800 = vmatmul.mubr.f32.gmra.mrb[0].mxu0 %v438
        %v4801 = vpop.f32.mrb[0].mxu0
        %v4802 = vadd.f32 0.0, %v4801
        %v4803 = vpop.f32.mrb[0].mxu0
        %4804 = vmatprep.mubr.f32.mxu0 0.0
        %4805 = vmatmul.mubr.f32.gmra.mrb[0].mxu0 %v440
        %v4806 = vpop.f32.mrb[0].mxu0
        %v4807 = vadd.f32 0.0, %v4806
        %v4808 = vpop.f32.mrb[0].mxu0
        %4809 = vdwg.mxu0
        %v4810 = vsel %vm433, %v282, 0
        %v4812 = vsel %vm433, %v283, 0
        %v4814 = vsel %vm433, %v286, 0
        %v4816 = vsel %vm433, %v287, 0
        %v4818 = vsel %vm433, %v290, 0
        %v4820 = vsel %vm433, %v291, 0
        %v4822 = vsel %vm433, %v294, 0
        %v4824 = vsel %vm433, %v295, 0
        %v4826 = vsel %vm433, %v298, 0
        %v4828 = vsel %vm433, %v302, 0
        %v4830 = vsel %vm433, %v306, 0
        %v4832 = vsel %vm433, %v310, 0
        %4834 = vmatprep.subr.mxu0 0.0
        %4835 = vmatpush1.msra.mxu0 %v4639
        %4836 = vmatprep.subr.mxu0 0.0
        %4837 = vmatpush1.msra.mxu0 0.0
        %4838 = vmatprep.subr.mxu0 0.0
        %4839 = vmatpush1.msra.mxu0 0.0
        %4840 = vmatprep.subr.mxu0 0.0
        %4841 = vmatpush1.msra.mxu0 0.0
        %4842 = vmatprep.subr.mxu0 0.0
        %4843 = vmatpush1.msra.mxu0 0.0
        %4844 = vmatprep.subr.mxu0 0.0
        %4845 = vmatpush1.msra.mxu0 0.0
        %4846 = vmatprep.subr.mxu0 0.0
        %4847 = vmatpush1.msra.mxu0 0.0
        %4848 = vmatprep.subr.mxu0 0.0
        %4849 = vmatpush1.msra.mxu0 0.0
        %4850 = vmatprep.subr.mxu0 0.0
        %4851 = vmatpush1.msra.mxu0 0.0
        %4852 = vmatprep.subr.mxu0 0.0
        %4853 = vmatpush1.msra.mxu0 0.0
        %4854 = vmatprep.subr.mxu0 0.0
        %4855 = vmatpush1.msra.mxu0 0.0
        %4856 = vmatprep.subr.mxu0 0.0
        %4857 = vmatpush1.msra.mxu0 0.0
        %4858 = vmatprep.subr.mxu0 0.0
        %4859 = vmatpush1.msra.mxu0 0.0
        %4860 = vmatprep.subr.mxu0 0.0
        %4861 = vmatpush1.msra.mxu0 0.0
        %4862 = vmatprep.subr.mxu0 0.0
        %4863 = vmatpush1.msra.mxu0 0.0
        %4864 = vmatprep.subr.mxu0 0.0
        %4865 = vmatpush1.msra.mxu0 0.0
        %4866 = vmatprep.subr.mxu0 0.0
        %4867 = vmatpush1.msra.mxu0 0.0
        %4868 = vmatprep.subr.mxu0 0.0
        %4869 = vmatpush1.msra.mxu0 0.0
        %4870 = vmatprep.subr.mxu0 0.0
        %4871 = vmatpush1.msra.mxu0 0.0
        %4872 = vmatprep.subr.mxu0 0.0
        %4873 = vmatpush1.msra.mxu0 0.0
        %4874 = vmatprep.subr.mxu0 0.0
        %4875 = vmatpush1.msra.mxu0 0.0
        %4876 = vmatprep.subr.mxu0 0.0
        %4877 = vmatpush1.msra.mxu0 0.0
        %4878 = vmatprep.subr.mxu0 0.0
        %4879 = vmatpush1.msra.mxu0 0.0
        %4880 = vmatprep.subr.mxu0 0.0
        %4881 = vmatpush1.msra.mxu0 0.0
        %4882 = vmatprep.subr.mxu0 0.0
        %4883 = vmatpush1.msra.mxu0 0.0
        %4884 = vmatprep.subr.mxu0 0.0
        %4885 = vmatpush1.msra.mxu0 0.0
        %4886 = vmatprep.subr.mxu0 0.0
        %4887 = vmatpush1.msra.mxu0 0.0
        %4888 = vmatprep.subr.mxu0 0.0
        %4889 = vmatpush1.msra.mxu0 0.0
        %4890 = vmatprep.subr.mxu0 0.0
        %4891 = vmatpush1.msra.mxu0 0.0
        %4892 = vmatprep.subr.mxu0 0.0
        %4893 = vmatpush1.msra.mxu0 0.0
        %4894 = vmatprep.subr.mxu0 0.0
        %4895 = vmatpush1.msra.mxu0 0.0
        %4896 = vmatprep.subr.mxu0 0.0
        %4897 = vmatpush1.msra.mxu0 0.0
        %4898 = vmatprep.mubr.f32.mxu0 0.0
        %4899 = vmatmul.mubr.f32.gmra.mrb[0].mxu0 %v4810
        %v4900 = vpop.f32.mrb[0].mxu0
        %v4901 = vadd.f32 %v4732, %v4900
        %v4902 = vpop.f32.mrb[0].mxu0
        %4903 = vmatprep.mubr.f32.mxu0 0.0
        %4904 = vmatmul.mubr.f32.gmra.mrb[0].mxu0 %v4812
        %v4905 = vpop.f32.mrb[0].mxu0
        %v4906 = vadd.f32 %v4737, %v4905
        %v4907 = vpop.f32.mrb[0].mxu0
        %4908 = vmatprep.mubr.f32.mxu0 0.0
        %4909 = vmatmul.mubr.f32.gmra.mrb[0].mxu0 %v4814
        %v4910 = vpop.f32.mrb[0].mxu0
        %v4911 = vadd.f32 %v4742, %v4910
        %v4912 = vpop.f32.mrb[0].mxu0
        %4913 = vmatprep.mubr.f32.mxu0 0.0
        %4914 = vmatmul.mubr.f32.gmra.mrb[0].mxu0 %v4816
        %v4915 = vpop.f32.mrb[0].mxu0
        %v4916 = vadd.f32 %v4747, %v4915
        %v4917 = vpop.f32.mrb[0].mxu0
        %4918 = vmatprep.mubr.f32.mxu0 0.0
        %4919 = vmatmul.mubr.f32.gmra.mrb[0].mxu0 %v4818
        %v4920 = vpop.f32.mrb[0].mxu0
        %v4921 = vadd.f32 %v4752, %v4920
        %v4922 = vpop.f32.mrb[0].mxu0
        %4923 = vmatprep.mubr.f32.mxu0 0.0
        %4924 = vmatmul.mubr.f32.gmra.mrb[0].mxu0 %v4820
        %v4925 = vpop.f32.mrb[0].mxu0
        %v4926 = vadd.f32 %v4757, %v4925
        %v4927 = vpop.f32.mrb[0].mxu0
        %4928 = vmatprep.mubr.f32.mxu0 0.0
        %4929 = vmatmul.mubr.f32.gmra.mrb[0].mxu0 %v4822
        %v4930 = vpop.f32.mrb[0].mxu0
        %v4931 = vadd.f32 %v4762, %v4930
        %v4932 = vpop.f32.mrb[0].mxu0
        %4933 = vmatprep.mubr.f32.mxu0 0.0
        %4934 = vmatmul.mubr.f32.gmra.mrb[0].mxu0 %v4824
        %v4935 = vpop.f32.mrb[0].mxu0
        %v4936 = vadd.f32 %v4767, %v4935
        %v4937 = vpop.f32.mrb[0].mxu0
        %4938 = vmatprep.mubr.f32.mxu0 0.0
        %4939 = vmatmul.mubr.f32.gmra.mrb[0].mxu0 %v4826
        %v4940 = vpop.f32.mrb[0].mxu0
        %v4941 = vadd.f32 %v4772, %v4940
        %v4942 = vpop.f32.mrb[0].mxu0
        %4943 = vmatprep.mubr.f32.mxu0 0.0
        %4944 = vmatmul.mubr.f32.gmra.mrb[0].mxu0 %v1021
        %v4945 = vpop.f32.mrb[0].mxu0
        %v4946 = vadd.f32 %v4777, %v4945
        %v4947 = vpop.f32.mrb[0].mxu0
        %4948 = vmatprep.mubr.f32.mxu0 0.0
        %4949 = vmatmul.mubr.f32.gmra.mrb[0].mxu0 %v4828
        %v4950 = vpop.f32.mrb[0].mxu0
        %v4951 = vadd.f32 %v4782, %v4950
        %v4952 = vpop.f32.mrb[0].mxu0
        %4953 = vmatprep.mubr.f32.mxu0 0.0
        %4954 = vmatmul.mubr.f32.gmra.mrb[0].mxu0 %v1025
        %v4955 = vpop.f32.mrb[0].mxu0
        %v4956 = vadd.f32 %v4787, %v4955
        %v4957 = vpop.f32.mrb[0].mxu0
        %4958 = vmatprep.mubr.f32.mxu0 0.0
        %4959 = vmatmul.mubr.f32.gmra.mrb[0].mxu0 %v4830
        %v4960 = vpop.f32.mrb[0].mxu0
        %v4961 = vadd.f32 %v4792, %v4960
        %v4962 = vpop.f32.mrb[0].mxu0
        %4963 = vmatprep.mubr.f32.mxu0 0.0
        %4964 = vmatmul.mubr.f32.gmra.mrb[0].mxu0 %v1029
        %v4965 = vpop.f32.mrb[0].mxu0
        %v4966 = vadd.f32 %v4797, %v4965
        %v4967 = vpop.f32.mrb[0].mxu0
        %4968 = vmatprep.mubr.f32.mxu0 0.0
        %4969 = vmatmul.mubr.f32.gmra.mrb[0].mxu0 %v4832
        %v4970 = vpop.f32.mrb[0].mxu0
        %v4971 = vadd.f32 %v4802, %v4970
        %v4972 = vpop.f32.mrb[0].mxu0
        %4973 = vmatprep.mubr.f32.mxu0 0.0
        %4974 = vmatmul.mubr.f32.gmra.mrb[0].mxu0 %v1033
        %v4975 = vpop.f32.mrb[0].mxu0
        %v4976 = vadd.f32 %v4807, %v4975
        %v4977 = vpop.f32.mrb[0].mxu0
        %4978 = vdwg.mxu0
        %v4981 = vrot.slane %v283, 4
        %v4982 = vrot.slane %v284, 4
        %v4983 = vsel %vm637, %v4981, %v4982
        %v4984 = vrot.slane %v285, 4
        %v4985 = vsel %vm637, %v4982, %v4984
        %v4986 = vrot.slane %v287, 4
        %v4987 = vrot.slane %v288, 4
        %v4988 = vsel %vm637, %v4986, %v4987
        %v4989 = vrot.slane %v289, 4
        %v4990 = vsel %vm637, %v4987, %v4989
        %v4991 = vrot.slane %v291, 4
        %v4992 = vrot.slane %v292, 4
        %v4993 = vsel %vm637, %v4991, %v4992
        %v4994 = vrot.slane %v293, 4
        %v4995 = vsel %vm637, %v4992, %v4994
        %v4996 = vrot.slane %v295, 4
        %v4997 = vrot.slane %v296, 4
        %v4998 = vsel %vm637, %v4996, %v4997
        %v4999 = vrot.slane %v297, 4
        %v5000 = vsel %vm637, %v4997, %v4999
        %v5001 = vrot.slane %v301, 4
        %v5002 = vsel %vm637, %v641, %v5001
        %v5003 = vrot.slane %v305, 4
        %v5004 = vsel %vm637, %v646, %v5003
        %v5005 = vrot.slane %v309, 4
        %v5006 = vsel %vm637, %v651, %v5005
        %v5007 = vrot.slane %v313, 4
        %v5008 = vsel %vm637, %v656, %v5007
        %v5009 = vld [vmem:[%s2 + $0xa0] sm:$0xff]
        %v5010 = vsel %vm433, %v4983, 0
        %v5012 = vsel %vm433, %v4985, 0
        %v5014 = vsel %vm433, %v4988, 0
        %v5016 = vsel %vm433, %v4990, 0
        %v5018 = vsel %vm433, %v4993, 0
        %v5020 = vsel %vm433, %v4995, 0
        %v5022 = vsel %vm433, %v4998, 0
        %v5024 = vsel %vm433, %v5000, 0
        %v5026 = vsel %vm433, %v5002, 0
        %v5028 = vsel %vm433, %v5004, 0
        %v5030 = vsel %vm433, %v5006, 0
        %v5032 = vsel %vm433, %v5008, 0
        %5034 = vmatprep.subr.mxu0 0.0
        %5035 = vmatpush1.msra.mxu0 %v5009
        %5036 = vmatprep.subr.mxu0 0.0
        %5037 = vmatpush1.msra.mxu0 0.0
        %5038 = vmatprep.subr.mxu0 0.0
        %5039 = vmatpush1.msra.mxu0 0.0
        %5040 = vmatprep.subr.mxu0 0.0
        %5041 = vmatpush1.msra.mxu0 0.0
        %5042 = vmatprep.subr.mxu0 0.0
        %5043 = vmatpush1.msra.mxu0 0.0
        %5044 = vmatprep.subr.mxu0 0.0
        %5045 = vmatpush1.msra.mxu0 0.0
        %5046 = vmatprep.subr.mxu0 0.0
        %5047 = vmatpush1.msra.mxu0 0.0
        %5048 = vmatprep.subr.mxu0 0.0
        %5049 = vmatpush1.msra.mxu0 0.0
        %5050 = vmatprep.subr.mxu0 0.0
        %5051 = vmatpush1.msra.mxu0 0.0
        %5052 = vmatprep.subr.mxu0 0.0
        %5053 = vmatpush1.msra.mxu0 0.0
        %5054 = vmatprep.subr.mxu0 0.0
        %5055 = vmatpush1.msra.mxu0 0.0
        %5056 = vmatprep.subr.mxu0 0.0
        %5057 = vmatpush1.msra.mxu0 0.0
        %5058 = vmatprep.subr.mxu0 0.0
        %5059 = vmatpush1.msra.mxu0 0.0
        %5060 = vmatprep.subr.mxu0 0.0
        %5061 = vmatpush1.msra.mxu0 0.0
        %5062 = vmatprep.subr.mxu0 0.0
        %5063 = vmatpush1.msra.mxu0 0.0
        %5064 = vmatprep.subr.mxu0 0.0
        %5065 = vmatpush1.msra.mxu0 0.0
        %5066 = vmatprep.subr.mxu0 0.0
        %5067 = vmatpush1.msra.mxu0 0.0
        %5068 = vmatprep.subr.mxu0 0.0
        %5069 = vmatpush1.msra.mxu0 0.0
        %5070 = vmatprep.subr.mxu0 0.0
        %5071 = vmatpush1.msra.mxu0 0.0
        %5072 = vmatprep.subr.mxu0 0.0
        %5073 = vmatpush1.msra.mxu0 0.0
        %5074 = vmatprep.subr.mxu0 0.0
        %5075 = vmatpush1.msra.mxu0 0.0
        %5076 = vmatprep.subr.mxu0 0.0
        %5077 = vmatpush1.msra.mxu0 0.0
        %5078 = vmatprep.subr.mxu0 0.0
        %5079 = vmatpush1.msra.mxu0 0.0
        %5080 = vmatprep.subr.mxu0 0.0
        %5081 = vmatpush1.msra.mxu0 0.0
        %5082 = vmatprep.subr.mxu0 0.0
        %5083 = vmatpush1.msra.mxu0 0.0
        %5084 = vmatprep.subr.mxu0 0.0
        %5085 = vmatpush1.msra.mxu0 0.0
        %5086 = vmatprep.subr.mxu0 0.0
        %5087 = vmatpush1.msra.mxu0 0.0
        %5088 = vmatprep.subr.mxu0 0.0
        %5089 = vmatpush1.msra.mxu0 0.0
        %5090 = vmatprep.subr.mxu0 0.0
        %5091 = vmatpush1.msra.mxu0 0.0
        %5092 = vmatprep.subr.mxu0 0.0
        %5093 = vmatpush1.msra.mxu0 0.0
        %5094 = vmatprep.subr.mxu0 0.0
        %5095 = vmatpush1.msra.mxu0 0.0
        %5096 = vmatprep.subr.mxu0 0.0
        %5097 = vmatpush1.msra.mxu0 0.0
        %5098 = vmatprep.mubr.f32.mxu0 0.0
        %5099 = vmatmul.mubr.f32.gmra.mrb[0].mxu0 %v5010
        %v5100 = vpop.f32.mrb[0].mxu0
        %v5101 = vadd.f32 0.0, %v5100
        %v5102 = vpop.f32.mrb[0].mxu0
        %5103 = vmatprep.mubr.f32.mxu0 0.0
        %5104 = vmatmul.mubr.f32.gmra.mrb[0].mxu0 %v5012
        %v5105 = vpop.f32.mrb[0].mxu0
        %v5106 = vadd.f32 0.0, %v5105
        %v5107 = vpop.f32.mrb[0].mxu0
        %5108 = vmatprep.mubr.f32.mxu0 0.0
        %5109 = vmatmul.mubr.f32.gmra.mrb[0].mxu0 %v5014
        %v5110 = vpop.f32.mrb[0].mxu0
        %v5111 = vadd.f32 0.0, %v5110
        %v5112 = vpop.f32.mrb[0].mxu0
        %5113 = vmatprep.mubr.f32.mxu0 0.0
        %5114 = vmatmul.mubr.f32.gmra.mrb[0].mxu0 %v5016
        %v5115 = vpop.f32.mrb[0].mxu0
        %v5116 = vadd.f32 0.0, %v5115
        %v5117 = vpop.f32.mrb[0].mxu0
        %5118 = vmatprep.mubr.f32.mxu0 0.0
        %5119 = vmatmul.mubr.f32.gmra.mrb[0].mxu0 %v5018
        %v5120 = vpop.f32.mrb[0].mxu0
        %v5121 = vadd.f32 0.0, %v5120
        %v5122 = vpop.f32.mrb[0].mxu0
        %5123 = vmatprep.mubr.f32.mxu0 0.0
        %5124 = vmatmul.mubr.f32.gmra.mrb[0].mxu0 %v5020
        %v5125 = vpop.f32.mrb[0].mxu0
        %v5126 = vadd.f32 0.0, %v5125
        %v5127 = vpop.f32.mrb[0].mxu0
        %5128 = vmatprep.mubr.f32.mxu0 0.0
        %5129 = vmatmul.mubr.f32.gmra.mrb[0].mxu0 %v5022
        %v5130 = vpop.f32.mrb[0].mxu0
        %v5131 = vadd.f32 0.0, %v5130
        %v5132 = vpop.f32.mrb[0].mxu0
        %5133 = vmatprep.mubr.f32.mxu0 0.0
        %5134 = vmatmul.mubr.f32.gmra.mrb[0].mxu0 %v5024
        %v5135 = vpop.f32.mrb[0].mxu0
        %v5136 = vadd.f32 0.0, %v5135
        %v5137 = vpop.f32.mrb[0].mxu0
        %5138 = vmatprep.mubr.f32.mxu0 0.0
        %5139 = vmatmul.mubr.f32.gmra.mrb[0].mxu0 %v845
        %v5140 = vpop.f32.mrb[0].mxu0
        %v5141 = vadd.f32 0.0, %v5140
        %v5142 = vpop.f32.mrb[0].mxu0
        %5143 = vmatprep.mubr.f32.mxu0 0.0
        %5144 = vmatmul.mubr.f32.gmra.mrb[0].mxu0 %v5026
        %v5145 = vpop.f32.mrb[0].mxu0
        %v5146 = vadd.f32 0.0, %v5145
        %v5147 = vpop.f32.mrb[0].mxu0
        %5148 = vmatprep.mubr.f32.mxu0 0.0
        %5149 = vmatmul.mubr.f32.gmra.mrb[0].mxu0 %v849
        %v5150 = vpop.f32.mrb[0].mxu0
        %v5151 = vadd.f32 0.0, %v5150
        %v5152 = vpop.f32.mrb[0].mxu0
        %5153 = vmatprep.mubr.f32.mxu0 0.0
        %5154 = vmatmul.mubr.f32.gmra.mrb[0].mxu0 %v5028
        %v5155 = vpop.f32.mrb[0].mxu0
        %v5156 = vadd.f32 0.0, %v5155
        %v5157 = vpop.f32.mrb[0].mxu0
        %5158 = vmatprep.mubr.f32.mxu0 0.0
        %5159 = vmatmul.mubr.f32.gmra.mrb[0].mxu0 %v853
        %v5160 = vpop.f32.mrb[0].mxu0
        %v5161 = vadd.f32 0.0, %v5160
        %v5162 = vpop.f32.mrb[0].mxu0
        %5163 = vmatprep.mubr.f32.mxu0 0.0
        %5164 = vmatmul.mubr.f32.gmra.mrb[0].mxu0 %v5030
        %v5165 = vpop.f32.mrb[0].mxu0
        %v5166 = vadd.f32 0.0, %v5165
        %v5167 = vpop.f32.mrb[0].mxu0
        %5168 = vmatprep.mubr.f32.mxu0 0.0
        %5169 = vmatmul.mubr.f32.gmra.mrb[0].mxu0 %v857
        %v5170 = vpop.f32.mrb[0].mxu0
        %v5171 = vadd.f32 0.0, %v5170
        %v5172 = vpop.f32.mrb[0].mxu0
        %5173 = vmatprep.mubr.f32.mxu0 0.0
        %5174 = vmatmul.mubr.f32.gmra.mrb[0].mxu0 %v5032
        %v5175 = vpop.f32.mrb[0].mxu0
        %v5176 = vadd.f32 0.0, %v5175
        %v5177 = vpop.f32.mrb[0].mxu0
        %5178 = vdwg.mxu0
        %v5179 = vadd.f32 %v4901, %v5101
        %v5180 = vadd.f32 %v4906, %v5106
        %v5181 = vadd.f32 %v4911, %v5111
        %v5182 = vadd.f32 %v4916, %v5116
        %v5183 = vadd.f32 %v4921, %v5121
        %v5184 = vadd.f32 %v4926, %v5126
        %v5185 = vadd.f32 %v4931, %v5131
        %v5186 = vadd.f32 %v4936, %v5136
        %v5187 = vadd.f32 %v4941, %v5141
        %v5188 = vadd.f32 %v4946, %v5146
        %v5189 = vadd.f32 %v4951, %v5151
        %v5190 = vadd.f32 %v4956, %v5156
        %v5191 = vadd.f32 %v4961, %v5161
        %v5192 = vadd.f32 %v4966, %v5166
        %v5193 = vadd.f32 %v4971, %v5171
        %v5194 = vadd.f32 %v4976, %v5176
        %v5195 = vld [vmem:[%s2 + $0xa8] sm:$0xff]
        %v5196 = vsel %vm433, %v314, 0
        %v5198 = vsel %vm433, %v318, 0
        %v5200 = vsel %vm433, %v322, 0
        %v5202 = vsel %vm433, %v326, 0
        %v5204 = vsel %vm433, %v330, 0
        %v5206 = vsel %vm433, %v334, 0
        %5208 = vmatprep.subr.mxu0 0.0
        %5209 = vmatpush1.msra.mxu0 %v5195
        %5210 = vmatprep.subr.mxu0 0.0
        %5211 = vmatpush1.msra.mxu0 0.0
        %5212 = vmatprep.subr.mxu0 0.0
        %5213 = vmatpush1.msra.mxu0 0.0
        %5214 = vmatprep.subr.mxu0 0.0
        %5215 = vmatpush1.msra.mxu0 0.0
        %5216 = vmatprep.subr.mxu0 0.0
        %5217 = vmatpush1.msra.mxu0 0.0
        %5218 = vmatprep.subr.mxu0 0.0
        %5219 = vmatpush1.msra.mxu0 0.0
        %5220 = vmatprep.subr.mxu0 0.0
        %5221 = vmatpush1.msra.mxu0 0.0
        %5222 = vmatprep.subr.mxu0 0.0
        %5223 = vmatpush1.msra.mxu0 0.0
        %5224 = vmatprep.subr.mxu0 0.0
        %5225 = vmatpush1.msra.mxu0 0.0
        %5226 = vmatprep.subr.mxu0 0.0
        %5227 = vmatpush1.msra.mxu0 0.0
        %5228 = vmatprep.subr.mxu0 0.0
        %5229 = vmatpush1.msra.mxu0 0.0
        %5230 = vmatprep.subr.mxu0 0.0
        %5231 = vmatpush1.msra.mxu0 0.0
        %5232 = vmatprep.subr.mxu0 0.0
        %5233 = vmatpush1.msra.mxu0 0.0
        %5234 = vmatprep.subr.mxu0 0.0
        %5235 = vmatpush1.msra.mxu0 0.0
        %5236 = vmatprep.subr.mxu0 0.0
        %5237 = vmatpush1.msra.mxu0 0.0
        %5238 = vmatprep.subr.mxu0 0.0
        %5239 = vmatpush1.msra.mxu0 0.0
        %5240 = vmatprep.subr.mxu0 0.0
        %5241 = vmatpush1.msra.mxu0 0.0
        %5242 = vmatprep.subr.mxu0 0.0
        %5243 = vmatpush1.msra.mxu0 0.0
        %5244 = vmatprep.subr.mxu0 0.0
        %5245 = vmatpush1.msra.mxu0 0.0
        %5246 = vmatprep.subr.mxu0 0.0
        %5247 = vmatpush1.msra.mxu0 0.0
        %5248 = vmatprep.subr.mxu0 0.0
        %5249 = vmatpush1.msra.mxu0 0.0
        %5250 = vmatprep.subr.mxu0 0.0
        %5251 = vmatpush1.msra.mxu0 0.0
        %5252 = vmatprep.subr.mxu0 0.0
        %5253 = vmatpush1.msra.mxu0 0.0
        %5254 = vmatprep.subr.mxu0 0.0
        %5255 = vmatpush1.msra.mxu0 0.0
        %5256 = vmatprep.subr.mxu0 0.0
        %5257 = vmatpush1.msra.mxu0 0.0
        %5258 = vmatprep.subr.mxu0 0.0
        %5259 = vmatpush1.msra.mxu0 0.0
        %5260 = vmatprep.subr.mxu0 0.0
        %5261 = vmatpush1.msra.mxu0 0.0
        %5262 = vmatprep.subr.mxu0 0.0
        %5263 = vmatpush1.msra.mxu0 0.0
        %5264 = vmatprep.subr.mxu0 0.0
        %5265 = vmatpush1.msra.mxu0 0.0
        %5266 = vmatprep.subr.mxu0 0.0
        %5267 = vmatpush1.msra.mxu0 0.0
        %5268 = vmatprep.subr.mxu0 0.0
        %5269 = vmatpush1.msra.mxu0 0.0
        %5270 = vmatprep.subr.mxu0 0.0
        %5271 = vmatpush1.msra.mxu0 0.0
        %5272 = vmatprep.mubr.f32.mxu0 0.0
        %5273 = vmatmul.mubr.f32.gmra.mrb[0].mxu0 %v4830
        %v5274 = vpop.f32.mrb[0].mxu0
        %v5275 = vadd.f32 0.0, %v5274
        %v5276 = vpop.f32.mrb[0].mxu0
        %5277 = vmatprep.mubr.f32.mxu0 0.0
        %5278 = vmatmul.mubr.f32.gmra.mrb[0].mxu0 %v1029
        %v5279 = vpop.f32.mrb[0].mxu0
        %v5280 = vadd.f32 0.0, %v5279
        %v5281 = vpop.f32.mrb[0].mxu0
        %5282 = vmatprep.mubr.f32.mxu0 0.0
        %5283 = vmatmul.mubr.f32.gmra.mrb[0].mxu0 %v4832
        %v5284 = vpop.f32.mrb[0].mxu0
        %v5285 = vadd.f32 0.0, %v5284
        %v5286 = vpop.f32.mrb[0].mxu0
        %5287 = vmatprep.mubr.f32.mxu0 0.0
        %5288 = vmatmul.mubr.f32.gmra.mrb[0].mxu0 %v1033
        %v5289 = vpop.f32.mrb[0].mxu0
        %v5290 = vadd.f32 0.0, %v5289
        %v5291 = vpop.f32.mrb[0].mxu0
        %5292 = vmatprep.mubr.f32.mxu0 0.0
        %5293 = vmatmul.mubr.f32.gmra.mrb[0].mxu0 %v5196
        %v5294 = vpop.f32.mrb[0].mxu0
        %v5295 = vadd.f32 0.0, %v5294
        %v5296 = vpop.f32.mrb[0].mxu0
        %5297 = vmatprep.mubr.f32.mxu0 0.0
        %5298 = vmatmul.mubr.f32.gmra.mrb[0].mxu0 %v1037
        %v5299 = vpop.f32.mrb[0].mxu0
        %v5300 = vadd.f32 0.0, %v5299
        %v5301 = vpop.f32.mrb[0].mxu0
        %5302 = vmatprep.mubr.f32.mxu0 0.0
        %5303 = vmatmul.mubr.f32.gmra.mrb[0].mxu0 %v5198
        %v5304 = vpop.f32.mrb[0].mxu0
        %v5305 = vadd.f32 0.0, %v5304
        %v5306 = vpop.f32.mrb[0].mxu0
        %5307 = vmatprep.mubr.f32.mxu0 0.0
        %5308 = vmatmul.mubr.f32.gmra.mrb[0].mxu0 %v1041
        %v5309 = vpop.f32.mrb[0].mxu0
        %v5310 = vadd.f32 0.0, %v5309
        %v5311 = vpop.f32.mrb[0].mxu0
        %5312 = vmatprep.mubr.f32.mxu0 0.0
        %5313 = vmatmul.mubr.f32.gmra.mrb[0].mxu0 %v5200
        %v5314 = vpop.f32.mrb[0].mxu0
        %v5315 = vadd.f32 0.0, %v5314
        %v5316 = vpop.f32.mrb[0].mxu0
        %5317 = vmatprep.mubr.f32.mxu0 0.0
        %5318 = vmatmul.mubr.f32.gmra.mrb[0].mxu0 %v1045
        %v5319 = vpop.f32.mrb[0].mxu0
        %v5320 = vadd.f32 0.0, %v5319
        %v5321 = vpop.f32.mrb[0].mxu0
        %5322 = vmatprep.mubr.f32.mxu0 0.0
        %5323 = vmatmul.mubr.f32.gmra.mrb[0].mxu0 %v5202
        %v5324 = vpop.f32.mrb[0].mxu0
        %v5325 = vadd.f32 0.0, %v5324
        %v5326 = vpop.f32.mrb[0].mxu0
        %5327 = vmatprep.mubr.f32.mxu0 0.0
        %5328 = vmatmul.mubr.f32.gmra.mrb[0].mxu0 %v1049
        %v5329 = vpop.f32.mrb[0].mxu0
        %v5330 = vadd.f32 0.0, %v5329
        %v5331 = vpop.f32.mrb[0].mxu0
        %5332 = vmatprep.mubr.f32.mxu0 0.0
        %5333 = vmatmul.mubr.f32.gmra.mrb[0].mxu0 %v5204
        %v5334 = vpop.f32.mrb[0].mxu0
        %v5335 = vadd.f32 0.0, %v5334
        %v5336 = vpop.f32.mrb[0].mxu0
        %5337 = vmatprep.mubr.f32.mxu0 0.0
        %5338 = vmatmul.mubr.f32.gmra.mrb[0].mxu0 %v1557
        %v5339 = vpop.f32.mrb[0].mxu0
        %v5340 = vadd.f32 0.0, %v5339
        %v5341 = vpop.f32.mrb[0].mxu0
        %5342 = vmatprep.mubr.f32.mxu0 0.0
        %5343 = vmatmul.mubr.f32.gmra.mrb[0].mxu0 %v5206
        %v5344 = vpop.f32.mrb[0].mxu0
        %v5345 = vadd.f32 0.0, %v5344
        %v5346 = vpop.f32.mrb[0].mxu0
        %5347 = vmatprep.mubr.f32.mxu0 0.0
        %5348 = vmatmul.mubr.f32.gmra.mrb[0].mxu0 %v1561
        %v5349 = vpop.f32.mrb[0].mxu0
        %v5350 = vadd.f32 0.0, %v5349
        %v5351 = vpop.f32.mrb[0].mxu0
        %5352 = vdwg.mxu0
        %v5353 = vadd.f32 %v5179, %v5275
        %v5354 = vadd.f32 %v5180, %v5280
        %v5355 = vadd.f32 %v5181, %v5285
        %v5356 = vadd.f32 %v5182, %v5290
        %v5357 = vadd.f32 %v5183, %v5295
        %v5358 = vadd.f32 %v5184, %v5300
        %v5359 = vadd.f32 %v5185, %v5305
        %v5360 = vadd.f32 %v5186, %v5310
        %v5361 = vadd.f32 %v5187, %v5315
        %v5362 = vadd.f32 %v5188, %v5320
        %v5363 = vadd.f32 %v5189, %v5325
        %v5364 = vadd.f32 %v5190, %v5330
        %v5365 = vadd.f32 %v5191, %v5335
        %v5366 = vadd.f32 %v5192, %v5340
        %v5367 = vadd.f32 %v5193, %v5345
        %v5368 = vadd.f32 %v5194, %v5350
        %v5369 = vld [vmem:[%s2 + $0xb0] sm:$0xff]
        %5370 = vmatprep.subr.mxu0 0.0
        %5371 = vmatpush1.msra.mxu0 %v5369
        %5372 = vmatprep.subr.mxu0 0.0
        %5373 = vmatpush1.msra.mxu0 0.0
        %5374 = vmatprep.subr.mxu0 0.0
        %5375 = vmatpush1.msra.mxu0 0.0
        %5376 = vmatprep.subr.mxu0 0.0
        %5377 = vmatpush1.msra.mxu0 0.0
        %5378 = vmatprep.subr.mxu0 0.0
        %5379 = vmatpush1.msra.mxu0 0.0
        %5380 = vmatprep.subr.mxu0 0.0
        %5381 = vmatpush1.msra.mxu0 0.0
        %5382 = vmatprep.subr.mxu0 0.0
        %5383 = vmatpush1.msra.mxu0 0.0
        %5384 = vmatprep.subr.mxu0 0.0
        %5385 = vmatpush1.msra.mxu0 0.0
        %5386 = vmatprep.subr.mxu0 0.0
        %5387 = vmatpush1.msra.mxu0 0.0
        %5388 = vmatprep.subr.mxu0 0.0
        %5389 = vmatpush1.msra.mxu0 0.0
        %5390 = vmatprep.subr.mxu0 0.0
        %5391 = vmatpush1.msra.mxu0 0.0
        %5392 = vmatprep.subr.mxu0 0.0
        %5393 = vmatpush1.msra.mxu0 0.0
        %5394 = vmatprep.subr.mxu0 0.0
        %5395 = vmatpush1.msra.mxu0 0.0
        %5396 = vmatprep.subr.mxu0 0.0
        %5397 = vmatpush1.msra.mxu0 0.0
        %5398 = vmatprep.subr.mxu0 0.0
        %5399 = vmatpush1.msra.mxu0 0.0
        %5400 = vmatprep.subr.mxu0 0.0
        %5401 = vmatpush1.msra.mxu0 0.0
        %5402 = vmatprep.subr.mxu0 0.0
        %5403 = vmatpush1.msra.mxu0 0.0
        %5404 = vmatprep.subr.mxu0 0.0
        %5405 = vmatpush1.msra.mxu0 0.0
        %5406 = vmatprep.subr.mxu0 0.0
        %5407 = vmatpush1.msra.mxu0 0.0
        %5408 = vmatprep.subr.mxu0 0.0
        %5409 = vmatpush1.msra.mxu0 0.0
        %5410 = vmatprep.subr.mxu0 0.0
        %5411 = vmatpush1.msra.mxu0 0.0
        %5412 = vmatprep.subr.mxu0 0.0
        %5413 = vmatpush1.msra.mxu0 0.0
        %5414 = vmatprep.subr.mxu0 0.0
        %5415 = vmatpush1.msra.mxu0 0.0
        %5416 = vmatprep.subr.mxu0 0.0
        %5417 = vmatpush1.msra.mxu0 0.0
        %5418 = vmatprep.subr.mxu0 0.0
        %5419 = vmatpush1.msra.mxu0 0.0
        %5420 = vmatprep.subr.mxu0 0.0
        %5421 = vmatpush1.msra.mxu0 0.0
        %5422 = vmatprep.subr.mxu0 0.0
        %5423 = vmatpush1.msra.mxu0 0.0
        %5424 = vmatprep.subr.mxu0 0.0
        %5425 = vmatpush1.msra.mxu0 0.0
        %5426 = vmatprep.subr.mxu0 0.0
        %5427 = vmatpush1.msra.mxu0 0.0
        %5428 = vmatprep.subr.mxu0 0.0
        %5429 = vmatpush1.msra.mxu0 0.0
        %5430 = vmatprep.subr.mxu0 0.0
        %5431 = vmatpush1.msra.mxu0 0.0
        %5432 = vmatprep.subr.mxu0 0.0
        %5433 = vmatpush1.msra.mxu0 0.0
        %5434 = vmatprep.mubr.f32.mxu0 0.0
        %5435 = vmatmul.mubr.f32.gmra.mrb[0].mxu0 %v434
        %v5436 = vpop.f32.mrb[0].mxu0
        %v5437 = vadd.f32 0.0, %v5436
        %v5438 = vpop.f32.mrb[0].mxu0
        %5439 = vmatprep.mubr.f32.mxu0 0.0
        %5440 = vmatmul.mubr.f32.gmra.mrb[0].mxu0 %v436
        %v5441 = vpop.f32.mrb[0].mxu0
        %v5442 = vadd.f32 0.0, %v5441
        %v5443 = vpop.f32.mrb[0].mxu0
        %5444 = vmatprep.mubr.f32.mxu0 0.0
        %5445 = vmatmul.mubr.f32.gmra.mrb[0].mxu0 %v438
        %v5446 = vpop.f32.mrb[0].mxu0
        %v5447 = vadd.f32 0.0, %v5446
        %v5448 = vpop.f32.mrb[0].mxu0
        %5449 = vmatprep.mubr.f32.mxu0 0.0
        %5450 = vmatmul.mubr.f32.gmra.mrb[0].mxu0 %v440
        %v5451 = vpop.f32.mrb[0].mxu0
        %v5452 = vadd.f32 0.0, %v5451
        %v5453 = vpop.f32.mrb[0].mxu0
        %5454 = vmatprep.mubr.f32.mxu0 0.0
        %5455 = vmatmul.mubr.f32.gmra.mrb[0].mxu0 %v442
        %v5456 = vpop.f32.mrb[0].mxu0
        %v5457 = vadd.f32 0.0, %v5456
        %v5458 = vpop.f32.mrb[0].mxu0
        %5459 = vmatprep.mubr.f32.mxu0 0.0
        %5460 = vmatmul.mubr.f32.gmra.mrb[0].mxu0 %v444
        %v5461 = vpop.f32.mrb[0].mxu0
        %v5462 = vadd.f32 0.0, %v5461
        %v5463 = vpop.f32.mrb[0].mxu0
        %5464 = vmatprep.mubr.f32.mxu0 0.0
        %5465 = vmatmul.mubr.f32.gmra.mrb[0].mxu0 %v446
        %v5466 = vpop.f32.mrb[0].mxu0
        %v5467 = vadd.f32 0.0, %v5466
        %v5468 = vpop.f32.mrb[0].mxu0
        %5469 = vmatprep.mubr.f32.mxu0 0.0
        %5470 = vmatmul.mubr.f32.gmra.mrb[0].mxu0 %v448
        %v5471 = vpop.f32.mrb[0].mxu0
        %v5472 = vadd.f32 0.0, %v5471
        %v5473 = vpop.f32.mrb[0].mxu0
        %5474 = vmatprep.mubr.f32.mxu0 0.0
        %5475 = vmatmul.mubr.f32.gmra.mrb[0].mxu0 %v450
        %v5476 = vpop.f32.mrb[0].mxu0
        %v5477 = vadd.f32 0.0, %v5476
        %v5478 = vpop.f32.mrb[0].mxu0
        %5479 = vmatprep.mubr.f32.mxu0 0.0
        %5480 = vmatmul.mubr.f32.gmra.mrb[0].mxu0 %v452
        %v5481 = vpop.f32.mrb[0].mxu0
        %v5482 = vadd.f32 0.0, %v5481
        %v5483 = vpop.f32.mrb[0].mxu0
        %5484 = vmatprep.mubr.f32.mxu0 0.0
        %5485 = vmatmul.mubr.f32.gmra.mrb[0].mxu0 %v454
        %v5486 = vpop.f32.mrb[0].mxu0
        %v5487 = vadd.f32 0.0, %v5486
        %v5488 = vpop.f32.mrb[0].mxu0
        %5489 = vmatprep.mubr.f32.mxu0 0.0
        %5490 = vmatmul.mubr.f32.gmra.mrb[0].mxu0 %v456
        %v5491 = vpop.f32.mrb[0].mxu0
        %v5492 = vadd.f32 0.0, %v5491
        %v5493 = vpop.f32.mrb[0].mxu0
        %5494 = vmatprep.mubr.f32.mxu0 0.0
        %5495 = vmatmul.mubr.f32.gmra.mrb[0].mxu0 %v458
        %v5496 = vpop.f32.mrb[0].mxu0
        %v5497 = vadd.f32 0.0, %v5496
        %v5498 = vpop.f32.mrb[0].mxu0
        %5499 = vmatprep.mubr.f32.mxu0 0.0
        %5500 = vmatmul.mubr.f32.gmra.mrb[0].mxu0 %v460
        %v5501 = vpop.f32.mrb[0].mxu0
        %v5502 = vadd.f32 0.0, %v5501
        %v5503 = vpop.f32.mrb[0].mxu0
        %5504 = vmatprep.mubr.f32.mxu0 0.0
        %5505 = vmatmul.mubr.f32.gmra.mrb[0].mxu0 %v462
        %v5506 = vpop.f32.mrb[0].mxu0
        %v5507 = vadd.f32 0.0, %v5506
        %v5508 = vpop.f32.mrb[0].mxu0
        %5509 = vmatprep.mubr.f32.mxu0 0.0
        %5510 = vmatmul.mubr.f32.gmra.mrb[0].mxu0 %v464
        %v5511 = vpop.f32.mrb[0].mxu0
        %v5512 = vadd.f32 0.0, %v5511
        %v5513 = vpop.f32.mrb[0].mxu0
        %5514 = vdwg.mxu0
        %v5515 = vadd.f32 %v5353, %v5437
        %v5516 = vadd.f32 %v5354, %v5442
        %v5517 = vadd.f32 %v5355, %v5447
        %v5518 = vadd.f32 %v5356, %v5452
        %v5519 = vadd.f32 %v5357, %v5457
        %v5520 = vadd.f32 %v5358, %v5462
        %v5521 = vadd.f32 %v5359, %v5467
        %v5522 = vadd.f32 %v5360, %v5472
        %v5523 = vadd.f32 %v5361, %v5477
        %v5524 = vadd.f32 %v5362, %v5482
        %v5525 = vadd.f32 %v5363, %v5487
        %v5526 = vadd.f32 %v5364, %v5492
        %v5527 = vadd.f32 %v5365, %v5497
        %v5528 = vadd.f32 %v5366, %v5502
        %v5529 = vadd.f32 %v5367, %v5507
        %v5530 = vadd.f32 %v5368, %v5512
        %v5531 = vrot.slane %v317, 4
        %v5532 = vsel %vm637, %v661, %v5531
        %v5533 = vrot.slane %v321, 4
        %v5534 = vsel %vm637, %v666, %v5533
        %v5535 = vrot.slane %v325, 4
        %v5536 = vsel %vm637, %v671, %v5535
        %v5537 = vrot.slane %v329, 4
        %v5538 = vsel %vm637, %v676, %v5537
        %v5539 = vrot.slane %v333, 4
        %v5540 = vsel %vm637, %v1217, %v5539
        %v5541 = vrot.slane %v337, 4
        %v5542 = vsel %vm637, %v1222, %v5541
        %v5543 = vld [vmem:[%s2 + $0xb8] sm:$0xff]
        %v5544 = vsel %vm433, %v5532, 0
        %v5546 = vsel %vm433, %v5534, 0
        %v5548 = vsel %vm433, %v5536, 0
        %v5550 = vsel %vm433, %v5538, 0
        %v5552 = vsel %vm433, %v5540, 0
        %v5554 = vsel %vm433, %v5542, 0
        %5556 = vmatprep.subr.mxu0 0.0
        %5557 = vmatpush1.msra.mxu0 %v5543
        %5558 = vmatprep.subr.mxu0 0.0
        %5559 = vmatpush1.msra.mxu0 0.0
        %5560 = vmatprep.subr.mxu0 0.0
        %5561 = vmatpush1.msra.mxu0 0.0
        %5562 = vmatprep.subr.mxu0 0.0
        %5563 = vmatpush1.msra.mxu0 0.0
        %5564 = vmatprep.subr.mxu0 0.0
        %5565 = vmatpush1.msra.mxu0 0.0
        %5566 = vmatprep.subr.mxu0 0.0
        %5567 = vmatpush1.msra.mxu0 0.0
        %5568 = vmatprep.subr.mxu0 0.0
        %5569 = vmatpush1.msra.mxu0 0.0
        %5570 = vmatprep.subr.mxu0 0.0
        %5571 = vmatpush1.msra.mxu0 0.0
        %5572 = vmatprep.subr.mxu0 0.0
        %5573 = vmatpush1.msra.mxu0 0.0
        %5574 = vmatprep.subr.mxu0 0.0
        %5575 = vmatpush1.msra.mxu0 0.0
        %5576 = vmatprep.subr.mxu0 0.0
        %5577 = vmatpush1.msra.mxu0 0.0
        %5578 = vmatprep.subr.mxu0 0.0
        %5579 = vmatpush1.msra.mxu0 0.0
        %5580 = vmatprep.subr.mxu0 0.0
        %5581 = vmatpush1.msra.mxu0 0.0
        %5582 = vmatprep.subr.mxu0 0.0
        %5583 = vmatpush1.msra.mxu0 0.0
        %5584 = vmatprep.subr.mxu0 0.0
        %5585 = vmatpush1.msra.mxu0 0.0
        %5586 = vmatprep.subr.mxu0 0.0
        %5587 = vmatpush1.msra.mxu0 0.0
        %5588 = vmatprep.subr.mxu0 0.0
        %5589 = vmatpush1.msra.mxu0 0.0
        %5590 = vmatprep.subr.mxu0 0.0
        %5591 = vmatpush1.msra.mxu0 0.0
        %5592 = vmatprep.subr.mxu0 0.0
        %5593 = vmatpush1.msra.mxu0 0.0
        %5594 = vmatprep.subr.mxu0 0.0
        %5595 = vmatpush1.msra.mxu0 0.0
        %5596 = vmatprep.subr.mxu0 0.0
        %5597 = vmatpush1.msra.mxu0 0.0
        %5598 = vmatprep.subr.mxu0 0.0
        %5599 = vmatpush1.msra.mxu0 0.0
        %5600 = vmatprep.subr.mxu0 0.0
        %5601 = vmatpush1.msra.mxu0 0.0
        %5602 = vmatprep.subr.mxu0 0.0
        %5603 = vmatpush1.msra.mxu0 0.0
        %5604 = vmatprep.subr.mxu0 0.0
        %5605 = vmatpush1.msra.mxu0 0.0
        %5606 = vmatprep.subr.mxu0 0.0
        %5607 = vmatpush1.msra.mxu0 0.0
        %5608 = vmatprep.subr.mxu0 0.0
        %5609 = vmatpush1.msra.mxu0 0.0
        %5610 = vmatprep.subr.mxu0 0.0
        %5611 = vmatpush1.msra.mxu0 0.0
        %5612 = vmatprep.subr.mxu0 0.0
        %5613 = vmatpush1.msra.mxu0 0.0
        %5614 = vmatprep.subr.mxu0 0.0
        %5615 = vmatpush1.msra.mxu0 0.0
        %5616 = vmatprep.subr.mxu0 0.0
        %5617 = vmatpush1.msra.mxu0 0.0
        %5618 = vmatprep.subr.mxu0 0.0
        %5619 = vmatpush1.msra.mxu0 0.0
        %5620 = vmatprep.mubr.f32.mxu0 0.0
        %5621 = vmatmul.mubr.f32.gmra.mrb[0].mxu0 %v853
        %v5622 = vpop.f32.mrb[0].mxu0
        %v5623 = vadd.f32 0.0, %v5622
        %v5624 = vpop.f32.mrb[0].mxu0
        %5625 = vmatprep.mubr.f32.mxu0 0.0
        %5626 = vmatmul.mubr.f32.gmra.mrb[0].mxu0 %v5030
        %v5627 = vpop.f32.mrb[0].mxu0
        %v5628 = vadd.f32 0.0, %v5627
        %v5629 = vpop.f32.mrb[0].mxu0
        %5630 = vmatprep.mubr.f32.mxu0 0.0
        %5631 = vmatmul.mubr.f32.gmra.mrb[0].mxu0 %v857
        %v5632 = vpop.f32.mrb[0].mxu0
        %v5633 = vadd.f32 0.0, %v5632
        %v5634 = vpop.f32.mrb[0].mxu0
        %5635 = vmatprep.mubr.f32.mxu0 0.0
        %5636 = vmatmul.mubr.f32.gmra.mrb[0].mxu0 %v5032
        %v5637 = vpop.f32.mrb[0].mxu0
        %v5638 = vadd.f32 0.0, %v5637
        %v5639 = vpop.f32.mrb[0].mxu0
        %5640 = vmatprep.mubr.f32.mxu0 0.0
        %5641 = vmatmul.mubr.f32.gmra.mrb[0].mxu0 %v861
        %v5642 = vpop.f32.mrb[0].mxu0
        %v5643 = vadd.f32 0.0, %v5642
        %v5644 = vpop.f32.mrb[0].mxu0
        %5645 = vmatprep.mubr.f32.mxu0 0.0
        %5646 = vmatmul.mubr.f32.gmra.mrb[0].mxu0 %v5544
        %v5647 = vpop.f32.mrb[0].mxu0
        %v5648 = vadd.f32 0.0, %v5647
        %v5649 = vpop.f32.mrb[0].mxu0
        %5650 = vmatprep.mubr.f32.mxu0 0.0
        %5651 = vmatmul.mubr.f32.gmra.mrb[0].mxu0 %v865
        %v5652 = vpop.f32.mrb[0].mxu0
        %v5653 = vadd.f32 0.0, %v5652
        %v5654 = vpop.f32.mrb[0].mxu0
        %5655 = vmatprep.mubr.f32.mxu0 0.0
        %5656 = vmatmul.mubr.f32.gmra.mrb[0].mxu0 %v5546
        %v5657 = vpop.f32.mrb[0].mxu0
        %v5658 = vadd.f32 0.0, %v5657
        %v5659 = vpop.f32.mrb[0].mxu0
        %5660 = vmatprep.mubr.f32.mxu0 0.0
        %5661 = vmatmul.mubr.f32.gmra.mrb[0].mxu0 %v869
        %v5662 = vpop.f32.mrb[0].mxu0
        %v5663 = vadd.f32 0.0, %v5662
        %v5664 = vpop.f32.mrb[0].mxu0
        %5665 = vmatprep.mubr.f32.mxu0 0.0
        %5666 = vmatmul.mubr.f32.gmra.mrb[0].mxu0 %v5548
        %v5667 = vpop.f32.mrb[0].mxu0
        %v5668 = vadd.f32 0.0, %v5667
        %v5669 = vpop.f32.mrb[0].mxu0
        %5670 = vmatprep.mubr.f32.mxu0 0.0
        %5671 = vmatmul.mubr.f32.gmra.mrb[0].mxu0 %v873
        %v5672 = vpop.f32.mrb[0].mxu0
        %v5673 = vadd.f32 0.0, %v5672
        %v5674 = vpop.f32.mrb[0].mxu0
        %5675 = vmatprep.mubr.f32.mxu0 0.0
        %5676 = vmatmul.mubr.f32.gmra.mrb[0].mxu0 %v5550
        %v5677 = vpop.f32.mrb[0].mxu0
        %v5678 = vadd.f32 0.0, %v5677
        %v5679 = vpop.f32.mrb[0].mxu0
        %5680 = vmatprep.mubr.f32.mxu0 0.0
        %5681 = vmatmul.mubr.f32.gmra.mrb[0].mxu0 %v1227
        %v5682 = vpop.f32.mrb[0].mxu0
        %v5683 = vadd.f32 0.0, %v5682
        %v5684 = vpop.f32.mrb[0].mxu0
        %5685 = vmatprep.mubr.f32.mxu0 0.0
        %5686 = vmatmul.mubr.f32.gmra.mrb[0].mxu0 %v5552
        %v5687 = vpop.f32.mrb[0].mxu0
        %v5688 = vadd.f32 0.0, %v5687
        %v5689 = vpop.f32.mrb[0].mxu0
        %5690 = vmatprep.mubr.f32.mxu0 0.0
        %5691 = vmatmul.mubr.f32.gmra.mrb[0].mxu0 %v1231
        %v5692 = vpop.f32.mrb[0].mxu0
        %v5693 = vadd.f32 0.0, %v5692
        %v5694 = vpop.f32.mrb[0].mxu0
        %5695 = vmatprep.mubr.f32.mxu0 0.0
        %5696 = vmatmul.mubr.f32.gmra.mrb[0].mxu0 %v5554
        %v5697 = vpop.f32.mrb[0].mxu0
        %v5698 = vadd.f32 0.0, %v5697
        %v5699 = vpop.f32.mrb[0].mxu0
        %5700 = vdwg.mxu0
        %v5701 = vadd.f32 %v5515, %v5623
        %v5702 = vadd.f32 %v5516, %v5628
        %v5703 = vadd.f32 %v5517, %v5633
        %v5704 = vadd.f32 %v5518, %v5638
        %v5705 = vadd.f32 %v5519, %v5643
        %v5706 = vadd.f32 %v5520, %v5648
        %v5707 = vadd.f32 %v5521, %v5653
        %v5708 = vadd.f32 %v5522, %v5658
        %v5709 = vadd.f32 %v5523, %v5663
        %v5710 = vadd.f32 %v5524, %v5668
        %v5711 = vadd.f32 %v5525, %v5673
        %v5712 = vadd.f32 %v5526, %v5678
        %v5713 = vadd.f32 %v5527, %v5683
        %v5714 = vadd.f32 %v5528, %v5688
        %v5715 = vadd.f32 %v5529, %v5693
        %v5716 = vadd.f32 %v5530, %v5698
        %v5717 = vld [vmem:[%s2 + $0xc0] sm:$0xff]
        %v5718 = vsel %vm433, %v338, 0
        %v5720 = vsel %vm433, %v342, 0
        %v5722 = vsel %vm433, %v346, 0
        %v5724 = vsel %vm433, %v347, 0
        %v5726 = vsel %vm433, %v350, 0
        %v5728 = vsel %vm433, %v351, 0
        %v5731 = vsel %vm433, %v354, 0
        %v5734 = vsel %vm433, %v355, 0
        %v5737 = vsel %vm433, %v358, 0
        %v5740 = vsel %vm433, %v359, 0
        %5742 = vmatprep.subr.mxu0 0.0
        %5743 = vmatpush1.msra.mxu0 %v5717
        %5744 = vmatprep.subr.mxu0 0.0
        %5745 = vmatpush1.msra.mxu0 0.0
        %5746 = vmatprep.subr.mxu0 0.0
        %5747 = vmatpush1.msra.mxu0 0.0
        %5748 = vmatprep.subr.mxu0 0.0
        %5749 = vmatpush1.msra.mxu0 0.0
        %5750 = vmatprep.subr.mxu0 0.0
        %5751 = vmatpush1.msra.mxu0 0.0
        %5752 = vmatprep.subr.mxu0 0.0
        %5753 = vmatpush1.msra.mxu0 0.0
        %5754 = vmatprep.subr.mxu0 0.0
        %5755 = vmatpush1.msra.mxu0 0.0
        %5756 = vmatprep.subr.mxu0 0.0
        %5757 = vmatpush1.msra.mxu0 0.0
        %5758 = vmatprep.subr.mxu0 0.0
        %5759 = vmatpush1.msra.mxu0 0.0
        %5760 = vmatprep.subr.mxu0 0.0
        %5761 = vmatpush1.msra.mxu0 0.0
        %5762 = vmatprep.subr.mxu0 0.0
        %5763 = vmatpush1.msra.mxu0 0.0
        %5764 = vmatprep.subr.mxu0 0.0
        %5765 = vmatpush1.msra.mxu0 0.0
        %5766 = vmatprep.subr.mxu0 0.0
        %5767 = vmatpush1.msra.mxu0 0.0
        %5768 = vmatprep.subr.mxu0 0.0
        %5769 = vmatpush1.msra.mxu0 0.0
        %5770 = vmatprep.subr.mxu0 0.0
        %5771 = vmatpush1.msra.mxu0 0.0
        %5772 = vmatprep.subr.mxu0 0.0
        %5773 = vmatpush1.msra.mxu0 0.0
        %5774 = vmatprep.subr.mxu0 0.0
        %5775 = vmatpush1.msra.mxu0 0.0
        %5776 = vmatprep.subr.mxu0 0.0
        %5777 = vmatpush1.msra.mxu0 0.0
        %5778 = vmatprep.subr.mxu0 0.0
        %5779 = vmatpush1.msra.mxu0 0.0
        %5780 = vmatprep.subr.mxu0 0.0
        %5781 = vmatpush1.msra.mxu0 0.0
        %5782 = vmatprep.subr.mxu0 0.0
        %5783 = vmatpush1.msra.mxu0 0.0
        %5784 = vmatprep.subr.mxu0 0.0
        %5785 = vmatpush1.msra.mxu0 0.0
        %5786 = vmatprep.subr.mxu0 0.0
        %5787 = vmatpush1.msra.mxu0 0.0
        %5788 = vmatprep.subr.mxu0 0.0
        %5789 = vmatpush1.msra.mxu0 0.0
        %5790 = vmatprep.subr.mxu0 0.0
        %5791 = vmatpush1.msra.mxu0 0.0
        %5792 = vmatprep.subr.mxu0 0.0
        %5793 = vmatpush1.msra.mxu0 0.0
        %5794 = vmatprep.subr.mxu0 0.0
        %5795 = vmatpush1.msra.mxu0 0.0
        %5796 = vmatprep.subr.mxu0 0.0
        %5797 = vmatpush1.msra.mxu0 0.0
        %5798 = vmatprep.subr.mxu0 0.0
        %5799 = vmatpush1.msra.mxu0 0.0
        %5800 = vmatprep.subr.mxu0 0.0
        %5801 = vmatpush1.msra.mxu0 0.0
        %5802 = vmatprep.subr.mxu0 0.0
        %5803 = vmatpush1.msra.mxu0 0.0
        %5804 = vmatprep.subr.mxu0 0.0
        %5805 = vmatpush1.msra.mxu0 0.0
        %5806 = vmatprep.mubr.f32.mxu0 0.0
        %5807 = vmatmul.mubr.f32.gmra.mrb[0].mxu0 %v5204
        %v5808 = vpop.f32.mrb[0].mxu0
        %v5809 = vadd.f32 0.0, %v5808
        %v5810 = vpop.f32.mrb[0].mxu0
        %5811 = vmatprep.mubr.f32.mxu0 0.0
        %5812 = vmatmul.mubr.f32.gmra.mrb[0].mxu0 %v1557
        %v5813 = vpop.f32.mrb[0].mxu0
        %v5814 = vadd.f32 0.0, %v5813
        %v5815 = vpop.f32.mrb[0].mxu0
        %5816 = vmatprep.mubr.f32.mxu0 0.0
        %5817 = vmatmul.mubr.f32.gmra.mrb[0].mxu0 %v5206
        %v5818 = vpop.f32.mrb[0].mxu0
        %v5819 = vadd.f32 0.0, %v5818
        %v5820 = vpop.f32.mrb[0].mxu0
        %5821 = vmatprep.mubr.f32.mxu0 0.0
        %5822 = vmatmul.mubr.f32.gmra.mrb[0].mxu0 %v1561
        %v5823 = vpop.f32.mrb[0].mxu0
        %v5824 = vadd.f32 0.0, %v5823
        %v5825 = vpop.f32.mrb[0].mxu0
        %5826 = vmatprep.mubr.f32.mxu0 0.0
        %5827 = vmatmul.mubr.f32.gmra.mrb[0].mxu0 %v5718
        %v5828 = vpop.f32.mrb[0].mxu0
        %v5829 = vadd.f32 0.0, %v5828
        %v5830 = vpop.f32.mrb[0].mxu0
        %5831 = vmatprep.mubr.f32.mxu0 0.0
        %5832 = vmatmul.mubr.f32.gmra.mrb[0].mxu0 %v2093
        %v5833 = vpop.f32.mrb[0].mxu0
        %v5834 = vadd.f32 0.0, %v5833
        %v5835 = vpop.f32.mrb[0].mxu0
        %5836 = vmatprep.mubr.f32.mxu0 0.0
        %5837 = vmatmul.mubr.f32.gmra.mrb[0].mxu0 %v5720
        %v5838 = vpop.f32.mrb[0].mxu0
        %v5839 = vadd.f32 0.0, %v5838
        %v5840 = vpop.f32.mrb[0].mxu0
        %5841 = vmatprep.mubr.f32.mxu0 0.0
        %5842 = vmatmul.mubr.f32.gmra.mrb[0].mxu0 %v2097
        %v5843 = vpop.f32.mrb[0].mxu0
        %v5844 = vadd.f32 0.0, %v5843
        %v5845 = vpop.f32.mrb[0].mxu0
        %5846 = vmatprep.mubr.f32.mxu0 0.0
        %5847 = vmatmul.mubr.f32.gmra.mrb[0].mxu0 %v5722
        %v5848 = vpop.f32.mrb[0].mxu0
        %v5849 = vadd.f32 0.0, %v5848
        %v5850 = vpop.f32.mrb[0].mxu0
        %5851 = vmatprep.mubr.f32.mxu0 0.0
        %5852 = vmatmul.mubr.f32.gmra.mrb[0].mxu0 %v5724
        %v5853 = vpop.f32.mrb[0].mxu0
        %v5854 = vadd.f32 0.0, %v5853
        %v5855 = vpop.f32.mrb[0].mxu0
        %5856 = vmatprep.mubr.f32.mxu0 0.0
        %5857 = vmatmul.mubr.f32.gmra.mrb[0].mxu0 %v5726
        %v5858 = vpop.f32.mrb[0].mxu0
        %v5859 = vadd.f32 0.0, %v5858
        %v5860 = vpop.f32.mrb[0].mxu0
        %5861 = vmatprep.mubr.f32.mxu0 0.0
        %5862 = vmatmul.mubr.f32.gmra.mrb[0].mxu0 %v5728
        %v5863 = vpop.f32.mrb[0].mxu0
        %v5864 = vadd.f32 0.0, %v5863
        %v5865 = vpop.f32.mrb[0].mxu0
        %5866 = vmatprep.mubr.f32.mxu0 0.0
        %5867 = vmatmul.mubr.f32.gmra.mrb[0].mxu0 %v5731
        %v5868 = vpop.f32.mrb[0].mxu0
        %v5869 = vadd.f32 0.0, %v5868
        %v5870 = vpop.f32.mrb[0].mxu0
        %5871 = vmatprep.mubr.f32.mxu0 0.0
        %5872 = vmatmul.mubr.f32.gmra.mrb[0].mxu0 %v5734
        %v5873 = vpop.f32.mrb[0].mxu0
        %v5874 = vadd.f32 0.0, %v5873
        %v5875 = vpop.f32.mrb[0].mxu0
        %5876 = vmatprep.mubr.f32.mxu0 0.0
        %5877 = vmatmul.mubr.f32.gmra.mrb[0].mxu0 %v5737
        %v5878 = vpop.f32.mrb[0].mxu0
        %v5879 = vadd.f32 0.0, %v5878
        %v5880 = vpop.f32.mrb[0].mxu0
        %5881 = vmatprep.mubr.f32.mxu0 0.0
        %5882 = vmatmul.mubr.f32.gmra.mrb[0].mxu0 %v5740
        %v5883 = vpop.f32.mrb[0].mxu0
        %v5884 = vadd.f32 0.0, %v5883
        %v5885 = vpop.f32.mrb[0].mxu0
        %5886 = vdwg.mxu0
        %v5887 = vadd.f32 %v5701, %v5809
        %v5888 = vadd.f32 %v5702, %v5814
        %v5889 = vadd.f32 %v5703, %v5819
        %v5890 = vadd.f32 %v5704, %v5824
        %v5891 = vadd.f32 %v5705, %v5829
        %v5892 = vadd.f32 %v5706, %v5834
        %v5893 = vadd.f32 %v5707, %v5839
        %v5894 = vadd.f32 %v5708, %v5844
        %v5895 = vadd.f32 %v5709, %v5849
        %v5896 = vadd.f32 %v5710, %v5854
        %v5897 = vadd.f32 %v5711, %v5859
        %v5898 = vadd.f32 %v5712, %v5864
        %v5899 = vadd.f32 %v5713, %v5869
        %v5900 = vadd.f32 %v5714, %v5874
        %v5901 = vadd.f32 %v5715, %v5879
        %v5902 = vadd.f32 %v5716, %v5884
        %v5905 = vrot.slane %v354, 6
        %v5906 = vrot.slane %v355, 6
        %v5907 = vsel %vm386, %v5905, %v5906
        %v5908 = vrot.slane %v356, 6
        %v5909 = vsel %vm386, %v5906, %v5908
        %v5910 = vrot.slane %v358, 6
        %v5911 = vrot.slane %v359, 6
        %v5912 = vsel %vm386, %v5910, %v5911
        %v5913 = vrot.slane %v360, 6
        %v5914 = vsel %vm386, %v5911, %v5913
        %v5915 = vld [vmem:[%s2 + $0xc8] sm:$0xff]
        %v5916 = vsel %vm433, %v5907, 0
        %v5918 = vsel %vm433, %v5909, 0
        %v5920 = vsel %vm433, %v5912, 0
        %v5922 = vsel %vm433, %v5914, 0
        %5924 = vmatprep.subr.mxu0 0.0
        %5925 = vmatpush1.msra.mxu0 %v5915
        %5926 = vmatprep.subr.mxu0 0.0
        %5927 = vmatpush1.msra.mxu0 0.0
        %5928 = vmatprep.subr.mxu0 0.0
        %5929 = vmatpush1.msra.mxu0 0.0
        %5930 = vmatprep.subr.mxu0 0.0
        %5931 = vmatpush1.msra.mxu0 0.0
        %5932 = vmatprep.subr.mxu0 0.0
        %5933 = vmatpush1.msra.mxu0 0.0
        %5934 = vmatprep.subr.mxu0 0.0
        %5935 = vmatpush1.msra.mxu0 0.0
        %5936 = vmatprep.subr.mxu0 0.0
        %5937 = vmatpush1.msra.mxu0 0.0
        %5938 = vmatprep.subr.mxu0 0.0
        %5939 = vmatpush1.msra.mxu0 0.0
        %5940 = vmatprep.subr.mxu0 0.0
        %5941 = vmatpush1.msra.mxu0 0.0
        %5942 = vmatprep.subr.mxu0 0.0
        %5943 = vmatpush1.msra.mxu0 0.0
        %5944 = vmatprep.subr.mxu0 0.0
        %5945 = vmatpush1.msra.mxu0 0.0
        %5946 = vmatprep.subr.mxu0 0.0
        %5947 = vmatpush1.msra.mxu0 0.0
        %5948 = vmatprep.subr.mxu0 0.0
        %5949 = vmatpush1.msra.mxu0 0.0
        %5950 = vmatprep.subr.mxu0 0.0
        %5951 = vmatpush1.msra.mxu0 0.0
        %5952 = vmatprep.subr.mxu0 0.0
        %5953 = vmatpush1.msra.mxu0 0.0
        %5954 = vmatprep.subr.mxu0 0.0
        %5955 = vmatpush1.msra.mxu0 0.0
        %5956 = vmatprep.subr.mxu0 0.0
        %5957 = vmatpush1.msra.mxu0 0.0
        %5958 = vmatprep.subr.mxu0 0.0
        %5959 = vmatpush1.msra.mxu0 0.0
        %5960 = vmatprep.subr.mxu0 0.0
        %5961 = vmatpush1.msra.mxu0 0.0
        %5962 = vmatprep.subr.mxu0 0.0
        %5963 = vmatpush1.msra.mxu0 0.0
        %5964 = vmatprep.subr.mxu0 0.0
        %5965 = vmatpush1.msra.mxu0 0.0
        %5966 = vmatprep.subr.mxu0 0.0
        %5967 = vmatpush1.msra.mxu0 0.0
        %5968 = vmatprep.subr.mxu0 0.0
        %5969 = vmatpush1.msra.mxu0 0.0
        %5970 = vmatprep.subr.mxu0 0.0
        %5971 = vmatpush1.msra.mxu0 0.0
        %5972 = vmatprep.subr.mxu0 0.0
        %5973 = vmatpush1.msra.mxu0 0.0
        %5974 = vmatprep.subr.mxu0 0.0
        %5975 = vmatpush1.msra.mxu0 0.0
        %5976 = vmatprep.subr.mxu0 0.0
        %5977 = vmatpush1.msra.mxu0 0.0
        %5978 = vmatprep.subr.mxu0 0.0
        %5979 = vmatpush1.msra.mxu0 0.0
        %5980 = vmatprep.subr.mxu0 0.0
        %5981 = vmatpush1.msra.mxu0 0.0
        %5982 = vmatprep.subr.mxu0 0.0
        %5983 = vmatpush1.msra.mxu0 0.0
        %5984 = vmatprep.subr.mxu0 0.0
        %5985 = vmatpush1.msra.mxu0 0.0
        %5986 = vmatprep.subr.mxu0 0.0
        %5987 = vmatpush1.msra.mxu0 0.0
        %5988 = vmatprep.mubr.f32.mxu0 0.0
        %5989 = vmatmul.mubr.f32.gmra.mrb[0].mxu0 %v458
        %v5990 = vpop.f32.mrb[0].mxu0
        %v5991 = vadd.f32 0.0, %v5990
        %v5992 = vpop.f32.mrb[0].mxu0
        %5993 = vmatprep.mubr.f32.mxu0 0.0
        %5994 = vmatmul.mubr.f32.gmra.mrb[0].mxu0 %v460
        %v5995 = vpop.f32.mrb[0].mxu0
        %v5996 = vadd.f32 0.0, %v5995
        %v5997 = vpop.f32.mrb[0].mxu0
        %5998 = vmatprep.mubr.f32.mxu0 0.0
        %5999 = vmatmul.mubr.f32.gmra.mrb[0].mxu0 %v462
        %v6000 = vpop.f32.mrb[0].mxu0
        %v6001 = vadd.f32 0.0, %v6000
        %v6002 = vpop.f32.mrb[0].mxu0
        %6003 = vmatprep.mubr.f32.mxu0 0.0
        %6004 = vmatmul.mubr.f32.gmra.mrb[0].mxu0 %v464
        %v6005 = vpop.f32.mrb[0].mxu0
        %v6006 = vadd.f32 0.0, %v6005
        %v6007 = vpop.f32.mrb[0].mxu0
        %6008 = vmatprep.mubr.f32.mxu0 0.0
        %6009 = vmatmul.mubr.f32.gmra.mrb[0].mxu0 %v1923
        %v6010 = vpop.f32.mrb[0].mxu0
        %v6011 = vadd.f32 0.0, %v6010
        %v6012 = vpop.f32.mrb[0].mxu0
        %6013 = vmatprep.mubr.f32.mxu0 0.0
        %6014 = vmatmul.mubr.f32.gmra.mrb[0].mxu0 %v1925
        %v6015 = vpop.f32.mrb[0].mxu0
        %v6016 = vadd.f32 0.0, %v6015
        %v6017 = vpop.f32.mrb[0].mxu0
        %6018 = vmatprep.mubr.f32.mxu0 0.0
        %6019 = vmatmul.mubr.f32.gmra.mrb[0].mxu0 %v1927
        %v6020 = vpop.f32.mrb[0].mxu0
        %v6021 = vadd.f32 0.0, %v6020
        %v6022 = vpop.f32.mrb[0].mxu0
        %6023 = vmatprep.mubr.f32.mxu0 0.0
        %6024 = vmatmul.mubr.f32.gmra.mrb[0].mxu0 %v1929
        %v6025 = vpop.f32.mrb[0].mxu0
        %v6026 = vadd.f32 0.0, %v6025
        %v6027 = vpop.f32.mrb[0].mxu0
        %6028 = vmatprep.mubr.f32.mxu0 0.0
        %6029 = vmatmul.mubr.f32.gmra.mrb[0].mxu0 %v4038
        %v6030 = vpop.f32.mrb[0].mxu0
        %v6031 = vadd.f32 0.0, %v6030
        %v6032 = vpop.f32.mrb[0].mxu0
        %6033 = vmatprep.mubr.f32.mxu0 0.0
        %6034 = vmatmul.mubr.f32.gmra.mrb[0].mxu0 %v4040
        %v6035 = vpop.f32.mrb[0].mxu0
        %v6036 = vadd.f32 0.0, %v6035
        %v6037 = vpop.f32.mrb[0].mxu0
        %6038 = vmatprep.mubr.f32.mxu0 0.0
        %6039 = vmatmul.mubr.f32.gmra.mrb[0].mxu0 %v4042
        %v6040 = vpop.f32.mrb[0].mxu0
        %v6041 = vadd.f32 0.0, %v6040
        %v6042 = vpop.f32.mrb[0].mxu0
        %6043 = vmatprep.mubr.f32.mxu0 0.0
        %6044 = vmatmul.mubr.f32.gmra.mrb[0].mxu0 %v4044
        %v6045 = vpop.f32.mrb[0].mxu0
        %v6046 = vadd.f32 0.0, %v6045
        %v6047 = vpop.f32.mrb[0].mxu0
        %6048 = vmatprep.mubr.f32.mxu0 0.0
        %6049 = vmatmul.mubr.f32.gmra.mrb[0].mxu0 %v5916
        %v6050 = vpop.f32.mrb[0].mxu0
        %v6051 = vadd.f32 0.0, %v6050
        %v6052 = vpop.f32.mrb[0].mxu0
        %6053 = vmatprep.mubr.f32.mxu0 0.0
        %6054 = vmatmul.mubr.f32.gmra.mrb[0].mxu0 %v5918
        %v6055 = vpop.f32.mrb[0].mxu0
        %v6056 = vadd.f32 0.0, %v6055
        %v6057 = vpop.f32.mrb[0].mxu0
        %6058 = vmatprep.mubr.f32.mxu0 0.0
        %6059 = vmatmul.mubr.f32.gmra.mrb[0].mxu0 %v5920
        %v6060 = vpop.f32.mrb[0].mxu0
        %v6061 = vadd.f32 0.0, %v6060
        %v6062 = vpop.f32.mrb[0].mxu0
        %6063 = vmatprep.mubr.f32.mxu0 0.0
        %6064 = vmatmul.mubr.f32.gmra.mrb[0].mxu0 %v5922
        %v6065 = vpop.f32.mrb[0].mxu0
        %v6066 = vadd.f32 0.0, %v6065
        %v6067 = vpop.f32.mrb[0].mxu0
        %6068 = vdwg.mxu0
        %v6069 = vadd.f32 %v5887, %v5991
        %v6070 = vadd.f32 %v5888, %v5996
        %v6071 = vadd.f32 %v5889, %v6001
        %v6072 = vadd.f32 %v5890, %v6006
        %v6073 = vadd.f32 %v5891, %v6011
        %v6074 = vadd.f32 %v5892, %v6016
        %v6075 = vadd.f32 %v5893, %v6021
        %v6076 = vadd.f32 %v5894, %v6026
        %v6077 = vadd.f32 %v5895, %v6031
        %v6078 = vadd.f32 %v5896, %v6036
        %v6079 = vadd.f32 %v5897, %v6041
        %v6080 = vadd.f32 %v5898, %v6046
        %v6081 = vadd.f32 %v5899, %v6051
        %v6082 = vadd.f32 %v5900, %v6056
        %v6083 = vadd.f32 %v5901, %v6061
        %v6084 = vadd.f32 %v5902, %v6066
        %v6087 = vrot.slane %v341, 4
        %v6088 = vsel %vm637, %v1735, %v6087
        %v6089 = vrot.slane %v345, 4
        %v6090 = vsel %vm637, %v1740, %v6089
        %v6091 = vrot.slane %v347, 4
        %v6092 = vrot.slane %v348, 4
        %v6093 = vsel %vm637, %v6091, %v6092
        %v6094 = vrot.slane %v349, 4
        %v6095 = vsel %vm637, %v6092, %v6094
        %v6096 = vrot.slane %v351, 4
        %v6097 = vrot.slane %v352, 4
        %v6098 = vsel %vm637, %v6096, %v6097
        %v6099 = vrot.slane %v353, 4
        %v6100 = vsel %vm637, %v6097, %v6099
        %v6101 = vrot.slane %v355, 4
        %v6102 = vrot.slane %v356, 4
        %v6103 = vsel %vm637, %v6101, %v6102
        %v6104 = vrot.slane %v357, 4
        %v6105 = vsel %vm637, %v6102, %v6104
        %v6106 = vrot.slane %v359, 4
        %v6107 = vrot.slane %v360, 4
        %v6108 = vsel %vm637, %v6106, %v6107
        %v6109 = vrot.slane %v361, 4
        %v6110 = vsel %vm637, %v6107, %v6109
        %v6111 = vld [vmem:[%s2 + $0xd0] sm:$0xff]
        %v6112 = vsel %vm433, %v6088, 0
        %v6114 = vsel %vm433, %v6090, 0
        %v6116 = vsel %vm433, %v6093, 0
        %v6118 = vsel %vm433, %v6095, 0
        %v6120 = vsel %vm433, %v6098, 0
        %v6122 = vsel %vm433, %v6100, 0
        %v6124 = vsel %vm433, %v6103, 0
        %v6126 = vsel %vm433, %v6105, 0
        %v6128 = vsel %vm433, %v6108, 0
        %v6130 = vsel %vm433, %v6110, 0
        %6132 = vmatprep.subr.mxu0 0.0
        %6133 = vmatpush1.msra.mxu0 %v6111
        %6134 = vmatprep.subr.mxu0 0.0
        %6135 = vmatpush1.msra.mxu0 0.0
        %6136 = vmatprep.subr.mxu0 0.0
        %6137 = vmatpush1.msra.mxu0 0.0
        %6138 = vmatprep.subr.mxu0 0.0
        %6139 = vmatpush1.msra.mxu0 0.0
        %6140 = vmatprep.subr.mxu0 0.0
        %6141 = vmatpush1.msra.mxu0 0.0
        %6142 = vmatprep.subr.mxu0 0.0
        %6143 = vmatpush1.msra.mxu0 0.0
        %6144 = vmatprep.subr.mxu0 0.0
        %6145 = vmatpush1.msra.mxu0 0.0
        %6146 = vmatprep.subr.mxu0 0.0
        %6147 = vmatpush1.msra.mxu0 0.0
        %6148 = vmatprep.subr.mxu0 0.0
        %6149 = vmatpush1.msra.mxu0 0.0
        %6150 = vmatprep.subr.mxu0 0.0
        %6151 = vmatpush1.msra.mxu0 0.0
        %6152 = vmatprep.subr.mxu0 0.0
        %6153 = vmatpush1.msra.mxu0 0.0
        %6154 = vmatprep.subr.mxu0 0.0
        %6155 = vmatpush1.msra.mxu0 0.0
        %6156 = vmatprep.subr.mxu0 0.0
        %6157 = vmatpush1.msra.mxu0 0.0
        %6158 = vmatprep.subr.mxu0 0.0
        %6159 = vmatpush1.msra.mxu0 0.0
        %6160 = vmatprep.subr.mxu0 0.0
        %6161 = vmatpush1.msra.mxu0 0.0
        %6162 = vmatprep.subr.mxu0 0.0
        %6163 = vmatpush1.msra.mxu0 0.0
        %6164 = vmatprep.subr.mxu0 0.0
        %6165 = vmatpush1.msra.mxu0 0.0
        %6166 = vmatprep.subr.mxu0 0.0
        %6167 = vmatpush1.msra.mxu0 0.0
        %6168 = vmatprep.subr.mxu0 0.0
        %6169 = vmatpush1.msra.mxu0 0.0
        %6170 = vmatprep.subr.mxu0 0.0
        %6171 = vmatpush1.msra.mxu0 0.0
        %6172 = vmatprep.subr.mxu0 0.0
        %6173 = vmatpush1.msra.mxu0 0.0
        %6174 = vmatprep.subr.mxu0 0.0
        %6175 = vmatpush1.msra.mxu0 0.0
        %6176 = vmatprep.subr.mxu0 0.0
        %6177 = vmatpush1.msra.mxu0 0.0
        %6178 = vmatprep.subr.mxu0 0.0
        %6179 = vmatpush1.msra.mxu0 0.0
        %6180 = vmatprep.subr.mxu0 0.0
        %6181 = vmatpush1.msra.mxu0 0.0
        %6182 = vmatprep.subr.mxu0 0.0
        %6183 = vmatpush1.msra.mxu0 0.0
        %6184 = vmatprep.subr.mxu0 0.0
        %6185 = vmatpush1.msra.mxu0 0.0
        %6186 = vmatprep.subr.mxu0 0.0
        %6187 = vmatpush1.msra.mxu0 0.0
        %6188 = vmatprep.subr.mxu0 0.0
        %6189 = vmatpush1.msra.mxu0 0.0
        %6190 = vmatprep.subr.mxu0 0.0
        %6191 = vmatpush1.msra.mxu0 0.0
        %6192 = vmatprep.subr.mxu0 0.0
        %6193 = vmatpush1.msra.mxu0 0.0
        %6194 = vmatprep.subr.mxu0 0.0
        %6195 = vmatpush1.msra.mxu0 0.0
        %6196 = vmatprep.mubr.f32.mxu0 0.0
        %6197 = vmatmul.mubr.f32.gmra.mrb[0].mxu0 %v1227
        %v6198 = vpop.f32.mrb[0].mxu0
        %v6199 = vadd.f32 0.0, %v6198
        %v6200 = vpop.f32.mrb[0].mxu0
        %6201 = vmatprep.mubr.f32.mxu0 0.0
        %6202 = vmatmul.mubr.f32.gmra.mrb[0].mxu0 %v5552
        %v6203 = vpop.f32.mrb[0].mxu0
        %v6204 = vadd.f32 0.0, %v6203
        %v6205 = vpop.f32.mrb[0].mxu0
        %6206 = vmatprep.mubr.f32.mxu0 0.0
        %6207 = vmatmul.mubr.f32.gmra.mrb[0].mxu0 %v1231
        %v6208 = vpop.f32.mrb[0].mxu0
        %v6209 = vadd.f32 0.0, %v6208
        %v6210 = vpop.f32.mrb[0].mxu0
        %6211 = vmatprep.mubr.f32.mxu0 0.0
        %6212 = vmatmul.mubr.f32.gmra.mrb[0].mxu0 %v5554
        %v6213 = vpop.f32.mrb[0].mxu0
        %v6214 = vadd.f32 0.0, %v6213
        %v6215 = vpop.f32.mrb[0].mxu0
        %6216 = vmatprep.mubr.f32.mxu0 0.0
        %6217 = vmatmul.mubr.f32.gmra.mrb[0].mxu0 %v1745
        %v6218 = vpop.f32.mrb[0].mxu0
        %v6219 = vadd.f32 0.0, %v6218
        %v6220 = vpop.f32.mrb[0].mxu0
        %6221 = vmatprep.mubr.f32.mxu0 0.0
        %6222 = vmatmul.mubr.f32.gmra.mrb[0].mxu0 %v6112
        %v6223 = vpop.f32.mrb[0].mxu0
        %v6224 = vadd.f32 0.0, %v6223
        %v6225 = vpop.f32.mrb[0].mxu0
        %6226 = vmatprep.mubr.f32.mxu0 0.0
        %6227 = vmatmul.mubr.f32.gmra.mrb[0].mxu0 %v1749
        %v6228 = vpop.f32.mrb[0].mxu0
        %v6229 = vadd.f32 0.0, %v6228
        %v6230 = vpop.f32.mrb[0].mxu0
        %6231 = vmatprep.mubr.f32.mxu0 0.0
        %6232 = vmatmul.mubr.f32.gmra.mrb[0].mxu0 %v6114
        %v6233 = vpop.f32.mrb[0].mxu0
        %v6234 = vadd.f32 0.0, %v6233
        %v6235 = vpop.f32.mrb[0].mxu0
        %6236 = vmatprep.mubr.f32.mxu0 0.0
        %6237 = vmatmul.mubr.f32.gmra.mrb[0].mxu0 %v6116
        %v6238 = vpop.f32.mrb[0].mxu0
        %v6239 = vadd.f32 0.0, %v6238
        %v6240 = vpop.f32.mrb[0].mxu0
        %6241 = vmatprep.mubr.f32.mxu0 0.0
        %6242 = vmatmul.mubr.f32.gmra.mrb[0].mxu0 %v6118
        %v6243 = vpop.f32.mrb[0].mxu0
        %v6244 = vadd.f32 0.0, %v6243
        %v6245 = vpop.f32.mrb[0].mxu0
        %6246 = vmatprep.mubr.f32.mxu0 0.0
        %6247 = vmatmul.mubr.f32.gmra.mrb[0].mxu0 %v6120
        %v6248 = vpop.f32.mrb[0].mxu0
        %v6249 = vadd.f32 0.0, %v6248
        %v6250 = vpop.f32.mrb[0].mxu0
        %6251 = vmatprep.mubr.f32.mxu0 0.0
        %6252 = vmatmul.mubr.f32.gmra.mrb[0].mxu0 %v6122
        %v6253 = vpop.f32.mrb[0].mxu0
        %v6254 = vadd.f32 0.0, %v6253
        %v6255 = vpop.f32.mrb[0].mxu0
        %6256 = vmatprep.mubr.f32.mxu0 0.0
        %6257 = vmatmul.mubr.f32.gmra.mrb[0].mxu0 %v6124
        %v6258 = vpop.f32.mrb[0].mxu0
        %v6259 = vadd.f32 0.0, %v6258
        %v6260 = vpop.f32.mrb[0].mxu0
        %6261 = vmatprep.mubr.f32.mxu0 0.0
        %6262 = vmatmul.mubr.f32.gmra.mrb[0].mxu0 %v6126
        %v6263 = vpop.f32.mrb[0].mxu0
        %v6264 = vadd.f32 0.0, %v6263
        %v6265 = vpop.f32.mrb[0].mxu0
        %6266 = vmatprep.mubr.f32.mxu0 0.0
        %6267 = vmatmul.mubr.f32.gmra.mrb[0].mxu0 %v6128
        %v6268 = vpop.f32.mrb[0].mxu0
        %v6269 = vadd.f32 0.0, %v6268
        %v6270 = vpop.f32.mrb[0].mxu0
        %6271 = vmatprep.mubr.f32.mxu0 0.0
        %6272 = vmatmul.mubr.f32.gmra.mrb[0].mxu0 %v6130
        %v6273 = vpop.f32.mrb[0].mxu0
        %v6274 = vadd.f32 0.0, %v6273
        %v6275 = vpop.f32.mrb[0].mxu0
        %6276 = vdwg.mxu0
        %v6277 = vadd.f32 %v6069, %v6199
        %v6278 = vadd.f32 %v6070, %v6204
        %v6279 = vadd.f32 %v6071, %v6209
        %v6280 = vadd.f32 %v6072, %v6214
        %v6281 = vadd.f32 %v6073, %v6219
        %v6282 = vadd.f32 %v6074, %v6224
        %v6283 = vadd.f32 %v6075, %v6229
        %v6284 = vadd.f32 %v6076, %v6234
        %v6285 = vadd.f32 %v6077, %v6239
        %v6286 = vadd.f32 %v6078, %v6244
        %v6287 = vadd.f32 %v6079, %v6249
        %v6288 = vadd.f32 %v6080, %v6254
        %v6289 = vadd.f32 %v6081, %v6259
        %v6290 = vadd.f32 %v6082, %v6264
        %v6291 = vadd.f32 %v6083, %v6269
        %v6292 = vadd.f32 %v6084, %v6274
        %v6293 = vld [vmem:[%s3 + $0x3] sm:$0x1]
        %v6294 = vlaneseq
        %v6295 = vshrl.u32 %v6294, 7
        %v6296 = vsub.s32 0, %v6295
        %v6297 = vrot.slane %v6293, %v6296
        %v6298 = vadd.f32 %v6277, %v6297
        %v6299 = vadd.f32 %v6278, %v6297
        %v6300 = vadd.f32 %v6279, %v6297
        %v6301 = vadd.f32 %v6280, %v6297
        %v6302 = vadd.f32 %v6281, %v6297
        %v6303 = vadd.f32 %v6282, %v6297
        %v6304 = vadd.f32 %v6283, %v6297
        %v6305 = vadd.f32 %v6284, %v6297
        %v6306 = vadd.f32 %v6285, %v6297
        %v6307 = vadd.f32 %v6286, %v6297
        %v6308 = vadd.f32 %v6287, %v6297
        %v6309 = vadd.f32 %v6288, %v6297
        %v6310 = vadd.f32 %v6289, %v6297
        %v6311 = vadd.f32 %v6290, %v6297
        %v6312 = vadd.f32 %v6291, %v6297
        %v6313 = vadd.f32 %v6292, %v6297
        %v6314 = vmax.f32 %v6298, 0.0
        %v6315 = vmax.f32 %v6299, 0.0
        %v6316 = vmax.f32 %v6300, 0.0
        %v6317 = vmax.f32 %v6301, 0.0
        %v6318 = vmax.f32 %v6302, 0.0
        %v6319 = vmax.f32 %v6303, 0.0
        %v6320 = vmax.f32 %v6304, 0.0
        %v6321 = vmax.f32 %v6305, 0.0
        %v6322 = vmax.f32 %v6306, 0.0
        %v6323 = vmax.f32 %v6307, 0.0
        %v6324 = vmax.f32 %v6308, 0.0
        %v6325 = vmax.f32 %v6309, 0.0
        %v6326 = vmax.f32 %v6310, 0.0
        %v6327 = vmax.f32 %v6311, 0.0
        %v6328 = vmax.f32 %v6312, 0.0
        %v6329 = vmax.f32 %v6313, 0.0
        %v6330 = vld [vmem:[%s4 + $0x60] sm:$0xff]
        %v6331 = vld [vmem:[%s4 + $0x68] sm:$0xff]
        %v6332 = vld [vmem:[%s4 + $0x70] sm:$0xff]
        %v6333 = vld [vmem:[%s4 + $0x78] sm:$0xff]
        %v6335 = vsel %vm2303, %v6314, 0
        %v6338 = vsel %vm2303, %v6315, 0
        %v6341 = vsel %vm2303, %v6316, 0
        %v6344 = vsel %vm2303, %v6317, 0
        %v6347 = vsel %vm2303, %v6318, 0
        %v6350 = vsel %vm2303, %v6319, 0
        %v6353 = vsel %vm2303, %v6320, 0
        %v6356 = vsel %vm2303, %v6321, 0
        %v6359 = vsel %vm2303, %v6322, 0
        %v6362 = vsel %vm2303, %v6323, 0
        %v6365 = vsel %vm2303, %v6324, 0
        %v6368 = vsel %vm2303, %v6325, 0
        %v6371 = vsel %vm2303, %v6326, 0
        %v6374 = vsel %vm2303, %v6327, 0
        %v6377 = vsel %vm2303, %v6328, 0
        %v6380 = vsel %vm2303, %v6329, 0
        %6382 = vmatprep.subr.mxu0 0.0
        %6383 = vmatpush1.msra.mxu0 %v6330
        %6384 = vmatprep.subr.mxu0 0.0
        %6385 = vmatpush1.msra.mxu0 %v6331
        %6386 = vmatprep.subr.mxu0 0.0
        %6387 = vmatpush1.msra.mxu0 %v6332
        %6388 = vmatprep.subr.mxu0 0.0
        %6389 = vmatpush1.msra.mxu0 %v6333
        %6390 = vmatprep.subr.mxu0 0.0
        %6391 = vmatpush1.msra.mxu0 0.0
        %6392 = vmatprep.subr.mxu0 0.0
        %6393 = vmatpush1.msra.mxu0 0.0
        %6394 = vmatprep.subr.mxu0 0.0
        %6395 = vmatpush1.msra.mxu0 0.0
        %6396 = vmatprep.subr.mxu0 0.0
        %6397 = vmatpush1.msra.mxu0 0.0
        %6398 = vmatprep.subr.mxu0 0.0
        %6399 = vmatpush1.msra.mxu0 0.0
        %6400 = vmatprep.subr.mxu0 0.0
        %6401 = vmatpush1.msra.mxu0 0.0
        %6402 = vmatprep.subr.mxu0 0.0
        %6403 = vmatpush1.msra.mxu0 0.0
        %6404 = vmatprep.subr.mxu0 0.0
        %6405 = vmatpush1.msra.mxu0 0.0
        %6406 = vmatprep.subr.mxu0 0.0
        %6407 = vmatpush1.msra.mxu0 0.0
        %6408 = vmatprep.subr.mxu0 0.0
        %6409 = vmatpush1.msra.mxu0 0.0
        %6410 = vmatprep.subr.mxu0 0.0
        %6411 = vmatpush1.msra.mxu0 0.0
        %6412 = vmatprep.subr.mxu0 0.0
        %6413 = vmatpush1.msra.mxu0 0.0
        %6414 = vmatprep.subr.mxu0 0.0
        %6415 = vmatpush1.msra.mxu0 0.0
        %6416 = vmatprep.subr.mxu0 0.0
        %6417 = vmatpush1.msra.mxu0 0.0
        %6418 = vmatprep.subr.mxu0 0.0
        %6419 = vmatpush1.msra.mxu0 0.0
        %6420 = vmatprep.subr.mxu0 0.0
        %6421 = vmatpush1.msra.mxu0 0.0
        %6422 = vmatprep.subr.mxu0 0.0
        %6423 = vmatpush1.msra.mxu0 0.0
        %6424 = vmatprep.subr.mxu0 0.0
        %6425 = vmatpush1.msra.mxu0 0.0
        %6426 = vmatprep.subr.mxu0 0.0
        %6427 = vmatpush1.msra.mxu0 0.0
        %6428 = vmatprep.subr.mxu0 0.0
        %6429 = vmatpush1.msra.mxu0 0.0
        %6430 = vmatprep.subr.mxu0 0.0
        %6431 = vmatpush1.msra.mxu0 0.0
        %6432 = vmatprep.subr.mxu0 0.0
        %6433 = vmatpush1.msra.mxu0 0.0
        %6434 = vmatprep.subr.mxu0 0.0
        %6435 = vmatpush1.msra.mxu0 0.0
        %6436 = vmatprep.subr.mxu0 0.0
        %6437 = vmatpush1.msra.mxu0 0.0
        %6438 = vmatprep.subr.mxu0 0.0
        %6439 = vmatpush1.msra.mxu0 0.0
        %6440 = vmatprep.subr.mxu0 0.0
        %6441 = vmatpush1.msra.mxu0 0.0
        %6442 = vmatprep.subr.mxu0 0.0
        %6443 = vmatpush1.msra.mxu0 0.0
        %6444 = vmatprep.subr.mxu0 0.0
        %6445 = vmatpush1.msra.mxu0 0.0
        %6446 = vmatprep.mubr.f32.mxu0 0.0
        %6447 = vmatmul.mubr.f32.gmra.mrb[0].mxu0 %v6335
        %v6448 = vpop.f32.mrb[0].mxu0
        %v6449 = vadd.f32 0.0, %v6448
        %v6450 = vpop.f32.mrb[0].mxu0
        %6451 = vmatprep.mubr.f32.mxu0 0.0
        %6452 = vmatmul.mubr.f32.gmra.mrb[0].mxu0 %v6338
        %v6453 = vpop.f32.mrb[0].mxu0
        %v6454 = vadd.f32 0.0, %v6453
        %v6455 = vpop.f32.mrb[0].mxu0
        %6456 = vmatprep.mubr.f32.mxu0 0.0
        %6457 = vmatmul.mubr.f32.gmra.mrb[0].mxu0 %v6341
        %v6458 = vpop.f32.mrb[0].mxu0
        %v6459 = vadd.f32 0.0, %v6458
        %v6460 = vpop.f32.mrb[0].mxu0
        %6461 = vmatprep.mubr.f32.mxu0 0.0
        %6462 = vmatmul.mubr.f32.gmra.mrb[0].mxu0 %v6344
        %v6463 = vpop.f32.mrb[0].mxu0
        %v6464 = vadd.f32 0.0, %v6463
        %v6465 = vpop.f32.mrb[0].mxu0
        %6466 = vmatprep.mubr.f32.mxu0 0.0
        %6467 = vmatmul.mubr.f32.gmra.mrb[0].mxu0 %v6347
        %v6468 = vpop.f32.mrb[0].mxu0
        %v6469 = vadd.f32 0.0, %v6468
        %v6470 = vpop.f32.mrb[0].mxu0
        %6471 = vmatprep.mubr.f32.mxu0 0.0
        %6472 = vmatmul.mubr.f32.gmra.mrb[0].mxu0 %v6350
        %v6473 = vpop.f32.mrb[0].mxu0
        %v6474 = vadd.f32 0.0, %v6473
        %v6475 = vpop.f32.mrb[0].mxu0
        %6476 = vmatprep.mubr.f32.mxu0 0.0
        %6477 = vmatmul.mubr.f32.gmra.mrb[0].mxu0 %v6353
        %v6478 = vpop.f32.mrb[0].mxu0
        %v6479 = vadd.f32 0.0, %v6478
        %v6480 = vpop.f32.mrb[0].mxu0
        %6481 = vmatprep.mubr.f32.mxu0 0.0
        %6482 = vmatmul.mubr.f32.gmra.mrb[0].mxu0 %v6356
        %v6483 = vpop.f32.mrb[0].mxu0
        %v6484 = vadd.f32 0.0, %v6483
        %v6485 = vpop.f32.mrb[0].mxu0
        %6486 = vmatprep.mubr.f32.mxu0 0.0
        %6487 = vmatmul.mubr.f32.gmra.mrb[0].mxu0 %v6359
        %v6488 = vpop.f32.mrb[0].mxu0
        %v6489 = vadd.f32 0.0, %v6488
        %v6490 = vpop.f32.mrb[0].mxu0
        %6491 = vmatprep.mubr.f32.mxu0 0.0
        %6492 = vmatmul.mubr.f32.gmra.mrb[0].mxu0 %v6362
        %v6493 = vpop.f32.mrb[0].mxu0
        %v6494 = vadd.f32 0.0, %v6493
        %v6495 = vpop.f32.mrb[0].mxu0
        %6496 = vmatprep.mubr.f32.mxu0 0.0
        %6497 = vmatmul.mubr.f32.gmra.mrb[0].mxu0 %v6365
        %v6498 = vpop.f32.mrb[0].mxu0
        %v6499 = vadd.f32 0.0, %v6498
        %v6500 = vpop.f32.mrb[0].mxu0
        %6501 = vmatprep.mubr.f32.mxu0 0.0
        %6502 = vmatmul.mubr.f32.gmra.mrb[0].mxu0 %v6368
        %v6503 = vpop.f32.mrb[0].mxu0
        %v6504 = vadd.f32 0.0, %v6503
        %v6505 = vpop.f32.mrb[0].mxu0
        %6506 = vmatprep.mubr.f32.mxu0 0.0
        %6507 = vmatmul.mubr.f32.gmra.mrb[0].mxu0 %v6371
        %v6508 = vpop.f32.mrb[0].mxu0
        %v6509 = vadd.f32 0.0, %v6508
        %v6510 = vpop.f32.mrb[0].mxu0
        %6511 = vmatprep.mubr.f32.mxu0 0.0
        %6512 = vmatmul.mubr.f32.gmra.mrb[0].mxu0 %v6374
        %v6513 = vpop.f32.mrb[0].mxu0
        %v6514 = vadd.f32 0.0, %v6513
        %v6515 = vpop.f32.mrb[0].mxu0
        %6516 = vmatprep.mubr.f32.mxu0 0.0
        %6517 = vmatmul.mubr.f32.gmra.mrb[0].mxu0 %v6377
        %v6518 = vpop.f32.mrb[0].mxu0
        %v6519 = vadd.f32 0.0, %v6518
        %v6520 = vpop.f32.mrb[0].mxu0
        %6521 = vmatprep.mubr.f32.mxu0 0.0
        %6522 = vmatmul.mubr.f32.gmra.mrb[0].mxu0 %v6380
        %v6523 = vpop.f32.mrb[0].mxu0
        %v6524 = vadd.f32 0.0, %v6523
        %v6525 = vpop.f32.mrb[0].mxu0
        %6526 = vdwg.mxu0
        %v6527 = vadd.f32 %v4623, %v6449
        %v6528 = vadd.f32 %v4624, %v6454
        %v6529 = vadd.f32 %v4625, %v6459
        %v6530 = vadd.f32 %v4626, %v6464
        %v6531 = vadd.f32 %v4627, %v6469
        %v6532 = vadd.f32 %v4628, %v6474
        %v6533 = vadd.f32 %v4629, %v6479
        %v6534 = vadd.f32 %v4630, %v6484
        %v6535 = vadd.f32 %v4631, %v6489
        %v6536 = vadd.f32 %v4632, %v6494
        %v6537 = vadd.f32 %v4633, %v6499
        %v6538 = vadd.f32 %v4634, %v6504
        %v6539 = vadd.f32 %v4635, %v6509
        %v6540 = vadd.f32 %v4636, %v6514
        %v6541 = vadd.f32 %v4637, %v6519
        %v6542 = vadd.f32 %v4638, %v6524
        %v6543 = vld [vmem:[%s277] sm:$0x1]
        %v6545 = vlaneseq
        %v6546 = vshrl.u32 %v6545, 7
        %v6547 = vsub.s32 0, %v6546
        %v6548 = vrot.slane %v6543, %v6547
        %v6550 = vadd.f32 %v6527, %v6548
        %v6551 = vadd.f32 %v6528, %v6548
        %v6552 = vadd.f32 %v6529, %v6548
        %v6553 = vadd.f32 %v6530, %v6548
        %v6554 = vadd.f32 %v6531, %v6548
        %v6555 = vadd.f32 %v6532, %v6548
        %v6556 = vadd.f32 %v6533, %v6548
        %v6557 = vadd.f32 %v6534, %v6548
        %v6558 = vadd.f32 %v6535, %v6548
        %v6559 = vadd.f32 %v6536, %v6548
        %v6560 = vadd.f32 %v6537, %v6548
        %v6561 = vadd.f32 %v6538, %v6548
        %v6562 = vadd.f32 %v6539, %v6548
        %v6563 = vadd.f32 %v6540, %v6548
        %v6564 = vadd.f32 %v6541, %v6548
        %v6565 = vadd.f32 %v6542, %v6548
        %v6566 = vmax.f32 %v6550, 0.0
        %v6567 = vmax.f32 %v6551, 0.0
        %v6568 = vmax.f32 %v6552, 0.0
        %v6569 = vmax.f32 %v6553, 0.0
        %v6570 = vmax.f32 %v6554, 0.0
        %v6571 = vmax.f32 %v6555, 0.0
        %v6572 = vmax.f32 %v6556, 0.0
        %v6573 = vmax.f32 %v6557, 0.0
        %v6574 = vmax.f32 %v6558, 0.0
        %v6575 = vmax.f32 %v6559, 0.0
        %v6576 = vmax.f32 %v6560, 0.0
        %v6577 = vmax.f32 %v6561, 0.0
        %v6578 = vmax.f32 %v6562, 0.0
        %v6579 = vmax.f32 %v6563, 0.0
        %v6580 = vmax.f32 %v6564, 0.0
        %v6581 = vmax.f32 %v6565, 0.0
        %6582 = vst.msk [vmem:[%s269] sm:$0xff] %vm2303, %v6566
        %6583 = vst.msk [vmem:[%s269 + $0x8] sm:$0xff] %vm2303, %v6567
        %6584 = vst.msk [vmem:[%s269 + $0x10] sm:$0xff] %vm2303, %v6568
        %6585 = vst.msk [vmem:[%s269 + $0x18] sm:$0xff] %vm2303, %v6569
        %6586 = vst.msk [vmem:[%s269 + $0x20] sm:$0xff] %vm2303, %v6570
        %6587 = vst.msk [vmem:[%s269 + $0x28] sm:$0xff] %vm2303, %v6571
        %6588 = vst.msk [vmem:[%s269 + $0x30] sm:$0xff] %vm2303, %v6572
        %6589 = vst.msk [vmem:[%s269 + $0x38] sm:$0xff] %vm2303, %v6573
        %6590 = vst.msk [vmem:[%s269 + $0x40] sm:$0xff] %vm2303, %v6574
        %6591 = vst.msk [vmem:[%s269 + $0x48] sm:$0xff] %vm2303, %v6575
        %6592 = vst.msk [vmem:[%s269 + $0x50] sm:$0xff] %vm2303, %v6576
        %6593 = vst.msk [vmem:[%s269 + $0x58] sm:$0xff] %vm2303, %v6577
        %6594 = vst.msk [vmem:[%s269 + $0x60] sm:$0xff] %vm2303, %v6578
        %6595 = vst.msk [vmem:[%s269 + $0x68] sm:$0xff] %vm2303, %v6579
        %6596 = vst.msk [vmem:[%s269 + $0x70] sm:$0xff] %vm2303, %v6580
        %6597 = vst.msk [vmem:[%s269 + $0x78] sm:$0xff] %vm2303, %v6581
        %s6598 = sand.u32 %s178, 1
        %s6599 = scalar_lea.sflag [#allocation3], %s6598
        %s6600 = sand.u32 %s178, 1
        %s6601 = smul.addr %s6600, 128
        %s6602 = scalar_lea.vmem [#allocation2], %s6601
        // Predicated region
        $region45: #{tpu_custom_call.1} parent=43 // pred_check
          %p6603 = pneg %p188
        $region46: #{tpu_custom_call.1} parent=43 // pred_check_branch
          %6605 = sbr.rel (%p6603) target = $region48
        $region47: #{tpu_custom_call.1} parent=43 // pred_region
          %s6606 = smul.u32 8, %s25
          %s6608 = ssub.s32 2048, 2048
          %6609 = vsyncadd %s6599, %s6608
          %s6610 = smul.addr %s6606, 2
          %s6611 = smul.addr %s24, 32
          %s6612 = sadd.s32 %s6610, %s6611
          %s6613 = smul.addr %s6612, 128
          %s6614 = scalar_lea.hbm %s6, %s6613
          %s6615 = sshll.u32 %s6602, 4
          %s6616 = int_to_ptr.vmem [resolvable:$true] %s6615
          %6621 = dma.vmem_to_hbm [thread:$0]  %s6616, 2048, %s6614, %s6599, 128, 128, 8
        $region48: #{tpu_custom_call.1} parent=43 // pred_fallthru
          _
      $region44: #{tpu_custom_call.1} parent=5 // pred_fallthru
        _
      %p6622 = scmp.le.s32.totalorder 2, %s15
      // Predicated region
      $region49: #{tpu_custom_call.1} parent=5 // pred_check
        %p6623 = pneg %p6622
      $region50: #{tpu_custom_call.1} parent=5 // pred_check_branch
        %6625 = sbr.rel (%p6623) target = $region52
      $region51: #{tpu_custom_call.1} parent=5 // pred_region
        %s6626 = ssub.s32 %s15, 2
        // Predicated region
        $region53: #{tpu_custom_call.1} parent=51 // pred_check
          %p6627 = pneg %p194
        $region54: #{tpu_custom_call.1} parent=51 // pred_check_branch
          %6629 = sbr.rel (%p6627) target = $region56
        $region55: #{tpu_custom_call.1} parent=51 // pred_region
          %s6630 = sand.u32 %s179, 1
          %s6631 = scalar_lea.sflag [#allocation3], %s6630
          %s6632 = sand.u32 %s179, 1
          %s6633 = smul.addr %s6632, 128
          %s6634 = scalar_lea.vmem [#allocation2], %s6633
          %6635 = dma.done %s6631, 2048
        $region56: #{tpu_custom_call.1} parent=51 // pred_fallthru
          _
      $region52: #{tpu_custom_call.1} parent=5 // pred_fallthru
        _
    $region6: #{tpu_custom_call.1} parent=1 // loop_footer
      %s19 = sadd.s32 1, %s15
    $region7: #{tpu_custom_call.1} parent=1 // loop_footer_branch
      %14 = sbr.rel target = $region3
    $region8: #{tpu_custom_call.1} parent=1 // loop_exit
      _
    %6636 = vsyncpa [#allocation3], 1
    %s6637 = scalar_lea.sflag [#allocation3], 1
    %6638 = vsyncpa %s6637, 1

</llo_original>
